<compile_context>
chip_gen: v6e
topology: v6e:2x2x1
jax: 0.10.0
libtpu: 0.0.40
codegen_flags: <defaults>
</compile_context>

<pallas_src>
import functools
import math

import jax
import jax.numpy as jnp
from jax import lax
from jax.experimental import pallas as pl
from jax.experimental.pallas import tpu as pltpu


_PAR = pltpu.CompilerParams(dimension_semantics=("parallel",))


# ----------------------------- Pallas kernels ------------------------------ #

def _fused_conv_kernel(x_ref, b1m_ref, s1e_ref, s1o_ref, c1_ref, bias1_ref,
                       b2m_ref, s2e_ref, s2o_ref, c2_ref, bias2_ref, o_ref, *, ib):
    """conv1+pool+ReLU+conv2+pool+ReLU for IB images, all activations in VMEM.

    x_ref:    [IB, 64, 64]            f32 input images (channel squeezed)
    b1m_ref:  [5, 64, 600]   bf16     banded conv1 weights, lane = 10*x + c
    s1e/s1o:  [30, 60]       bf16     even/odd row selection (pool1 along y)
    c1_ref:   [590, 300]     bf16     lane compaction (pool1 along x)
    bias1:    [1, 300]       f32      conv1 bias broadcast over lanes
    b2m_ref:  [5, 300, 520]  bf16     banded conv2 weights, lane = 20*x + o
    s2e/s2o:  [13, 26]       bf16     even/odd row selection (pool2 along y)
    c2_ref:   [500, 260]     bf16     lane compaction (pool2 along x)
    bias2:    [1, 260]       f32      conv2 bias broadcast over lanes
    o_ref:    [IB, 13, 260]  bf16     pooled+ReLU conv2 output, lane = 20*x + o
    """
    f32 = jnp.float32
    bf16 = jnp.bfloat16

    for im in range(ib):
        xb = x_ref[im].astype(bf16)                                   # [64, 64]

        # ---- conv1: sum over 5 vertical taps of banded matmuls (K=64 each) ----
        r1 = jnp.dot(xb[0:60, :], b1m_ref[0], preferred_element_type=f32)
        for i in range(1, 5):
            r1 = r1 + jnp.dot(xb[i:i + 60, :], b1m_ref[i],
                              preferred_element_type=f32)
        r1 = r1.astype(bf16)                                          # [60, 600]

        # ---- 2x2 max pool: rows via bf16 selection matmuls, cols via lane-shift max
        p1 = jnp.maximum(
            jnp.dot(s1e_ref[...], r1, preferred_element_type=f32),
            jnp.dot(s1o_ref[...], r1, preferred_element_type=f32))    # [30, 600]
        m1 = jnp.maximum(p1[:, 0:590], p1[:, 10:600]).astype(bf16)    # [30, 590]
        # compaction + (hoisted) bias + ReLU -> dense lane = 10*x + c
        h1 = jnp.maximum(
            jnp.dot(m1, c1_ref[...], preferred_element_type=f32) + bias1_ref[...],
            0.0).astype(bf16)                                         # [30, 300]

        # ---- conv2: banded matmuls, K=300 per vertical tap ----
        # TODO(synk): nn.Dropout2d on the conv2 output is identity (eval mode).
        r2 = jnp.dot(h1[0:26, :], b2m_ref[0], preferred_element_type=f32)
        for i in range(1, 5):
            r2 = r2 + jnp.dot(h1[i:i + 26, :], b2m_ref[i],
                              preferred_element_type=f32)
        r2 = r2.astype(bf16)                                          # [26, 520]

        p2 = jnp.maximum(
            jnp.dot(s2e_ref[...], r2, preferred_element_type=f32),
            jnp.dot(s2o_ref[...], r2, preferred_element_type=f32))    # [13, 520]
        m2 = jnp.maximum(p2[:, 0:500], p2[:, 20:520]).astype(bf16)    # [13, 500]
        h2 = jnp.maximum(
            jnp.dot(m2, c2_ref[...], preferred_element_type=f32) + bias2_ref[...],
            0.0)                                                      # [13, 260]
        o_ref[im] = h2.astype(o_ref.dtype)


def _mlp_head_kernel(x_ref, w1_ref, b1_ref, w2_ref, b2_ref, o_ref):
    """Fused fc1 + ReLU + fc2 + log_softmax on a row-tile of the batch."""
    h = jnp.dot(x_ref[...], w1_ref[...], preferred_element_type=jnp.float32) + b1_ref[...]
    h = jnp.maximum(h, 0.0)
    # TODO(synk): F.dropout after fc1 is identity (eval-mode semantics only).
    z = jnp.dot(h.astype(w2_ref.dtype), w2_ref[...],
                preferred_element_type=jnp.float32) + b2_ref[...]
    z = z - jnp.max(z, axis=-1, keepdims=True)
    o_ref[...] = (z - jnp.log(jnp.sum(jnp.exp(z), axis=-1, keepdims=True))).astype(o_ref.dtype)


# ------------------------------ kernel wrappers ----------------------------- #

def fused_convs(x_sq, p):
    """x_sq: [B, 64, 64] f32. Returns bf16 [B, 13, 260] (flatten order y, x, c)."""
    B = x_sq.shape[0]
    if B >= 16:
        IB = 8
    elif B >= 4:
        IB = 2
    else:
        IB = 1
    Bp = ((B + IB - 1) // IB) * IB
    if Bp != B:
        x_sq = jnp.pad(x_sq, ((0, Bp - B), (0, 0), (0, 0)))

    kernel = functools.partial(_fused_conv_kernel, ib=IB)

    def wspec(shape):
        return pl.BlockSpec(shape, lambda bb, _s=len(shape): (0,) * _s)

    out = pl.pallas_call(
        kernel,
        grid=(Bp // IB,),
        in_specs=[
            pl.BlockSpec((IB, 64, 64), lambda bb: (bb, 0, 0)),
            wspec((5, 64, 600)),     # B1
            wspec((30, 60)),         # S1 even
            wspec((30, 60)),         # S1 odd
            wspec((590, 300)),       # C1
            wspec((1, 300)),         # bias1 (lane-broadcast)
            wspec((5, 300, 520)),    # B2
            wspec((13, 26)),         # S2 even
            wspec((13, 26)),         # S2 odd
            wspec((500, 260)),       # C2
            wspec((1, 260)),         # bias2 (lane-broadcast)
        ],
        out_specs=pl.BlockSpec((IB, 13, 260), lambda bb: (bb, 0, 0)),
        out_shape=jax.ShapeDtypeStruct((Bp, 13, 260), jnp.bfloat16),
        compiler_params=_PAR,
    )(x_sq, p["B1"], p["S1e"], p["S1o"], p["C1"], p["b1"],
      p["B2"], p["S2e"], p["S2o"], p["C2"], p["b2"])
    return out[:B]


def mlp_head(flat, fc1_w, fc1_b, fc2_w, fc2_b):
    """flat: [B, 3380] bf16. Returns f32 [B, 10] log-probs."""
    B, K = flat.shape
    N1 = fc1_w.shape[1]
    N2 = fc2_w.shape[1]
    # bf16 packs 16 rows/vreg -> BM multiple of 16; larger tiles amortize the
    # weight-stationary K=3380 matmul while keeping >=2 grid steps when B allows.
    if B > 512:
        BM = 256
    else:
        BM = max(16, 16 * ((B + 31) // 32))
    Bp = ((B + BM - 1) // BM) * BM
    xp = flat
    if Bp != B:
        xp = jnp.pad(xp, ((0, Bp - B), (0, 0)))
    out = pl.pallas_call(
        _mlp_head_kernel,
        grid=(Bp // BM,),
        in_specs=[
            pl.BlockSpec((BM, K), lambda i: (i, 0)),
            pl.BlockSpec((K, N1), lambda i: (0, 0)),
            pl.BlockSpec((1, N1), lambda i: (0, 0)),
            pl.BlockSpec((N1, N2), lambda i: (0, 0)),
            pl.BlockSpec((1, N2), lambda i: (0, 0)),
        ],
        out_specs=pl.BlockSpec((BM, N2), lambda i: (i, 0)),
        out_shape=jax.ShapeDtypeStruct((Bp, N2), jnp.float32),
        compiler_params=_PAR,
    )(xp, fc1_w, fc1_b, fc2_w, fc2_b)
    return out[:B]


# ------------------------------ forward pass -------------------------------- #

def cnn_mnist_forward(x_nchw, params):
    B = x_nchw.shape[0]
    x = x_nchw[:, 0, :, :]                         # squeeze C=1 -> [B, 64, 64], W in lanes
    h2 = fused_convs(x, params)                    # [B, 13, 260] bf16
    flat = h2.reshape(B, 13 * 260)                 # free row-major reshape -> [B, 3380]
    return mlp_head(flat, params["fc1_w"], params["fc1_b"],
                    params["fc2_w"], params["fc2_b"])


# ------------------------ parameters (PyTorch layout) ------------------------ #

def init_params_pt(key):
    ks = jax.random.split(key, 8)

    def uinit(k, shape, fan_in):
        bound = 1.0 / math.sqrt(fan_in)
        return jax.random.uniform(k, shape, jnp.float32, -bound, bound)

    return {
        "conv1_w": uinit(ks[0], (10, 1, 5, 5), 25),      # [Cout, Cin, kh, kw]
        "conv1_b": uinit(ks[1], (10,), 25),
        "conv2_w": uinit(ks[2], (20, 10, 5, 5), 250),
        "conv2_b": uinit(ks[3], (20,), 250),
        "fc1_w": uinit(ks[4], (50, 20 * 13 * 13), 3380),  # nn.Linear [out, in]
        "fc1_b": uinit(ks[5], (50,), 3380),
        "fc2_w": uinit(ks[6], (10, 50), 50),
        "fc2_b": uinit(ks[7], (10,), 50),
    }


def prepare_params(pt):
    """Precompute banded conv matrices, pooling selection/compaction matrices
    and MXU-ready (bf16) fc weights from PyTorch-layout params."""
    f32, bf16 = jnp.float32, jnp.bfloat16
    w1 = pt["conv1_w"]            # [10, 1, 5, 5]  (cout, cin=1, kh, kw)
    w2 = pt["conv2_w"]            # [20, 10, 5, 5] (cout, cin, kh, kw)

    # conv1 banded: B1[i, x_in, 10*xo + c] = w1[c, 0, i, x_in - xo] for 0<=x_in-xo<5
    x_in = jnp.arange(64)
    col1 = jnp.arange(600)
    xo, c1c = col1 // 10, col1 % 10
    j1 = x_in[:, None] - xo[None, :]                          # [64, 600]
    valid1 = (j1 >= 0) & (j1 < 5)
    j1c = jnp.clip(j1, 0, 4)
    b1_slabs = []
    for i in range(5):
        w1_i = w1[:, 0, i, :]                                 # [10, 5] -> [c, j]
        b1_slabs.append(jnp.where(valid1, w1_i[c1c[None, :], j1c], 0.0))
    B1 = jnp.stack(b1_slabs).astype(bf16)                     # [5, 64, 600]

    # conv2 banded: B2[i, 10*xin + c, 20*x2 + o] = w2[o, c, i, xin - x2]
    row2 = jnp.arange(300)
    xin, cc = row2 // 10, row2 % 10
    col2 = jnp.arange(520)
    x2, oo = col2 // 20, col2 % 20
    j2 = xin[:, None] - x2[None, :]                           # [300, 520]
    valid2 = (j2 >= 0) & (j2 < 5)
    j2c = jnp.clip(j2, 0, 4)
    b2_slabs = []
    for i in range(5):
        w2_i = w2[:, :, i, :]                                 # [20, 10, 5] -> [o, c, j]
        b2_slabs.append(jnp.where(valid2, w2_i[oo[None, :], cc[:, None], j2c], 0.0))
    B2 = jnp.stack(b2_slabs).astype(bf16)                     # [5, 300, 520]

    # even/odd row-selection matrices (exact 0/1 in bf16)
    def even_odd(n_out, n_in):
        r = jnp.arange(n_out)[:, None]
        q = jnp.arange(n_in)[None, :]
        return (q == 2 * r).astype(bf16), (q == 2 * r + 1).astype(bf16)

    S1e, S1o = even_odd(30, 60)
    S2e, S2o = even_odd(13, 26)

    # lane compaction matrices: C1[20*xp + c, 10*xp + c] = 1 ; C2[40*xq + o, 20*xq + o] = 1
    lin1 = jnp.arange(590)[:, None]
    lo1 = jnp.arange(300)[None, :]
    C1 = (lin1 == 20 * (lo1 // 10) + lo1 % 10).astype(bf16)   # [590, 300]
    lin2 = jnp.arange(500)[:, None]
    lo2 = jnp.arange(260)[None, :]
    C2 = (lin2 == 40 * (lo2 // 20) + lo2 % 20).astype(bf16)   # [500, 260]

    b1lane = jnp.tile(pt["conv1_b"], 30).reshape(1, 300).astype(f32)
    b2lane = jnp.tile(pt["conv2_b"], 13).reshape(1, 260).astype(f32)

    # fc1: PyTorch flattens (C,H,W); our flatten is (H,W,C) -> permute weight rows once.
    fc1_w = (pt["fc1_w"].T.reshape(20, 13, 13, 50)
             .transpose(1, 2, 0, 3).reshape(3380, 50).astype(bf16))
    fc2_w = pt["fc2_w"].T.astype(bf16)

    return {
        "B1": B1, "S1e": S1e, "S1o": S1o, "C1": C1, "b1": b1lane,
        "B2": B2, "S2e": S2e, "S2o": S2o, "C2": C2, "b2": b2lane,
        "fc1_w": fc1_w, "fc1_b": pt["fc1_b"].reshape(1, 50).astype(f32),
        "fc2_w": fc2_w, "fc2_b": pt["fc2_b"].reshape(1, 10).astype(f32),
    }


# ------------------------- pure-JAX reference (f32) -------------------------- #

def cnn_mnist_reference(x_nchw, pt):
    dn = ("NCHW", "OIHW", "NCHW")
    y = lax.conv_general_dilated(x_nchw, pt["conv1_w"], (1, 1), "VALID",
                                 dimension_numbers=dn) + pt["conv1_b"][None, :, None, None]
    y = jax.nn.relu(lax.reduce_window(y, -jnp.inf, lax.max, (1, 1, 2, 2), (1, 1, 2, 2), "VALID"))
    y = lax.conv_general_dilated(y, pt["conv2_w"], (1, 1), "VALID",
                                 dimension_numbers=dn) + pt["conv2_b"][None, :, None, None]
    y = jax.nn.relu(lax.reduce_window(y, -jnp.inf, lax.max, (1, 1, 2, 2), (1, 1, 2, 2), "VALID"))
    y = y.reshape(y.shape[0], -1)                                    # (C,H,W) flatten
    y = jax.nn.relu(y @ pt["fc1_w"].T + pt["fc1_b"])
    y = y @ pt["fc2_w"].T + pt["fc2_b"]
    return jax.nn.log_softmax(y, axis=1)


if __name__ == "__main__":
    key = jax.random.PRNGKey(0)
    pkey, xkey = jax.random.split(key)
    pt_params = init_params_pt(pkey)
    params = prepare_params(pt_params)

    # 64x64 single-channel input is the spatial size implied by fc1 = Linear(20*13*13)
    x = jax.random.normal(xkey, (2, 1, 64, 64), jnp.float32)

    out = jax.jit(cnn_mnist_forward)(x, params)
    out = jax.block_until_ready(out)

    assert out.shape == (2, 10), out.shape
    assert bool(jnp.all(jnp.isfinite(out)))
    # log_softmax rows must exponentiate-sum to 1
    row_sums = jnp.exp(out).sum(axis=1)
    assert bool(jnp.allclose(row_sums, 1.0, atol=1e-3)), row_sums
    # match the f32 pure-JAX reference (loose tolerance: kernels use bf16 MXU operands)
    ref = cnn_mnist_reference(x, pt_params)
    max_err = float(jnp.max(jnp.abs(out - ref)))
    assert max_err < 0.1, max_err

    print("KERNEL_OK")
</pallas_src>

<mosaic_0001>
module attributes {stable_mosaic.version = 11 : i64} {
  func.func @_fused_conv_kernel(%arg0: i32, %arg1: memref<1x64x64xf32, #tpu.memory_space<vmem>>, %arg2: memref<5x64x600xbf16, #tpu.memory_space<vmem>>, %arg3: memref<30x60xbf16, #tpu.memory_space<vmem>>, %arg4: memref<30x60xbf16, #tpu.memory_space<vmem>>, %arg5: memref<590x300xbf16, #tpu.memory_space<vmem>>, %arg6: memref<1x300xf32, #tpu.memory_space<vmem>>, %arg7: memref<5x300x520xbf16, #tpu.memory_space<vmem>>, %arg8: memref<13x26xbf16, #tpu.memory_space<vmem>>, %arg9: memref<13x26xbf16, #tpu.memory_space<vmem>>, %arg10: memref<500x260xbf16, #tpu.memory_space<vmem>>, %arg11: memref<1x260xf32, #tpu.memory_space<vmem>>, %arg12: memref<1x13x260xbf16, #tpu.memory_space<vmem>>) attributes {dimension_semantics = [#tpu.dimension_semantics<parallel>], iteration_bounds = array<i64: 2>, scalar_prefetch = 0 : i64, scratch_operands = 0 : i64, tpu.core_type = #tpu.core_type<tc>, window_params = [{transform_indices = @transform_0, window_bounds = array<i64: 1, 64, 64>}, {pipeline_mode = #tpu.pipeline_mode<synchronous>, transform_indices = @transform_1, window_bounds = array<i64: 5, 64, 600>}, {pipeline_mode = #tpu.pipeline_mode<synchronous>, transform_indices = @transform_2, window_bounds = array<i64: 30, 60>}, {pipeline_mode = #tpu.pipeline_mode<synchronous>, transform_indices = @transform_3, window_bounds = array<i64: 30, 60>}, {pipeline_mode = #tpu.pipeline_mode<synchronous>, transform_indices = @transform_4, window_bounds = array<i64: 590, 300>}, {pipeline_mode = #tpu.pipeline_mode<synchronous>, transform_indices = @transform_5, window_bounds = array<i64: 1, 300>}, {pipeline_mode = #tpu.pipeline_mode<synchronous>, transform_indices = @transform_6, window_bounds = array<i64: 5, 300, 520>}, {pipeline_mode = #tpu.pipeline_mode<synchronous>, transform_indices = @transform_7, window_bounds = array<i64: 13, 26>}, {pipeline_mode = #tpu.pipeline_mode<synchronous>, transform_indices = @transform_8, window_bounds = array<i64: 13, 26>}, {pipeline_mode = #tpu.pipeline_mode<synchronous>, transform_indices = @transform_9, window_bounds = array<i64: 500, 260>}, {pipeline_mode = #tpu.pipeline_mode<synchronous>, transform_indices = @transform_10, window_bounds = array<i64: 1, 260>}, {transform_indices = @transform_11, window_bounds = array<i64: 1, 13, 260>}]} {
    %c0 = arith.constant 0 : index
    %c0_0 = arith.constant 0 : index
    %c0_1 = arith.constant 0 : index
    %0 = vector.load %arg1[%c0, %c0_0, %c0_1] : memref<1x64x64xf32, #tpu.memory_space<vmem>>, vector<1x64x64xf32>
    %1 = vector.shape_cast %0 : vector<1x64x64xf32> to vector<64x64xf32>
    %2 = arith.truncf %1 : vector<64x64xf32> to vector<64x64xbf16>
    %3 = vector.extract_strided_slice %2 {offsets = [0, 0], sizes = [60, 64], strides = [1, 1]} : vector<64x64xbf16> to vector<60x64xbf16>
    %c0_2 = arith.constant 0 : index
    %c0_3 = arith.constant 0 : index
    %c0_4 = arith.constant 0 : index
    %4 = vector.load %arg2[%c0_2, %c0_3, %c0_4] : memref<5x64x600xbf16, #tpu.memory_space<vmem>>, vector<1x64x600xbf16>
    %5 = vector.shape_cast %4 : vector<1x64x600xbf16> to vector<64x600xbf16>
    %cst = arith.constant dense<0.000000e+00> : vector<60x600xf32>
    %6 = tpu.matmul %3, %5, %cst {dimension_numbers = #tpu.dot_dimension_numbers<[1], [0], [0], [1], [0, 0, 1, 1], [], []>} : vector<60x64xbf16>, vector<64x600xbf16>, vector<60x600xf32> -> vector<60x600xf32>
    %7 = vector.extract_strided_slice %2 {offsets = [1, 0], sizes = [60, 64], strides = [1, 1]} : vector<64x64xbf16> to vector<60x64xbf16>
    %c1 = arith.constant 1 : index
    %c0_5 = arith.constant 0 : index
    %c0_6 = arith.constant 0 : index
    %8 = vector.load %arg2[%c1, %c0_5, %c0_6] : memref<5x64x600xbf16, #tpu.memory_space<vmem>>, vector<1x64x600xbf16>
    %9 = vector.shape_cast %8 : vector<1x64x600xbf16> to vector<64x600xbf16>
    %cst_7 = arith.constant dense<0.000000e+00> : vector<60x600xf32>
    %10 = tpu.matmul %7, %9, %cst_7 {dimension_numbers = #tpu.dot_dimension_numbers<[1], [0], [0], [1], [0, 0, 1, 1], [], []>} : vector<60x64xbf16>, vector<64x600xbf16>, vector<60x600xf32> -> vector<60x600xf32>
    %11 = arith.addf %6, %10 : vector<60x600xf32>
    %12 = vector.extract_strided_slice %2 {offsets = [2, 0], sizes = [60, 64], strides = [1, 1]} : vector<64x64xbf16> to vector<60x64xbf16>
    %c2 = arith.constant 2 : index
    %c0_8 = arith.constant 0 : index
    %c0_9 = arith.constant 0 : index
    %13 = vector.load %arg2[%c2, %c0_8, %c0_9] : memref<5x64x600xbf16, #tpu.memory_space<vmem>>, vector<1x64x600xbf16>
    %14 = vector.shape_cast %13 : vector<1x64x600xbf16> to vector<64x600xbf16>
    %cst_10 = arith.constant dense<0.000000e+00> : vector<60x600xf32>
    %15 = tpu.matmul %12, %14, %cst_10 {dimension_numbers = #tpu.dot_dimension_numbers<[1], [0], [0], [1], [0, 0, 1, 1], [], []>} : vector<60x64xbf16>, vector<64x600xbf16>, vector<60x600xf32> -> vector<60x600xf32>
    %16 = arith.addf %11, %15 : vector<60x600xf32>
    %17 = vector.extract_strided_slice %2 {offsets = [3, 0], sizes = [60, 64], strides = [1, 1]} : vector<64x64xbf16> to vector<60x64xbf16>
    %c3 = arith.constant 3 : index
    %c0_11 = arith.constant 0 : index
    %c0_12 = arith.constant 0 : index
    %18 = vector.load %arg2[%c3, %c0_11, %c0_12] : memref<5x64x600xbf16, #tpu.memory_space<vmem>>, vector<1x64x600xbf16>
    %19 = vector.shape_cast %18 : vector<1x64x600xbf16> to vector<64x600xbf16>
    %cst_13 = arith.constant dense<0.000000e+00> : vector<60x600xf32>
    %20 = tpu.matmul %17, %19, %cst_13 {dimension_numbers = #tpu.dot_dimension_numbers<[1], [0], [0], [1], [0, 0, 1, 1], [], []>} : vector<60x64xbf16>, vector<64x600xbf16>, vector<60x600xf32> -> vector<60x600xf32>
    %21 = arith.addf %16, %20 : vector<60x600xf32>
    %22 = vector.extract_strided_slice %2 {offsets = [4, 0], sizes = [60, 64], strides = [1, 1]} : vector<64x64xbf16> to vector<60x64xbf16>
    %c4 = arith.constant 4 : index
    %c0_14 = arith.constant 0 : index
    %c0_15 = arith.constant 0 : index
    %23 = vector.load %arg2[%c4, %c0_14, %c0_15] : memref<5x64x600xbf16, #tpu.memory_space<vmem>>, vector<1x64x600xbf16>
    %24 = vector.shape_cast %23 : vector<1x64x600xbf16> to vector<64x600xbf16>
    %cst_16 = arith.constant dense<0.000000e+00> : vector<60x600xf32>
    %25 = tpu.matmul %22, %24, %cst_16 {dimension_numbers = #tpu.dot_dimension_numbers<[1], [0], [0], [1], [0, 0, 1, 1], [], []>} : vector<60x64xbf16>, vector<64x600xbf16>, vector<60x600xf32> -> vector<60x600xf32>
    %26 = arith.addf %21, %25 : vector<60x600xf32>
    %27 = arith.truncf %26 : vector<60x600xf32> to vector<60x600xbf16>
    %c0_17 = arith.constant 0 : index
    %c0_18 = arith.constant 0 : index
    %28 = vector.load %arg3[%c0_17, %c0_18] : memref<30x60xbf16, #tpu.memory_space<vmem>>, vector<30x60xbf16>
    %cst_19 = arith.constant dense<0.000000e+00> : vector<30x600xf32>
    %29 = tpu.matmul %28, %27, %cst_19 {dimension_numbers = #tpu.dot_dimension_numbers<[1], [0], [0], [1], [0, 0, 1, 1], [], []>} : vector<30x60xbf16>, vector<60x600xbf16>, vector<30x600xf32> -> vector<30x600xf32>
    %c0_20 = arith.constant 0 : index
    %c0_21 = arith.constant 0 : index
    %30 = vector.load %arg4[%c0_20, %c0_21] : memref<30x60xbf16, #tpu.memory_space<vmem>>, vector<30x60xbf16>
    %cst_22 = arith.constant dense<0.000000e+00> : vector<30x600xf32>
    %31 = tpu.matmul %30, %27, %cst_22 {dimension_numbers = #tpu.dot_dimension_numbers<[1], [0], [0], [1], [0, 0, 1, 1], [], []>} : vector<30x60xbf16>, vector<60x600xbf16>, vector<30x600xf32> -> vector<30x600xf32>
    %32 = arith.maximumf %29, %31 : vector<30x600xf32>
    %33 = vector.extract_strided_slice %32 {offsets = [0, 0], sizes = [30, 590], strides = [1, 1]} : vector<30x600xf32> to vector<30x590xf32>
    %34 = vector.extract_strided_slice %32 {offsets = [0, 10], sizes = [30, 590], strides = [1, 1]} : vector<30x600xf32> to vector<30x590xf32>
    %35 = arith.maximumf %33, %34 : vector<30x590xf32>
    %36 = arith.truncf %35 : vector<30x590xf32> to vector<30x590xbf16>
    %c0_23 = arith.constant 0 : index
    %c0_24 = arith.constant 0 : index
    %37 = vector.load %arg5[%c0_23, %c0_24] : memref<590x300xbf16, #tpu.memory_space<vmem>>, vector<590x300xbf16>
    %cst_25 = arith.constant dense<0.000000e+00> : vector<30x300xf32>
    %38 = tpu.matmul %36, %37, %cst_25 {dimension_numbers = #tpu.dot_dimension_numbers<[1], [0], [0], [1], [0, 0, 1, 1], [], []>} : vector<30x590xbf16>, vector<590x300xbf16>, vector<30x300xf32> -> vector<30x300xf32>
    %c0_26 = arith.constant 0 : index
    %c0_27 = arith.constant 0 : index
    %39 = vector.load %arg6[%c0_26, %c0_27] : memref<1x300xf32, #tpu.memory_space<vmem>>, vector<1x300xf32>
    %40 = vector.broadcast %39 : vector<1x300xf32> to vector<30x300xf32>
    %41 = arith.addf %38, %40 : vector<30x300xf32>
    %cst_28 = arith.constant 0.000000e+00 : f32
    %42 = vector.broadcast %cst_28 : f32 to vector<30x300xf32>
    %43 = arith.maximumf %41, %42 : vector<30x300xf32>
    %44 = arith.truncf %43 : vector<30x300xf32> to vector<30x300xbf16>
    %45 = vector.extract_strided_slice %44 {offsets = [0, 0], sizes = [26, 300], strides = [1, 1]} : vector<30x300xbf16> to vector<26x300xbf16>
    %c0_29 = arith.constant 0 : index
    %c0_30 = arith.constant 0 : index
    %c0_31 = arith.constant 0 : index
    %46 = vector.load %arg7[%c0_29, %c0_30, %c0_31] : memref<5x300x520xbf16, #tpu.memory_space<vmem>>, vector<1x300x520xbf16>
    %47 = vector.shape_cast %46 : vector<1x300x520xbf16> to vector<300x520xbf16>
    %cst_32 = arith.constant dense<0.000000e+00> : vector<26x520xf32>
    %48 = tpu.matmul %45, %47, %cst_32 {dimension_numbers = #tpu.dot_dimension_numbers<[1], [0], [0], [1], [0, 0, 1, 1], [], []>} : vector<26x300xbf16>, vector<300x520xbf16>, vector<26x520xf32> -> vector<26x520xf32>
    %49 = vector.extract_strided_slice %44 {offsets = [1, 0], sizes = [26, 300], strides = [1, 1]} : vector<30x300xbf16> to vector<26x300xbf16>
    %c1_33 = arith.constant 1 : index
    %c0_34 = arith.constant 0 : index
    %c0_35 = arith.constant 0 : index
    %50 = vector.load %arg7[%c1_33, %c0_34, %c0_35] : memref<5x300x520xbf16, #tpu.memory_space<vmem>>, vector<1x300x520xbf16>
    %51 = vector.shape_cast %50 : vector<1x300x520xbf16> to vector<300x520xbf16>
    %cst_36 = arith.constant dense<0.000000e+00> : vector<26x520xf32>
    %52 = tpu.matmul %49, %51, %cst_36 {dimension_numbers = #tpu.dot_dimension_numbers<[1], [0], [0], [1], [0, 0, 1, 1], [], []>} : vector<26x300xbf16>, vector<300x520xbf16>, vector<26x520xf32> -> vector<26x520xf32>
    %53 = arith.addf %48, %52 : vector<26x520xf32>
    %54 = vector.extract_strided_slice %44 {offsets = [2, 0], sizes = [26, 300], strides = [1, 1]} : vector<30x300xbf16> to vector<26x300xbf16>
    %c2_37 = arith.constant 2 : index
    %c0_38 = arith.constant 0 : index
    %c0_39 = arith.constant 0 : index
    %55 = vector.load %arg7[%c2_37, %c0_38, %c0_39] : memref<5x300x520xbf16, #tpu.memory_space<vmem>>, vector<1x300x520xbf16>
    %56 = vector.shape_cast %55 : vector<1x300x520xbf16> to vector<300x520xbf16>
    %cst_40 = arith.constant dense<0.000000e+00> : vector<26x520xf32>
    %57 = tpu.matmul %54, %56, %cst_40 {dimension_numbers = #tpu.dot_dimension_numbers<[1], [0], [0], [1], [0, 0, 1, 1], [], []>} : vector<26x300xbf16>, vector<300x520xbf16>, vector<26x520xf32> -> vector<26x520xf32>
    %58 = arith.addf %53, %57 : vector<26x520xf32>
    %59 = vector.extract_strided_slice %44 {offsets = [3, 0], sizes = [26, 300], strides = [1, 1]} : vector<30x300xbf16> to vector<26x300xbf16>
    %c3_41 = arith.constant 3 : index
    %c0_42 = arith.constant 0 : index
    %c0_43 = arith.constant 0 : index
    %60 = vector.load %arg7[%c3_41, %c0_42, %c0_43] : memref<5x300x520xbf16, #tpu.memory_space<vmem>>, vector<1x300x520xbf16>
    %61 = vector.shape_cast %60 : vector<1x300x520xbf16> to vector<300x520xbf16>
    %cst_44 = arith.constant dense<0.000000e+00> : vector<26x520xf32>
    %62 = tpu.matmul %59, %61, %cst_44 {dimension_numbers = #tpu.dot_dimension_numbers<[1], [0], [0], [1], [0, 0, 1, 1], [], []>} : vector<26x300xbf16>, vector<300x520xbf16>, vector<26x520xf32> -> vector<26x520xf32>
    %63 = arith.addf %58, %62 : vector<26x520xf32>
    %64 = vector.extract_strided_slice %44 {offsets = [4, 0], sizes = [26, 300], strides = [1, 1]} : vector<30x300xbf16> to vector<26x300xbf16>
    %c4_45 = arith.constant 4 : index
    %c0_46 = arith.constant 0 : index
    %c0_47 = arith.constant 0 : index
    %65 = vector.load %arg7[%c4_45, %c0_46, %c0_47] : memref<5x300x520xbf16, #tpu.memory_space<vmem>>, vector<1x300x520xbf16>
    %66 = vector.shape_cast %65 : vector<1x300x520xbf16> to vector<300x520xbf16>
    %cst_48 = arith.constant dense<0.000000e+00> : vector<26x520xf32>
    %67 = tpu.matmul %64, %66, %cst_48 {dimension_numbers = #tpu.dot_dimension_numbers<[1], [0], [0], [1], [0, 0, 1, 1], [], []>} : vector<26x300xbf16>, vector<300x520xbf16>, vector<26x520xf32> -> vector<26x520xf32>
    %68 = arith.addf %63, %67 : vector<26x520xf32>
    %69 = arith.truncf %68 : vector<26x520xf32> to vector<26x520xbf16>
    %c0_49 = arith.constant 0 : index
    %c0_50 = arith.constant 0 : index
    %70 = vector.load %arg8[%c0_49, %c0_50] : memref<13x26xbf16, #tpu.memory_space<vmem>>, vector<13x26xbf16>
    %cst_51 = arith.constant dense<0.000000e+00> : vector<13x520xf32>
    %71 = tpu.matmul %70, %69, %cst_51 {dimension_numbers = #tpu.dot_dimension_numbers<[1], [0], [0], [1], [0, 0, 1, 1], [], []>} : vector<13x26xbf16>, vector<26x520xbf16>, vector<13x520xf32> -> vector<13x520xf32>
    %c0_52 = arith.constant 0 : index
    %c0_53 = arith.constant 0 : index
    %72 = vector.load %arg9[%c0_52, %c0_53] : memref<13x26xbf16, #tpu.memory_space<vmem>>, vector<13x26xbf16>
    %cst_54 = arith.constant dense<0.000000e+00> : vector<13x520xf32>
    %73 = tpu.matmul %72, %69, %cst_54 {dimension_numbers = #tpu.dot_dimension_numbers<[1], [0], [0], [1], [0, 0, 1, 1], [], []>} : vector<13x26xbf16>, vector<26x520xbf16>, vector<13x520xf32> -> vector<13x520xf32>
    %74 = arith.maximumf %71, %73 : vector<13x520xf32>
    %75 = vector.extract_strided_slice %74 {offsets = [0, 0], sizes = [13, 500], strides = [1, 1]} : vector<13x520xf32> to vector<13x500xf32>
    %76 = vector.extract_strided_slice %74 {offsets = [0, 20], sizes = [13, 500], strides = [1, 1]} : vector<13x520xf32> to vector<13x500xf32>
    %77 = arith.maximumf %75, %76 : vector<13x500xf32>
    %78 = arith.truncf %77 : vector<13x500xf32> to vector<13x500xbf16>
    %c0_55 = arith.constant 0 : index
    %c0_56 = arith.constant 0 : index
    %79 = vector.load %arg10[%c0_55, %c0_56] : memref<500x260xbf16, #tpu.memory_space<vmem>>, vector<500x260xbf16>
    %cst_57 = arith.constant dense<0.000000e+00> : vector<13x260xf32>
    %80 = tpu.matmul %78, %79, %cst_57 {dimension_numbers = #tpu.dot_dimension_numbers<[1], [0], [0], [1], [0, 0, 1, 1], [], []>} : vector<13x500xbf16>, vector<500x260xbf16>, vector<13x260xf32> -> vector<13x260xf32>
    %c0_58 = arith.constant 0 : index
    %c0_59 = arith.constant 0 : index
    %81 = vector.load %arg11[%c0_58, %c0_59] : memref<1x260xf32, #tpu.memory_space<vmem>>, vector<1x260xf32>
    %82 = vector.broadcast %81 : vector<1x260xf32> to vector<13x260xf32>
    %83 = arith.addf %80, %82 : vector<13x260xf32>
    %cst_60 = arith.constant 0.000000e+00 : f32
    %84 = vector.broadcast %cst_60 : f32 to vector<13x260xf32>
    %85 = arith.maximumf %83, %84 : vector<13x260xf32>
    %86 = arith.truncf %85 : vector<13x260xf32> to vector<13x260xbf16>
    %c0_61 = arith.constant 0 : index
    %c0_62 = arith.constant 0 : index
    %c0_63 = arith.constant 0 : index
    %87 = vector.load %arg12[%c0_61, %c0_62, %c0_63] : memref<1x13x260xbf16, #tpu.memory_space<vmem>>, vector<1x13x260xbf16>
    %88 = vector.shape_cast %87 : vector<1x13x260xbf16> to vector<13x260xbf16>
    %89 = vector.shape_cast %86 : vector<13x260xbf16> to vector<1x13x260xbf16>
    tpu.vector_store %arg12[%c0_61, %c0_62, %c0_63], %89 {strides = array<i32>} : memref<1x13x260xbf16, #tpu.memory_space<vmem>>, vector<1x13x260xbf16>,
    return
  }
  func.func @transform_0(%arg0: i32) -> (i32, i32, i32) {
    %c0_i32 = arith.constant 0 : i32
    %c0_i32_0 = arith.constant 0 : i32
    %c0_i32_1 = arith.constant 0 : i32
    return %arg0, %c0_i32, %c0_i32_0 : i32, i32, i32
  }
  func.func @transform_1(%arg0: i32) -> (i32, i32, i32) {
    %c0_i32 = arith.constant 0 : i32
    %c0_i32_0 = arith.constant 0 : i32
    %c0_i32_1 = arith.constant 0 : i32
    %c0_i32_2 = arith.constant 0 : i32
    return %c0_i32, %c0_i32_0, %c0_i32_1 : i32, i32, i32
  }
  func.func @transform_2(%arg0: i32) -> (i32, i32) {
    %c0_i32 = arith.constant 0 : i32
    %c0_i32_0 = arith.constant 0 : i32
    %c0_i32_1 = arith.constant 0 : i32
    return %c0_i32, %c0_i32_0 : i32, i32
  }
  func.func @transform_3(%arg0: i32) -> (i32, i32) {
    %c0_i32 = arith.constant 0 : i32
    %c0_i32_0 = arith.constant 0 : i32
    %c0_i32_1 = arith.constant 0 : i32
    return %c0_i32, %c0_i32_0 : i32, i32
  }
  func.func @transform_4(%arg0: i32) -> (i32, i32) {
    %c0_i32 = arith.constant 0 : i32
    %c0_i32_0 = arith.constant 0 : i32
    %c0_i32_1 = arith.constant 0 : i32
    return %c0_i32, %c0_i32_0 : i32, i32
  }
  func.func @transform_5(%arg0: i32) -> (i32, i32) {
    %c0_i32 = arith.constant 0 : i32
    %c0_i32_0 = arith.constant 0 : i32
    %c0_i32_1 = arith.constant 0 : i32
    return %c0_i32, %c0_i32_0 : i32, i32
  }
  func.func @transform_6(%arg0: i32) -> (i32, i32, i32) {
    %c0_i32 = arith.constant 0 : i32
    %c0_i32_0 = arith.constant 0 : i32
    %c0_i32_1 = arith.constant 0 : i32
    %c0_i32_2 = arith.constant 0 : i32
    return %c0_i32, %c0_i32_0, %c0_i32_1 : i32, i32, i32
  }
  func.func @transform_7(%arg0: i32) -> (i32, i32) {
    %c0_i32 = arith.constant 0 : i32
    %c0_i32_0 = arith.constant 0 : i32
    %c0_i32_1 = arith.constant 0 : i32
    return %c0_i32, %c0_i32_0 : i32, i32
  }
  func.func @transform_8(%arg0: i32) -> (i32, i32) {
    %c0_i32 = arith.constant 0 : i32
    %c0_i32_0 = arith.constant 0 : i32
    %c0_i32_1 = arith.constant 0 : i32
    return %c0_i32, %c0_i32_0 : i32, i32
  }
  func.func @transform_9(%arg0: i32) -> (i32, i32) {
    %c0_i32 = arith.constant 0 : i32
    %c0_i32_0 = arith.constant 0 : i32
    %c0_i32_1 = arith.constant 0 : i32
    return %c0_i32, %c0_i32_0 : i32, i32
  }
  func.func @transform_10(%arg0: i32) -> (i32, i32) {
    %c0_i32 = arith.constant 0 : i32
    %c0_i32_0 = arith.constant 0 : i32
    %c0_i32_1 = arith.constant 0 : i32
    return %c0_i32, %c0_i32_0 : i32, i32
  }
  func.func @transform_11(%arg0: i32) -> (i32, i32, i32) {
    %c0_i32 = arith.constant 0 : i32
    %c0_i32_0 = arith.constant 0 : i32
    %c0_i32_1 = arith.constant 0 : i32
    return %arg0, %c0_i32, %c0_i32_0 : i32, i32, i32
  }
}

module attributes {stable_mosaic.version = 11 : i64} {
  func.func @_mlp_head_kernel(%arg0: i32, %arg1: memref<16x3380xbf16, #tpu.memory_space<vmem>>, %arg2: memref<3380x50xbf16, #tpu.memory_space<vmem>>, %arg3: memref<1x50xf32, #tpu.memory_space<vmem>>, %arg4: memref<50x10xbf16, #tpu.memory_space<vmem>>, %arg5: memref<1x10xf32, #tpu.memory_space<vmem>>, %arg6: memref<16x10xf32, #tpu.memory_space<vmem>>) attributes {dimension_semantics = [#tpu.dimension_semantics<parallel>], iteration_bounds = array<i64: 1>, scalar_prefetch = 0 : i64, scratch_operands = 0 : i64, tpu.core_type = #tpu.core_type<tc>, window_params = [{transform_indices = @transform_0, window_bounds = array<i64: 16, 3380>}, {pipeline_mode = #tpu.pipeline_mode<synchronous>, transform_indices = @transform_1, window_bounds = array<i64: 3380, 50>}, {pipeline_mode = #tpu.pipeline_mode<synchronous>, transform_indices = @transform_2, window_bounds = array<i64: 1, 50>}, {pipeline_mode = #tpu.pipeline_mode<synchronous>, transform_indices = @transform_3, window_bounds = array<i64: 50, 10>}, {pipeline_mode = #tpu.pipeline_mode<synchronous>, transform_indices = @transform_4, window_bounds = array<i64: 1, 10>}, {transform_indices = @transform_5, window_bounds = array<i64: 16, 10>}]} {
    %c0 = arith.constant 0 : index
    %c0_0 = arith.constant 0 : index
    %0 = vector.load %arg1[%c0, %c0_0] : memref<16x3380xbf16, #tpu.memory_space<vmem>>, vector<16x3380xbf16>
    %c0_1 = arith.constant 0 : index
    %c0_2 = arith.constant 0 : index
    %1 = vector.load %arg2[%c0_1, %c0_2] : memref<3380x50xbf16, #tpu.memory_space<vmem>>, vector<3380x50xbf16>
    %cst = arith.constant dense<0.000000e+00> : vector<16x50xf32>
    %2 = tpu.matmul %0, %1, %cst {dimension_numbers = #tpu.dot_dimension_numbers<[1], [0], [0], [1], [0, 0, 1, 1], [], []>} : vector<16x3380xbf16>, vector<3380x50xbf16>, vector<16x50xf32> -> vector<16x50xf32>
    %c0_3 = arith.constant 0 : index
    %c0_4 = arith.constant 0 : index
    %3 = vector.load %arg3[%c0_3, %c0_4] : memref<1x50xf32, #tpu.memory_space<vmem>>, vector<1x50xf32>
    %4 = vector.broadcast %3 : vector<1x50xf32> to vector<16x50xf32>
    %5 = arith.addf %2, %4 : vector<16x50xf32>
    %cst_5 = arith.constant 0.000000e+00 : f32
    %6 = vector.broadcast %cst_5 : f32 to vector<16x50xf32>
    %7 = arith.maximumf %5, %6 : vector<16x50xf32>
    %8 = arith.truncf %7 : vector<16x50xf32> to vector<16x50xbf16>
    %c0_6 = arith.constant 0 : index
    %c0_7 = arith.constant 0 : index
    %9 = vector.load %arg4[%c0_6, %c0_7] : memref<50x10xbf16, #tpu.memory_space<vmem>>, vector<50x10xbf16>
    %cst_8 = arith.constant dense<0.000000e+00> : vector<16x10xf32>
    %10 = tpu.matmul %8, %9, %cst_8 {dimension_numbers = #tpu.dot_dimension_numbers<[1], [0], [0], [1], [0, 0, 1, 1], [], []>} : vector<16x50xbf16>, vector<50x10xbf16>, vector<16x10xf32> -> vector<16x10xf32>
    %c0_9 = arith.constant 0 : index
    %c0_10 = arith.constant 0 : index
    %11 = vector.load %arg5[%c0_9, %c0_10] : memref<1x10xf32, #tpu.memory_space<vmem>>, vector<1x10xf32>
    %12 = vector.broadcast %11 : vector<1x10xf32> to vector<16x10xf32>
    %13 = arith.addf %10, %12 : vector<16x10xf32>
    %cst_11 = arith.constant dense<0xFF800000> : vector<16xf32>
    %14 = vector.multi_reduction <maximumf>, %13, %cst_11 [1] : vector<16x10xf32> to vector<16xf32>
    %15 = vector.shape_cast %14 : vector<16xf32> to vector<16x1xf32>
    %16 = vector.broadcast %15 : vector<16x1xf32> to vector<16x10xf32>
    %17 = arith.subf %13, %16 : vector<16x10xf32>
    %18 = math.exp %17 : vector<16x10xf32>
    %cst_12 = arith.constant dense<0.000000e+00> : vector<16xf32>
    %19 = vector.multi_reduction <add>, %18, %cst_12 [1] : vector<16x10xf32> to vector<16xf32>
    %20 = vector.shape_cast %19 : vector<16xf32> to vector<16x1xf32>
    %21 = math.log %20 : vector<16x1xf32>
    %22 = vector.broadcast %21 : vector<16x1xf32> to vector<16x10xf32>
    %23 = arith.subf %17, %22 : vector<16x10xf32>
    %c0_13 = arith.constant 0 : index
    %c0_14 = arith.constant 0 : index
    %24 = vector.load %arg6[%c0_13, %c0_14] : memref<16x10xf32, #tpu.memory_space<vmem>>, vector<16x10xf32>
    tpu.vector_store %arg6[%c0_13, %c0_14], %23 {strides = array<i32>} : memref<16x10xf32, #tpu.memory_space<vmem>>, vector<16x10xf32>,
    return
  }
  func.func @transform_0(%arg0: i32) -> (i32, i32) {
    %c0_i32 = arith.constant 0 : i32
    %c0_i32_0 = arith.constant 0 : i32
    return %arg0, %c0_i32 : i32, i32
  }
  func.func @transform_1(%arg0: i32) -> (i32, i32) {
    %c0_i32 = arith.constant 0 : i32
    %c0_i32_0 = arith.constant 0 : i32
    %c0_i32_1 = arith.constant 0 : i32
    return %c0_i32, %c0_i32_0 : i32, i32
  }
  func.func @transform_2(%arg0: i32) -> (i32, i32) {
    %c0_i32 = arith.constant 0 : i32
    %c0_i32_0 = arith.constant 0 : i32
    %c0_i32_1 = arith.constant 0 : i32
    return %c0_i32, %c0_i32_0 : i32, i32
  }
  func.func @transform_3(%arg0: i32) -> (i32, i32) {
    %c0_i32 = arith.constant 0 : i32
    %c0_i32_0 = arith.constant 0 : i32
    %c0_i32_1 = arith.constant 0 : i32
    return %c0_i32, %c0_i32_0 : i32, i32
  }
  func.func @transform_4(%arg0: i32) -> (i32, i32) {
    %c0_i32 = arith.constant 0 : i32
    %c0_i32_0 = arith.constant 0 : i32
    %c0_i32_1 = arith.constant 0 : i32
    return %c0_i32, %c0_i32_0 : i32, i32
  }
  func.func @transform_5(%arg0: i32) -> (i32, i32) {
    %c0_i32 = arith.constant 0 : i32
    %c0_i32_0 = arith.constant 0 : i32
    return %arg0, %c0_i32 : i32, i32
  }
}

</mosaic_0001>

<llo_original>
// kernel: cnn_mnist_forward.3
$region0: #{cnn_mnist_forward.3}
  #allocation0 [shape = 'u32[]', space=smem, size = 0x4, offset = 0x4, fixed_abs, tag = 'smem constant byte address 0x4 - core index']
  #allocation1 [shape = 'u32[144,128]{1,0:T(1,128)}', space=vmem, size = 0x12000, scoped, tag = 'internal scratch']
  %s0 = inlined_call_operand.vmem [shape: bf16[16,3380], index: 0, kind: input, shape index: {}]
  %s1 = inlined_call_operand.vmem [shape: bf16[3380,50], index: 1, kind: input, shape index: {}]
  %s2 = inlined_call_operand.vmem [shape: f32[1,50], index: 2, kind: input, shape index: {}]
  %s3 = inlined_call_operand.vmem [shape: bf16[50,10], index: 3, kind: input, shape index: {}]
  %s4 = inlined_call_operand.vmem [shape: f32[1,10], index: 4, kind: input, shape index: {}]
  %s5 = inlined_call_operand.vmem [shape: f32[16,10], index: 5, kind: output, shape index: {}]
  %s6 = sld [smem:[#allocation0]]
  $region30: #{cnn_mnist_forward.3} parent=0
    _
  %s8 = ssub.s32 1, %s6
  %s9 = scalar_select 0, %s8, %s6
  // Predicated region
  $region2: #{cnn_mnist_forward.3} parent=0 // pred_check
    _
  $region3: #{cnn_mnist_forward.3} parent=0 // pred_check_branch
    %11 = sbr.rel (0) target = $region5
  $region4: #{cnn_mnist_forward.3} parent=0 // pred_region
    _
  $region5: #{cnn_mnist_forward.3} parent=0 // pred_fallthru
    _
  // Predicated region
  $region6: #{cnn_mnist_forward.3} parent=0 // pred_check
    _
  $region7: #{cnn_mnist_forward.3} parent=0 // pred_check_branch
    %13 = sbr.rel (0) target = $region9
  $region8: #{cnn_mnist_forward.3} parent=0 // pred_region
    _
  $region9: #{cnn_mnist_forward.3} parent=0 // pred_fallthru
    _
  // Predicated region
  $region10: #{cnn_mnist_forward.3} parent=0 // pred_check
    _
  $region11: #{cnn_mnist_forward.3} parent=0 // pred_check_branch
    %15 = sbr.rel (0) target = $region13
  $region12: #{cnn_mnist_forward.3} parent=0 // pred_region
    _
  $region13: #{cnn_mnist_forward.3} parent=0 // pred_fallthru
    _
  // Predicated region
  $region14: #{cnn_mnist_forward.3} parent=0 // pred_check
    _
  $region15: #{cnn_mnist_forward.3} parent=0 // pred_check_branch
    %17 = sbr.rel (0) target = $region17
  $region16: #{cnn_mnist_forward.3} parent=0 // pred_region
    _
  $region17: #{cnn_mnist_forward.3} parent=0 // pred_fallthru
    _
  // Predicated region
  $region18: #{cnn_mnist_forward.3} parent=0 // pred_check
    _
  $region19: #{cnn_mnist_forward.3} parent=0 // pred_check_branch
    %19 = sbr.rel (0) target = $region21
  $region20: #{cnn_mnist_forward.3} parent=0 // pred_region
    _
  $region21: #{cnn_mnist_forward.3} parent=0 // pred_fallthru
    _
  %v21 = vld [vmem:[%s0] sm:$0xff]
  %v22 = vld [vmem:[%s0 + $0x8] sm:$0xff]
  %v23 = vld [vmem:[%s0 + $0x10] sm:$0xff]
  %v24 = vld [vmem:[%s0 + $0x18] sm:$0xff]
  %v25 = vld [vmem:[%s0 + $0x20] sm:$0xff]
  %v26 = vld [vmem:[%s0 + $0x28] sm:$0xff]
  %v27 = vld [vmem:[%s0 + $0x30] sm:$0xff]
  %v28 = vld [vmem:[%s0 + $0x38] sm:$0xff]
  %v29 = vld [vmem:[%s0 + $0x40] sm:$0xff]
  %v30 = vld [vmem:[%s0 + $0x48] sm:$0xff]
  %v31 = vld [vmem:[%s0 + $0x50] sm:$0xff]
  %v32 = vld [vmem:[%s0 + $0x58] sm:$0xff]
  %v33 = vld [vmem:[%s0 + $0x60] sm:$0xff]
  %v34 = vld [vmem:[%s0 + $0x68] sm:$0xf]
  %v35 = vld [vmem:[%s0 + $0x6c] sm:$0xff]
  %v36 = vld [vmem:[%s0 + $0x74] sm:$0xff]
  %v37 = vld [vmem:[%s0 + $0x7c] sm:$0xff]
  %v38 = vld [vmem:[%s0 + $0x84] sm:$0xff]
  %v39 = vld [vmem:[%s0 + $0x8c] sm:$0xff]
  %v40 = vld [vmem:[%s0 + $0x94] sm:$0xff]
  %v41 = vld [vmem:[%s0 + $0x9c] sm:$0xff]
  %v42 = vld [vmem:[%s0 + $0xa4] sm:$0xff]
  %v43 = vld [vmem:[%s0 + $0xac] sm:$0xff]
  %v44 = vld [vmem:[%s0 + $0xb4] sm:$0xff]
  %v45 = vld [vmem:[%s0 + $0xbc] sm:$0xff]
  %v46 = vld [vmem:[%s0 + $0xc4] sm:$0xff]
  %v47 = vld [vmem:[%s0 + $0xcc] sm:$0xff]
  %v48 = vld [vmem:[%s0 + $0xd4] sm:$0xf]
  %v49 = vld [vmem:[%s1] sm:$0xf]
  %v50 = vld [vmem:[%s1 + $0x4] sm:$0xf]
  %v51 = vld [vmem:[%s1 + $0x8] sm:$0xf]
  %v52 = vld [vmem:[%s1 + $0xc] sm:$0xf]
  %v53 = vld [vmem:[%s1 + $0x10] sm:$0xf]
  %v54 = vld [vmem:[%s1 + $0x14] sm:$0xf]
  %v55 = vld [vmem:[%s1 + $0x18] sm:$0xf]
  %v56 = vld [vmem:[%s1 + $0x1c] sm:$0xf]
  %v57 = vld [vmem:[%s1 + $0x20] sm:$0xf]
  %v58 = vld [vmem:[%s1 + $0x24] sm:$0xf]
  %v59 = vld [vmem:[%s1 + $0x28] sm:$0xf]
  %v60 = vld [vmem:[%s1 + $0x2c] sm:$0xf]
  %v61 = vld [vmem:[%s1 + $0x30] sm:$0xf]
  %v62 = vld [vmem:[%s1 + $0x34] sm:$0xf]
  %v63 = vld [vmem:[%s1 + $0x38] sm:$0xf]
  %v64 = vld [vmem:[%s1 + $0x3c] sm:$0xf]
  %v65 = vld [vmem:[%s1 + $0x40] sm:$0xf]
  %v66 = vld [vmem:[%s1 + $0x44] sm:$0xf]
  %v67 = vld [vmem:[%s1 + $0x48] sm:$0xf]
  %v68 = vld [vmem:[%s1 + $0x4c] sm:$0xf]
  %v69 = vld [vmem:[%s1 + $0x50] sm:$0xf]
  %v70 = vld [vmem:[%s1 + $0x54] sm:$0xf]
  %v71 = vld [vmem:[%s1 + $0x58] sm:$0xf]
  %v72 = vld [vmem:[%s1 + $0x5c] sm:$0xf]
  %v73 = vld [vmem:[%s1 + $0x60] sm:$0xf]
  %v74 = vld [vmem:[%s1 + $0x64] sm:$0xf]
  %v75 = vld [vmem:[%s1 + $0x68] sm:$0xf]
  %v76 = vld [vmem:[%s1 + $0x6c] sm:$0xf]
  %v77 = vld [vmem:[%s1 + $0x70] sm:$0xf]
  %v78 = vld [vmem:[%s1 + $0x74] sm:$0xf]
  %v79 = vld [vmem:[%s1 + $0x78] sm:$0xf]
  %v80 = vld [vmem:[%s1 + $0x7c] sm:$0xf]
  %v81 = vld [vmem:[%s1 + $0x80] sm:$0xf]
  %v82 = vld [vmem:[%s1 + $0x84] sm:$0xf]
  %v83 = vld [vmem:[%s1 + $0x88] sm:$0xf]
  %v84 = vld [vmem:[%s1 + $0x8c] sm:$0xf]
  %v85 = vld [vmem:[%s1 + $0x90] sm:$0xf]
  %v86 = vld [vmem:[%s1 + $0x94] sm:$0xf]
  %v87 = vld [vmem:[%s1 + $0x98] sm:$0xf]
  %v88 = vld [vmem:[%s1 + $0x9c] sm:$0xf]
  %v89 = vld [vmem:[%s1 + $0xa0] sm:$0xf]
  %v90 = vld [vmem:[%s1 + $0xa4] sm:$0xf]
  %v91 = vld [vmem:[%s1 + $0xa8] sm:$0xf]
  %v92 = vld [vmem:[%s1 + $0xac] sm:$0xf]
  %v93 = vld [vmem:[%s1 + $0xb0] sm:$0xf]
  %v94 = vld [vmem:[%s1 + $0xb4] sm:$0xf]
  %v95 = vld [vmem:[%s1 + $0xb8] sm:$0xf]
  %v96 = vld [vmem:[%s1 + $0xbc] sm:$0xf]
  %v97 = vld [vmem:[%s1 + $0xc0] sm:$0xf]
  %v98 = vld [vmem:[%s1 + $0xc4] sm:$0xf]
  %v99 = vld [vmem:[%s1 + $0xc8] sm:$0xf]
  %v100 = vld [vmem:[%s1 + $0xcc] sm:$0xf]
  %v101 = vld [vmem:[%s1 + $0xd0] sm:$0xf]
  %v102 = vld [vmem:[%s1 + $0xd4] sm:$0xf]
  %v103 = vld [vmem:[%s1 + $0xd8] sm:$0xf]
  %v104 = vld [vmem:[%s1 + $0xdc] sm:$0xf]
  %v105 = vld [vmem:[%s1 + $0xe0] sm:$0xf]
  %v106 = vld [vmem:[%s1 + $0xe4] sm:$0xf]
  %v107 = vld [vmem:[%s1 + $0xe8] sm:$0xf]
  %v108 = vld [vmem:[%s1 + $0xec] sm:$0xf]
  %v109 = vld [vmem:[%s1 + $0xf0] sm:$0xf]
  %v110 = vld [vmem:[%s1 + $0xf4] sm:$0xf]
  %v111 = vld [vmem:[%s1 + $0xf8] sm:$0xf]
  %v112 = vld [vmem:[%s1 + $0xfc] sm:$0xf]
  %v113 = vld [vmem:[%s1 + $0x100] sm:$0xf]
  %v114 = vld [vmem:[%s1 + $0x104] sm:$0xf]
  %v115 = vld [vmem:[%s1 + $0x108] sm:$0xf]
  %v116 = vld [vmem:[%s1 + $0x10c] sm:$0xf]
  %v117 = vld [vmem:[%s1 + $0x110] sm:$0xf]
  %v118 = vld [vmem:[%s1 + $0x114] sm:$0xf]
  %v119 = vld [vmem:[%s1 + $0x118] sm:$0xf]
  %v120 = vld [vmem:[%s1 + $0x11c] sm:$0xf]
  %v121 = vld [vmem:[%s1 + $0x120] sm:$0xf]
  %v122 = vld [vmem:[%s1 + $0x124] sm:$0xf]
  %v123 = vld [vmem:[%s1 + $0x128] sm:$0xf]
  %v124 = vld [vmem:[%s1 + $0x12c] sm:$0xf]
  %v125 = vld [vmem:[%s1 + $0x130] sm:$0xf]
  %v126 = vld [vmem:[%s1 + $0x134] sm:$0xf]
  %v127 = vld [vmem:[%s1 + $0x138] sm:$0xf]
  %v128 = vld [vmem:[%s1 + $0x13c] sm:$0xf]
  %v129 = vld [vmem:[%s1 + $0x140] sm:$0xf]
  %v130 = vld [vmem:[%s1 + $0x144] sm:$0xf]
  %v131 = vld [vmem:[%s1 + $0x148] sm:$0xf]
  %v132 = vld [vmem:[%s1 + $0x14c] sm:$0xf]
  %v133 = vld [vmem:[%s1 + $0x150] sm:$0xf]
  %v134 = vld [vmem:[%s1 + $0x154] sm:$0xf]
  %v135 = vld [vmem:[%s1 + $0x158] sm:$0xf]
  %v136 = vld [vmem:[%s1 + $0x15c] sm:$0xf]
  %v137 = vld [vmem:[%s1 + $0x160] sm:$0xf]
  %v138 = vld [vmem:[%s1 + $0x164] sm:$0xf]
  %v139 = vld [vmem:[%s1 + $0x168] sm:$0xf]
  %v140 = vld [vmem:[%s1 + $0x16c] sm:$0xf]
  %v141 = vld [vmem:[%s1 + $0x170] sm:$0xf]
  %v142 = vld [vmem:[%s1 + $0x174] sm:$0xf]
  %v143 = vld [vmem:[%s1 + $0x178] sm:$0xf]
  %v144 = vld [vmem:[%s1 + $0x17c] sm:$0xf]
  %v145 = vld [vmem:[%s1 + $0x180] sm:$0xf]
  %v146 = vld [vmem:[%s1 + $0x184] sm:$0xf]
  %v147 = vld [vmem:[%s1 + $0x188] sm:$0xf]
  %v148 = vld [vmem:[%s1 + $0x18c] sm:$0xf]
  %v149 = vld [vmem:[%s1 + $0x190] sm:$0xf]
  %v150 = vld [vmem:[%s1 + $0x194] sm:$0xf]
  %v151 = vld [vmem:[%s1 + $0x198] sm:$0xf]
  %v152 = vld [vmem:[%s1 + $0x19c] sm:$0xf]
  %v153 = vld [vmem:[%s1 + $0x1a0] sm:$0xf]
  %v154 = vld [vmem:[%s1 + $0x1a4] sm:$0xf]
  %v155 = vld [vmem:[%s1 + $0x1a8] sm:$0xf]
  %v156 = vld [vmem:[%s1 + $0x1ac] sm:$0xf]
  %v157 = vld [vmem:[%s1 + $0x1b0] sm:$0xf]
  %v158 = vld [vmem:[%s1 + $0x1b4] sm:$0xf]
  %v159 = vld [vmem:[%s1 + $0x1b8] sm:$0xf]
  %v160 = vld [vmem:[%s1 + $0x1bc] sm:$0xf]
  %v161 = vld [vmem:[%s1 + $0x1c0] sm:$0xf]
  %v162 = vld [vmem:[%s1 + $0x1c4] sm:$0xf]
  %v163 = vld [vmem:[%s1 + $0x1c8] sm:$0xf]
  %v164 = vld [vmem:[%s1 + $0x1cc] sm:$0xf]
  %v165 = vld [vmem:[%s1 + $0x1d0] sm:$0xf]
  %v166 = vld [vmem:[%s1 + $0x1d4] sm:$0xf]
  %v167 = vld [vmem:[%s1 + $0x1d8] sm:$0xf]
  %v168 = vld [vmem:[%s1 + $0x1dc] sm:$0xf]
  %v169 = vld [vmem:[%s1 + $0x1e0] sm:$0xf]
  %v170 = vld [vmem:[%s1 + $0x1e4] sm:$0xf]
  %v171 = vld [vmem:[%s1 + $0x1e8] sm:$0xf]
  %v172 = vld [vmem:[%s1 + $0x1ec] sm:$0xf]
  %v173 = vld [vmem:[%s1 + $0x1f0] sm:$0xf]
  %v174 = vld [vmem:[%s1 + $0x1f4] sm:$0xf]
  %v175 = vld [vmem:[%s1 + $0x1f8] sm:$0xf]
  %v176 = vld [vmem:[%s1 + $0x1fc] sm:$0xf]
  %v177 = vld [vmem:[%s1 + $0x200] sm:$0xf]
  %v178 = vld [vmem:[%s1 + $0x204] sm:$0xf]
  %v179 = vld [vmem:[%s1 + $0x208] sm:$0xf]
  %v180 = vld [vmem:[%s1 + $0x20c] sm:$0xf]
  %v181 = vld [vmem:[%s1 + $0x210] sm:$0xf]
  %v182 = vld [vmem:[%s1 + $0x214] sm:$0xf]
  %v183 = vld [vmem:[%s1 + $0x218] sm:$0xf]
  %v184 = vld [vmem:[%s1 + $0x21c] sm:$0xf]
  %v185 = vld [vmem:[%s1 + $0x220] sm:$0xf]
  %v186 = vld [vmem:[%s1 + $0x224] sm:$0xf]
  %v187 = vld [vmem:[%s1 + $0x228] sm:$0xf]
  %v188 = vld [vmem:[%s1 + $0x22c] sm:$0xf]
  %v189 = vld [vmem:[%s1 + $0x230] sm:$0xf]
  %v190 = vld [vmem:[%s1 + $0x234] sm:$0xf]
  %v191 = vld [vmem:[%s1 + $0x238] sm:$0xf]
  %v192 = vld [vmem:[%s1 + $0x23c] sm:$0xf]
  %v193 = vld [vmem:[%s1 + $0x240] sm:$0xf]
  %v194 = vld [vmem:[%s1 + $0x244] sm:$0xf]
  %v195 = vld [vmem:[%s1 + $0x248] sm:$0xf]
  %v196 = vld [vmem:[%s1 + $0x24c] sm:$0xf]
  %v197 = vld [vmem:[%s1 + $0x250] sm:$0xf]
  %v198 = vld [vmem:[%s1 + $0x254] sm:$0xf]
  %v199 = vld [vmem:[%s1 + $0x258] sm:$0xf]
  %v200 = vld [vmem:[%s1 + $0x25c] sm:$0xf]
  %v201 = vld [vmem:[%s1 + $0x260] sm:$0xf]
  %v202 = vld [vmem:[%s1 + $0x264] sm:$0xf]
  %v203 = vld [vmem:[%s1 + $0x268] sm:$0xf]
  %v204 = vld [vmem:[%s1 + $0x26c] sm:$0xf]
  %v205 = vld [vmem:[%s1 + $0x270] sm:$0xf]
  %v206 = vld [vmem:[%s1 + $0x274] sm:$0xf]
  %v207 = vld [vmem:[%s1 + $0x278] sm:$0xf]
  %v208 = vld [vmem:[%s1 + $0x27c] sm:$0xf]
  %v209 = vld [vmem:[%s1 + $0x280] sm:$0xf]
  %v210 = vld [vmem:[%s1 + $0x284] sm:$0xf]
  %v211 = vld [vmem:[%s1 + $0x288] sm:$0xf]
  %v212 = vld [vmem:[%s1 + $0x28c] sm:$0xf]
  %v213 = vld [vmem:[%s1 + $0x290] sm:$0xf]
  %v214 = vld [vmem:[%s1 + $0x294] sm:$0xf]
  %v215 = vld [vmem:[%s1 + $0x298] sm:$0xf]
  %v216 = vld [vmem:[%s1 + $0x29c] sm:$0xf]
  %v217 = vld [vmem:[%s1 + $0x2a0] sm:$0xf]
  %v218 = vld [vmem:[%s1 + $0x2a4] sm:$0xf]
  %v219 = vld [vmem:[%s1 + $0x2a8] sm:$0xf]
  %v220 = vld [vmem:[%s1 + $0x2ac] sm:$0xf]
  %v221 = vld [vmem:[%s1 + $0x2b0] sm:$0xf]
  %v222 = vld [vmem:[%s1 + $0x2b4] sm:$0xf]
  %v223 = vld [vmem:[%s1 + $0x2b8] sm:$0xf]
  %v224 = vld [vmem:[%s1 + $0x2bc] sm:$0xf]
  %v225 = vld [vmem:[%s1 + $0x2c0] sm:$0xf]
  %v226 = vld [vmem:[%s1 + $0x2c4] sm:$0xf]
  %v227 = vld [vmem:[%s1 + $0x2c8] sm:$0xf]
  %v228 = vld [vmem:[%s1 + $0x2cc] sm:$0xf]
  %v229 = vld [vmem:[%s1 + $0x2d0] sm:$0xf]
  %v230 = vld [vmem:[%s1 + $0x2d4] sm:$0xf]
  %v231 = vld [vmem:[%s1 + $0x2d8] sm:$0xf]
  %v232 = vld [vmem:[%s1 + $0x2dc] sm:$0xf]
  %v233 = vld [vmem:[%s1 + $0x2e0] sm:$0xf]
  %v234 = vld [vmem:[%s1 + $0x2e4] sm:$0xf]
  %v235 = vld [vmem:[%s1 + $0x2e8] sm:$0xf]
  %v236 = vld [vmem:[%s1 + $0x2ec] sm:$0xf]
  %v237 = vld [vmem:[%s1 + $0x2f0] sm:$0xf]
  %v238 = vld [vmem:[%s1 + $0x2f4] sm:$0xf]
  %v239 = vld [vmem:[%s1 + $0x2f8] sm:$0xf]
  %v240 = vld [vmem:[%s1 + $0x2fc] sm:$0xf]
  %v241 = vld [vmem:[%s1 + $0x300] sm:$0xf]
  %v242 = vld [vmem:[%s1 + $0x304] sm:$0xf]
  %v243 = vld [vmem:[%s1 + $0x308] sm:$0xf]
  %v244 = vld [vmem:[%s1 + $0x30c] sm:$0xf]
  %v245 = vld [vmem:[%s1 + $0x310] sm:$0xf]
  %v246 = vld [vmem:[%s1 + $0x314] sm:$0xf]
  %v247 = vld [vmem:[%s1 + $0x318] sm:$0xf]
  %v248 = vld [vmem:[%s1 + $0x31c] sm:$0xf]
  %v249 = vld [vmem:[%s1 + $0x320] sm:$0xf]
  %v250 = vld [vmem:[%s1 + $0x324] sm:$0xf]
  %v251 = vld [vmem:[%s1 + $0x328] sm:$0xf]
  %v252 = vld [vmem:[%s1 + $0x32c] sm:$0xf]
  %v253 = vld [vmem:[%s1 + $0x330] sm:$0xf]
  %v254 = vld [vmem:[%s1 + $0x334] sm:$0xf]
  %v255 = vld [vmem:[%s1 + $0x338] sm:$0xf]
  %v256 = vld [vmem:[%s1 + $0x33c] sm:$0xf]
  %v257 = vld [vmem:[%s1 + $0x340] sm:$0xf]
  %v258 = vld [vmem:[%s1 + $0x344] sm:$0xf]
  %v259 = vld [vmem:[%s1 + $0x348] sm:$0xf]
  %v260 = vld [vmem:[%s1 + $0x34c] sm:$0xf]
  %v261 = vld [vmem:[%s1 + $0x350] sm:$0xf]
  %v262 = vld [vmem:[%s1 + $0x354] sm:$0xf]
  %v263 = vld [vmem:[%s1 + $0x358] sm:$0xf]
  %v264 = vld [vmem:[%s1 + $0x35c] sm:$0xf]
  %v265 = vld [vmem:[%s1 + $0x360] sm:$0xf]
  %v266 = vld [vmem:[%s1 + $0x364] sm:$0xf]
  %v267 = vld [vmem:[%s1 + $0x368] sm:$0xf]
  %v268 = vld [vmem:[%s1 + $0x36c] sm:$0xf]
  %v269 = vld [vmem:[%s1 + $0x370] sm:$0xf]
  %v270 = vld [vmem:[%s1 + $0x374] sm:$0xf]
  %v271 = vld [vmem:[%s1 + $0x378] sm:$0xf]
  %v272 = vld [vmem:[%s1 + $0x37c] sm:$0xf]
  %v273 = vld [vmem:[%s1 + $0x380] sm:$0xf]
  %v274 = vld [vmem:[%s1 + $0x384] sm:$0xf]
  %v275 = vld [vmem:[%s1 + $0x388] sm:$0xf]
  %v276 = vld [vmem:[%s1 + $0x38c] sm:$0xf]
  %v277 = vld [vmem:[%s1 + $0x390] sm:$0xf]
  %v278 = vld [vmem:[%s1 + $0x394] sm:$0xf]
  %v279 = vld [vmem:[%s1 + $0x398] sm:$0xf]
  %v280 = vld [vmem:[%s1 + $0x39c] sm:$0xf]
  %v281 = vld [vmem:[%s1 + $0x3a0] sm:$0xf]
  %v282 = vld [vmem:[%s1 + $0x3a4] sm:$0xf]
  %v283 = vld [vmem:[%s1 + $0x3a8] sm:$0xf]
  %v284 = vld [vmem:[%s1 + $0x3ac] sm:$0xf]
  %v285 = vld [vmem:[%s1 + $0x3b0] sm:$0xf]
  %v286 = vld [vmem:[%s1 + $0x3b4] sm:$0xf]
  %v287 = vld [vmem:[%s1 + $0x3b8] sm:$0xf]
  %v288 = vld [vmem:[%s1 + $0x3bc] sm:$0xf]
  %v289 = vld [vmem:[%s1 + $0x3c0] sm:$0xf]
  %v290 = vld [vmem:[%s1 + $0x3c4] sm:$0xf]
  %v291 = vld [vmem:[%s1 + $0x3c8] sm:$0xf]
  %v292 = vld [vmem:[%s1 + $0x3cc] sm:$0xf]
  %v293 = vld [vmem:[%s1 + $0x3d0] sm:$0xf]
  %v294 = vld [vmem:[%s1 + $0x3d4] sm:$0xf]
  %v295 = vld [vmem:[%s1 + $0x3d8] sm:$0xf]
  %v296 = vld [vmem:[%s1 + $0x3dc] sm:$0xf]
  %v297 = vld [vmem:[%s1 + $0x3e0] sm:$0xf]
  %v298 = vld [vmem:[%s1 + $0x3e4] sm:$0xf]
  %v299 = vld [vmem:[%s1 + $0x3e8] sm:$0xf]
  %v300 = vld [vmem:[%s1 + $0x3ec] sm:$0xf]
  %v301 = vld [vmem:[%s1 + $0x3f0] sm:$0xf]
  %v302 = vld [vmem:[%s1 + $0x3f4] sm:$0xf]
  %v303 = vld [vmem:[%s1 + $0x3f8] sm:$0xf]
  %v304 = vld [vmem:[%s1 + $0x3fc] sm:$0xf]
  %v305 = vld [vmem:[%s1 + $0x400] sm:$0xf]
  %v306 = vld [vmem:[%s1 + $0x404] sm:$0xf]
  %v307 = vld [vmem:[%s1 + $0x408] sm:$0xf]
  %v308 = vld [vmem:[%s1 + $0x40c] sm:$0xf]
  %v309 = vld [vmem:[%s1 + $0x410] sm:$0xf]
  %v310 = vld [vmem:[%s1 + $0x414] sm:$0xf]
  %v311 = vld [vmem:[%s1 + $0x418] sm:$0xf]
  %v312 = vld [vmem:[%s1 + $0x41c] sm:$0xf]
  %v313 = vld [vmem:[%s1 + $0x420] sm:$0xf]
  %v314 = vld [vmem:[%s1 + $0x424] sm:$0xf]
  %v315 = vld [vmem:[%s1 + $0x428] sm:$0xf]
  %v316 = vld [vmem:[%s1 + $0x42c] sm:$0xf]
  %v317 = vld [vmem:[%s1 + $0x430] sm:$0xf]
  %v318 = vld [vmem:[%s1 + $0x434] sm:$0xf]
  %v319 = vld [vmem:[%s1 + $0x438] sm:$0xf]
  %v320 = vld [vmem:[%s1 + $0x43c] sm:$0xf]
  %v321 = vld [vmem:[%s1 + $0x440] sm:$0xf]
  %v322 = vld [vmem:[%s1 + $0x444] sm:$0xf]
  %v323 = vld [vmem:[%s1 + $0x448] sm:$0xf]
  %v324 = vld [vmem:[%s1 + $0x44c] sm:$0xf]
  %v325 = vld [vmem:[%s1 + $0x450] sm:$0xf]
  %v326 = vld [vmem:[%s1 + $0x454] sm:$0xf]
  %v327 = vld [vmem:[%s1 + $0x458] sm:$0xf]
  %v328 = vld [vmem:[%s1 + $0x45c] sm:$0xf]
  %v329 = vld [vmem:[%s1 + $0x460] sm:$0xf]
  %v330 = vld [vmem:[%s1 + $0x464] sm:$0xf]
  %v331 = vld [vmem:[%s1 + $0x468] sm:$0xf]
  %v332 = vld [vmem:[%s1 + $0x46c] sm:$0xf]
  %v333 = vld [vmem:[%s1 + $0x470] sm:$0xf]
  %v334 = vld [vmem:[%s1 + $0x474] sm:$0xf]
  %v335 = vld [vmem:[%s1 + $0x478] sm:$0xf]
  %v336 = vld [vmem:[%s1 + $0x47c] sm:$0xf]
  %v337 = vld [vmem:[%s1 + $0x480] sm:$0xf]
  %v338 = vld [vmem:[%s1 + $0x484] sm:$0xf]
  %v339 = vld [vmem:[%s1 + $0x488] sm:$0xf]
  %v340 = vld [vmem:[%s1 + $0x48c] sm:$0xf]
  %v341 = vld [vmem:[%s1 + $0x490] sm:$0xf]
  %v342 = vld [vmem:[%s1 + $0x494] sm:$0xf]
  %v343 = vld [vmem:[%s1 + $0x498] sm:$0xf]
  %v344 = vld [vmem:[%s1 + $0x49c] sm:$0xf]
  %v345 = vld [vmem:[%s1 + $0x4a0] sm:$0xf]
  %v346 = vld [vmem:[%s1 + $0x4a4] sm:$0xf]
  %v347 = vld [vmem:[%s1 + $0x4a8] sm:$0xf]
  %v348 = vld [vmem:[%s1 + $0x4ac] sm:$0xf]
  %v349 = vld [vmem:[%s1 + $0x4b0] sm:$0xf]
  %v350 = vld [vmem:[%s1 + $0x4b4] sm:$0xf]
  %v351 = vld [vmem:[%s1 + $0x4b8] sm:$0xf]
  %v352 = vld [vmem:[%s1 + $0x4bc] sm:$0xf]
  %v353 = vld [vmem:[%s1 + $0x4c0] sm:$0xf]
  %v354 = vld [vmem:[%s1 + $0x4c4] sm:$0xf]
  %v355 = vld [vmem:[%s1 + $0x4c8] sm:$0xf]
  %v356 = vld [vmem:[%s1 + $0x4cc] sm:$0xf]
  %v357 = vld [vmem:[%s1 + $0x4d0] sm:$0xf]
  %v358 = vld [vmem:[%s1 + $0x4d4] sm:$0xf]
  %v359 = vld [vmem:[%s1 + $0x4d8] sm:$0xf]
  %v360 = vld [vmem:[%s1 + $0x4dc] sm:$0xf]
  %v361 = vld [vmem:[%s1 + $0x4e0] sm:$0xf]
  %v362 = vld [vmem:[%s1 + $0x4e4] sm:$0xf]
  %v363 = vld [vmem:[%s1 + $0x4e8] sm:$0xf]
  %v364 = vld [vmem:[%s1 + $0x4ec] sm:$0xf]
  %v365 = vld [vmem:[%s1 + $0x4f0] sm:$0xf]
  %v366 = vld [vmem:[%s1 + $0x4f4] sm:$0xf]
  %v367 = vld [vmem:[%s1 + $0x4f8] sm:$0xf]
  %v368 = vld [vmem:[%s1 + $0x4fc] sm:$0xf]
  %v369 = vld [vmem:[%s1 + $0x500] sm:$0xf]
  %v370 = vld [vmem:[%s1 + $0x504] sm:$0xf]
  %v371 = vld [vmem:[%s1 + $0x508] sm:$0xf]
  %v372 = vld [vmem:[%s1 + $0x50c] sm:$0xf]
  %v373 = vld [vmem:[%s1 + $0x510] sm:$0xf]
  %v374 = vld [vmem:[%s1 + $0x514] sm:$0xf]
  %v375 = vld [vmem:[%s1 + $0x518] sm:$0xf]
  %v376 = vld [vmem:[%s1 + $0x51c] sm:$0xf]
  %v377 = vld [vmem:[%s1 + $0x520] sm:$0xf]
  %v378 = vld [vmem:[%s1 + $0x524] sm:$0xf]
  %v379 = vld [vmem:[%s1 + $0x528] sm:$0xf]
  %v380 = vld [vmem:[%s1 + $0x52c] sm:$0xf]
  %v381 = vld [vmem:[%s1 + $0x530] sm:$0xf]
  %v382 = vld [vmem:[%s1 + $0x534] sm:$0xf]
  %v383 = vld [vmem:[%s1 + $0x538] sm:$0xf]
  %v384 = vld [vmem:[%s1 + $0x53c] sm:$0xf]
  %v385 = vld [vmem:[%s1 + $0x540] sm:$0xf]
  %v386 = vld [vmem:[%s1 + $0x544] sm:$0xf]
  %v387 = vld [vmem:[%s1 + $0x548] sm:$0xf]
  %v388 = vld [vmem:[%s1 + $0x54c] sm:$0xf]
  %v389 = vld [vmem:[%s1 + $0x550] sm:$0xf]
  %v390 = vld [vmem:[%s1 + $0x554] sm:$0xf]
  %v391 = vld [vmem:[%s1 + $0x558] sm:$0xf]
  %v392 = vld [vmem:[%s1 + $0x55c] sm:$0xf]
  %v393 = vld [vmem:[%s1 + $0x560] sm:$0xf]
  %v394 = vld [vmem:[%s1 + $0x564] sm:$0xf]
  %v395 = vld [vmem:[%s1 + $0x568] sm:$0xf]
  %v396 = vld [vmem:[%s1 + $0x56c] sm:$0xf]
  %v397 = vld [vmem:[%s1 + $0x570] sm:$0xf]
  %v398 = vld [vmem:[%s1 + $0x574] sm:$0xf]
  %v399 = vld [vmem:[%s1 + $0x578] sm:$0xf]
  %v400 = vld [vmem:[%s1 + $0x57c] sm:$0xf]
  %v401 = vld [vmem:[%s1 + $0x580] sm:$0xf]
  %v402 = vld [vmem:[%s1 + $0x584] sm:$0xf]
  %v403 = vld [vmem:[%s1 + $0x588] sm:$0xf]
  %v404 = vld [vmem:[%s1 + $0x58c] sm:$0xf]
  %v405 = vld [vmem:[%s1 + $0x590] sm:$0xf]
  %v406 = vld [vmem:[%s1 + $0x594] sm:$0xf]
  %v407 = vld [vmem:[%s1 + $0x598] sm:$0xf]
  %v408 = vld [vmem:[%s1 + $0x59c] sm:$0xf]
  %v409 = vld [vmem:[%s1 + $0x5a0] sm:$0xf]
  %v410 = vld [vmem:[%s1 + $0x5a4] sm:$0xf]
  %v411 = vld [vmem:[%s1 + $0x5a8] sm:$0xf]
  %v412 = vld [vmem:[%s1 + $0x5ac] sm:$0xf]
  %v413 = vld [vmem:[%s1 + $0x5b0] sm:$0xf]
  %v414 = vld [vmem:[%s1 + $0x5b4] sm:$0xf]
  %v415 = vld [vmem:[%s1 + $0x5b8] sm:$0xf]
  %v416 = vld [vmem:[%s1 + $0x5bc] sm:$0xf]
  %v417 = vld [vmem:[%s1 + $0x5c0] sm:$0xf]
  %v418 = vld [vmem:[%s1 + $0x5c4] sm:$0xf]
  %v419 = vld [vmem:[%s1 + $0x5c8] sm:$0xf]
  %v420 = vld [vmem:[%s1 + $0x5cc] sm:$0xf]
  %v421 = vld [vmem:[%s1 + $0x5d0] sm:$0xf]
  %v422 = vld [vmem:[%s1 + $0x5d4] sm:$0xf]
  %v423 = vld [vmem:[%s1 + $0x5d8] sm:$0xf]
  %v424 = vld [vmem:[%s1 + $0x5dc] sm:$0xf]
  %v425 = vld [vmem:[%s1 + $0x5e0] sm:$0xf]
  %v426 = vld [vmem:[%s1 + $0x5e4] sm:$0xf]
  %v427 = vld [vmem:[%s1 + $0x5e8] sm:$0xf]
  %v428 = vld [vmem:[%s1 + $0x5ec] sm:$0xf]
  %v429 = vld [vmem:[%s1 + $0x5f0] sm:$0xf]
  %v430 = vld [vmem:[%s1 + $0x5f4] sm:$0xf]
  %v431 = vld [vmem:[%s1 + $0x5f8] sm:$0xf]
  %v432 = vld [vmem:[%s1 + $0x5fc] sm:$0xf]
  %v433 = vld [vmem:[%s1 + $0x600] sm:$0xf]
  %v434 = vld [vmem:[%s1 + $0x604] sm:$0xf]
  %v435 = vld [vmem:[%s1 + $0x608] sm:$0xf]
  %v436 = vld [vmem:[%s1 + $0x60c] sm:$0xf]
  %v437 = vld [vmem:[%s1 + $0x610] sm:$0xf]
  %v438 = vld [vmem:[%s1 + $0x614] sm:$0xf]
  %v439 = vld [vmem:[%s1 + $0x618] sm:$0xf]
  %v440 = vld [vmem:[%s1 + $0x61c] sm:$0xf]
  %v441 = vld [vmem:[%s1 + $0x620] sm:$0xf]
  %v442 = vld [vmem:[%s1 + $0x624] sm:$0xf]
  %v443 = vld [vmem:[%s1 + $0x628] sm:$0xf]
  %v444 = vld [vmem:[%s1 + $0x62c] sm:$0xf]
  %v445 = vld [vmem:[%s1 + $0x630] sm:$0xf]
  %v446 = vld [vmem:[%s1 + $0x634] sm:$0xf]
  %v447 = vld [vmem:[%s1 + $0x638] sm:$0xf]
  %v448 = vld [vmem:[%s1 + $0x63c] sm:$0xf]
  %v449 = vld [vmem:[%s1 + $0x640] sm:$0xf]
  %v450 = vld [vmem:[%s1 + $0x644] sm:$0xf]
  %v451 = vld [vmem:[%s1 + $0x648] sm:$0xf]
  %v452 = vld [vmem:[%s1 + $0x64c] sm:$0xf]
  %v453 = vld [vmem:[%s1 + $0x650] sm:$0xf]
  %v454 = vld [vmem:[%s1 + $0x654] sm:$0xf]
  %v455 = vld [vmem:[%s1 + $0x658] sm:$0xf]
  %v456 = vld [vmem:[%s1 + $0x65c] sm:$0xf]
  %v457 = vld [vmem:[%s1 + $0x660] sm:$0xf]
  %v458 = vld [vmem:[%s1 + $0x664] sm:$0xf]
  %v459 = vld [vmem:[%s1 + $0x668] sm:$0xf]
  %v460 = vld [vmem:[%s1 + $0x66c] sm:$0xf]
  %v461 = vld [vmem:[%s1 + $0x670] sm:$0xf]
  %v462 = vld [vmem:[%s1 + $0x674] sm:$0xf]
  %v463 = vld [vmem:[%s1 + $0x678] sm:$0xf]
  %v464 = vld [vmem:[%s1 + $0x67c] sm:$0xf]
  %v465 = vld [vmem:[%s1 + $0x680] sm:$0xf]
  %v466 = vld [vmem:[%s1 + $0x684] sm:$0xf]
  %v467 = vld [vmem:[%s1 + $0x688] sm:$0xf]
  %v468 = vld [vmem:[%s1 + $0x68c] sm:$0xf]
  %v469 = vld [vmem:[%s1 + $0x690] sm:$0xf]
  %v470 = vld [vmem:[%s1 + $0x694] sm:$0xf]
  %v471 = vld [vmem:[%s1 + $0x698] sm:$0x3]
  %v472 = vld [vmem:[%s2] sm:$0x1]
  %v474 = vlaneseq
  %v475 = vshrl.u32 %v474, 7
  %v476 = vsub.s32 0, %v475
  %v477 = vrot.slane %v472, %v476
  %v507 = vunpack.c.l.b16 %v21
  %v508 = vunpack.c.h.b16 %v21
  %v509 = vunpack.c.l.b16 %v22
  %v510 = vunpack.c.h.b16 %v22
  %v511 = vunpack.c.l.b16 %v23
  %v512 = vunpack.c.h.b16 %v23
  %v513 = vunpack.c.l.b16 %v24
  %v514 = vunpack.c.h.b16 %v24
  %v515 = vunpack.c.l.b16 %v25
  %v516 = vunpack.c.h.b16 %v25
  %v517 = vunpack.c.l.b16 %v26
  %v518 = vunpack.c.h.b16 %v26
  %v519 = vunpack.c.l.b16 %v27
  %v520 = vunpack.c.h.b16 %v27
  %v521 = vunpack.c.l.b16 %v28
  %v522 = vunpack.c.h.b16 %v28
  %v523 = vunpack.c.l.b16 %v29
  %v524 = vunpack.c.h.b16 %v29
  %v525 = vunpack.c.l.b16 %v30
  %v526 = vunpack.c.h.b16 %v30
  %v527 = vunpack.c.l.b16 %v31
  %v528 = vunpack.c.h.b16 %v31
  %v529 = vunpack.c.l.b16 %v32
  %v530 = vunpack.c.h.b16 %v32
  %v531 = vunpack.c.l.b16 %v33
  %v532 = vunpack.c.h.b16 %v33
  %v533 = vunpack.c.l.b16 %v34
  %v534 = vunpack.c.l.b16 %v35
  %v535 = vunpack.c.h.b16 %v35
  %v536 = vunpack.c.l.b16 %v36
  %v537 = vunpack.c.h.b16 %v36
  %v538 = vunpack.c.l.b16 %v37
  %v539 = vunpack.c.h.b16 %v37
  %v540 = vunpack.c.l.b16 %v38
  %v541 = vunpack.c.h.b16 %v38
  %v542 = vunpack.c.l.b16 %v39
  %v543 = vunpack.c.h.b16 %v39
  %v544 = vunpack.c.l.b16 %v40
  %v545 = vunpack.c.h.b16 %v40
  %v546 = vunpack.c.l.b16 %v41
  %v547 = vunpack.c.h.b16 %v41
  %v548 = vunpack.c.l.b16 %v42
  %v549 = vunpack.c.h.b16 %v42
  %v550 = vunpack.c.l.b16 %v43
  %v551 = vunpack.c.h.b16 %v43
  %v552 = vunpack.c.l.b16 %v44
  %v553 = vunpack.c.h.b16 %v44
  %v554 = vunpack.c.l.b16 %v45
  %v555 = vunpack.c.h.b16 %v45
  %v556 = vunpack.c.l.b16 %v46
  %v557 = vunpack.c.h.b16 %v46
  %v558 = vunpack.c.l.b16 %v47
  %v559 = vunpack.c.h.b16 %v47
  %v560 = vunpack.c.l.b16 %v48
  %v561 = vpack.c.b16 %v534, %v507
  %v562 = vpack.c.b16 %v535, %v508
  %v563 = vpack.c.b16 %v536, %v509
  %v564 = vpack.c.b16 %v537, %v510
  %v565 = vpack.c.b16 %v538, %v511
  %v566 = vpack.c.b16 %v539, %v512
  %v567 = vpack.c.b16 %v540, %v513
  %v568 = vpack.c.b16 %v541, %v514
  %v569 = vpack.c.b16 %v542, %v515
  %v570 = vpack.c.b16 %v543, %v516
  %v571 = vpack.c.b16 %v544, %v517
  %v572 = vpack.c.b16 %v545, %v518
  %v573 = vpack.c.b16 %v546, %v519
  %v574 = vpack.c.b16 %v547, %v520
  %v575 = vpack.c.b16 %v548, %v521
  %v576 = vpack.c.b16 %v549, %v522
  %v577 = vpack.c.b16 %v550, %v523
  %v578 = vpack.c.b16 %v551, %v524
  %v579 = vpack.c.b16 %v552, %v525
  %v580 = vpack.c.b16 %v553, %v526
  %v581 = vpack.c.b16 %v554, %v527
  %v582 = vpack.c.b16 %v555, %v528
  %v583 = vpack.c.b16 %v556, %v529
  %v584 = vpack.c.b16 %v557, %v530
  %v585 = vpack.c.b16 %v558, %v531
  %v586 = vpack.c.b16 %v559, %v532
  %v587 = vpack.c.b16 %v560, %v533
  %v1037 = vunpack.c.l.b16 %v49
  %v1038 = vunpack.c.l.b16 %v50
  %v1039 = vunpack.c.l.b16 %v51
  %v1040 = vunpack.c.l.b16 %v52
  %v1041 = vunpack.c.l.b16 %v53
  %v1042 = vunpack.c.l.b16 %v54
  %v1043 = vunpack.c.l.b16 %v55
  %v1044 = vunpack.c.l.b16 %v56
  %v1045 = vunpack.c.l.b16 %v57
  %v1046 = vunpack.c.l.b16 %v58
  %v1047 = vunpack.c.l.b16 %v59
  %v1048 = vunpack.c.l.b16 %v60
  %v1049 = vunpack.c.l.b16 %v61
  %v1050 = vunpack.c.l.b16 %v62
  %v1051 = vunpack.c.l.b16 %v63
  %v1052 = vunpack.c.l.b16 %v64
  %v1053 = vunpack.c.l.b16 %v65
  %v1054 = vunpack.c.l.b16 %v66
  %v1055 = vunpack.c.l.b16 %v67
  %v1056 = vunpack.c.l.b16 %v68
  %v1057 = vunpack.c.l.b16 %v69
  %v1058 = vunpack.c.l.b16 %v70
  %v1059 = vunpack.c.l.b16 %v71
  %v1060 = vunpack.c.l.b16 %v72
  %v1061 = vunpack.c.l.b16 %v73
  %v1062 = vunpack.c.l.b16 %v74
  %v1063 = vunpack.c.l.b16 %v75
  %v1064 = vunpack.c.l.b16 %v76
  %v1065 = vunpack.c.l.b16 %v77
  %v1066 = vunpack.c.l.b16 %v78
  %v1067 = vunpack.c.l.b16 %v79
  %v1068 = vunpack.c.l.b16 %v80
  %v1069 = vunpack.c.l.b16 %v81
  %v1070 = vunpack.c.l.b16 %v82
  %v1071 = vunpack.c.l.b16 %v83
  %v1072 = vunpack.c.l.b16 %v84
  %v1073 = vunpack.c.l.b16 %v85
  %v1074 = vunpack.c.l.b16 %v86
  %v1075 = vunpack.c.l.b16 %v87
  %v1076 = vunpack.c.l.b16 %v88
  %v1077 = vunpack.c.l.b16 %v89
  %v1078 = vunpack.c.l.b16 %v90
  %v1079 = vunpack.c.l.b16 %v91
  %v1080 = vunpack.c.l.b16 %v92
  %v1081 = vunpack.c.l.b16 %v93
  %v1082 = vunpack.c.l.b16 %v94
  %v1083 = vunpack.c.l.b16 %v95
  %v1084 = vunpack.c.l.b16 %v96
  %v1085 = vunpack.c.l.b16 %v97
  %v1086 = vunpack.c.l.b16 %v98
  %v1087 = vunpack.c.l.b16 %v99
  %v1088 = vunpack.c.l.b16 %v100
  %v1089 = vunpack.c.l.b16 %v101
  %v1090 = vunpack.c.l.b16 %v102
  %v1091 = vunpack.c.l.b16 %v103
  %v1092 = vunpack.c.l.b16 %v104
  %v1093 = vunpack.c.l.b16 %v105
  %v1094 = vunpack.c.l.b16 %v106
  %v1095 = vunpack.c.l.b16 %v107
  %v1096 = vunpack.c.l.b16 %v108
  %v1097 = vunpack.c.l.b16 %v109
  %v1098 = vunpack.c.l.b16 %v110
  %v1099 = vunpack.c.l.b16 %v111
  %v1100 = vunpack.c.l.b16 %v112
  %v1101 = vunpack.c.l.b16 %v113
  %v1102 = vunpack.c.l.b16 %v114
  %v1103 = vunpack.c.l.b16 %v115
  %v1104 = vunpack.c.l.b16 %v116
  %v1105 = vunpack.c.l.b16 %v117
  %v1106 = vunpack.c.l.b16 %v118
  %v1107 = vunpack.c.l.b16 %v119
  %v1108 = vunpack.c.l.b16 %v120
  %v1109 = vunpack.c.l.b16 %v121
  %v1110 = vunpack.c.l.b16 %v122
  %v1111 = vunpack.c.l.b16 %v123
  %v1112 = vunpack.c.l.b16 %v124
  %v1113 = vunpack.c.l.b16 %v125
  %v1114 = vunpack.c.l.b16 %v126
  %v1115 = vunpack.c.l.b16 %v127
  %v1116 = vunpack.c.l.b16 %v128
  %v1117 = vunpack.c.l.b16 %v129
  %v1118 = vunpack.c.l.b16 %v130
  %v1119 = vunpack.c.l.b16 %v131
  %v1120 = vunpack.c.l.b16 %v132
  %v1121 = vunpack.c.l.b16 %v133
  %v1122 = vunpack.c.l.b16 %v134
  %v1123 = vunpack.c.l.b16 %v135
  %v1124 = vunpack.c.l.b16 %v136
  %v1125 = vunpack.c.l.b16 %v137
  %v1126 = vunpack.c.l.b16 %v138
  %v1127 = vunpack.c.l.b16 %v139
  %v1128 = vunpack.c.l.b16 %v140
  %v1129 = vunpack.c.l.b16 %v141
  %v1130 = vunpack.c.l.b16 %v142
  %v1131 = vunpack.c.l.b16 %v143
  %v1132 = vunpack.c.l.b16 %v144
  %v1133 = vunpack.c.l.b16 %v145
  %v1134 = vunpack.c.l.b16 %v146
  %v1135 = vunpack.c.l.b16 %v147
  %v1136 = vunpack.c.l.b16 %v148
  %v1137 = vunpack.c.l.b16 %v149
  %v1138 = vunpack.c.l.b16 %v150
  %v1139 = vunpack.c.l.b16 %v151
  %v1140 = vunpack.c.l.b16 %v152
  %v1141 = vunpack.c.l.b16 %v153
  %v1142 = vunpack.c.l.b16 %v154
  %v1143 = vunpack.c.l.b16 %v155
  %v1144 = vunpack.c.l.b16 %v156
  %v1145 = vunpack.c.l.b16 %v157
  %v1146 = vunpack.c.l.b16 %v158
  %v1147 = vunpack.c.l.b16 %v159
  %v1148 = vunpack.c.l.b16 %v160
  %v1149 = vunpack.c.l.b16 %v161
  %v1150 = vunpack.c.l.b16 %v162
  %v1151 = vunpack.c.l.b16 %v163
  %v1152 = vunpack.c.l.b16 %v164
  %v1153 = vunpack.c.l.b16 %v165
  %v1154 = vunpack.c.l.b16 %v166
  %v1155 = vunpack.c.l.b16 %v167
  %v1156 = vunpack.c.l.b16 %v168
  %v1157 = vunpack.c.l.b16 %v169
  %v1158 = vunpack.c.l.b16 %v170
  %v1159 = vunpack.c.l.b16 %v171
  %v1160 = vunpack.c.l.b16 %v172
  %v1161 = vunpack.c.l.b16 %v173
  %v1162 = vunpack.c.l.b16 %v174
  %v1163 = vunpack.c.l.b16 %v175
  %v1164 = vunpack.c.l.b16 %v176
  %v1165 = vunpack.c.l.b16 %v177
  %v1166 = vunpack.c.l.b16 %v178
  %v1167 = vunpack.c.l.b16 %v179
  %v1168 = vunpack.c.l.b16 %v180
  %v1169 = vunpack.c.l.b16 %v181
  %v1170 = vunpack.c.l.b16 %v182
  %v1171 = vunpack.c.l.b16 %v183
  %v1172 = vunpack.c.l.b16 %v184
  %v1173 = vunpack.c.l.b16 %v185
  %v1174 = vunpack.c.l.b16 %v186
  %v1175 = vunpack.c.l.b16 %v187
  %v1176 = vunpack.c.l.b16 %v188
  %v1177 = vunpack.c.l.b16 %v189
  %v1178 = vunpack.c.l.b16 %v190
  %v1179 = vunpack.c.l.b16 %v191
  %v1180 = vunpack.c.l.b16 %v192
  %v1181 = vunpack.c.l.b16 %v193
  %v1182 = vunpack.c.l.b16 %v194
  %v1183 = vunpack.c.l.b16 %v195
  %v1184 = vunpack.c.l.b16 %v196
  %v1185 = vunpack.c.l.b16 %v197
  %v1186 = vunpack.c.l.b16 %v198
  %v1187 = vunpack.c.l.b16 %v199
  %v1188 = vunpack.c.l.b16 %v200
  %v1189 = vunpack.c.l.b16 %v201
  %v1190 = vunpack.c.l.b16 %v202
  %v1191 = vunpack.c.l.b16 %v203
  %v1192 = vunpack.c.l.b16 %v204
  %v1193 = vunpack.c.l.b16 %v205
  %v1194 = vunpack.c.l.b16 %v206
  %v1195 = vunpack.c.l.b16 %v207
  %v1196 = vunpack.c.l.b16 %v208
  %v1197 = vunpack.c.l.b16 %v209
  %v1198 = vunpack.c.l.b16 %v210
  %v1199 = vunpack.c.l.b16 %v211
  %v1200 = vunpack.c.l.b16 %v212
  %v1201 = vunpack.c.l.b16 %v213
  %v1202 = vunpack.c.l.b16 %v214
  %v1203 = vunpack.c.l.b16 %v215
  %v1204 = vunpack.c.l.b16 %v216
  %v1205 = vunpack.c.l.b16 %v217
  %v1206 = vunpack.c.l.b16 %v218
  %v1207 = vunpack.c.l.b16 %v219
  %v1208 = vunpack.c.l.b16 %v220
  %v1209 = vunpack.c.l.b16 %v221
  %v1210 = vunpack.c.l.b16 %v222
  %v1211 = vunpack.c.l.b16 %v223
  %v1212 = vunpack.c.l.b16 %v224
  %v1213 = vunpack.c.l.b16 %v225
  %v1214 = vunpack.c.l.b16 %v226
  %v1215 = vunpack.c.l.b16 %v227
  %v1216 = vunpack.c.l.b16 %v228
  %v1217 = vunpack.c.l.b16 %v229
  %v1218 = vunpack.c.l.b16 %v230
  %v1219 = vunpack.c.l.b16 %v231
  %v1220 = vunpack.c.l.b16 %v232
  %v1221 = vunpack.c.l.b16 %v233
  %v1222 = vunpack.c.l.b16 %v234
  %v1223 = vunpack.c.l.b16 %v235
  %v1224 = vunpack.c.l.b16 %v236
  %v1225 = vunpack.c.l.b16 %v237
  %v1226 = vunpack.c.l.b16 %v238
  %v1227 = vunpack.c.l.b16 %v239
  %v1228 = vunpack.c.l.b16 %v240
  %v1229 = vunpack.c.l.b16 %v241
  %v1230 = vunpack.c.l.b16 %v242
  %v1231 = vunpack.c.l.b16 %v243
  %v1232 = vunpack.c.l.b16 %v244
  %v1233 = vunpack.c.l.b16 %v245
  %v1234 = vunpack.c.l.b16 %v246
  %v1235 = vunpack.c.l.b16 %v247
  %v1236 = vunpack.c.l.b16 %v248
  %v1237 = vunpack.c.l.b16 %v249
  %v1238 = vunpack.c.l.b16 %v250
  %v1239 = vunpack.c.l.b16 %v251
  %v1240 = vunpack.c.l.b16 %v252
  %v1241 = vunpack.c.l.b16 %v253
  %v1242 = vunpack.c.l.b16 %v254
  %v1243 = vunpack.c.l.b16 %v255
  %v1244 = vunpack.c.l.b16 %v256
  %v1245 = vunpack.c.l.b16 %v257
  %v1246 = vunpack.c.l.b16 %v258
  %v1247 = vunpack.c.l.b16 %v259
  %v1248 = vunpack.c.l.b16 %v260
  %v1249 = vunpack.c.l.b16 %v261
  %v1250 = vunpack.c.l.b16 %v262
  %v1251 = vunpack.c.l.b16 %v263
  %v1252 = vunpack.c.l.b16 %v264
  %v1253 = vunpack.c.l.b16 %v265
  %v1254 = vunpack.c.l.b16 %v266
  %v1255 = vunpack.c.l.b16 %v267
  %v1256 = vunpack.c.l.b16 %v268
  %v1257 = vunpack.c.l.b16 %v269
  %v1258 = vunpack.c.l.b16 %v270
  %v1259 = vunpack.c.l.b16 %v271
  %v1260 = vunpack.c.l.b16 %v272
  %v1261 = vunpack.c.l.b16 %v273
  %v1262 = vunpack.c.l.b16 %v274
  %v1263 = vunpack.c.l.b16 %v275
  %v1264 = vunpack.c.l.b16 %v276
  %v1265 = vunpack.c.l.b16 %v277
  %v1266 = vunpack.c.l.b16 %v278
  %v1267 = vunpack.c.l.b16 %v279
  %v1268 = vunpack.c.l.b16 %v280
  %v1269 = vunpack.c.l.b16 %v281
  %v1270 = vunpack.c.l.b16 %v282
  %v1271 = vunpack.c.l.b16 %v283
  %v1272 = vunpack.c.l.b16 %v284
  %v1273 = vunpack.c.l.b16 %v285
  %v1274 = vunpack.c.l.b16 %v286
  %v1275 = vunpack.c.l.b16 %v287
  %v1276 = vunpack.c.l.b16 %v288
  %v1277 = vunpack.c.l.b16 %v289
  %v1278 = vunpack.c.l.b16 %v290
  %v1279 = vunpack.c.l.b16 %v291
  %v1280 = vunpack.c.l.b16 %v292
  %v1281 = vunpack.c.l.b16 %v293
  %v1282 = vunpack.c.l.b16 %v294
  %v1283 = vunpack.c.l.b16 %v295
  %v1284 = vunpack.c.l.b16 %v296
  %v1285 = vunpack.c.l.b16 %v297
  %v1286 = vunpack.c.l.b16 %v298
  %v1287 = vunpack.c.l.b16 %v299
  %v1288 = vunpack.c.l.b16 %v300
  %v1289 = vunpack.c.l.b16 %v301
  %v1290 = vunpack.c.l.b16 %v302
  %v1291 = vunpack.c.l.b16 %v303
  %v1292 = vunpack.c.l.b16 %v304
  %v1293 = vunpack.c.l.b16 %v305
  %v1294 = vunpack.c.l.b16 %v306
  %v1295 = vunpack.c.l.b16 %v307
  %v1296 = vunpack.c.l.b16 %v308
  %v1297 = vunpack.c.l.b16 %v309
  %v1298 = vunpack.c.l.b16 %v310
  %v1299 = vunpack.c.l.b16 %v311
  %v1300 = vunpack.c.l.b16 %v312
  %v1301 = vunpack.c.l.b16 %v313
  %v1302 = vunpack.c.l.b16 %v314
  %v1303 = vunpack.c.l.b16 %v315
  %v1304 = vunpack.c.l.b16 %v316
  %v1305 = vunpack.c.l.b16 %v317
  %v1306 = vunpack.c.l.b16 %v318
  %v1307 = vunpack.c.l.b16 %v319
  %v1308 = vunpack.c.l.b16 %v320
  %v1309 = vunpack.c.l.b16 %v321
  %v1310 = vunpack.c.l.b16 %v322
  %v1311 = vunpack.c.l.b16 %v323
  %v1312 = vunpack.c.l.b16 %v324
  %v1313 = vunpack.c.l.b16 %v325
  %v1314 = vunpack.c.l.b16 %v326
  %v1315 = vunpack.c.l.b16 %v327
  %v1316 = vunpack.c.l.b16 %v328
  %v1317 = vunpack.c.l.b16 %v329
  %v1318 = vunpack.c.l.b16 %v330
  %v1319 = vunpack.c.l.b16 %v331
  %v1320 = vunpack.c.l.b16 %v332
  %v1321 = vunpack.c.l.b16 %v333
  %v1322 = vunpack.c.l.b16 %v334
  %v1323 = vunpack.c.l.b16 %v335
  %v1324 = vunpack.c.l.b16 %v336
  %v1325 = vunpack.c.l.b16 %v337
  %v1326 = vunpack.c.l.b16 %v338
  %v1327 = vunpack.c.l.b16 %v339
  %v1328 = vunpack.c.l.b16 %v340
  %v1329 = vunpack.c.l.b16 %v341
  %v1330 = vunpack.c.l.b16 %v342
  %v1331 = vunpack.c.l.b16 %v343
  %v1332 = vunpack.c.l.b16 %v344
  %v1333 = vunpack.c.l.b16 %v345
  %v1334 = vunpack.c.l.b16 %v346
  %v1335 = vunpack.c.l.b16 %v347
  %v1336 = vunpack.c.l.b16 %v348
  %v1337 = vunpack.c.l.b16 %v349
  %v1338 = vunpack.c.l.b16 %v350
  %v1339 = vunpack.c.l.b16 %v351
  %v1340 = vunpack.c.l.b16 %v352
  %v1341 = vunpack.c.l.b16 %v353
  %v1342 = vunpack.c.l.b16 %v354
  %v1343 = vunpack.c.l.b16 %v355
  %v1344 = vunpack.c.l.b16 %v356
  %v1345 = vunpack.c.l.b16 %v357
  %v1346 = vunpack.c.l.b16 %v358
  %v1347 = vunpack.c.l.b16 %v359
  %v1348 = vunpack.c.l.b16 %v360
  %v1349 = vunpack.c.l.b16 %v361
  %v1350 = vunpack.c.l.b16 %v362
  %v1351 = vunpack.c.l.b16 %v363
  %v1352 = vunpack.c.l.b16 %v364
  %v1353 = vunpack.c.l.b16 %v365
  %v1354 = vunpack.c.l.b16 %v366
  %v1355 = vunpack.c.l.b16 %v367
  %v1356 = vunpack.c.l.b16 %v368
  %v1357 = vunpack.c.l.b16 %v369
  %v1358 = vunpack.c.l.b16 %v370
  %v1359 = vunpack.c.l.b16 %v371
  %v1360 = vunpack.c.l.b16 %v372
  %v1361 = vunpack.c.l.b16 %v373
  %v1362 = vunpack.c.l.b16 %v374
  %v1363 = vunpack.c.l.b16 %v375
  %v1364 = vunpack.c.l.b16 %v376
  %v1365 = vunpack.c.l.b16 %v377
  %v1366 = vunpack.c.l.b16 %v378
  %v1367 = vunpack.c.l.b16 %v379
  %v1368 = vunpack.c.l.b16 %v380
  %v1369 = vunpack.c.l.b16 %v381
  %v1370 = vunpack.c.l.b16 %v382
  %v1371 = vunpack.c.l.b16 %v383
  %v1372 = vunpack.c.l.b16 %v384
  %v1373 = vunpack.c.l.b16 %v385
  %v1374 = vunpack.c.l.b16 %v386
  %v1375 = vunpack.c.l.b16 %v387
  %v1376 = vunpack.c.l.b16 %v388
  %v1377 = vunpack.c.l.b16 %v389
  %v1378 = vunpack.c.l.b16 %v390
  %v1379 = vunpack.c.l.b16 %v391
  %v1380 = vunpack.c.l.b16 %v392
  %v1381 = vunpack.c.l.b16 %v393
  %v1382 = vunpack.c.l.b16 %v394
  %v1383 = vunpack.c.l.b16 %v395
  %v1384 = vunpack.c.l.b16 %v396
  %v1385 = vunpack.c.l.b16 %v397
  %v1386 = vunpack.c.l.b16 %v398
  %v1387 = vunpack.c.l.b16 %v399
  %v1388 = vunpack.c.l.b16 %v400
  %v1389 = vunpack.c.l.b16 %v401
  %v1390 = vunpack.c.l.b16 %v402
  %v1391 = vunpack.c.l.b16 %v403
  %v1392 = vunpack.c.l.b16 %v404
  %v1393 = vunpack.c.l.b16 %v405
  %v1394 = vunpack.c.l.b16 %v406
  %v1395 = vunpack.c.l.b16 %v407
  %v1396 = vunpack.c.l.b16 %v408
  %v1397 = vunpack.c.l.b16 %v409
  %v1398 = vunpack.c.l.b16 %v410
  %v1399 = vunpack.c.l.b16 %v411
  %v1400 = vunpack.c.l.b16 %v412
  %v1401 = vunpack.c.l.b16 %v413
  %v1402 = vunpack.c.l.b16 %v414
  %v1403 = vunpack.c.l.b16 %v415
  %v1404 = vunpack.c.l.b16 %v416
  %v1405 = vunpack.c.l.b16 %v417
  %v1406 = vunpack.c.l.b16 %v418
  %v1407 = vunpack.c.l.b16 %v419
  %v1408 = vunpack.c.l.b16 %v420
  %v1409 = vunpack.c.l.b16 %v421
  %v1410 = vunpack.c.l.b16 %v422
  %v1411 = vunpack.c.l.b16 %v423
  %v1412 = vunpack.c.l.b16 %v424
  %v1413 = vunpack.c.l.b16 %v425
  %v1414 = vunpack.c.l.b16 %v426
  %v1415 = vunpack.c.l.b16 %v427
  %v1416 = vunpack.c.l.b16 %v428
  %v1417 = vunpack.c.l.b16 %v429
  %v1418 = vunpack.c.l.b16 %v430
  %v1419 = vunpack.c.l.b16 %v431
  %v1420 = vunpack.c.l.b16 %v432
  %v1421 = vunpack.c.l.b16 %v433
  %v1422 = vunpack.c.l.b16 %v434
  %v1423 = vunpack.c.l.b16 %v435
  %v1424 = vunpack.c.l.b16 %v436
  %v1425 = vunpack.c.l.b16 %v437
  %v1426 = vunpack.c.l.b16 %v438
  %v1427 = vunpack.c.l.b16 %v439
  %v1428 = vunpack.c.l.b16 %v440
  %v1429 = vunpack.c.l.b16 %v441
  %v1430 = vunpack.c.l.b16 %v442
  %v1431 = vunpack.c.l.b16 %v443
  %v1432 = vunpack.c.l.b16 %v444
  %v1433 = vunpack.c.l.b16 %v445
  %v1434 = vunpack.c.l.b16 %v446
  %v1435 = vunpack.c.l.b16 %v447
  %v1436 = vunpack.c.l.b16 %v448
  %v1437 = vunpack.c.l.b16 %v449
  %v1438 = vunpack.c.l.b16 %v450
  %v1439 = vunpack.c.l.b16 %v451
  %v1440 = vunpack.c.l.b16 %v452
  %v1441 = vunpack.c.l.b16 %v453
  %v1442 = vunpack.c.l.b16 %v454
  %v1443 = vunpack.c.l.b16 %v455
  %v1444 = vunpack.c.l.b16 %v456
  %v1445 = vunpack.c.l.b16 %v457
  %v1446 = vunpack.c.l.b16 %v458
  %v1447 = vunpack.c.l.b16 %v459
  %v1448 = vunpack.c.l.b16 %v460
  %v1449 = vunpack.c.l.b16 %v461
  %v1450 = vunpack.c.l.b16 %v462
  %v1451 = vunpack.c.l.b16 %v463
  %v1452 = vunpack.c.l.b16 %v464
  %v1453 = vunpack.c.l.b16 %v465
  %v1454 = vunpack.c.l.b16 %v466
  %v1455 = vunpack.c.l.b16 %v467
  %v1456 = vunpack.c.l.b16 %v468
  %v1457 = vunpack.c.l.b16 %v469
  %v1458 = vunpack.c.l.b16 %v470
  %v1459 = vunpack.c.l.b16 %v471
  %v1460 = vpack.c.b16 %v1038, %v1037
  %v1461 = vpack.c.b16 %v1040, %v1039
  %v1462 = vpack.c.b16 %v1042, %v1041
  %v1463 = vpack.c.b16 %v1044, %v1043
  %v1464 = vpack.c.b16 %v1046, %v1045
  %v1465 = vpack.c.b16 %v1048, %v1047
  %v1466 = vpack.c.b16 %v1050, %v1049
  %v1467 = vpack.c.b16 %v1052, %v1051
  %v1468 = vpack.c.b16 %v1054, %v1053
  %v1469 = vpack.c.b16 %v1056, %v1055
  %v1470 = vpack.c.b16 %v1058, %v1057
  %v1471 = vpack.c.b16 %v1060, %v1059
  %v1472 = vpack.c.b16 %v1062, %v1061
  %v1473 = vpack.c.b16 %v1064, %v1063
  %v1474 = vpack.c.b16 %v1066, %v1065
  %v1475 = vpack.c.b16 %v1068, %v1067
  %v1476 = vpack.c.b16 %v1070, %v1069
  %v1477 = vpack.c.b16 %v1072, %v1071
  %v1478 = vpack.c.b16 %v1074, %v1073
  %v1479 = vpack.c.b16 %v1076, %v1075
  %v1480 = vpack.c.b16 %v1078, %v1077
  %v1481 = vpack.c.b16 %v1080, %v1079
  %v1482 = vpack.c.b16 %v1082, %v1081
  %v1483 = vpack.c.b16 %v1084, %v1083
  %v1484 = vpack.c.b16 %v1086, %v1085
  %v1485 = vpack.c.b16 %v1088, %v1087
  %v1486 = vpack.c.b16 %v1090, %v1089
  %v1487 = vpack.c.b16 %v1092, %v1091
  %v1488 = vpack.c.b16 %v1094, %v1093
  %v1489 = vpack.c.b16 %v1096, %v1095
  %v1490 = vpack.c.b16 %v1098, %v1097
  %v1491 = vpack.c.b16 %v1100, %v1099
  %v1492 = vpack.c.b16 %v1102, %v1101
  %v1493 = vpack.c.b16 %v1104, %v1103
  %v1494 = vpack.c.b16 %v1106, %v1105
  %v1495 = vpack.c.b16 %v1108, %v1107
  %v1496 = vpack.c.b16 %v1110, %v1109
  %v1497 = vpack.c.b16 %v1112, %v1111
  %v1498 = vpack.c.b16 %v1114, %v1113
  %v1499 = vpack.c.b16 %v1116, %v1115
  %v1500 = vpack.c.b16 %v1118, %v1117
  %v1501 = vpack.c.b16 %v1120, %v1119
  %v1502 = vpack.c.b16 %v1122, %v1121
  %v1503 = vpack.c.b16 %v1124, %v1123
  %v1504 = vpack.c.b16 %v1126, %v1125
  %v1505 = vpack.c.b16 %v1128, %v1127
  %v1506 = vpack.c.b16 %v1130, %v1129
  %v1507 = vpack.c.b16 %v1132, %v1131
  %v1508 = vpack.c.b16 %v1134, %v1133
  %v1509 = vpack.c.b16 %v1136, %v1135
  %v1510 = vpack.c.b16 %v1138, %v1137
  %v1511 = vpack.c.b16 %v1140, %v1139
  %v1512 = vpack.c.b16 %v1142, %v1141
  %v1513 = vpack.c.b16 %v1144, %v1143
  %v1514 = vpack.c.b16 %v1146, %v1145
  %v1515 = vpack.c.b16 %v1148, %v1147
  %v1516 = vpack.c.b16 %v1150, %v1149
  %v1517 = vpack.c.b16 %v1152, %v1151
  %v1518 = vpack.c.b16 %v1154, %v1153
  %v1519 = vpack.c.b16 %v1156, %v1155
  %v1520 = vpack.c.b16 %v1158, %v1157
  %v1521 = vpack.c.b16 %v1160, %v1159
  %v1522 = vpack.c.b16 %v1162, %v1161
  %v1523 = vpack.c.b16 %v1164, %v1163
  %v1524 = vpack.c.b16 %v1166, %v1165
  %v1525 = vpack.c.b16 %v1168, %v1167
  %v1526 = vpack.c.b16 %v1170, %v1169
  %v1527 = vpack.c.b16 %v1172, %v1171
  %v1528 = vpack.c.b16 %v1174, %v1173
  %v1529 = vpack.c.b16 %v1176, %v1175
  %v1530 = vpack.c.b16 %v1178, %v1177
  %v1531 = vpack.c.b16 %v1180, %v1179
  %v1532 = vpack.c.b16 %v1182, %v1181
  %v1533 = vpack.c.b16 %v1184, %v1183
  %v1534 = vpack.c.b16 %v1186, %v1185
  %v1535 = vpack.c.b16 %v1188, %v1187
  %v1536 = vpack.c.b16 %v1190, %v1189
  %v1537 = vpack.c.b16 %v1192, %v1191
  %v1538 = vpack.c.b16 %v1194, %v1193
  %v1539 = vpack.c.b16 %v1196, %v1195
  %v1540 = vpack.c.b16 %v1198, %v1197
  %v1541 = vpack.c.b16 %v1200, %v1199
  %v1542 = vpack.c.b16 %v1202, %v1201
  %v1543 = vpack.c.b16 %v1204, %v1203
  %v1544 = vpack.c.b16 %v1206, %v1205
  %v1545 = vpack.c.b16 %v1208, %v1207
  %v1546 = vpack.c.b16 %v1210, %v1209
  %v1547 = vpack.c.b16 %v1212, %v1211
  %v1548 = vpack.c.b16 %v1214, %v1213
  %v1549 = vpack.c.b16 %v1216, %v1215
  %v1550 = vpack.c.b16 %v1218, %v1217
  %v1551 = vpack.c.b16 %v1220, %v1219
  %v1552 = vpack.c.b16 %v1222, %v1221
  %v1553 = vpack.c.b16 %v1224, %v1223
  %v1554 = vpack.c.b16 %v1226, %v1225
  %v1555 = vpack.c.b16 %v1228, %v1227
  %v1556 = vpack.c.b16 %v1230, %v1229
  %v1557 = vpack.c.b16 %v1232, %v1231
  %v1558 = vpack.c.b16 %v1234, %v1233
  %v1559 = vpack.c.b16 %v1236, %v1235
  %v1560 = vpack.c.b16 %v1238, %v1237
  %v1561 = vpack.c.b16 %v1240, %v1239
  %v1562 = vpack.c.b16 %v1242, %v1241
  %v1563 = vpack.c.b16 %v1244, %v1243
  %v1564 = vpack.c.b16 %v1246, %v1245
  %v1565 = vpack.c.b16 %v1248, %v1247
  %v1566 = vpack.c.b16 %v1250, %v1249
  %v1567 = vpack.c.b16 %v1252, %v1251
  %v1568 = vpack.c.b16 %v1254, %v1253
  %v1569 = vpack.c.b16 %v1256, %v1255
  %v1570 = vpack.c.b16 %v1258, %v1257
  %v1571 = vpack.c.b16 %v1260, %v1259
  %v1572 = vpack.c.b16 %v1262, %v1261
  %v1573 = vpack.c.b16 %v1264, %v1263
  %v1574 = vpack.c.b16 %v1266, %v1265
  %v1575 = vpack.c.b16 %v1268, %v1267
  %v1576 = vpack.c.b16 %v1270, %v1269
  %v1577 = vpack.c.b16 %v1272, %v1271
  %v1578 = vpack.c.b16 %v1274, %v1273
  %v1579 = vpack.c.b16 %v1276, %v1275
  %v1580 = vpack.c.b16 %v1278, %v1277
  %v1581 = vpack.c.b16 %v1280, %v1279
  %v1582 = vpack.c.b16 %v1282, %v1281
  %v1583 = vpack.c.b16 %v1284, %v1283
  %v1584 = vpack.c.b16 %v1286, %v1285
  %v1585 = vpack.c.b16 %v1288, %v1287
  %v1586 = vpack.c.b16 %v1290, %v1289
  %v1587 = vpack.c.b16 %v1292, %v1291
  %v1588 = vpack.c.b16 %v1294, %v1293
  %v1589 = vpack.c.b16 %v1296, %v1295
  %v1590 = vpack.c.b16 %v1298, %v1297
  %v1591 = vpack.c.b16 %v1300, %v1299
  %v1592 = vpack.c.b16 %v1302, %v1301
  %v1593 = vpack.c.b16 %v1304, %v1303
  %v1594 = vpack.c.b16 %v1306, %v1305
  %v1595 = vpack.c.b16 %v1308, %v1307
  %v1596 = vpack.c.b16 %v1310, %v1309
  %v1597 = vpack.c.b16 %v1312, %v1311
  %v1598 = vpack.c.b16 %v1314, %v1313
  %v1599 = vpack.c.b16 %v1316, %v1315
  %v1600 = vpack.c.b16 %v1318, %v1317
  %v1601 = vpack.c.b16 %v1320, %v1319
  %v1602 = vpack.c.b16 %v1322, %v1321
  %v1603 = vpack.c.b16 %v1324, %v1323
  %v1604 = vpack.c.b16 %v1326, %v1325
  %v1605 = vpack.c.b16 %v1328, %v1327
  %v1606 = vpack.c.b16 %v1330, %v1329
  %v1607 = vpack.c.b16 %v1332, %v1331
  %v1608 = vpack.c.b16 %v1334, %v1333
  %v1609 = vpack.c.b16 %v1336, %v1335
  %v1610 = vpack.c.b16 %v1338, %v1337
  %v1611 = vpack.c.b16 %v1340, %v1339
  %v1612 = vpack.c.b16 %v1342, %v1341
  %v1613 = vpack.c.b16 %v1344, %v1343
  %v1614 = vpack.c.b16 %v1346, %v1345
  %v1615 = vpack.c.b16 %v1348, %v1347
  %v1616 = vpack.c.b16 %v1350, %v1349
  %v1617 = vpack.c.b16 %v1352, %v1351
  %v1618 = vpack.c.b16 %v1354, %v1353
  %v1619 = vpack.c.b16 %v1356, %v1355
  %v1620 = vpack.c.b16 %v1358, %v1357
  %v1621 = vpack.c.b16 %v1360, %v1359
  %v1622 = vpack.c.b16 %v1362, %v1361
  %v1623 = vpack.c.b16 %v1364, %v1363
  %v1624 = vpack.c.b16 %v1366, %v1365
  %v1625 = vpack.c.b16 %v1368, %v1367
  %v1626 = vpack.c.b16 %v1370, %v1369
  %v1627 = vpack.c.b16 %v1372, %v1371
  %v1628 = vpack.c.b16 %v1374, %v1373
  %v1629 = vpack.c.b16 %v1376, %v1375
  %v1630 = vpack.c.b16 %v1378, %v1377
  %v1631 = vpack.c.b16 %v1380, %v1379
  %v1632 = vpack.c.b16 %v1382, %v1381
  %v1633 = vpack.c.b16 %v1384, %v1383
  %v1634 = vpack.c.b16 %v1386, %v1385
  %v1635 = vpack.c.b16 %v1388, %v1387
  %v1636 = vpack.c.b16 %v1390, %v1389
  %v1637 = vpack.c.b16 %v1392, %v1391
  %v1638 = vpack.c.b16 %v1394, %v1393
  %v1639 = vpack.c.b16 %v1396, %v1395
  %v1640 = vpack.c.b16 %v1398, %v1397
  %v1641 = vpack.c.b16 %v1400, %v1399
  %v1642 = vpack.c.b16 %v1402, %v1401
  %v1643 = vpack.c.b16 %v1404, %v1403
  %v1644 = vpack.c.b16 %v1406, %v1405
  %v1645 = vpack.c.b16 %v1408, %v1407
  %v1646 = vpack.c.b16 %v1410, %v1409
  %v1647 = vpack.c.b16 %v1412, %v1411
  %v1648 = vpack.c.b16 %v1414, %v1413
  %v1649 = vpack.c.b16 %v1416, %v1415
  %v1650 = vpack.c.b16 %v1418, %v1417
  %v1651 = vpack.c.b16 %v1420, %v1419
  %v1652 = vpack.c.b16 %v1422, %v1421
  %v1653 = vpack.c.b16 %v1424, %v1423
  %v1654 = vpack.c.b16 %v1426, %v1425
  %v1655 = vpack.c.b16 %v1428, %v1427
  %v1656 = vpack.c.b16 %v1430, %v1429
  %v1657 = vpack.c.b16 %v1432, %v1431
  %v1658 = vpack.c.b16 %v1434, %v1433
  %v1659 = vpack.c.b16 %v1436, %v1435
  %v1660 = vpack.c.b16 %v1438, %v1437
  %v1661 = vpack.c.b16 %v1440, %v1439
  %v1662 = vpack.c.b16 %v1442, %v1441
  %v1663 = vpack.c.b16 %v1444, %v1443
  %v1664 = vpack.c.b16 %v1446, %v1445
  %v1665 = vpack.c.b16 %v1448, %v1447
  %v1666 = vpack.c.b16 %v1450, %v1449
  %v1667 = vpack.c.b16 %v1452, %v1451
  %v1668 = vpack.c.b16 %v1454, %v1453
  %v1669 = vpack.c.b16 %v1456, %v1455
  %v1670 = vpack.c.b16 %v1458, %v1457
  %v1671 = vpack.c.b16 %v1459, %v1459
  %vm1883 = vcmask 424960
  %v1885 = vsel %vm1883, %v587, 0
  %vm1887 = vcmask 1041408
  %v1889 = vsel %vm1887, %v1671, 0
  %1891 = vmatprep.subr.bf16.mxu0 0
  %1892 = vmatpush1.bf16.msra.mxu0 %v1467
  %1893 = vmatprep.subr.bf16.mxu0 0
  %1894 = vmatpush1.bf16.msra.mxu0 %v1466
  %1895 = vmatprep.subr.bf16.mxu0 0
  %1896 = vmatpush1.bf16.msra.mxu0 %v1465
  %1897 = vmatprep.subr.bf16.mxu0 0
  %1898 = vmatpush1.bf16.msra.mxu0 %v1464
  %1899 = vmatprep.subr.bf16.mxu0 0
  %1900 = vmatpush1.bf16.msra.mxu0 %v1463
  %1901 = vmatprep.subr.bf16.mxu0 0
  %1902 = vmatpush1.bf16.msra.mxu0 %v1462
  %1903 = vmatprep.subr.bf16.mxu0 0
  %1904 = vmatpush1.bf16.msra.mxu0 %v1461
  %1905 = vmatprep.subr.bf16.mxu0 0
  %1906 = vmatpush1.bf16.msra.mxu0 %v1460
  %1907 = vmatprep.subr.bf16.mxu0 0
  %1908 = vmatpush2.bf16.msra.mxu0 %v1475
  %1909 = vmatprep.subr.bf16.mxu0 0
  %1910 = vmatpush2.bf16.msra.mxu0 %v1474
  %1911 = vmatprep.subr.bf16.mxu0 0
  %1912 = vmatpush2.bf16.msra.mxu0 %v1473
  %1913 = vmatprep.subr.bf16.mxu0 0
  %1914 = vmatpush2.bf16.msra.mxu0 %v1472
  %1915 = vmatprep.subr.bf16.mxu0 0
  %1916 = vmatpush2.bf16.msra.mxu0 %v1471
  %1917 = vmatprep.subr.bf16.mxu0 0
  %1918 = vmatpush2.bf16.msra.mxu0 %v1470
  %1919 = vmatprep.subr.bf16.mxu0 0
  %1920 = vmatpush2.bf16.msra.mxu0 %v1469
  %1921 = vmatprep.subr.bf16.mxu0 0
  %1922 = vmatpush2.bf16.msra.mxu0 %v1468
  %1923 = vmatprep.mubr.bf16.mxu0 %v562
  %1924 = vmatmul.mubr.bf16.gmra.mxu0 %v561
  %v1925 = vpop.f32.mrf.mxu0
  %v1926 = vadd.f32 %v477, %v1925
  %v1927 = vpop.f32.mrf.mxu0
  %v1928 = vpop.f32.mrf.mxu0
  %v1929 = vadd.f32 %v477, %v1928
  %v1930 = vpop.f32.mrf.mxu0
  %1931 = vdwg.mxu0
  %1932 = vmatprep.subr.bf16.mxu0 0
  %1933 = vmatpush1.bf16.msra.mxu0 %v1483
  %1934 = vmatprep.subr.bf16.mxu0 0
  %1935 = vmatpush1.bf16.msra.mxu0 %v1482
  %1936 = vmatprep.subr.bf16.mxu0 0
  %1937 = vmatpush1.bf16.msra.mxu0 %v1481
  %1938 = vmatprep.subr.bf16.mxu0 0
  %1939 = vmatpush1.bf16.msra.mxu0 %v1480
  %1940 = vmatprep.subr.bf16.mxu0 0
  %1941 = vmatpush1.bf16.msra.mxu0 %v1479
  %1942 = vmatprep.subr.bf16.mxu0 0
  %1943 = vmatpush1.bf16.msra.mxu0 %v1478
  %1944 = vmatprep.subr.bf16.mxu0 0
  %1945 = vmatpush1.bf16.msra.mxu0 %v1477
  %1946 = vmatprep.subr.bf16.mxu0 0
  %1947 = vmatpush1.bf16.msra.mxu0 %v1476
  %1948 = vmatprep.subr.bf16.mxu0 0
  %1949 = vmatpush2.bf16.msra.mxu0 %v1491
  %1950 = vmatprep.subr.bf16.mxu0 0
  %1951 = vmatpush2.bf16.msra.mxu0 %v1490
  %1952 = vmatprep.subr.bf16.mxu0 0
  %1953 = vmatpush2.bf16.msra.mxu0 %v1489
  %1954 = vmatprep.subr.bf16.mxu0 0
  %1955 = vmatpush2.bf16.msra.mxu0 %v1488
  %1956 = vmatprep.subr.bf16.mxu0 0
  %1957 = vmatpush2.bf16.msra.mxu0 %v1487
  %1958 = vmatprep.subr.bf16.mxu0 0
  %1959 = vmatpush2.bf16.msra.mxu0 %v1486
  %1960 = vmatprep.subr.bf16.mxu0 0
  %1961 = vmatpush2.bf16.msra.mxu0 %v1485
  %1962 = vmatprep.subr.bf16.mxu0 0
  %1963 = vmatpush2.bf16.msra.mxu0 %v1484
  %1964 = vmatprep.mubr.bf16.mxu0 %v564
  %1965 = vmatmul.mubr.bf16.gmra.mxu0 %v563
  %v1966 = vpop.f32.mrf.mxu0
  %v1967 = vadd.f32 %v1926, %v1966
  %v1968 = vpop.f32.mrf.mxu0
  %v1969 = vpop.f32.mrf.mxu0
  %v1970 = vadd.f32 %v1929, %v1969
  %v1971 = vpop.f32.mrf.mxu0
  %1972 = vdwg.mxu0
  %1973 = vmatprep.subr.bf16.mxu0 0
  %1974 = vmatpush1.bf16.msra.mxu0 %v1499
  %1975 = vmatprep.subr.bf16.mxu0 0
  %1976 = vmatpush1.bf16.msra.mxu0 %v1498
  %1977 = vmatprep.subr.bf16.mxu0 0
  %1978 = vmatpush1.bf16.msra.mxu0 %v1497
  %1979 = vmatprep.subr.bf16.mxu0 0
  %1980 = vmatpush1.bf16.msra.mxu0 %v1496
  %1981 = vmatprep.subr.bf16.mxu0 0
  %1982 = vmatpush1.bf16.msra.mxu0 %v1495
  %1983 = vmatprep.subr.bf16.mxu0 0
  %1984 = vmatpush1.bf16.msra.mxu0 %v1494
  %1985 = vmatprep.subr.bf16.mxu0 0
  %1986 = vmatpush1.bf16.msra.mxu0 %v1493
  %1987 = vmatprep.subr.bf16.mxu0 0
  %1988 = vmatpush1.bf16.msra.mxu0 %v1492
  %1989 = vmatprep.subr.bf16.mxu0 0
  %1990 = vmatpush2.bf16.msra.mxu0 %v1507
  %1991 = vmatprep.subr.bf16.mxu0 0
  %1992 = vmatpush2.bf16.msra.mxu0 %v1506
  %1993 = vmatprep.subr.bf16.mxu0 0
  %1994 = vmatpush2.bf16.msra.mxu0 %v1505
  %1995 = vmatprep.subr.bf16.mxu0 0
  %1996 = vmatpush2.bf16.msra.mxu0 %v1504
  %1997 = vmatprep.subr.bf16.mxu0 0
  %1998 = vmatpush2.bf16.msra.mxu0 %v1503
  %1999 = vmatprep.subr.bf16.mxu0 0
  %2000 = vmatpush2.bf16.msra.mxu0 %v1502
  %2001 = vmatprep.subr.bf16.mxu0 0
  %2002 = vmatpush2.bf16.msra.mxu0 %v1501
  %2003 = vmatprep.subr.bf16.mxu0 0
  %2004 = vmatpush2.bf16.msra.mxu0 %v1500
  %2005 = vmatprep.mubr.bf16.mxu0 %v566
  %2006 = vmatmul.mubr.bf16.gmra.mxu0 %v565
  %v2007 = vpop.f32.mrf.mxu0
  %v2008 = vadd.f32 %v1967, %v2007
  %v2009 = vpop.f32.mrf.mxu0
  %v2010 = vpop.f32.mrf.mxu0
  %v2011 = vadd.f32 %v1970, %v2010
  %v2012 = vpop.f32.mrf.mxu0
  %2013 = vdwg.mxu0
  %2014 = vmatprep.subr.bf16.mxu0 0
  %2015 = vmatpush1.bf16.msra.mxu0 %v1515
  %2016 = vmatprep.subr.bf16.mxu0 0
  %2017 = vmatpush1.bf16.msra.mxu0 %v1514
  %2018 = vmatprep.subr.bf16.mxu0 0
  %2019 = vmatpush1.bf16.msra.mxu0 %v1513
  %2020 = vmatprep.subr.bf16.mxu0 0
  %2021 = vmatpush1.bf16.msra.mxu0 %v1512
  %2022 = vmatprep.subr.bf16.mxu0 0
  %2023 = vmatpush1.bf16.msra.mxu0 %v1511
  %2024 = vmatprep.subr.bf16.mxu0 0
  %2025 = vmatpush1.bf16.msra.mxu0 %v1510
  %2026 = vmatprep.subr.bf16.mxu0 0
  %2027 = vmatpush1.bf16.msra.mxu0 %v1509
  %2028 = vmatprep.subr.bf16.mxu0 0
  %2029 = vmatpush1.bf16.msra.mxu0 %v1508
  %2030 = vmatprep.subr.bf16.mxu0 0
  %2031 = vmatpush2.bf16.msra.mxu0 %v1523
  %2032 = vmatprep.subr.bf16.mxu0 0
  %2033 = vmatpush2.bf16.msra.mxu0 %v1522
  %2034 = vmatprep.subr.bf16.mxu0 0
  %2035 = vmatpush2.bf16.msra.mxu0 %v1521
  %2036 = vmatprep.subr.bf16.mxu0 0
  %2037 = vmatpush2.bf16.msra.mxu0 %v1520
  %2038 = vmatprep.subr.bf16.mxu0 0
  %2039 = vmatpush2.bf16.msra.mxu0 %v1519
  %2040 = vmatprep.subr.bf16.mxu0 0
  %2041 = vmatpush2.bf16.msra.mxu0 %v1518
  %2042 = vmatprep.subr.bf16.mxu0 0
  %2043 = vmatpush2.bf16.msra.mxu0 %v1517
  %2044 = vmatprep.subr.bf16.mxu0 0
  %2045 = vmatpush2.bf16.msra.mxu0 %v1516
  %2046 = vmatprep.mubr.bf16.mxu0 %v568
  %2047 = vmatmul.mubr.bf16.gmra.mxu0 %v567
  %v2048 = vpop.f32.mrf.mxu0
  %v2049 = vadd.f32 %v2008, %v2048
  %v2050 = vpop.f32.mrf.mxu0
  %v2051 = vpop.f32.mrf.mxu0
  %v2052 = vadd.f32 %v2011, %v2051
  %v2053 = vpop.f32.mrf.mxu0
  %2054 = vdwg.mxu0
  %2055 = vmatprep.subr.bf16.mxu0 0
  %2056 = vmatpush1.bf16.msra.mxu0 %v1531
  %2057 = vmatprep.subr.bf16.mxu0 0
  %2058 = vmatpush1.bf16.msra.mxu0 %v1530
  %2059 = vmatprep.subr.bf16.mxu0 0
  %2060 = vmatpush1.bf16.msra.mxu0 %v1529
  %2061 = vmatprep.subr.bf16.mxu0 0
  %2062 = vmatpush1.bf16.msra.mxu0 %v1528
  %2063 = vmatprep.subr.bf16.mxu0 0
  %2064 = vmatpush1.bf16.msra.mxu0 %v1527
  %2065 = vmatprep.subr.bf16.mxu0 0
  %2066 = vmatpush1.bf16.msra.mxu0 %v1526
  %2067 = vmatprep.subr.bf16.mxu0 0
  %2068 = vmatpush1.bf16.msra.mxu0 %v1525
  %2069 = vmatprep.subr.bf16.mxu0 0
  %2070 = vmatpush1.bf16.msra.mxu0 %v1524
  %2071 = vmatprep.subr.bf16.mxu0 0
  %2072 = vmatpush2.bf16.msra.mxu0 %v1539
  %2073 = vmatprep.subr.bf16.mxu0 0
  %2074 = vmatpush2.bf16.msra.mxu0 %v1538
  %2075 = vmatprep.subr.bf16.mxu0 0
  %2076 = vmatpush2.bf16.msra.mxu0 %v1537
  %2077 = vmatprep.subr.bf16.mxu0 0
  %2078 = vmatpush2.bf16.msra.mxu0 %v1536
  %2079 = vmatprep.subr.bf16.mxu0 0
  %2080 = vmatpush2.bf16.msra.mxu0 %v1535
  %2081 = vmatprep.subr.bf16.mxu0 0
  %2082 = vmatpush2.bf16.msra.mxu0 %v1534
  %2083 = vmatprep.subr.bf16.mxu0 0
  %2084 = vmatpush2.bf16.msra.mxu0 %v1533
  %2085 = vmatprep.subr.bf16.mxu0 0
  %2086 = vmatpush2.bf16.msra.mxu0 %v1532
  %2087 = vmatprep.mubr.bf16.mxu0 %v570
  %2088 = vmatmul.mubr.bf16.gmra.mxu0 %v569
  %v2089 = vpop.f32.mrf.mxu0
  %v2090 = vadd.f32 %v2049, %v2089
  %v2091 = vpop.f32.mrf.mxu0
  %v2092 = vpop.f32.mrf.mxu0
  %v2093 = vadd.f32 %v2052, %v2092
  %v2094 = vpop.f32.mrf.mxu0
  %2095 = vdwg.mxu0
  %2096 = vmatprep.subr.bf16.mxu0 0
  %2097 = vmatpush1.bf16.msra.mxu0 %v1547
  %2098 = vmatprep.subr.bf16.mxu0 0
  %2099 = vmatpush1.bf16.msra.mxu0 %v1546
  %2100 = vmatprep.subr.bf16.mxu0 0
  %2101 = vmatpush1.bf16.msra.mxu0 %v1545
  %2102 = vmatprep.subr.bf16.mxu0 0
  %2103 = vmatpush1.bf16.msra.mxu0 %v1544
  %2104 = vmatprep.subr.bf16.mxu0 0
  %2105 = vmatpush1.bf16.msra.mxu0 %v1543
  %2106 = vmatprep.subr.bf16.mxu0 0
  %2107 = vmatpush1.bf16.msra.mxu0 %v1542
  %2108 = vmatprep.subr.bf16.mxu0 0
  %2109 = vmatpush1.bf16.msra.mxu0 %v1541
  %2110 = vmatprep.subr.bf16.mxu0 0
  %2111 = vmatpush1.bf16.msra.mxu0 %v1540
  %2112 = vmatprep.subr.bf16.mxu0 0
  %2113 = vmatpush2.bf16.msra.mxu0 %v1555
  %2114 = vmatprep.subr.bf16.mxu0 0
  %2115 = vmatpush2.bf16.msra.mxu0 %v1554
  %2116 = vmatprep.subr.bf16.mxu0 0
  %2117 = vmatpush2.bf16.msra.mxu0 %v1553
  %2118 = vmatprep.subr.bf16.mxu0 0
  %2119 = vmatpush2.bf16.msra.mxu0 %v1552
  %2120 = vmatprep.subr.bf16.mxu0 0
  %2121 = vmatpush2.bf16.msra.mxu0 %v1551
  %2122 = vmatprep.subr.bf16.mxu0 0
  %2123 = vmatpush2.bf16.msra.mxu0 %v1550
  %2124 = vmatprep.subr.bf16.mxu0 0
  %2125 = vmatpush2.bf16.msra.mxu0 %v1549
  %2126 = vmatprep.subr.bf16.mxu0 0
  %2127 = vmatpush2.bf16.msra.mxu0 %v1548
  %2128 = vmatprep.mubr.bf16.mxu0 %v572
  %2129 = vmatmul.mubr.bf16.gmra.mxu0 %v571
  %v2130 = vpop.f32.mrf.mxu0
  %v2131 = vadd.f32 %v2090, %v2130
  %v2132 = vpop.f32.mrf.mxu0
  %v2133 = vpop.f32.mrf.mxu0
  %v2134 = vadd.f32 %v2093, %v2133
  %v2135 = vpop.f32.mrf.mxu0
  %2136 = vdwg.mxu0
  %2137 = vmatprep.subr.bf16.mxu0 0
  %2138 = vmatpush1.bf16.msra.mxu0 %v1563
  %2139 = vmatprep.subr.bf16.mxu0 0
  %2140 = vmatpush1.bf16.msra.mxu0 %v1562
  %2141 = vmatprep.subr.bf16.mxu0 0
  %2142 = vmatpush1.bf16.msra.mxu0 %v1561
  %2143 = vmatprep.subr.bf16.mxu0 0
  %2144 = vmatpush1.bf16.msra.mxu0 %v1560
  %2145 = vmatprep.subr.bf16.mxu0 0
  %2146 = vmatpush1.bf16.msra.mxu0 %v1559
  %2147 = vmatprep.subr.bf16.mxu0 0
  %2148 = vmatpush1.bf16.msra.mxu0 %v1558
  %2149 = vmatprep.subr.bf16.mxu0 0
  %2150 = vmatpush1.bf16.msra.mxu0 %v1557
  %2151 = vmatprep.subr.bf16.mxu0 0
  %2152 = vmatpush1.bf16.msra.mxu0 %v1556
  %2153 = vmatprep.subr.bf16.mxu0 0
  %2154 = vmatpush2.bf16.msra.mxu0 %v1571
  %2155 = vmatprep.subr.bf16.mxu0 0
  %2156 = vmatpush2.bf16.msra.mxu0 %v1570
  %2157 = vmatprep.subr.bf16.mxu0 0
  %2158 = vmatpush2.bf16.msra.mxu0 %v1569
  %2159 = vmatprep.subr.bf16.mxu0 0
  %2160 = vmatpush2.bf16.msra.mxu0 %v1568
  %2161 = vmatprep.subr.bf16.mxu0 0
  %2162 = vmatpush2.bf16.msra.mxu0 %v1567
  %2163 = vmatprep.subr.bf16.mxu0 0
  %2164 = vmatpush2.bf16.msra.mxu0 %v1566
  %2165 = vmatprep.subr.bf16.mxu0 0
  %2166 = vmatpush2.bf16.msra.mxu0 %v1565
  %2167 = vmatprep.subr.bf16.mxu0 0
  %2168 = vmatpush2.bf16.msra.mxu0 %v1564
  %2169 = vmatprep.mubr.bf16.mxu0 %v574
  %2170 = vmatmul.mubr.bf16.gmra.mxu0 %v573
  %v2171 = vpop.f32.mrf.mxu0
  %v2172 = vadd.f32 %v2131, %v2171
  %v2173 = vpop.f32.mrf.mxu0
  %v2174 = vpop.f32.mrf.mxu0
  %v2175 = vadd.f32 %v2134, %v2174
  %v2176 = vpop.f32.mrf.mxu0
  %2177 = vdwg.mxu0
  %2178 = vmatprep.subr.bf16.mxu0 0
  %2179 = vmatpush1.bf16.msra.mxu0 %v1579
  %2180 = vmatprep.subr.bf16.mxu0 0
  %2181 = vmatpush1.bf16.msra.mxu0 %v1578
  %2182 = vmatprep.subr.bf16.mxu0 0
  %2183 = vmatpush1.bf16.msra.mxu0 %v1577
  %2184 = vmatprep.subr.bf16.mxu0 0
  %2185 = vmatpush1.bf16.msra.mxu0 %v1576
  %2186 = vmatprep.subr.bf16.mxu0 0
  %2187 = vmatpush1.bf16.msra.mxu0 %v1575
  %2188 = vmatprep.subr.bf16.mxu0 0
  %2189 = vmatpush1.bf16.msra.mxu0 %v1574
  %2190 = vmatprep.subr.bf16.mxu0 0
  %2191 = vmatpush1.bf16.msra.mxu0 %v1573
  %2192 = vmatprep.subr.bf16.mxu0 0
  %2193 = vmatpush1.bf16.msra.mxu0 %v1572
  %2194 = vmatprep.subr.bf16.mxu0 0
  %2195 = vmatpush2.bf16.msra.mxu0 %v1587
  %2196 = vmatprep.subr.bf16.mxu0 0
  %2197 = vmatpush2.bf16.msra.mxu0 %v1586
  %2198 = vmatprep.subr.bf16.mxu0 0
  %2199 = vmatpush2.bf16.msra.mxu0 %v1585
  %2200 = vmatprep.subr.bf16.mxu0 0
  %2201 = vmatpush2.bf16.msra.mxu0 %v1584
  %2202 = vmatprep.subr.bf16.mxu0 0
  %2203 = vmatpush2.bf16.msra.mxu0 %v1583
  %2204 = vmatprep.subr.bf16.mxu0 0
  %2205 = vmatpush2.bf16.msra.mxu0 %v1582
  %2206 = vmatprep.subr.bf16.mxu0 0
  %2207 = vmatpush2.bf16.msra.mxu0 %v1581
  %2208 = vmatprep.subr.bf16.mxu0 0
  %2209 = vmatpush2.bf16.msra.mxu0 %v1580
  %2210 = vmatprep.mubr.bf16.mxu0 %v576
  %2211 = vmatmul.mubr.bf16.gmra.mxu0 %v575
  %v2212 = vpop.f32.mrf.mxu0
  %v2213 = vadd.f32 %v2172, %v2212
  %v2214 = vpop.f32.mrf.mxu0
  %v2215 = vpop.f32.mrf.mxu0
  %v2216 = vadd.f32 %v2175, %v2215
  %v2217 = vpop.f32.mrf.mxu0
  %2218 = vdwg.mxu0
  %2219 = vmatprep.subr.bf16.mxu0 0
  %2220 = vmatpush1.bf16.msra.mxu0 %v1595
  %2221 = vmatprep.subr.bf16.mxu0 0
  %2222 = vmatpush1.bf16.msra.mxu0 %v1594
  %2223 = vmatprep.subr.bf16.mxu0 0
  %2224 = vmatpush1.bf16.msra.mxu0 %v1593
  %2225 = vmatprep.subr.bf16.mxu0 0
  %2226 = vmatpush1.bf16.msra.mxu0 %v1592
  %2227 = vmatprep.subr.bf16.mxu0 0
  %2228 = vmatpush1.bf16.msra.mxu0 %v1591
  %2229 = vmatprep.subr.bf16.mxu0 0
  %2230 = vmatpush1.bf16.msra.mxu0 %v1590
  %2231 = vmatprep.subr.bf16.mxu0 0
  %2232 = vmatpush1.bf16.msra.mxu0 %v1589
  %2233 = vmatprep.subr.bf16.mxu0 0
  %2234 = vmatpush1.bf16.msra.mxu0 %v1588
  %2235 = vmatprep.subr.bf16.mxu0 0
  %2236 = vmatpush2.bf16.msra.mxu0 %v1603
  %2237 = vmatprep.subr.bf16.mxu0 0
  %2238 = vmatpush2.bf16.msra.mxu0 %v1602
  %2239 = vmatprep.subr.bf16.mxu0 0
  %2240 = vmatpush2.bf16.msra.mxu0 %v1601
  %2241 = vmatprep.subr.bf16.mxu0 0
  %2242 = vmatpush2.bf16.msra.mxu0 %v1600
  %2243 = vmatprep.subr.bf16.mxu0 0
  %2244 = vmatpush2.bf16.msra.mxu0 %v1599
  %2245 = vmatprep.subr.bf16.mxu0 0
  %2246 = vmatpush2.bf16.msra.mxu0 %v1598
  %2247 = vmatprep.subr.bf16.mxu0 0
  %2248 = vmatpush2.bf16.msra.mxu0 %v1597
  %2249 = vmatprep.subr.bf16.mxu0 0
  %2250 = vmatpush2.bf16.msra.mxu0 %v1596
  %2251 = vmatprep.mubr.bf16.mxu0 %v578
  %2252 = vmatmul.mubr.bf16.gmra.mxu0 %v577
  %v2253 = vpop.f32.mrf.mxu0
  %v2254 = vadd.f32 %v2213, %v2253
  %v2255 = vpop.f32.mrf.mxu0
  %v2256 = vpop.f32.mrf.mxu0
  %v2257 = vadd.f32 %v2216, %v2256
  %v2258 = vpop.f32.mrf.mxu0
  %2259 = vdwg.mxu0
  %2260 = vmatprep.subr.bf16.mxu0 0
  %2261 = vmatpush1.bf16.msra.mxu0 %v1611
  %2262 = vmatprep.subr.bf16.mxu0 0
  %2263 = vmatpush1.bf16.msra.mxu0 %v1610
  %2264 = vmatprep.subr.bf16.mxu0 0
  %2265 = vmatpush1.bf16.msra.mxu0 %v1609
  %2266 = vmatprep.subr.bf16.mxu0 0
  %2267 = vmatpush1.bf16.msra.mxu0 %v1608
  %2268 = vmatprep.subr.bf16.mxu0 0
  %2269 = vmatpush1.bf16.msra.mxu0 %v1607
  %2270 = vmatprep.subr.bf16.mxu0 0
  %2271 = vmatpush1.bf16.msra.mxu0 %v1606
  %2272 = vmatprep.subr.bf16.mxu0 0
  %2273 = vmatpush1.bf16.msra.mxu0 %v1605
  %2274 = vmatprep.subr.bf16.mxu0 0
  %2275 = vmatpush1.bf16.msra.mxu0 %v1604
  %2276 = vmatprep.subr.bf16.mxu0 0
  %2277 = vmatpush2.bf16.msra.mxu0 %v1619
  %2278 = vmatprep.subr.bf16.mxu0 0
  %2279 = vmatpush2.bf16.msra.mxu0 %v1618
  %2280 = vmatprep.subr.bf16.mxu0 0
  %2281 = vmatpush2.bf16.msra.mxu0 %v1617
  %2282 = vmatprep.subr.bf16.mxu0 0
  %2283 = vmatpush2.bf16.msra.mxu0 %v1616
  %2284 = vmatprep.subr.bf16.mxu0 0
  %2285 = vmatpush2.bf16.msra.mxu0 %v1615
  %2286 = vmatprep.subr.bf16.mxu0 0
  %2287 = vmatpush2.bf16.msra.mxu0 %v1614
  %2288 = vmatprep.subr.bf16.mxu0 0
  %2289 = vmatpush2.bf16.msra.mxu0 %v1613
  %2290 = vmatprep.subr.bf16.mxu0 0
  %2291 = vmatpush2.bf16.msra.mxu0 %v1612
  %2292 = vmatprep.mubr.bf16.mxu0 %v580
  %2293 = vmatmul.mubr.bf16.gmra.mxu0 %v579
  %v2294 = vpop.f32.mrf.mxu0
  %v2295 = vadd.f32 %v2254, %v2294
  %v2296 = vpop.f32.mrf.mxu0
  %v2297 = vpop.f32.mrf.mxu0
  %v2298 = vadd.f32 %v2257, %v2297
  %v2299 = vpop.f32.mrf.mxu0
  %2300 = vdwg.mxu0
  %2301 = vmatprep.subr.bf16.mxu0 0
  %2302 = vmatpush1.bf16.msra.mxu0 %v1627
  %2303 = vmatprep.subr.bf16.mxu0 0
  %2304 = vmatpush1.bf16.msra.mxu0 %v1626
  %2305 = vmatprep.subr.bf16.mxu0 0
  %2306 = vmatpush1.bf16.msra.mxu0 %v1625
  %2307 = vmatprep.subr.bf16.mxu0 0
  %2308 = vmatpush1.bf16.msra.mxu0 %v1624
  %2309 = vmatprep.subr.bf16.mxu0 0
  %2310 = vmatpush1.bf16.msra.mxu0 %v1623
  %2311 = vmatprep.subr.bf16.mxu0 0
  %2312 = vmatpush1.bf16.msra.mxu0 %v1622
  %2313 = vmatprep.subr.bf16.mxu0 0
  %2314 = vmatpush1.bf16.msra.mxu0 %v1621
  %2315 = vmatprep.subr.bf16.mxu0 0
  %2316 = vmatpush1.bf16.msra.mxu0 %v1620
  %2317 = vmatprep.subr.bf16.mxu0 0
  %2318 = vmatpush2.bf16.msra.mxu0 %v1635
  %2319 = vmatprep.subr.bf16.mxu0 0
  %2320 = vmatpush2.bf16.msra.mxu0 %v1634
  %2321 = vmatprep.subr.bf16.mxu0 0
  %2322 = vmatpush2.bf16.msra.mxu0 %v1633
  %2323 = vmatprep.subr.bf16.mxu0 0
  %2324 = vmatpush2.bf16.msra.mxu0 %v1632
  %2325 = vmatprep.subr.bf16.mxu0 0
  %2326 = vmatpush2.bf16.msra.mxu0 %v1631
  %2327 = vmatprep.subr.bf16.mxu0 0
  %2328 = vmatpush2.bf16.msra.mxu0 %v1630
  %2329 = vmatprep.subr.bf16.mxu0 0
  %2330 = vmatpush2.bf16.msra.mxu0 %v1629
  %2331 = vmatprep.subr.bf16.mxu0 0
  %2332 = vmatpush2.bf16.msra.mxu0 %v1628
  %2333 = vmatprep.mubr.bf16.mxu0 %v582
  %2334 = vmatmul.mubr.bf16.gmra.mxu0 %v581
  %v2335 = vpop.f32.mrf.mxu0
  %v2336 = vadd.f32 %v2295, %v2335
  %v2337 = vpop.f32.mrf.mxu0
  %v2338 = vpop.f32.mrf.mxu0
  %v2339 = vadd.f32 %v2298, %v2338
  %v2340 = vpop.f32.mrf.mxu0
  %2341 = vdwg.mxu0
  %2342 = vmatprep.subr.bf16.mxu0 0
  %2343 = vmatpush1.bf16.msra.mxu0 %v1643
  %2344 = vmatprep.subr.bf16.mxu0 0
  %2345 = vmatpush1.bf16.msra.mxu0 %v1642
  %2346 = vmatprep.subr.bf16.mxu0 0
  %2347 = vmatpush1.bf16.msra.mxu0 %v1641
  %2348 = vmatprep.subr.bf16.mxu0 0
  %2349 = vmatpush1.bf16.msra.mxu0 %v1640
  %2350 = vmatprep.subr.bf16.mxu0 0
  %2351 = vmatpush1.bf16.msra.mxu0 %v1639
  %2352 = vmatprep.subr.bf16.mxu0 0
  %2353 = vmatpush1.bf16.msra.mxu0 %v1638
  %2354 = vmatprep.subr.bf16.mxu0 0
  %2355 = vmatpush1.bf16.msra.mxu0 %v1637
  %2356 = vmatprep.subr.bf16.mxu0 0
  %2357 = vmatpush1.bf16.msra.mxu0 %v1636
  %2358 = vmatprep.subr.bf16.mxu0 0
  %2359 = vmatpush2.bf16.msra.mxu0 %v1651
  %2360 = vmatprep.subr.bf16.mxu0 0
  %2361 = vmatpush2.bf16.msra.mxu0 %v1650
  %2362 = vmatprep.subr.bf16.mxu0 0
  %2363 = vmatpush2.bf16.msra.mxu0 %v1649
  %2364 = vmatprep.subr.bf16.mxu0 0
  %2365 = vmatpush2.bf16.msra.mxu0 %v1648
  %2366 = vmatprep.subr.bf16.mxu0 0
  %2367 = vmatpush2.bf16.msra.mxu0 %v1647
  %2368 = vmatprep.subr.bf16.mxu0 0
  %2369 = vmatpush2.bf16.msra.mxu0 %v1646
  %2370 = vmatprep.subr.bf16.mxu0 0
  %2371 = vmatpush2.bf16.msra.mxu0 %v1645
  %2372 = vmatprep.subr.bf16.mxu0 0
  %2373 = vmatpush2.bf16.msra.mxu0 %v1644
  %2374 = vmatprep.mubr.bf16.mxu0 %v584
  %2375 = vmatmul.mubr.bf16.gmra.mxu0 %v583
  %v2376 = vpop.f32.mrf.mxu0
  %v2377 = vadd.f32 %v2336, %v2376
  %v2378 = vpop.f32.mrf.mxu0
  %v2379 = vpop.f32.mrf.mxu0
  %v2380 = vadd.f32 %v2339, %v2379
  %v2381 = vpop.f32.mrf.mxu0
  %2382 = vdwg.mxu0
  %2383 = vmatprep.subr.bf16.mxu0 0
  %2384 = vmatpush1.bf16.msra.mxu0 %v1659
  %2385 = vmatprep.subr.bf16.mxu0 0
  %2386 = vmatpush1.bf16.msra.mxu0 %v1658
  %2387 = vmatprep.subr.bf16.mxu0 0
  %2388 = vmatpush1.bf16.msra.mxu0 %v1657
  %2389 = vmatprep.subr.bf16.mxu0 0
  %2390 = vmatpush1.bf16.msra.mxu0 %v1656
  %2391 = vmatprep.subr.bf16.mxu0 0
  %2392 = vmatpush1.bf16.msra.mxu0 %v1655
  %2393 = vmatprep.subr.bf16.mxu0 0
  %2394 = vmatpush1.bf16.msra.mxu0 %v1654
  %2395 = vmatprep.subr.bf16.mxu0 0
  %2396 = vmatpush1.bf16.msra.mxu0 %v1653
  %2397 = vmatprep.subr.bf16.mxu0 0
  %2398 = vmatpush1.bf16.msra.mxu0 %v1652
  %2399 = vmatprep.subr.bf16.mxu0 0
  %2400 = vmatpush2.bf16.msra.mxu0 %v1667
  %2401 = vmatprep.subr.bf16.mxu0 0
  %2402 = vmatpush2.bf16.msra.mxu0 %v1666
  %2403 = vmatprep.subr.bf16.mxu0 0
  %2404 = vmatpush2.bf16.msra.mxu0 %v1665
  %2405 = vmatprep.subr.bf16.mxu0 0
  %2406 = vmatpush2.bf16.msra.mxu0 %v1664
  %2407 = vmatprep.subr.bf16.mxu0 0
  %2408 = vmatpush2.bf16.msra.mxu0 %v1663
  %2409 = vmatprep.subr.bf16.mxu0 0
  %2410 = vmatpush2.bf16.msra.mxu0 %v1662
  %2411 = vmatprep.subr.bf16.mxu0 0
  %2412 = vmatpush2.bf16.msra.mxu0 %v1661
  %2413 = vmatprep.subr.bf16.mxu0 0
  %2414 = vmatpush2.bf16.msra.mxu0 %v1660
  %2415 = vmatprep.mubr.bf16.mxu0 %v586
  %2416 = vmatmul.mubr.bf16.gmra.mxu0 %v585
  %v2417 = vpop.f32.mrf.mxu0
  %v2418 = vadd.f32 %v2377, %v2417
  %v2419 = vpop.f32.mrf.mxu0
  %v2420 = vpop.f32.mrf.mxu0
  %v2421 = vadd.f32 %v2380, %v2420
  %v2422 = vpop.f32.mrf.mxu0
  %2423 = vdwg.mxu0
  %2424 = vmatprep.subr.bf16.mxu0 0
  %2425 = vmatpush1.bf16.msra.mxu0 0
  %2426 = vmatprep.subr.bf16.mxu0 0
  %2427 = vmatpush1.bf16.msra.mxu0 0
  %2428 = vmatprep.subr.bf16.mxu0 0
  %2429 = vmatpush1.bf16.msra.mxu0 0
  %2430 = vmatprep.subr.bf16.mxu0 0
  %2431 = vmatpush1.bf16.msra.mxu0 0
  %2432 = vmatprep.subr.bf16.mxu0 0
  %2433 = vmatpush1.bf16.msra.mxu0 %v1889
  %2434 = vmatprep.subr.bf16.mxu0 0
  %2435 = vmatpush1.bf16.msra.mxu0 %v1670
  %2436 = vmatprep.subr.bf16.mxu0 0
  %2437 = vmatpush1.bf16.msra.mxu0 %v1669
  %2438 = vmatprep.subr.bf16.mxu0 0
  %2439 = vmatpush1.bf16.msra.mxu0 %v1668
  %2440 = vmatprep.subr.bf16.mxu0 0
  %2441 = vmatpush2.bf16.msra.mxu0 0
  %2442 = vmatprep.subr.bf16.mxu0 0
  %2443 = vmatpush2.bf16.msra.mxu0 0
  %2444 = vmatprep.subr.bf16.mxu0 0
  %2445 = vmatpush2.bf16.msra.mxu0 0
  %2446 = vmatprep.subr.bf16.mxu0 0
  %2447 = vmatpush2.bf16.msra.mxu0 0
  %2448 = vmatprep.subr.bf16.mxu0 0
  %2449 = vmatpush2.bf16.msra.mxu0 0
  %2450 = vmatprep.subr.bf16.mxu0 0
  %2451 = vmatpush2.bf16.msra.mxu0 0
  %2452 = vmatprep.subr.bf16.mxu0 0
  %2453 = vmatpush2.bf16.msra.mxu0 0
  %2454 = vmatprep.subr.bf16.mxu0 0
  %2455 = vmatpush2.bf16.msra.mxu0 0
  %2456 = vmatprep.mubr.bf16.mxu0 0
  %2457 = vmatmul.mubr.bf16.gmra.mxu0 %v1885
  %v2458 = vpop.f32.mrf.mxu0
  %v2459 = vadd.f32 %v2418, %v2458
  %v2460 = vpop.f32.mrf.mxu0
  %v2461 = vpop.f32.mrf.mxu0
  %v2462 = vadd.f32 %v2421, %v2461
  %v2463 = vpop.f32.mrf.mxu0
  %2464 = vdwg.mxu0
  %v2465 = vmax.f32 %v2459, 0.0
  %v2466 = vmax.f32 %v2462, 0.0
  %v2467 = vpack.c.bf16 %v2466, %v2465
  %v2468 = vld [vmem:[%s3] sm:$0xf]
  %v2469 = vld [vmem:[%s3 + $0x4] sm:$0xf]
  %v2470 = vld [vmem:[%s3 + $0x8] sm:$0xf]
  %v2471 = vld [vmem:[%s3 + $0xc] sm:$0xf]
  %v2472 = vld [vmem:[%s3 + $0x10] sm:$0xf]
  %v2473 = vld [vmem:[%s3 + $0x14] sm:$0xf]
  %v2474 = vld [vmem:[%s3 + $0x18] sm:$0x1]
  %v2475 = vld [vmem:[%s4] sm:$0x1]
  %v2477 = vlaneseq
  %v2478 = vshrl.u32 %v2477, 7
  %v2479 = vsub.s32 0, %v2478
  %v2480 = vrot.slane %v2475, %v2479
  %v2489 = vunpack.c.l.b16 %v2468
  %v2490 = vunpack.c.l.b16 %v2469
  %v2491 = vunpack.c.l.b16 %v2470
  %v2492 = vunpack.c.l.b16 %v2471
  %v2493 = vunpack.c.l.b16 %v2472
  %v2494 = vunpack.c.l.b16 %v2473
  %v2495 = vunpack.c.l.b16 %v2474
  %v2496 = vpack.c.b16 %v2490, %v2489
  %v2497 = vpack.c.b16 %v2492, %v2491
  %v2498 = vpack.c.b16 %v2494, %v2493
  %v2499 = vpack.c.b16 %v2495, %v2495
  %vm2503 = vcmask 408576
  %v2505 = vsel %vm2503, %v2467, 0
  %vm2507 = vcmask 1040384
  %v2509 = vsel %vm2507, %v2499, 0
  %2511 = vmatprep.subr.bf16.mxu0 0
  %2512 = vmatpush1.bf16.msra.mxu0 0
  %2513 = vmatprep.subr.bf16.mxu0 0
  %2514 = vmatpush1.bf16.msra.mxu0 0
  %2515 = vmatprep.subr.bf16.mxu0 0
  %2516 = vmatpush1.bf16.msra.mxu0 0
  %2517 = vmatprep.subr.bf16.mxu0 0
  %2518 = vmatpush1.bf16.msra.mxu0 0
  %2519 = vmatprep.subr.bf16.mxu0 0
  %2520 = vmatpush1.bf16.msra.mxu0 %v2509
  %2521 = vmatprep.subr.bf16.mxu0 0
  %2522 = vmatpush1.bf16.msra.mxu0 %v2498
  %2523 = vmatprep.subr.bf16.mxu0 0
  %2524 = vmatpush1.bf16.msra.mxu0 %v2497
  %2525 = vmatprep.subr.bf16.mxu0 0
  %2526 = vmatpush1.bf16.msra.mxu0 %v2496
  %2527 = vmatprep.subr.bf16.mxu0 0
  %2528 = vmatpush2.bf16.msra.mxu0 0
  %2529 = vmatprep.subr.bf16.mxu0 0
  %2530 = vmatpush2.bf16.msra.mxu0 0
  %2531 = vmatprep.subr.bf16.mxu0 0
  %2532 = vmatpush2.bf16.msra.mxu0 0
  %2533 = vmatprep.subr.bf16.mxu0 0
  %2534 = vmatpush2.bf16.msra.mxu0 0
  %2535 = vmatprep.subr.bf16.mxu0 0
  %2536 = vmatpush2.bf16.msra.mxu0 0
  %2537 = vmatprep.subr.bf16.mxu0 0
  %2538 = vmatpush2.bf16.msra.mxu0 0
  %2539 = vmatprep.subr.bf16.mxu0 0
  %2540 = vmatpush2.bf16.msra.mxu0 0
  %2541 = vmatprep.subr.bf16.mxu0 0
  %2542 = vmatpush2.bf16.msra.mxu0 0
  %2543 = vmatprep.mubr.bf16.mxu0 0
  %2544 = vmatmul.mubr.bf16.gmra.mxu0 %v2505
  %v2545 = vpop.f32.mrf.mxu0
  %v2546 = vadd.f32 %v2480, %v2545
  %v2547 = vpop.f32.mrf.mxu0
  %v2548 = vpop.f32.mrf.mxu0
  %v2549 = vadd.f32 %v2480, %v2548
  %v2550 = vpop.f32.mrf.mxu0
  %2551 = vdwg.mxu0
  %vm2552 = vcmask 80896
  %v2553 = vsel %vm2552, %v2546, -inf
  %2554 = vmax.xlane.f32.xlu0 %v2553
  %v2555 = vpop.xlane.xlu0 %2554
  %v2556 = vsel %vm2552, %v2549, -inf
  %2557 = vmax.xlane.f32.xlu0 %v2556
  %v2558 = vpop.xlane.xlu0 %2557
  %v2559 = vsub.f32 %v2546, %v2555
  %v2560 = vsub.f32 %v2549, %v2558
  %v2561 = vmul.f32 %v2559, 1.442695
  %v2562 = vpow.pop %v2561
  %v2563 = vmul.f32 %v2560, 1.442695
  %v2564 = vpow.pop %v2563
  %v2565 = vsel %vm2552, %v2562, 0.0
  %2566 = vadd.xlane.f32.xlu0 %v2565
  %v2567 = vpop.xlane.xlu0 %2566
  %v2568 = vsel %vm2552, %v2564, 0.0
  %2569 = vadd.xlane.f32.xlu0 %v2568
  %v2570 = vpop.xlane.xlu0 %2569
  %v2571 = vlog2.pop %v2567
  %v2572 = vmul.f32 %v2571, 0.6931472
  %v2573 = vlog2.pop %v2570
  %v2574 = vmul.f32 %v2573, 0.6931472
  %v2575 = vsub.f32 %v2559, %v2572
  %v2576 = vsub.f32 %v2560, %v2574
  %2577 = vst.msk [vmem:[%s5] sm:$0xff] %vm2552, %v2575
  %2578 = vst.msk [vmem:[%s5 + $0x8] sm:$0xff] %vm2552, %v2576
  // Predicated region
  $region22: #{cnn_mnist_forward.3} parent=0 // pred_check
    _
  $region23: #{cnn_mnist_forward.3} parent=0 // pred_check_branch
    %2580 = sbr.rel (0) target = $region25
  $region24: #{cnn_mnist_forward.3} parent=0 // pred_region
    _
  $region25: #{cnn_mnist_forward.3} parent=0 // pred_fallthru
    _
  // Predicated region
  $region26: #{cnn_mnist_forward.3} parent=0 // pred_check
    _
  $region27: #{cnn_mnist_forward.3} parent=0 // pred_check_branch
    %2582 = sbr.rel (0) target = $region29
  $region28: #{cnn_mnist_forward.3} parent=0 // pred_region
    _
  $region29: #{cnn_mnist_forward.3} parent=0 // pred_fallthru
    _

// kernel: cnn_mnist_forward.2
$region0: #{cnn_mnist_forward.2}
  #allocation0 [shape = 'u32[]', space=smem, size = 0x4, offset = 0x4, fixed_abs, tag = 'smem constant byte address 0x4 - core index']
  #allocation1 [shape = 'u32[144,128]{1,0:T(1,128)}', space=vmem, size = 0x12000, scoped, tag = 'internal scratch']
  %s0 = inlined_call_operand.hbm [shape: f32[2,64,64], index: 0, kind: input, shape index: {}]
  %s1 = inlined_call_operand.hbm [shape: bf16[5,64,600], index: 1, kind: input, shape index: {}]
  %s2 = inlined_call_operand.hbm [shape: bf16[30,60], index: 2, kind: input, shape index: {}]
  %s3 = inlined_call_operand.hbm [shape: bf16[30,60], index: 3, kind: input, shape index: {}]
  %s4 = inlined_call_operand.vmem [shape: bf16[590,300], index: 4, kind: input, shape index: {}]
  %s5 = inlined_call_operand.hbm [shape: f32[1,300], index: 5, kind: input, shape index: {}]
  %s6 = inlined_call_operand.hbm [shape: bf16[5,300,520], index: 6, kind: input, shape index: {}]
  %s7 = inlined_call_operand.hbm [shape: bf16[13,26], index: 7, kind: input, shape index: {}]
  %s8 = inlined_call_operand.hbm [shape: bf16[13,26], index: 8, kind: input, shape index: {}]
  %s9 = inlined_call_operand.vmem [shape: bf16[500,260], index: 9, kind: input, shape index: {}]
  %s10 = inlined_call_operand.hbm [shape: f32[1,260], index: 10, kind: input, shape index: {}]
  %s11 = inlined_call_operand.vmem [shape: bf16[2,13,260], index: 11, kind: output, shape index: {}]
  %s12 = sld [smem:[#allocation0]]
  $region113: #{cnn_mnist_forward.2} parent=0
    _
  %s14 = ssub.s32 1, %s12
  %s15 = scalar_select 0, %s14, %s12
  $region1: #{cnn_mnist_forward.2} parent=0
    #allocation2 [shape = 'u8[65536]{0}', space=vmem, size = 0x10000, scoped, tag = 'input window, operand 0']
    #allocation3 [shape = 's32[2]{0}', space=sflag, size = 0x8, scoped, tag = 'scoped memory for cnn_mnist_forward.2']
    #allocation4 [shape = 'u8[409600]{0}', space=vmem, size = 0x64000, scoped, tag = 'input window, operand 1, single buffered']
    #allocation5 [shape = 's32[1]{0}', space=sflag, size = 0x4, scoped, tag = 'scoped memory for cnn_mnist_forward.2']
    #allocation6 [shape = 'u8[8192]{0}', space=vmem, size = 0x2000, scoped, tag = 'input window, operand 2, single buffered']
    #allocation7 [shape = 'u8[8192]{0}', space=vmem, size = 0x2000, scoped, tag = 'input window, operand 3, single buffered']
    #allocation8 [shape = 's32[1]{0}', space=sflag, size = 0x4, scoped, tag = 'scoped memory for cnn_mnist_forward.2']
    #allocation9 [shape = 'u8[1536]{0}', space=vmem, size = 0x800, scoped, tag = 'input window, operand 5, single buffered']
    #allocation10 [shape = 'u8[1945600]{0}', space=vmem, size = 0x1db000, scoped, tag = 'input window, operand 6, single buffered']
    #allocation11 [shape = 's32[1]{0}', space=sflag, size = 0x4, scoped, tag = 'scoped memory for cnn_mnist_forward.2']
    #allocation12 [shape = 'u8[4096]{0}', space=vmem, size = 0x1000, scoped, tag = 'input window, operand 7, single buffered']
    #allocation13 [shape = 'u8[4096]{0}', space=vmem, size = 0x1000, scoped, tag = 'input window, operand 8, single buffered']
    #allocation14 [shape = 's32[1]{0}', space=sflag, size = 0x4, scoped, tag = 'scoped memory for cnn_mnist_forward.2']
    #allocation15 [shape = 'u8[1536]{0}', space=vmem, size = 0x800, scoped, tag = 'input window, operand 10, single buffered']
    %16 = vsyncpa [#allocation3], 0
    %s17 = scalar_lea.sflag [#allocation3], 1
    %18 = vsyncpa %s17, 0
    %19 = vsyncpa [#allocation5], 0
    %20 = vsyncpa [#allocation8], 0
    %21 = vsyncpa [#allocation11], 0
    %22 = vsyncpa [#allocation14], 0
    loop: start=0, step=1, limit=4
    $region2: #{cnn_mnist_forward.2} parent=1 // loop_pre_header
      _
    $region3: #{cnn_mnist_forward.2} parent=1 // loop_header
      %s24 = sphi 0, %s28
      %p25 = scmp.ge.s32.totalorder %s24, 4
      %s34 = sphi 0, %s36
      %s37 = sphi 0, %s34
      %s38 = sphi 0, %s37
      %s54 = sphi 0, %s38
      %s58 = sphi 0, %s58
      %s60 = sphi 0, %s58
      %s61 = sphi 0, %s60
      %s75 = sphi 0, %s61
      %s79 = sphi 0, %s79
      %s81 = sphi 0, %s79
      %s82 = sphi 0, %s81
      %s96 = sphi 0, %s82
      %s100 = sphi 0, %s100
      %s102 = sphi 0, %s100
      %s103 = sphi 0, %s102
      %s117 = sphi 0, %s103
      %s121 = sphi 0, %s121
      %s123 = sphi 0, %s121
      %s124 = sphi 0, %s123
      %s138 = sphi 0, %s124
      %s142 = sphi 0, %s142
      %s144 = sphi 0, %s142
      %s145 = sphi 0, %s144
      %s159 = sphi 0, %s145
      %s163 = sphi 0, %s163
      %s165 = sphi 0, %s163
      %s166 = sphi 0, %s165
      %s180 = sphi 0, %s166
      %s184 = sphi 0, %s184
      %s186 = sphi 0, %s184
      %s187 = sphi 0, %s186
      %s201 = sphi 0, %s187
      %s205 = sphi 0, %s205
      %s207 = sphi 0, %s205
      %s208 = sphi 0, %s207
      %s222 = sphi 0, %s208
      %s226 = sphi 0, %s226
      %s228 = sphi 0, %s226
      %s229 = sphi 0, %s228
      %s243 = sphi 0, %s229
      %s247 = sphi 0, %s247
      %s249 = sphi 0, %s247
      %s250 = sphi 0, %s249
      %s264 = sphi 0, %s250
      %s270 = sphi 0, %s272
      %s273 = sphi 0, %s270
      %s274 = sphi 0, %s273
      %s290 = sphi 0, %s274
    $region4: #{cnn_mnist_forward.2} parent=1 // loop_header_branch
      %27 = sbr.rel (%p25) target = $region8
    $region5: #{cnn_mnist_forward.2} parent=1 // loop_body
      %s29 = ssub.s32 %s24, 1
      %s30 = ssub.s32 %s24, 2
      %s31 = sadd.s32 %s24, 1
      %s32 = ssub.s32 %s24, %s31
      %p33 = scmp.eq.s32.totalorder %s32, 0
      %s35 = sadd.s32 %s34, 1
      %s36 = scalar_select %p33, %s34, %s35
      %p39 = pneg %p33
      %p40 = scmp.eq.s32.totalorder %s24, 1
      %p41 = por %p39, %p40
      %p42 = scmp.ne.s32.totalorder %s34, %s37
      %p43 = scmp.eq.s32.totalorder %s24, 0
      %p44 = por %p42, %p43
      %p45 = scmp.ne.s32.totalorder %s34, %s37
      %p46 = scmp.eq.s32.totalorder %s29, 1
      %p47 = por %p45, %p46
      %p48 = scmp.ne.s32.totalorder %s37, %s38
      %p49 = scmp.eq.s32.totalorder %s29, 0
      %p50 = por %p48, %p49
      %p51 = scmp.ne.s32.totalorder %s37, %s38
      %p52 = scmp.eq.s32.totalorder %s30, 1
      %p53 = por %p51, %p52
      %p55 = scmp.ne.s32.totalorder %s38, %s54
      %p56 = scmp.eq.s32.totalorder %s30, 0
      %p57 = por %p55, %p56
      %s59 = sadd.s32 %s58, 1
      %p62 = scmp.eq.s32.totalorder %s24, 1
      %p63 = scmp.ne.s32.totalorder %s58, %s60
      %p64 = scmp.eq.s32.totalorder %s24, 0
      %p65 = por %p63, %p64
      %p66 = scmp.ne.s32.totalorder %s58, %s60
      %p67 = scmp.eq.s32.totalorder %s29, 1
      %p68 = por %p66, %p67
      %p69 = scmp.ne.s32.totalorder %s60, %s61
      %p70 = scmp.eq.s32.totalorder %s29, 0
      %p71 = por %p69, %p70
      %p72 = scmp.ne.s32.totalorder %s60, %s61
      %p73 = scmp.eq.s32.totalorder %s30, 1
      %p74 = por %p72, %p73
      %p76 = scmp.ne.s32.totalorder %s61, %s75
      %p77 = scmp.eq.s32.totalorder %s30, 0
      %p78 = por %p76, %p77
      %s80 = sadd.s32 %s79, 1
      %p83 = scmp.eq.s32.totalorder %s24, 1
      %p84 = scmp.ne.s32.totalorder %s79, %s81
      %p85 = scmp.eq.s32.totalorder %s24, 0
      %p86 = por %p84, %p85
      %p87 = scmp.ne.s32.totalorder %s79, %s81
      %p88 = scmp.eq.s32.totalorder %s29, 1
      %p89 = por %p87, %p88
      %p90 = scmp.ne.s32.totalorder %s81, %s82
      %p91 = scmp.eq.s32.totalorder %s29, 0
      %p92 = por %p90, %p91
      %p93 = scmp.ne.s32.totalorder %s81, %s82
      %p94 = scmp.eq.s32.totalorder %s30, 1
      %p95 = por %p93, %p94
      %p97 = scmp.ne.s32.totalorder %s82, %s96
      %p98 = scmp.eq.s32.totalorder %s30, 0
      %p99 = por %p97, %p98
      %s101 = sadd.s32 %s100, 1
      %p104 = scmp.eq.s32.totalorder %s24, 1
      %p105 = scmp.ne.s32.totalorder %s100, %s102
      %p106 = scmp.eq.s32.totalorder %s24, 0
      %p107 = por %p105, %p106
      %p108 = scmp.ne.s32.totalorder %s100, %s102
      %p109 = scmp.eq.s32.totalorder %s29, 1
      %p110 = por %p108, %p109
      %p111 = scmp.ne.s32.totalorder %s102, %s103
      %p112 = scmp.eq.s32.totalorder %s29, 0
      %p113 = por %p111, %p112
      %p114 = scmp.ne.s32.totalorder %s102, %s103
      %p115 = scmp.eq.s32.totalorder %s30, 1
      %p116 = por %p114, %p115
      %p118 = scmp.ne.s32.totalorder %s103, %s117
      %p119 = scmp.eq.s32.totalorder %s30, 0
      %p120 = por %p118, %p119
      %s122 = sadd.s32 %s121, 1
      %p125 = scmp.eq.s32.totalorder %s24, 1
      %p126 = scmp.ne.s32.totalorder %s121, %s123
      %p127 = scmp.eq.s32.totalorder %s24, 0
      %p128 = por %p126, %p127
      %p129 = scmp.ne.s32.totalorder %s121, %s123
      %p130 = scmp.eq.s32.totalorder %s29, 1
      %p131 = por %p129, %p130
      %p132 = scmp.ne.s32.totalorder %s123, %s124
      %p133 = scmp.eq.s32.totalorder %s29, 0
      %p134 = por %p132, %p133
      %p135 = scmp.ne.s32.totalorder %s123, %s124
      %p136 = scmp.eq.s32.totalorder %s30, 1
      %p137 = por %p135, %p136
      %p139 = scmp.ne.s32.totalorder %s124, %s138
      %p140 = scmp.eq.s32.totalorder %s30, 0
      %p141 = por %p139, %p140
      %s143 = sadd.s32 %s142, 1
      %p146 = scmp.eq.s32.totalorder %s24, 1
      %p147 = scmp.ne.s32.totalorder %s142, %s144
      %p148 = scmp.eq.s32.totalorder %s24, 0
      %p149 = por %p147, %p148
      %p150 = scmp.ne.s32.totalorder %s142, %s144
      %p151 = scmp.eq.s32.totalorder %s29, 1
      %p152 = por %p150, %p151
      %p153 = scmp.ne.s32.totalorder %s144, %s145
      %p154 = scmp.eq.s32.totalorder %s29, 0
      %p155 = por %p153, %p154
      %p156 = scmp.ne.s32.totalorder %s144, %s145
      %p157 = scmp.eq.s32.totalorder %s30, 1
      %p158 = por %p156, %p157
      %p160 = scmp.ne.s32.totalorder %s145, %s159
      %p161 = scmp.eq.s32.totalorder %s30, 0
      %p162 = por %p160, %p161
      %s164 = sadd.s32 %s163, 1
      %p167 = scmp.eq.s32.totalorder %s24, 1
      %p168 = scmp.ne.s32.totalorder %s163, %s165
      %p169 = scmp.eq.s32.totalorder %s24, 0
      %p170 = por %p168, %p169
      %p171 = scmp.ne.s32.totalorder %s163, %s165
      %p172 = scmp.eq.s32.totalorder %s29, 1
      %p173 = por %p171, %p172
      %p174 = scmp.ne.s32.totalorder %s165, %s166
      %p175 = scmp.eq.s32.totalorder %s29, 0
      %p176 = por %p174, %p175
      %p177 = scmp.ne.s32.totalorder %s165, %s166
      %p178 = scmp.eq.s32.totalorder %s30, 1
      %p179 = por %p177, %p178
      %p181 = scmp.ne.s32.totalorder %s166, %s180
      %p182 = scmp.eq.s32.totalorder %s30, 0
      %p183 = por %p181, %p182
      %s185 = sadd.s32 %s184, 1
      %p188 = scmp.eq.s32.totalorder %s24, 1
      %p189 = scmp.ne.s32.totalorder %s184, %s186
      %p190 = scmp.eq.s32.totalorder %s24, 0
      %p191 = por %p189, %p190
      %p192 = scmp.ne.s32.totalorder %s184, %s186
      %p193 = scmp.eq.s32.totalorder %s29, 1
      %p194 = por %p192, %p193
      %p195 = scmp.ne.s32.totalorder %s186, %s187
      %p196 = scmp.eq.s32.totalorder %s29, 0
      %p197 = por %p195, %p196
      %p198 = scmp.ne.s32.totalorder %s186, %s187
      %p199 = scmp.eq.s32.totalorder %s30, 1
      %p200 = por %p198, %p199
      %p202 = scmp.ne.s32.totalorder %s187, %s201
      %p203 = scmp.eq.s32.totalorder %s30, 0
      %p204 = por %p202, %p203
      %s206 = sadd.s32 %s205, 1
      %p209 = scmp.eq.s32.totalorder %s24, 1
      %p210 = scmp.ne.s32.totalorder %s205, %s207
      %p211 = scmp.eq.s32.totalorder %s24, 0
      %p212 = por %p210, %p211
      %p213 = scmp.ne.s32.totalorder %s205, %s207
      %p214 = scmp.eq.s32.totalorder %s29, 1
      %p215 = por %p213, %p214
      %p216 = scmp.ne.s32.totalorder %s207, %s208
      %p217 = scmp.eq.s32.totalorder %s29, 0
      %p218 = por %p216, %p217
      %p219 = scmp.ne.s32.totalorder %s207, %s208
      %p220 = scmp.eq.s32.totalorder %s30, 1
      %p221 = por %p219, %p220
      %p223 = scmp.ne.s32.totalorder %s208, %s222
      %p224 = scmp.eq.s32.totalorder %s30, 0
      %p225 = por %p223, %p224
      %s227 = sadd.s32 %s226, 1
      %p230 = scmp.eq.s32.totalorder %s24, 1
      %p231 = scmp.ne.s32.totalorder %s226, %s228
      %p232 = scmp.eq.s32.totalorder %s24, 0
      %p233 = por %p231, %p232
      %p234 = scmp.ne.s32.totalorder %s226, %s228
      %p235 = scmp.eq.s32.totalorder %s29, 1
      %p236 = por %p234, %p235
      %p237 = scmp.ne.s32.totalorder %s228, %s229
      %p238 = scmp.eq.s32.totalorder %s29, 0
      %p239 = por %p237, %p238
      %p240 = scmp.ne.s32.totalorder %s228, %s229
      %p241 = scmp.eq.s32.totalorder %s30, 1
      %p242 = por %p240, %p241
      %p244 = scmp.ne.s32.totalorder %s229, %s243
      %p245 = scmp.eq.s32.totalorder %s30, 0
      %p246 = por %p244, %p245
      %s248 = sadd.s32 %s247, 1
      %p251 = scmp.eq.s32.totalorder %s24, 1
      %p252 = scmp.ne.s32.totalorder %s247, %s249
      %p253 = scmp.eq.s32.totalorder %s24, 0
      %p254 = por %p252, %p253
      %p255 = scmp.ne.s32.totalorder %s247, %s249
      %p256 = scmp.eq.s32.totalorder %s29, 1
      %p257 = por %p255, %p256
      %p258 = scmp.ne.s32.totalorder %s249, %s250
      %p259 = scmp.eq.s32.totalorder %s29, 0
      %p260 = por %p258, %p259
      %p261 = scmp.ne.s32.totalorder %s249, %s250
      %p262 = scmp.eq.s32.totalorder %s30, 1
      %p263 = por %p261, %p262
      %p265 = scmp.ne.s32.totalorder %s250, %s264
      %p266 = scmp.eq.s32.totalorder %s30, 0
      %p267 = por %p265, %p266
      %s268 = ssub.s32 %s24, %s31
      %p269 = scmp.eq.s32.totalorder %s268, 0
      %s271 = sadd.s32 %s270, 1
      %s272 = scalar_select %p269, %s270, %s271
      %p275 = pneg %p269
      %p276 = scmp.eq.s32.totalorder %s24, 1
      %p277 = por %p275, %p276
      %p278 = scmp.ne.s32.totalorder %s270, %s273
      %p279 = scmp.eq.s32.totalorder %s24, 0
      %p280 = por %p278, %p279
      %p281 = scmp.ne.s32.totalorder %s270, %s273
      %p282 = scmp.eq.s32.totalorder %s29, 1
      %p283 = por %p281, %p282
      %p284 = scmp.ne.s32.totalorder %s273, %s274
      %p285 = scmp.eq.s32.totalorder %s29, 0
      %p286 = por %p284, %p285
      %p287 = scmp.ne.s32.totalorder %s273, %s274
      %p288 = scmp.eq.s32.totalorder %s30, 1
      %p289 = por %p287, %p288
      %p291 = scmp.ne.s32.totalorder %s274, %s290
      %p292 = scmp.eq.s32.totalorder %s30, 0
      %p293 = por %p291, %p292
      %p294 = scmp.le.s32.totalorder 1, %s24
      %p295 = scmp.lt.s32.totalorder %s24, 3
      %p296 = pnand %p294, %p295
      %p297 = pneg %p296
      // Predicated region
      $region9: #{cnn_mnist_forward.2} parent=5 // pred_check
        _
      $region10: #{cnn_mnist_forward.2} parent=5 // pred_check_branch
        %299 = sbr.rel (%p296) target = $region12
      $region11: #{cnn_mnist_forward.2} parent=5 // pred_region
        %s300 = ssub.s32 %s24, 1
        // Predicated region
        $region13: #{cnn_mnist_forward.2} parent=11 // pred_check
          %p301 = pneg %p71
        $region14: #{cnn_mnist_forward.2} parent=11 // pred_check_branch
          %303 = sbr.rel (%p301) target = $region16
        $region15: #{cnn_mnist_forward.2} parent=11 // pred_region
          %s305 = ssub.s32 12800, 12800
          %306 = vsyncadd [#allocation5], %s305
          %s307 = sshll.u32 [#allocation4], 4
          %s308 = int_to_ptr.vmem [resolvable:$true] %s307
          %313 = dma.hbm_to_vmem [thread:$0]  %s1, 12800, %s308, [#allocation5], 320, 320, 20
        $region16: #{cnn_mnist_forward.2} parent=11 // pred_fallthru
          _
        // Predicated region
        $region17: #{cnn_mnist_forward.2} parent=11 // pred_check
          %p314 = pneg %p92
        $region18: #{cnn_mnist_forward.2} parent=11 // pred_check_branch
          %316 = sbr.rel (%p314) target = $region20
        $region19: #{cnn_mnist_forward.2} parent=11 // pred_region
          %s318 = ssub.s32 256, 256
          %319 = vsyncadd [#allocation5], %s318
          %s320 = sshll.u32 [#allocation6], 4
          %s321 = int_to_ptr.vmem [resolvable:$true] %s320
          %326 = dma.hbm_to_vmem [thread:$0]  %s2, 256, %s321, [#allocation5], 64, 64, 4
        $region20: #{cnn_mnist_forward.2} parent=11 // pred_fallthru
          _
        // Predicated region
        $region21: #{cnn_mnist_forward.2} parent=11 // pred_check
          %p327 = pneg %p113
        $region22: #{cnn_mnist_forward.2} parent=11 // pred_check_branch
          %329 = sbr.rel (%p327) target = $region24
        $region23: #{cnn_mnist_forward.2} parent=11 // pred_region
          %s331 = ssub.s32 256, 256
          %332 = vsyncadd [#allocation8], %s331
          %s333 = sshll.u32 [#allocation7], 4
          %s334 = int_to_ptr.vmem [resolvable:$true] %s333
          %339 = dma.hbm_to_vmem [thread:$0]  %s3, 256, %s334, [#allocation8], 64, 64, 4
        $region24: #{cnn_mnist_forward.2} parent=11 // pred_fallthru
          _
        // Predicated region
        $region25: #{cnn_mnist_forward.2} parent=11 // pred_check
          %p340 = pneg %p134
        $region26: #{cnn_mnist_forward.2} parent=11 // pred_check_branch
          %342 = sbr.rel (%p340) target = $region28
        $region27: #{cnn_mnist_forward.2} parent=11 // pred_region
          _
        $region28: #{cnn_mnist_forward.2} parent=11 // pred_fallthru
          _
        // Predicated region
        $region29: #{cnn_mnist_forward.2} parent=11 // pred_check
          %p343 = pneg %p155
        $region30: #{cnn_mnist_forward.2} parent=11 // pred_check_branch
          %345 = sbr.rel (%p343) target = $region32
        $region31: #{cnn_mnist_forward.2} parent=11 // pred_region
          %s347 = ssub.s32 48, 48
          %348 = vsyncadd [#allocation8], %s347
          %s350 = sshll.u32 [#allocation9], 4
          %s351 = int_to_ptr.vmem [resolvable:$true] %s350
          %353 = dma.hbm_to_vmem [thread:$0]  %s5, 48, %s351, [#allocation8]
        $region32: #{cnn_mnist_forward.2} parent=11 // pred_fallthru
          _
        // Predicated region
        $region33: #{cnn_mnist_forward.2} parent=11 // pred_check
          %p354 = pneg %p176
        $region34: #{cnn_mnist_forward.2} parent=11 // pred_check_branch
          %356 = sbr.rel (%p354) target = $region36
        $region35: #{cnn_mnist_forward.2} parent=11 // pred_region
          %s358 = ssub.s32 60800, 60800
          %359 = vsyncadd [#allocation11], %s358
          %s360 = sshll.u32 [#allocation10], 4
          %s361 = int_to_ptr.vmem [resolvable:$true] %s360
          %366 = dma.hbm_to_vmem [thread:$0]  %s6, 60800, %s361, [#allocation11], 320, 320, 20
        $region36: #{cnn_mnist_forward.2} parent=11 // pred_fallthru
          _
        // Predicated region
        $region37: #{cnn_mnist_forward.2} parent=11 // pred_check
          %p367 = pneg %p197
        $region38: #{cnn_mnist_forward.2} parent=11 // pred_check_branch
          %369 = sbr.rel (%p367) target = $region40
        $region39: #{cnn_mnist_forward.2} parent=11 // pred_region
          %s371 = ssub.s32 128, 128
          %372 = vsyncadd [#allocation11], %s371
          %s373 = sshll.u32 [#allocation12], 4
          %s374 = int_to_ptr.vmem [resolvable:$true] %s373
          %379 = dma.hbm_to_vmem [thread:$0]  %s7, 128, %s374, [#allocation11], 64, 64, 4
        $region40: #{cnn_mnist_forward.2} parent=11 // pred_fallthru
          _
        // Predicated region
        $region41: #{cnn_mnist_forward.2} parent=11 // pred_check
          %p380 = pneg %p218
        $region42: #{cnn_mnist_forward.2} parent=11 // pred_check_branch
          %382 = sbr.rel (%p380) target = $region44
        $region43: #{cnn_mnist_forward.2} parent=11 // pred_region
          %s384 = ssub.s32 128, 128
          %385 = vsyncadd [#allocation14], %s384
          %s386 = sshll.u32 [#allocation13], 4
          %s387 = int_to_ptr.vmem [resolvable:$true] %s386
          %392 = dma.hbm_to_vmem [thread:$0]  %s8, 128, %s387, [#allocation14], 64, 64, 4
        $region44: #{cnn_mnist_forward.2} parent=11 // pred_fallthru
          _
        // Predicated region
        $region45: #{cnn_mnist_forward.2} parent=11 // pred_check
          %p393 = pneg %p239
        $region46: #{cnn_mnist_forward.2} parent=11 // pred_check_branch
          %395 = sbr.rel (%p393) target = $region48
        $region47: #{cnn_mnist_forward.2} parent=11 // pred_region
          _
        $region48: #{cnn_mnist_forward.2} parent=11 // pred_fallthru
          _
        // Predicated region
        $region49: #{cnn_mnist_forward.2} parent=11 // pred_check
          %p396 = pneg %p260
        $region50: #{cnn_mnist_forward.2} parent=11 // pred_check_branch
          %398 = sbr.rel (%p396) target = $region52
        $region51: #{cnn_mnist_forward.2} parent=11 // pred_region
          %s400 = ssub.s32 48, 48
          %401 = vsyncadd [#allocation14], %s400
          %s403 = sshll.u32 [#allocation15], 4
          %s404 = int_to_ptr.vmem [resolvable:$true] %s403
          %406 = dma.hbm_to_vmem [thread:$0]  %s10, 48, %s404, [#allocation14]
        $region52: #{cnn_mnist_forward.2} parent=11 // pred_fallthru
          _
      $region12: #{cnn_mnist_forward.2} parent=5 // pred_fallthru
        _
      %p407 = scmp.lt.s32.totalorder %s24, 2
      // Predicated region
      $region53: #{cnn_mnist_forward.2} parent=5 // pred_check
        %p408 = pneg %p407
      $region54: #{cnn_mnist_forward.2} parent=5 // pred_check_branch
        %410 = sbr.rel (%p408) target = $region56
      $region55: #{cnn_mnist_forward.2} parent=5 // pred_region
        // Predicated region
        $region57: #{cnn_mnist_forward.2} parent=55 // pred_check
          %p411 = pneg %p44
        $region58: #{cnn_mnist_forward.2} parent=55 // pred_check_branch
          %413 = sbr.rel (%p411) target = $region60
        $region59: #{cnn_mnist_forward.2} parent=55 // pred_region
          %s414 = sand.u32 %s34, 1
          %s415 = scalar_lea.sflag [#allocation3], %s414
          %s416 = sand.u32 %s34, 1
          %s417 = smul.addr %s416, 64
          %s418 = scalar_lea.vmem [#allocation2], %s417
          %s420 = ssub.s32 1024, 1024
          %421 = vsyncadd %s415, %s420
          %s422 = smul.addr %s24, 8
          %s423 = smul.addr %s422, 128
          %s424 = scalar_lea.hbm %s0, %s423
          %s425 = sshll.u32 %s418, 4
          %s426 = int_to_ptr.vmem [resolvable:$true] %s425
          %431 = dma.hbm_to_vmem [thread:$0]  %s424, 1024, %s426, %s415, 128, 128, 8
        $region60: #{cnn_mnist_forward.2} parent=55 // pred_fallthru
          _
      $region56: #{cnn_mnist_forward.2} parent=5 // pred_fallthru
        _
      %p432 = scmp.le.s32.totalorder 1, %s24
      %p433 = scmp.lt.s32.totalorder %s24, 3
      %p434 = pnand %p432, %p433
      %p435 = pneg %p434
      // Predicated region
      $region61: #{cnn_mnist_forward.2} parent=5 // pred_check
        _
      $region62: #{cnn_mnist_forward.2} parent=5 // pred_check_branch
        %437 = sbr.rel (%p434) target = $region64
      $region63: #{cnn_mnist_forward.2} parent=5 // pred_region
        %s438 = ssub.s32 %s24, 1
        %s439 = sand.u32 %s37, 1
        %s440 = scalar_lea.sflag [#allocation3], %s439
        %s441 = sand.u32 %s37, 1
        %s442 = smul.addr %s441, 64
        %s443 = scalar_lea.vmem [#allocation2], %s442
        // Predicated region
        $region65: #{cnn_mnist_forward.2} parent=63 // pred_check
          %p444 = pneg %p50
        $region66: #{cnn_mnist_forward.2} parent=63 // pred_check_branch
          %446 = sbr.rel (%p444) target = $region68
        $region67: #{cnn_mnist_forward.2} parent=63 // pred_region
          %447 = dma.done %s440, 1024
        $region68: #{cnn_mnist_forward.2} parent=63 // pred_fallthru
          _
        // Predicated region
        $region69: #{cnn_mnist_forward.2} parent=63 // pred_check
          %p448 = pneg %p71
        $region70: #{cnn_mnist_forward.2} parent=63 // pred_check_branch
          %450 = sbr.rel (%p448) target = $region72
        $region71: #{cnn_mnist_forward.2} parent=63 // pred_region
          %451 = dma.done [#allocation5], 12800
        $region72: #{cnn_mnist_forward.2} parent=63 // pred_fallthru
          _
        // Predicated region
        $region73: #{cnn_mnist_forward.2} parent=63 // pred_check
          %p452 = pneg %p92
        $region74: #{cnn_mnist_forward.2} parent=63 // pred_check_branch
          %454 = sbr.rel (%p452) target = $region76
        $region75: #{cnn_mnist_forward.2} parent=63 // pred_region
          %455 = dma.done [#allocation5], 256
        $region76: #{cnn_mnist_forward.2} parent=63 // pred_fallthru
          _
        // Predicated region
        $region77: #{cnn_mnist_forward.2} parent=63 // pred_check
          %p456 = pneg %p113
        $region78: #{cnn_mnist_forward.2} parent=63 // pred_check_branch
          %458 = sbr.rel (%p456) target = $region80
        $region79: #{cnn_mnist_forward.2} parent=63 // pred_region
          %459 = dma.done [#allocation8], 256
        $region80: #{cnn_mnist_forward.2} parent=63 // pred_fallthru
          _
        // Predicated region
        $region81: #{cnn_mnist_forward.2} parent=63 // pred_check
          %p460 = pneg %p155
        $region82: #{cnn_mnist_forward.2} parent=63 // pred_check_branch
          %462 = sbr.rel (%p460) target = $region84
        $region83: #{cnn_mnist_forward.2} parent=63 // pred_region
          %463 = dma.done [#allocation8], 48
        $region84: #{cnn_mnist_forward.2} parent=63 // pred_fallthru
          _
        // Predicated region
        $region85: #{cnn_mnist_forward.2} parent=63 // pred_check
          %p464 = pneg %p176
        $region86: #{cnn_mnist_forward.2} parent=63 // pred_check_branch
          %466 = sbr.rel (%p464) target = $region88
        $region87: #{cnn_mnist_forward.2} parent=63 // pred_region
          %467 = dma.done [#allocation11], 60800
        $region88: #{cnn_mnist_forward.2} parent=63 // pred_fallthru
          _
        // Predicated region
        $region89: #{cnn_mnist_forward.2} parent=63 // pred_check
          %p468 = pneg %p197
        $region90: #{cnn_mnist_forward.2} parent=63 // pred_check_branch
          %470 = sbr.rel (%p468) target = $region92
        $region91: #{cnn_mnist_forward.2} parent=63 // pred_region
          %471 = dma.done [#allocation11], 128
        $region92: #{cnn_mnist_forward.2} parent=63 // pred_fallthru
          _
        // Predicated region
        $region93: #{cnn_mnist_forward.2} parent=63 // pred_check
          %p472 = pneg %p218
        $region94: #{cnn_mnist_forward.2} parent=63 // pred_check_branch
          %474 = sbr.rel (%p472) target = $region96
        $region95: #{cnn_mnist_forward.2} parent=63 // pred_region
          %475 = dma.done [#allocation14], 128
        $region96: #{cnn_mnist_forward.2} parent=63 // pred_fallthru
          _
        // Predicated region
        $region97: #{cnn_mnist_forward.2} parent=63 // pred_check
          %p476 = pneg %p260
        $region98: #{cnn_mnist_forward.2} parent=63 // pred_check_branch
          %478 = sbr.rel (%p476) target = $region100
        $region99: #{cnn_mnist_forward.2} parent=63 // pred_region
          %479 = dma.done [#allocation14], 48
        $region100: #{cnn_mnist_forward.2} parent=63 // pred_fallthru
          _
        %s480 = sand.u32 %s37, 1
        %s481 = scalar_lea.sflag [#allocation3], %s480
        %s482 = sand.u32 %s37, 1
        %s483 = smul.addr %s482, 64
        %s484 = scalar_lea.vmem [#allocation2], %s483
        %p485 = pneg %p50
        %p486 = pneg %p47
        %p487 = pneg %p71
        %p488 = pneg %p68
        %p489 = pneg %p92
        %p490 = pneg %p89
        %p491 = pneg %p113
        %p492 = pneg %p110
        %p493 = pneg %p134
        %p494 = pneg %p131
        %p495 = pneg %p155
        %p496 = pneg %p152
        %p497 = pneg %p176
        %p498 = pneg %p173
        %p499 = pneg %p197
        %p500 = pneg %p194
        %p501 = pneg %p218
        %p502 = pneg %p215
        %p503 = pneg %p239
        %p504 = pneg %p236
        %p505 = pneg %p260
        %p506 = pneg %p257
        %p507 = pneg %p286
        %p508 = pneg %p283
        %p509 = scmp.lt.s32.totalorder %s29, 1
        %s510 = scalar_select %p509, %s29, 1
        %s511 = smul.addr %s510, 6
        %s512 = smul.addr %s511, 4
        %s513 = scalar_lea.vmem %s11, %s512
        %p514 = scmp.lt.s32.totalorder %s29, 1
        %s515 = scalar_select %p514, %s29, 1
        %s516 = smul.addr %s515, 6
        %s517 = smul.addr %s516, 4
        %s518 = scalar_lea.vmem %s11, %s517
        %v520 = vld [vmem:[%s443] sm:$0xff]
        %v521 = vld [vmem:[%s443 + $0x8] sm:$0xff]
        %v522 = vld [vmem:[%s443 + $0x10] sm:$0xff]
        %v523 = vld [vmem:[%s443 + $0x18] sm:$0xff]
        %v524 = vld [vmem:[%s443 + $0x20] sm:$0xff]
        %v525 = vld [vmem:[%s443 + $0x28] sm:$0xff]
        %v526 = vld [vmem:[%s443 + $0x30] sm:$0xff]
        %v527 = vld [vmem:[%s443 + $0x38] sm:$0xff]
        %v528 = vpack.c.bf16 %v521, %v520
        %v529 = vpack.c.bf16 %v523, %v522
        %v530 = vpack.c.bf16 %v525, %v524
        %v531 = vpack.c.bf16 %v527, %v526
        %v532 = vld [vmem:[#allocation4] sm:$0xff]
        %v533 = vld [vmem:[#allocation4 + $0x8] sm:$0xff]
        %v534 = vld [vmem:[#allocation4 + $0x10] sm:$0xf]
        %v535 = vld [vmem:[#allocation4 + $0x14] sm:$0xff]
        %v536 = vld [vmem:[#allocation4 + $0x1c] sm:$0xff]
        %v537 = vld [vmem:[#allocation4 + $0x24] sm:$0xf]
        %v538 = vld [vmem:[#allocation4 + $0x28] sm:$0xff]
        %v539 = vld [vmem:[#allocation4 + $0x30] sm:$0xff]
        %v540 = vld [vmem:[#allocation4 + $0x38] sm:$0xf]
        %v541 = vld [vmem:[#allocation4 + $0x3c] sm:$0xff]
        %v542 = vld [vmem:[#allocation4 + $0x44] sm:$0xff]
        %v543 = vld [vmem:[#allocation4 + $0x4c] sm:$0xf]
        %v544 = vld [vmem:[#allocation4 + $0x50] sm:$0xff]
        %v545 = vld [vmem:[#allocation4 + $0x58] sm:$0xff]
        %v546 = vld [vmem:[#allocation4 + $0x60] sm:$0xf]
        %v547 = vld [vmem:[#allocation4 + $0x64] sm:$0xff]
        %v548 = vld [vmem:[#allocation4 + $0x6c] sm:$0xff]
        %v549 = vld [vmem:[#allocation4 + $0x74] sm:$0xf]
        %v550 = vld [vmem:[#allocation4 + $0x78] sm:$0xff]
        %v551 = vld [vmem:[#allocation4 + $0x80] sm:$0xff]
        %v552 = vld [vmem:[#allocation4 + $0x88] sm:$0xf]
        %v553 = vld [vmem:[#allocation4 + $0x8c] sm:$0xff]
        %v554 = vld [vmem:[#allocation4 + $0x94] sm:$0xff]
        %v555 = vld [vmem:[#allocation4 + $0x9c] sm:$0xf]
        %s556 = scalar_lea.vmem [#allocation4], 160
        %v557 = vld [vmem:[%s556] sm:$0xff]
        %v558 = vld [vmem:[%s556 + $0x8] sm:$0xff]
        %v559 = vld [vmem:[%s556 + $0x10] sm:$0xf]
        %v560 = vld [vmem:[%s556 + $0x14] sm:$0xff]
        %v561 = vld [vmem:[%s556 + $0x1c] sm:$0xff]
        %v562 = vld [vmem:[%s556 + $0x24] sm:$0xf]
        %v563 = vld [vmem:[%s556 + $0x28] sm:$0xff]
        %v564 = vld [vmem:[%s556 + $0x30] sm:$0xff]
        %v565 = vld [vmem:[%s556 + $0x38] sm:$0xf]
        %v566 = vld [vmem:[%s556 + $0x3c] sm:$0xff]
        %v567 = vld [vmem:[%s556 + $0x44] sm:$0xff]
        %v568 = vld [vmem:[%s556 + $0x4c] sm:$0xf]
        %v569 = vld [vmem:[%s556 + $0x50] sm:$0xff]
        %v570 = vld [vmem:[%s556 + $0x58] sm:$0xff]
        %v571 = vld [vmem:[%s556 + $0x60] sm:$0xf]
        %v572 = vld [vmem:[%s556 + $0x64] sm:$0xff]
        %v573 = vld [vmem:[%s556 + $0x6c] sm:$0xff]
        %v574 = vld [vmem:[%s556 + $0x74] sm:$0xf]
        %v575 = vld [vmem:[%s556 + $0x78] sm:$0xff]
        %v576 = vld [vmem:[%s556 + $0x80] sm:$0xff]
        %v577 = vld [vmem:[%s556 + $0x88] sm:$0xf]
        %v578 = vld [vmem:[%s556 + $0x8c] sm:$0xff]
        %v579 = vld [vmem:[%s556 + $0x94] sm:$0xff]
        %v580 = vld [vmem:[%s556 + $0x9c] sm:$0xf]
        %vm581 = vsmask.f32 7424
        %v583 = vshrl.u32 %v528, 16
        %v585 = vshll.u32 %v528, 16
        %v587 = vrot.slane %v585, 1
        %v588 = vor.u32 %v583, %v587
        %v590 = vshll.u32 %v529, 16
        %v592 = vrot.slane %v590, 1
        %v593 = vsel %vm581, %v588, %v592
        %v594 = vshrl.u32 %v529, 16
        %v596 = vor.u32 %v594, %v592
        %v598 = vshll.u32 %v530, 16
        %v600 = vrot.slane %v598, 1
        %v601 = vsel %vm581, %v596, %v600
        %v602 = vshrl.u32 %v530, 16
        %v604 = vor.u32 %v602, %v600
        %v606 = vshll.u32 %v531, 16
        %v608 = vrot.slane %v606, 1
        %v609 = vsel %vm581, %v604, %v608
        %v610 = vshrl.u32 %v531, 16
        %v612 = vor.u32 %v610, %v608
        %v637 = vunpack.c.l.b16 %v557
        %v638 = vunpack.c.h.b16 %v557
        %v639 = vunpack.c.l.b16 %v558
        %v640 = vunpack.c.h.b16 %v558
        %v641 = vunpack.c.l.b16 %v559
        %v642 = vunpack.c.l.b16 %v560
        %v643 = vunpack.c.h.b16 %v560
        %v644 = vunpack.c.l.b16 %v561
        %v645 = vunpack.c.h.b16 %v561
        %v646 = vunpack.c.l.b16 %v562
        %v647 = vunpack.c.l.b16 %v563
        %v648 = vunpack.c.h.b16 %v563
        %v649 = vunpack.c.l.b16 %v564
        %v650 = vunpack.c.h.b16 %v564
        %v651 = vunpack.c.l.b16 %v565
        %v652 = vunpack.c.l.b16 %v566
        %v653 = vunpack.c.h.b16 %v566
        %v654 = vunpack.c.l.b16 %v567
        %v655 = vunpack.c.h.b16 %v567
        %v656 = vunpack.c.l.b16 %v568
        %v657 = vunpack.c.l.b16 %v569
        %v658 = vunpack.c.h.b16 %v569
        %v659 = vunpack.c.l.b16 %v570
        %v660 = vunpack.c.h.b16 %v570
        %v661 = vunpack.c.l.b16 %v571
        %v662 = vunpack.c.l.b16 %v572
        %v663 = vunpack.c.h.b16 %v572
        %v664 = vunpack.c.l.b16 %v573
        %v665 = vunpack.c.h.b16 %v573
        %v666 = vunpack.c.l.b16 %v574
        %v667 = vunpack.c.l.b16 %v575
        %v668 = vunpack.c.h.b16 %v575
        %v669 = vunpack.c.l.b16 %v576
        %v670 = vunpack.c.h.b16 %v576
        %v671 = vunpack.c.l.b16 %v577
        %v672 = vunpack.c.l.b16 %v578
        %v673 = vunpack.c.h.b16 %v578
        %v674 = vunpack.c.l.b16 %v579
        %v675 = vunpack.c.h.b16 %v579
        %v676 = vunpack.c.l.b16 %v580
        %v677 = vpack.c.b16 %v642, %v637
        %v678 = vpack.c.b16 %v643, %v638
        %v679 = vpack.c.b16 %v644, %v639
        %v680 = vpack.c.b16 %v645, %v640
        %v681 = vpack.c.b16 %v646, %v641
        %v682 = vpack.c.b16 %v652, %v647
        %v683 = vpack.c.b16 %v653, %v648
        %v684 = vpack.c.b16 %v654, %v649
        %v685 = vpack.c.b16 %v655, %v650
        %v686 = vpack.c.b16 %v656, %v651
        %v687 = vpack.c.b16 %v662, %v657
        %v688 = vpack.c.b16 %v663, %v658
        %v689 = vpack.c.b16 %v664, %v659
        %v690 = vpack.c.b16 %v665, %v660
        %v691 = vpack.c.b16 %v666, %v661
        %v692 = vpack.c.b16 %v672, %v667
        %v693 = vpack.c.b16 %v673, %v668
        %v694 = vpack.c.b16 %v674, %v669
        %v695 = vpack.c.b16 %v675, %v670
        %v696 = vpack.c.b16 %v676, %v671
        %vm717 = vcmask 523264
        %v719 = vsel %vm717, %v593, 0
        %v722 = vsel %vm717, %v601, 0
        %v725 = vsel %vm717, %v609, 0
        %v728 = vsel %vm717, %v612, 0
        %730 = vmatprep.subr.bf16.mxu0 0
        %731 = vmatpush1.bf16.msra.mxu0 0
        %732 = vmatprep.subr.bf16.mxu0 0
        %733 = vmatpush1.bf16.msra.mxu0 0
        %734 = vmatprep.subr.bf16.mxu0 0
        %735 = vmatpush1.bf16.msra.mxu0 0
        %736 = vmatprep.subr.bf16.mxu0 0
        %737 = vmatpush1.bf16.msra.mxu0 0
        %738 = vmatprep.subr.bf16.mxu0 %v693
        %739 = vmatpush1.bf16.msra.mxu0 %v692
        %740 = vmatprep.subr.bf16.mxu0 %v688
        %741 = vmatpush1.bf16.msra.mxu0 %v687
        %742 = vmatprep.subr.bf16.mxu0 %v683
        %743 = vmatpush1.bf16.msra.mxu0 %v682
        %744 = vmatprep.subr.bf16.mxu0 %v678
        %745 = vmatpush1.bf16.msra.mxu0 %v677
        %746 = vmatprep.subr.bf16.mxu0 0
        %747 = vmatpush2.bf16.msra.mxu0 0
        %748 = vmatprep.subr.bf16.mxu0 0
        %749 = vmatpush2.bf16.msra.mxu0 0
        %750 = vmatprep.subr.bf16.mxu0 0
        %751 = vmatpush2.bf16.msra.mxu0 0
        %752 = vmatprep.subr.bf16.mxu0 0
        %753 = vmatpush2.bf16.msra.mxu0 0
        %754 = vmatprep.subr.bf16.mxu0 0
        %755 = vmatpush2.bf16.msra.mxu0 0
        %756 = vmatprep.subr.bf16.mxu0 0
        %757 = vmatpush2.bf16.msra.mxu0 0
        %758 = vmatprep.subr.bf16.mxu0 0
        %759 = vmatpush2.bf16.msra.mxu0 0
        %760 = vmatprep.subr.bf16.mxu0 0
        %761 = vmatpush2.bf16.msra.mxu0 0
        %762 = vmatprep.mubr.bf16.mxu0 0
        %763 = vmatmul.mubr.bf16.gmra.mxu0 %v719
        %v764 = vpop.f32.mrf.mxu0
        %v765 = vadd.f32 0.0, %v764
        %v766 = vpop.f32.mrf.mxu0
        %v767 = vadd.f32 0.0, %v766
        %v768 = vpop.f32.mrf.mxu0
        %v769 = vadd.f32 0.0, %v768
        %v770 = vpop.f32.mrf.mxu0
        %v771 = vadd.f32 0.0, %v770
        %772 = vmatprep.mubr.bf16.mxu0 0
        %773 = vmatmul.mubr.bf16.gmra.mxu0 %v722
        %v774 = vpop.f32.mrf.mxu0
        %v775 = vadd.f32 0.0, %v774
        %v776 = vpop.f32.mrf.mxu0
        %v777 = vadd.f32 0.0, %v776
        %v778 = vpop.f32.mrf.mxu0
        %v779 = vadd.f32 0.0, %v778
        %v780 = vpop.f32.mrf.mxu0
        %v781 = vadd.f32 0.0, %v780
        %782 = vmatprep.mubr.bf16.mxu0 0
        %783 = vmatmul.mubr.bf16.gmra.mxu0 %v725
        %v784 = vpop.f32.mrf.mxu0
        %v785 = vadd.f32 0.0, %v784
        %v786 = vpop.f32.mrf.mxu0
        %v787 = vadd.f32 0.0, %v786
        %v788 = vpop.f32.mrf.mxu0
        %v789 = vadd.f32 0.0, %v788
        %v790 = vpop.f32.mrf.mxu0
        %v791 = vadd.f32 0.0, %v790
        %792 = vmatprep.mubr.bf16.mxu0 0
        %793 = vmatmul.mubr.bf16.gmra.mxu0 %v728
        %v794 = vpop.f32.mrf.mxu0
        %v795 = vadd.f32 0.0, %v794
        %v796 = vpop.f32.mrf.mxu0
        %v797 = vadd.f32 0.0, %v796
        %v798 = vpop.f32.mrf.mxu0
        %v799 = vadd.f32 0.0, %v798
        %v800 = vpop.f32.mrf.mxu0
        %v801 = vadd.f32 0.0, %v800
        %802 = vdwg.mxu0
        %803 = vmatprep.subr.bf16.mxu0 0
        %804 = vmatpush1.bf16.msra.mxu0 0
        %805 = vmatprep.subr.bf16.mxu0 0
        %806 = vmatpush1.bf16.msra.mxu0 0
        %807 = vmatprep.subr.bf16.mxu0 0
        %808 = vmatpush1.bf16.msra.mxu0 0
        %809 = vmatprep.subr.bf16.mxu0 0
        %810 = vmatpush1.bf16.msra.mxu0 0
        %811 = vmatprep.subr.bf16.mxu0 %v695
        %812 = vmatpush1.bf16.msra.mxu0 %v694
        %813 = vmatprep.subr.bf16.mxu0 %v690
        %814 = vmatpush1.bf16.msra.mxu0 %v689
        %815 = vmatprep.subr.bf16.mxu0 %v685
        %816 = vmatpush1.bf16.msra.mxu0 %v684
        %817 = vmatprep.subr.bf16.mxu0 %v680
        %818 = vmatpush1.bf16.msra.mxu0 %v679
        %819 = vmatprep.subr.bf16.mxu0 0
        %820 = vmatpush2.bf16.msra.mxu0 0
        %821 = vmatprep.subr.bf16.mxu0 0
        %822 = vmatpush2.bf16.msra.mxu0 0
        %823 = vmatprep.subr.bf16.mxu0 0
        %824 = vmatpush2.bf16.msra.mxu0 0
        %825 = vmatprep.subr.bf16.mxu0 0
        %826 = vmatpush2.bf16.msra.mxu0 0
        %827 = vmatprep.subr.bf16.mxu0 0
        %828 = vmatpush2.bf16.msra.mxu0 0
        %829 = vmatprep.subr.bf16.mxu0 0
        %830 = vmatpush2.bf16.msra.mxu0 0
        %831 = vmatprep.subr.bf16.mxu0 0
        %832 = vmatpush2.bf16.msra.mxu0 0
        %833 = vmatprep.subr.bf16.mxu0 0
        %834 = vmatpush2.bf16.msra.mxu0 0
        %835 = vmatprep.mubr.bf16.mxu0 0
        %836 = vmatmul.mubr.bf16.gmra.mxu0 %v719
        %v837 = vpop.f32.mrf.mxu0
        %v838 = vadd.f32 0.0, %v837
        %v839 = vpop.f32.mrf.mxu0
        %v840 = vadd.f32 0.0, %v839
        %v841 = vpop.f32.mrf.mxu0
        %v842 = vadd.f32 0.0, %v841
        %v843 = vpop.f32.mrf.mxu0
        %v844 = vadd.f32 0.0, %v843
        %845 = vmatprep.mubr.bf16.mxu0 0
        %846 = vmatmul.mubr.bf16.gmra.mxu0 %v722
        %v847 = vpop.f32.mrf.mxu0
        %v848 = vadd.f32 0.0, %v847
        %v849 = vpop.f32.mrf.mxu0
        %v850 = vadd.f32 0.0, %v849
        %v851 = vpop.f32.mrf.mxu0
        %v852 = vadd.f32 0.0, %v851
        %v853 = vpop.f32.mrf.mxu0
        %v854 = vadd.f32 0.0, %v853
        %855 = vmatprep.mubr.bf16.mxu0 0
        %856 = vmatmul.mubr.bf16.gmra.mxu0 %v725
        %v857 = vpop.f32.mrf.mxu0
        %v858 = vadd.f32 0.0, %v857
        %v859 = vpop.f32.mrf.mxu0
        %v860 = vadd.f32 0.0, %v859
        %v861 = vpop.f32.mrf.mxu0
        %v862 = vadd.f32 0.0, %v861
        %v863 = vpop.f32.mrf.mxu0
        %v864 = vadd.f32 0.0, %v863
        %865 = vmatprep.mubr.bf16.mxu0 0
        %866 = vmatmul.mubr.bf16.gmra.mxu0 %v728
        %v867 = vpop.f32.mrf.mxu0
        %v868 = vadd.f32 0.0, %v867
        %v869 = vpop.f32.mrf.mxu0
        %v870 = vadd.f32 0.0, %v869
        %v871 = vpop.f32.mrf.mxu0
        %v872 = vadd.f32 0.0, %v871
        %v873 = vpop.f32.mrf.mxu0
        %v874 = vadd.f32 0.0, %v873
        %875 = vdwg.mxu0
        %876 = vmatprep.subr.bf16.mxu0 0
        %877 = vmatpush1.bf16.msra.mxu0 0
        %878 = vmatprep.subr.bf16.mxu0 0
        %879 = vmatpush1.bf16.msra.mxu0 0
        %880 = vmatprep.subr.bf16.mxu0 0
        %881 = vmatpush1.bf16.msra.mxu0 0
        %882 = vmatprep.subr.bf16.mxu0 0
        %883 = vmatpush1.bf16.msra.mxu0 0
        %884 = vmatprep.subr.bf16.mxu0 0
        %885 = vmatpush1.bf16.msra.mxu0 %v696
        %886 = vmatprep.subr.bf16.mxu0 0
        %887 = vmatpush1.bf16.msra.mxu0 %v691
        %888 = vmatprep.subr.bf16.mxu0 0
        %889 = vmatpush1.bf16.msra.mxu0 %v686
        %890 = vmatprep.subr.bf16.mxu0 0
        %891 = vmatpush1.bf16.msra.mxu0 %v681
        %892 = vmatprep.subr.bf16.mxu0 0
        %893 = vmatpush2.bf16.msra.mxu0 0
        %894 = vmatprep.subr.bf16.mxu0 0
        %895 = vmatpush2.bf16.msra.mxu0 0
        %896 = vmatprep.subr.bf16.mxu0 0
        %897 = vmatpush2.bf16.msra.mxu0 0
        %898 = vmatprep.subr.bf16.mxu0 0
        %899 = vmatpush2.bf16.msra.mxu0 0
        %900 = vmatprep.subr.bf16.mxu0 0
        %901 = vmatpush2.bf16.msra.mxu0 0
        %902 = vmatprep.subr.bf16.mxu0 0
        %903 = vmatpush2.bf16.msra.mxu0 0
        %904 = vmatprep.subr.bf16.mxu0 0
        %905 = vmatpush2.bf16.msra.mxu0 0
        %906 = vmatprep.subr.bf16.mxu0 0
        %907 = vmatpush2.bf16.msra.mxu0 0
        %908 = vmatprep.mubr.bf16.mxu0 0
        %909 = vmatmul.mubr.bf16.gmra.mxu0 %v719
        %v910 = vpop.f32.mrf.mxu0
        %v911 = vadd.f32 0.0, %v910
        %v912 = vpop.f32.mrf.mxu0
        %v913 = vpop.f32.mrf.mxu0
        %v914 = vadd.f32 0.0, %v913
        %v915 = vpop.f32.mrf.mxu0
        %916 = vmatprep.mubr.bf16.mxu0 0
        %917 = vmatmul.mubr.bf16.gmra.mxu0 %v722
        %v918 = vpop.f32.mrf.mxu0
        %v919 = vadd.f32 0.0, %v918
        %v920 = vpop.f32.mrf.mxu0
        %v921 = vpop.f32.mrf.mxu0
        %v922 = vadd.f32 0.0, %v921
        %v923 = vpop.f32.mrf.mxu0
        %924 = vmatprep.mubr.bf16.mxu0 0
        %925 = vmatmul.mubr.bf16.gmra.mxu0 %v725
        %v926 = vpop.f32.mrf.mxu0
        %v927 = vadd.f32 0.0, %v926
        %v928 = vpop.f32.mrf.mxu0
        %v929 = vpop.f32.mrf.mxu0
        %v930 = vadd.f32 0.0, %v929
        %v931 = vpop.f32.mrf.mxu0
        %932 = vmatprep.mubr.bf16.mxu0 0
        %933 = vmatmul.mubr.bf16.gmra.mxu0 %v728
        %v934 = vpop.f32.mrf.mxu0
        %v935 = vadd.f32 0.0, %v934
        %v936 = vpop.f32.mrf.mxu0
        %v937 = vpop.f32.mrf.mxu0
        %v938 = vadd.f32 0.0, %v937
        %v939 = vpop.f32.mrf.mxu0
        %940 = vdwg.mxu0
        %v965 = vunpack.c.l.b16 %v532
        %v966 = vunpack.c.h.b16 %v532
        %v967 = vunpack.c.l.b16 %v533
        %v968 = vunpack.c.h.b16 %v533
        %v969 = vunpack.c.l.b16 %v534
        %v970 = vunpack.c.l.b16 %v535
        %v971 = vunpack.c.h.b16 %v535
        %v972 = vunpack.c.l.b16 %v536
        %v973 = vunpack.c.h.b16 %v536
        %v974 = vunpack.c.l.b16 %v537
        %v975 = vunpack.c.l.b16 %v538
        %v976 = vunpack.c.h.b16 %v538
        %v977 = vunpack.c.l.b16 %v539
        %v978 = vunpack.c.h.b16 %v539
        %v979 = vunpack.c.l.b16 %v540
        %v980 = vunpack.c.l.b16 %v541
        %v981 = vunpack.c.h.b16 %v541
        %v982 = vunpack.c.l.b16 %v542
        %v983 = vunpack.c.h.b16 %v542
        %v984 = vunpack.c.l.b16 %v543
        %v985 = vunpack.c.l.b16 %v544
        %v986 = vunpack.c.h.b16 %v544
        %v987 = vunpack.c.l.b16 %v545
        %v988 = vunpack.c.h.b16 %v545
        %v989 = vunpack.c.l.b16 %v546
        %v990 = vunpack.c.l.b16 %v547
        %v991 = vunpack.c.h.b16 %v547
        %v992 = vunpack.c.l.b16 %v548
        %v993 = vunpack.c.h.b16 %v548
        %v994 = vunpack.c.l.b16 %v549
        %v995 = vunpack.c.l.b16 %v550
        %v996 = vunpack.c.h.b16 %v550
        %v997 = vunpack.c.l.b16 %v551
        %v998 = vunpack.c.h.b16 %v551
        %v999 = vunpack.c.l.b16 %v552
        %v1000 = vunpack.c.l.b16 %v553
        %v1001 = vunpack.c.h.b16 %v553
        %v1002 = vunpack.c.l.b16 %v554
        %v1003 = vunpack.c.h.b16 %v554
        %v1004 = vunpack.c.l.b16 %v555
        %v1005 = vpack.c.b16 %v970, %v965
        %v1006 = vpack.c.b16 %v971, %v966
        %v1007 = vpack.c.b16 %v972, %v967
        %v1008 = vpack.c.b16 %v973, %v968
        %v1009 = vpack.c.b16 %v974, %v969
        %v1010 = vpack.c.b16 %v980, %v975
        %v1011 = vpack.c.b16 %v981, %v976
        %v1012 = vpack.c.b16 %v982, %v977
        %v1013 = vpack.c.b16 %v983, %v978
        %v1014 = vpack.c.b16 %v984, %v979
        %v1015 = vpack.c.b16 %v990, %v985
        %v1016 = vpack.c.b16 %v991, %v986
        %v1017 = vpack.c.b16 %v992, %v987
        %v1018 = vpack.c.b16 %v993, %v988
        %v1019 = vpack.c.b16 %v994, %v989
        %v1020 = vpack.c.b16 %v1000, %v995
        %v1021 = vpack.c.b16 %v1001, %v996
        %v1022 = vpack.c.b16 %v1002, %v997
        %v1023 = vpack.c.b16 %v1003, %v998
        %v1024 = vpack.c.b16 %v1004, %v999
        %v1045 = vsel %vm717, %v528, 0
        %v1047 = vsel %vm717, %v529, 0
        %v1049 = vsel %vm717, %v530, 0
        %v1051 = vsel %vm717, %v531, 0
        %1053 = vmatprep.subr.bf16.mxu0 0
        %1054 = vmatpush1.bf16.msra.mxu0 0
        %1055 = vmatprep.subr.bf16.mxu0 0
        %1056 = vmatpush1.bf16.msra.mxu0 0
        %1057 = vmatprep.subr.bf16.mxu0 0
        %1058 = vmatpush1.bf16.msra.mxu0 0
        %1059 = vmatprep.subr.bf16.mxu0 0
        %1060 = vmatpush1.bf16.msra.mxu0 0
        %1061 = vmatprep.subr.bf16.mxu0 %v1021
        %1062 = vmatpush1.bf16.msra.mxu0 %v1020
        %1063 = vmatprep.subr.bf16.mxu0 %v1016
        %1064 = vmatpush1.bf16.msra.mxu0 %v1015
        %1065 = vmatprep.subr.bf16.mxu0 %v1011
        %1066 = vmatpush1.bf16.msra.mxu0 %v1010
        %1067 = vmatprep.subr.bf16.mxu0 %v1006
        %1068 = vmatpush1.bf16.msra.mxu0 %v1005
        %1069 = vmatprep.subr.bf16.mxu0 0
        %1070 = vmatpush2.bf16.msra.mxu0 0
        %1071 = vmatprep.subr.bf16.mxu0 0
        %1072 = vmatpush2.bf16.msra.mxu0 0
        %1073 = vmatprep.subr.bf16.mxu0 0
        %1074 = vmatpush2.bf16.msra.mxu0 0
        %1075 = vmatprep.subr.bf16.mxu0 0
        %1076 = vmatpush2.bf16.msra.mxu0 0
        %1077 = vmatprep.subr.bf16.mxu0 0
        %1078 = vmatpush2.bf16.msra.mxu0 0
        %1079 = vmatprep.subr.bf16.mxu0 0
        %1080 = vmatpush2.bf16.msra.mxu0 0
        %1081 = vmatprep.subr.bf16.mxu0 0
        %1082 = vmatpush2.bf16.msra.mxu0 0
        %1083 = vmatprep.subr.bf16.mxu0 0
        %1084 = vmatpush2.bf16.msra.mxu0 0
        %1085 = vmatprep.mubr.bf16.mxu0 0
        %1086 = vmatmul.mubr.bf16.gmra.mxu0 %v1045
        %v1087 = vpop.f32.mrf.mxu0
        %v1088 = vadd.f32 %v765, %v1087
        %v1089 = vpop.f32.mrf.mxu0
        %v1090 = vadd.f32 %v767, %v1089
        %v1091 = vpop.f32.mrf.mxu0
        %v1092 = vadd.f32 %v769, %v1091
        %v1093 = vpop.f32.mrf.mxu0
        %v1094 = vadd.f32 %v771, %v1093
        %1095 = vmatprep.mubr.bf16.mxu0 0
        %1096 = vmatmul.mubr.bf16.gmra.mxu0 %v1047
        %v1097 = vpop.f32.mrf.mxu0
        %v1098 = vadd.f32 %v775, %v1097
        %v1099 = vpop.f32.mrf.mxu0
        %v1100 = vadd.f32 %v777, %v1099
        %v1101 = vpop.f32.mrf.mxu0
        %v1102 = vadd.f32 %v779, %v1101
        %v1103 = vpop.f32.mrf.mxu0
        %v1104 = vadd.f32 %v781, %v1103
        %1105 = vmatprep.mubr.bf16.mxu0 0
        %1106 = vmatmul.mubr.bf16.gmra.mxu0 %v1049
        %v1107 = vpop.f32.mrf.mxu0
        %v1108 = vadd.f32 %v785, %v1107
        %v1109 = vpop.f32.mrf.mxu0
        %v1110 = vadd.f32 %v787, %v1109
        %v1111 = vpop.f32.mrf.mxu0
        %v1112 = vadd.f32 %v789, %v1111
        %v1113 = vpop.f32.mrf.mxu0
        %v1114 = vadd.f32 %v791, %v1113
        %1115 = vmatprep.mubr.bf16.mxu0 0
        %1116 = vmatmul.mubr.bf16.gmra.mxu0 %v1051
        %v1117 = vpop.f32.mrf.mxu0
        %v1118 = vadd.f32 %v795, %v1117
        %v1119 = vpop.f32.mrf.mxu0
        %v1120 = vadd.f32 %v797, %v1119
        %v1121 = vpop.f32.mrf.mxu0
        %v1122 = vadd.f32 %v799, %v1121
        %v1123 = vpop.f32.mrf.mxu0
        %v1124 = vadd.f32 %v801, %v1123
        %1125 = vdwg.mxu0
        %1126 = vmatprep.subr.bf16.mxu0 0
        %1127 = vmatpush1.bf16.msra.mxu0 0
        %1128 = vmatprep.subr.bf16.mxu0 0
        %1129 = vmatpush1.bf16.msra.mxu0 0
        %1130 = vmatprep.subr.bf16.mxu0 0
        %1131 = vmatpush1.bf16.msra.mxu0 0
        %1132 = vmatprep.subr.bf16.mxu0 0
        %1133 = vmatpush1.bf16.msra.mxu0 0
        %1134 = vmatprep.subr.bf16.mxu0 %v1023
        %1135 = vmatpush1.bf16.msra.mxu0 %v1022
        %1136 = vmatprep.subr.bf16.mxu0 %v1018
        %1137 = vmatpush1.bf16.msra.mxu0 %v1017
        %1138 = vmatprep.subr.bf16.mxu0 %v1013
        %1139 = vmatpush1.bf16.msra.mxu0 %v1012
        %1140 = vmatprep.subr.bf16.mxu0 %v1008
        %1141 = vmatpush1.bf16.msra.mxu0 %v1007
        %1142 = vmatprep.subr.bf16.mxu0 0
        %1143 = vmatpush2.bf16.msra.mxu0 0
        %1144 = vmatprep.subr.bf16.mxu0 0
        %1145 = vmatpush2.bf16.msra.mxu0 0
        %1146 = vmatprep.subr.bf16.mxu0 0
        %1147 = vmatpush2.bf16.msra.mxu0 0
        %1148 = vmatprep.subr.bf16.mxu0 0
        %1149 = vmatpush2.bf16.msra.mxu0 0
        %1150 = vmatprep.subr.bf16.mxu0 0
        %1151 = vmatpush2.bf16.msra.mxu0 0
        %1152 = vmatprep.subr.bf16.mxu0 0
        %1153 = vmatpush2.bf16.msra.mxu0 0
        %1154 = vmatprep.subr.bf16.mxu0 0
        %1155 = vmatpush2.bf16.msra.mxu0 0
        %1156 = vmatprep.subr.bf16.mxu0 0
        %1157 = vmatpush2.bf16.msra.mxu0 0
        %1158 = vmatprep.mubr.bf16.mxu0 0
        %1159 = vmatmul.mubr.bf16.gmra.mxu0 %v1045
        %v1160 = vpop.f32.mrf.mxu0
        %v1161 = vadd.f32 %v838, %v1160
        %v1162 = vpop.f32.mrf.mxu0
        %v1163 = vadd.f32 %v840, %v1162
        %v1164 = vpop.f32.mrf.mxu0
        %v1165 = vadd.f32 %v842, %v1164
        %v1166 = vpop.f32.mrf.mxu0
        %v1167 = vadd.f32 %v844, %v1166
        %1168 = vmatprep.mubr.bf16.mxu0 0
        %1169 = vmatmul.mubr.bf16.gmra.mxu0 %v1047
        %v1170 = vpop.f32.mrf.mxu0
        %v1171 = vadd.f32 %v848, %v1170
        %v1172 = vpop.f32.mrf.mxu0
        %v1173 = vadd.f32 %v850, %v1172
        %v1174 = vpop.f32.mrf.mxu0
        %v1175 = vadd.f32 %v852, %v1174
        %v1176 = vpop.f32.mrf.mxu0
        %v1177 = vadd.f32 %v854, %v1176
        %1178 = vmatprep.mubr.bf16.mxu0 0
        %1179 = vmatmul.mubr.bf16.gmra.mxu0 %v1049
        %v1180 = vpop.f32.mrf.mxu0
        %v1181 = vadd.f32 %v858, %v1180
        %v1182 = vpop.f32.mrf.mxu0
        %v1183 = vadd.f32 %v860, %v1182
        %v1184 = vpop.f32.mrf.mxu0
        %v1185 = vadd.f32 %v862, %v1184
        %v1186 = vpop.f32.mrf.mxu0
        %v1187 = vadd.f32 %v864, %v1186
        %1188 = vmatprep.mubr.bf16.mxu0 0
        %1189 = vmatmul.mubr.bf16.gmra.mxu0 %v1051
        %v1190 = vpop.f32.mrf.mxu0
        %v1191 = vadd.f32 %v868, %v1190
        %v1192 = vpop.f32.mrf.mxu0
        %v1193 = vadd.f32 %v870, %v1192
        %v1194 = vpop.f32.mrf.mxu0
        %v1195 = vadd.f32 %v872, %v1194
        %v1196 = vpop.f32.mrf.mxu0
        %v1197 = vadd.f32 %v874, %v1196
        %1198 = vdwg.mxu0
        %1199 = vmatprep.subr.bf16.mxu0 0
        %1200 = vmatpush1.bf16.msra.mxu0 0
        %1201 = vmatprep.subr.bf16.mxu0 0
        %1202 = vmatpush1.bf16.msra.mxu0 0
        %1203 = vmatprep.subr.bf16.mxu0 0
        %1204 = vmatpush1.bf16.msra.mxu0 0
        %1205 = vmatprep.subr.bf16.mxu0 0
        %1206 = vmatpush1.bf16.msra.mxu0 0
        %1207 = vmatprep.subr.bf16.mxu0 0
        %1208 = vmatpush1.bf16.msra.mxu0 %v1024
        %1209 = vmatprep.subr.bf16.mxu0 0
        %1210 = vmatpush1.bf16.msra.mxu0 %v1019
        %1211 = vmatprep.subr.bf16.mxu0 0
        %1212 = vmatpush1.bf16.msra.mxu0 %v1014
        %1213 = vmatprep.subr.bf16.mxu0 0
        %1214 = vmatpush1.bf16.msra.mxu0 %v1009
        %1215 = vmatprep.subr.bf16.mxu0 0
        %1216 = vmatpush2.bf16.msra.mxu0 0
        %1217 = vmatprep.subr.bf16.mxu0 0
        %1218 = vmatpush2.bf16.msra.mxu0 0
        %1219 = vmatprep.subr.bf16.mxu0 0
        %1220 = vmatpush2.bf16.msra.mxu0 0
        %1221 = vmatprep.subr.bf16.mxu0 0
        %1222 = vmatpush2.bf16.msra.mxu0 0
        %1223 = vmatprep.subr.bf16.mxu0 0
        %1224 = vmatpush2.bf16.msra.mxu0 0
        %1225 = vmatprep.subr.bf16.mxu0 0
        %1226 = vmatpush2.bf16.msra.mxu0 0
        %1227 = vmatprep.subr.bf16.mxu0 0
        %1228 = vmatpush2.bf16.msra.mxu0 0
        %1229 = vmatprep.subr.bf16.mxu0 0
        %1230 = vmatpush2.bf16.msra.mxu0 0
        %1231 = vmatprep.mubr.bf16.mxu0 0
        %1232 = vmatmul.mubr.bf16.gmra.mxu0 %v1045
        %v1233 = vpop.f32.mrf.mxu0
        %v1234 = vadd.f32 %v911, %v1233
        %v1235 = vpop.f32.mrf.mxu0
        %v1236 = vpop.f32.mrf.mxu0
        %v1237 = vadd.f32 %v914, %v1236
        %v1238 = vpop.f32.mrf.mxu0
        %1239 = vmatprep.mubr.bf16.mxu0 0
        %1240 = vmatmul.mubr.bf16.gmra.mxu0 %v1047
        %v1241 = vpop.f32.mrf.mxu0
        %v1242 = vadd.f32 %v919, %v1241
        %v1243 = vpop.f32.mrf.mxu0
        %v1244 = vpop.f32.mrf.mxu0
        %v1245 = vadd.f32 %v922, %v1244
        %v1246 = vpop.f32.mrf.mxu0
        %1247 = vmatprep.mubr.bf16.mxu0 0
        %1248 = vmatmul.mubr.bf16.gmra.mxu0 %v1049
        %v1249 = vpop.f32.mrf.mxu0
        %v1250 = vadd.f32 %v927, %v1249
        %v1251 = vpop.f32.mrf.mxu0
        %v1252 = vpop.f32.mrf.mxu0
        %v1253 = vadd.f32 %v930, %v1252
        %v1254 = vpop.f32.mrf.mxu0
        %1255 = vmatprep.mubr.bf16.mxu0 0
        %1256 = vmatmul.mubr.bf16.gmra.mxu0 %v1051
        %v1257 = vpop.f32.mrf.mxu0
        %v1258 = vadd.f32 %v935, %v1257
        %v1259 = vpop.f32.mrf.mxu0
        %v1260 = vpop.f32.mrf.mxu0
        %v1261 = vadd.f32 %v938, %v1260
        %v1262 = vpop.f32.mrf.mxu0
        %1263 = vdwg.mxu0
        %s1264 = scalar_lea.vmem [#allocation4], 320
        %v1265 = vld [vmem:[%s1264] sm:$0xff]
        %v1266 = vld [vmem:[%s1264 + $0x8] sm:$0xff]
        %v1267 = vld [vmem:[%s1264 + $0x10] sm:$0xf]
        %v1268 = vld [vmem:[%s1264 + $0x14] sm:$0xff]
        %v1269 = vld [vmem:[%s1264 + $0x1c] sm:$0xff]
        %v1270 = vld [vmem:[%s1264 + $0x24] sm:$0xf]
        %v1271 = vld [vmem:[%s1264 + $0x28] sm:$0xff]
        %v1272 = vld [vmem:[%s1264 + $0x30] sm:$0xff]
        %v1273 = vld [vmem:[%s1264 + $0x38] sm:$0xf]
        %v1274 = vld [vmem:[%s1264 + $0x3c] sm:$0xff]
        %v1275 = vld [vmem:[%s1264 + $0x44] sm:$0xff]
        %v1276 = vld [vmem:[%s1264 + $0x4c] sm:$0xf]
        %v1277 = vld [vmem:[%s1264 + $0x50] sm:$0xff]
        %v1278 = vld [vmem:[%s1264 + $0x58] sm:$0xff]
        %v1279 = vld [vmem:[%s1264 + $0x60] sm:$0xf]
        %v1280 = vld [vmem:[%s1264 + $0x64] sm:$0xff]
        %v1281 = vld [vmem:[%s1264 + $0x6c] sm:$0xff]
        %v1282 = vld [vmem:[%s1264 + $0x74] sm:$0xf]
        %v1283 = vld [vmem:[%s1264 + $0x78] sm:$0xff]
        %v1284 = vld [vmem:[%s1264 + $0x80] sm:$0xff]
        %v1285 = vld [vmem:[%s1264 + $0x88] sm:$0xf]
        %v1286 = vld [vmem:[%s1264 + $0x8c] sm:$0xff]
        %v1287 = vld [vmem:[%s1264 + $0x94] sm:$0xff]
        %v1288 = vld [vmem:[%s1264 + $0x9c] sm:$0xf]
        %vm1293 = vcmask 1046528
        %v1294 = vrot.slane %v528, 1
        %v1295 = vrot.slane %v529, 1
        %v1296 = vsel %vm1293, %v1294, %v1295
        %v1297 = vrot.slane %v530, 1
        %v1298 = vsel %vm1293, %v1295, %v1297
        %v1299 = vrot.slane %v531, 1
        %v1300 = vsel %vm1293, %v1297, %v1299
        %v1325 = vunpack.c.l.b16 %v1265
        %v1326 = vunpack.c.h.b16 %v1265
        %v1327 = vunpack.c.l.b16 %v1266
        %v1328 = vunpack.c.h.b16 %v1266
        %v1329 = vunpack.c.l.b16 %v1267
        %v1330 = vunpack.c.l.b16 %v1268
        %v1331 = vunpack.c.h.b16 %v1268
        %v1332 = vunpack.c.l.b16 %v1269
        %v1333 = vunpack.c.h.b16 %v1269
        %v1334 = vunpack.c.l.b16 %v1270
        %v1335 = vunpack.c.l.b16 %v1271
        %v1336 = vunpack.c.h.b16 %v1271
        %v1337 = vunpack.c.l.b16 %v1272
        %v1338 = vunpack.c.h.b16 %v1272
        %v1339 = vunpack.c.l.b16 %v1273
        %v1340 = vunpack.c.l.b16 %v1274
        %v1341 = vunpack.c.h.b16 %v1274
        %v1342 = vunpack.c.l.b16 %v1275
        %v1343 = vunpack.c.h.b16 %v1275
        %v1344 = vunpack.c.l.b16 %v1276
        %v1345 = vunpack.c.l.b16 %v1277
        %v1346 = vunpack.c.h.b16 %v1277
        %v1347 = vunpack.c.l.b16 %v1278
        %v1348 = vunpack.c.h.b16 %v1278
        %v1349 = vunpack.c.l.b16 %v1279
        %v1350 = vunpack.c.l.b16 %v1280
        %v1351 = vunpack.c.h.b16 %v1280
        %v1352 = vunpack.c.l.b16 %v1281
        %v1353 = vunpack.c.h.b16 %v1281
        %v1354 = vunpack.c.l.b16 %v1282
        %v1355 = vunpack.c.l.b16 %v1283
        %v1356 = vunpack.c.h.b16 %v1283
        %v1357 = vunpack.c.l.b16 %v1284
        %v1358 = vunpack.c.h.b16 %v1284
        %v1359 = vunpack.c.l.b16 %v1285
        %v1360 = vunpack.c.l.b16 %v1286
        %v1361 = vunpack.c.h.b16 %v1286
        %v1362 = vunpack.c.l.b16 %v1287
        %v1363 = vunpack.c.h.b16 %v1287
        %v1364 = vunpack.c.l.b16 %v1288
        %v1365 = vpack.c.b16 %v1330, %v1325
        %v1366 = vpack.c.b16 %v1331, %v1326
        %v1367 = vpack.c.b16 %v1332, %v1327
        %v1368 = vpack.c.b16 %v1333, %v1328
        %v1369 = vpack.c.b16 %v1334, %v1329
        %v1370 = vpack.c.b16 %v1340, %v1335
        %v1371 = vpack.c.b16 %v1341, %v1336
        %v1372 = vpack.c.b16 %v1342, %v1337
        %v1373 = vpack.c.b16 %v1343, %v1338
        %v1374 = vpack.c.b16 %v1344, %v1339
        %v1375 = vpack.c.b16 %v1350, %v1345
        %v1376 = vpack.c.b16 %v1351, %v1346
        %v1377 = vpack.c.b16 %v1352, %v1347
        %v1378 = vpack.c.b16 %v1353, %v1348
        %v1379 = vpack.c.b16 %v1354, %v1349
        %v1380 = vpack.c.b16 %v1360, %v1355
        %v1381 = vpack.c.b16 %v1361, %v1356
        %v1382 = vpack.c.b16 %v1362, %v1357
        %v1383 = vpack.c.b16 %v1363, %v1358
        %v1384 = vpack.c.b16 %v1364, %v1359
        %v1406 = vsel %vm717, %v1296, 0
        %v1409 = vsel %vm717, %v1298, 0
        %v1412 = vsel %vm717, %v1300, 0
        %v1415 = vsel %vm717, %v1299, 0
        %1417 = vmatprep.subr.bf16.mxu0 0
        %1418 = vmatpush1.bf16.msra.mxu0 0
        %1419 = vmatprep.subr.bf16.mxu0 0
        %1420 = vmatpush1.bf16.msra.mxu0 0
        %1421 = vmatprep.subr.bf16.mxu0 0
        %1422 = vmatpush1.bf16.msra.mxu0 0
        %1423 = vmatprep.subr.bf16.mxu0 0
        %1424 = vmatpush1.bf16.msra.mxu0 0
        %1425 = vmatprep.subr.bf16.mxu0 %v1381
        %1426 = vmatpush1.bf16.msra.mxu0 %v1380
        %1427 = vmatprep.subr.bf16.mxu0 %v1376
        %1428 = vmatpush1.bf16.msra.mxu0 %v1375
        %1429 = vmatprep.subr.bf16.mxu0 %v1371
        %1430 = vmatpush1.bf16.msra.mxu0 %v1370
        %1431 = vmatprep.subr.bf16.mxu0 %v1366
        %1432 = vmatpush1.bf16.msra.mxu0 %v1365
        %1433 = vmatprep.subr.bf16.mxu0 0
        %1434 = vmatpush2.bf16.msra.mxu0 0
        %1435 = vmatprep.subr.bf16.mxu0 0
        %1436 = vmatpush2.bf16.msra.mxu0 0
        %1437 = vmatprep.subr.bf16.mxu0 0
        %1438 = vmatpush2.bf16.msra.mxu0 0
        %1439 = vmatprep.subr.bf16.mxu0 0
        %1440 = vmatpush2.bf16.msra.mxu0 0
        %1441 = vmatprep.subr.bf16.mxu0 0
        %1442 = vmatpush2.bf16.msra.mxu0 0
        %1443 = vmatprep.subr.bf16.mxu0 0
        %1444 = vmatpush2.bf16.msra.mxu0 0
        %1445 = vmatprep.subr.bf16.mxu0 0
        %1446 = vmatpush2.bf16.msra.mxu0 0
        %1447 = vmatprep.subr.bf16.mxu0 0
        %1448 = vmatpush2.bf16.msra.mxu0 0
        %1449 = vmatprep.mubr.bf16.mxu0 0
        %1450 = vmatmul.mubr.bf16.gmra.mxu0 %v1406
        %v1451 = vpop.f32.mrf.mxu0
        %v1452 = vadd.f32 0.0, %v1451
        %v1453 = vpop.f32.mrf.mxu0
        %v1454 = vadd.f32 0.0, %v1453
        %v1455 = vpop.f32.mrf.mxu0
        %v1456 = vadd.f32 0.0, %v1455
        %v1457 = vpop.f32.mrf.mxu0
        %v1458 = vadd.f32 0.0, %v1457
        %1459 = vmatprep.mubr.bf16.mxu0 0
        %1460 = vmatmul.mubr.bf16.gmra.mxu0 %v1409
        %v1461 = vpop.f32.mrf.mxu0
        %v1462 = vadd.f32 0.0, %v1461
        %v1463 = vpop.f32.mrf.mxu0
        %v1464 = vadd.f32 0.0, %v1463
        %v1465 = vpop.f32.mrf.mxu0
        %v1466 = vadd.f32 0.0, %v1465
        %v1467 = vpop.f32.mrf.mxu0
        %v1468 = vadd.f32 0.0, %v1467
        %1469 = vmatprep.mubr.bf16.mxu0 0
        %1470 = vmatmul.mubr.bf16.gmra.mxu0 %v1412
        %v1471 = vpop.f32.mrf.mxu0
        %v1472 = vadd.f32 0.0, %v1471
        %v1473 = vpop.f32.mrf.mxu0
        %v1474 = vadd.f32 0.0, %v1473
        %v1475 = vpop.f32.mrf.mxu0
        %v1476 = vadd.f32 0.0, %v1475
        %v1477 = vpop.f32.mrf.mxu0
        %v1478 = vadd.f32 0.0, %v1477
        %1479 = vmatprep.mubr.bf16.mxu0 0
        %1480 = vmatmul.mubr.bf16.gmra.mxu0 %v1415
        %v1481 = vpop.f32.mrf.mxu0
        %v1482 = vadd.f32 0.0, %v1481
        %v1483 = vpop.f32.mrf.mxu0
        %v1484 = vadd.f32 0.0, %v1483
        %v1485 = vpop.f32.mrf.mxu0
        %v1486 = vadd.f32 0.0, %v1485
        %v1487 = vpop.f32.mrf.mxu0
        %v1488 = vadd.f32 0.0, %v1487
        %1489 = vdwg.mxu0
        %1490 = vmatprep.subr.bf16.mxu0 0
        %1491 = vmatpush1.bf16.msra.mxu0 0
        %1492 = vmatprep.subr.bf16.mxu0 0
        %1493 = vmatpush1.bf16.msra.mxu0 0
        %1494 = vmatprep.subr.bf16.mxu0 0
        %1495 = vmatpush1.bf16.msra.mxu0 0
        %1496 = vmatprep.subr.bf16.mxu0 0
        %1497 = vmatpush1.bf16.msra.mxu0 0
        %1498 = vmatprep.subr.bf16.mxu0 %v1383
        %1499 = vmatpush1.bf16.msra.mxu0 %v1382
        %1500 = vmatprep.subr.bf16.mxu0 %v1378
        %1501 = vmatpush1.bf16.msra.mxu0 %v1377
        %1502 = vmatprep.subr.bf16.mxu0 %v1373
        %1503 = vmatpush1.bf16.msra.mxu0 %v1372
        %1504 = vmatprep.subr.bf16.mxu0 %v1368
        %1505 = vmatpush1.bf16.msra.mxu0 %v1367
        %1506 = vmatprep.subr.bf16.mxu0 0
        %1507 = vmatpush2.bf16.msra.mxu0 0
        %1508 = vmatprep.subr.bf16.mxu0 0
        %1509 = vmatpush2.bf16.msra.mxu0 0
        %1510 = vmatprep.subr.bf16.mxu0 0
        %1511 = vmatpush2.bf16.msra.mxu0 0
        %1512 = vmatprep.subr.bf16.mxu0 0
        %1513 = vmatpush2.bf16.msra.mxu0 0
        %1514 = vmatprep.subr.bf16.mxu0 0
        %1515 = vmatpush2.bf16.msra.mxu0 0
        %1516 = vmatprep.subr.bf16.mxu0 0
        %1517 = vmatpush2.bf16.msra.mxu0 0
        %1518 = vmatprep.subr.bf16.mxu0 0
        %1519 = vmatpush2.bf16.msra.mxu0 0
        %1520 = vmatprep.subr.bf16.mxu0 0
        %1521 = vmatpush2.bf16.msra.mxu0 0
        %1522 = vmatprep.mubr.bf16.mxu0 0
        %1523 = vmatmul.mubr.bf16.gmra.mxu0 %v1406
        %v1524 = vpop.f32.mrf.mxu0
        %v1525 = vadd.f32 0.0, %v1524
        %v1526 = vpop.f32.mrf.mxu0
        %v1527 = vadd.f32 0.0, %v1526
        %v1528 = vpop.f32.mrf.mxu0
        %v1529 = vadd.f32 0.0, %v1528
        %v1530 = vpop.f32.mrf.mxu0
        %v1531 = vadd.f32 0.0, %v1530
        %1532 = vmatprep.mubr.bf16.mxu0 0
        %1533 = vmatmul.mubr.bf16.gmra.mxu0 %v1409
        %v1534 = vpop.f32.mrf.mxu0
        %v1535 = vadd.f32 0.0, %v1534
        %v1536 = vpop.f32.mrf.mxu0
        %v1537 = vadd.f32 0.0, %v1536
        %v1538 = vpop.f32.mrf.mxu0
        %v1539 = vadd.f32 0.0, %v1538
        %v1540 = vpop.f32.mrf.mxu0
        %v1541 = vadd.f32 0.0, %v1540
        %1542 = vmatprep.mubr.bf16.mxu0 0
        %1543 = vmatmul.mubr.bf16.gmra.mxu0 %v1412
        %v1544 = vpop.f32.mrf.mxu0
        %v1545 = vadd.f32 0.0, %v1544
        %v1546 = vpop.f32.mrf.mxu0
        %v1547 = vadd.f32 0.0, %v1546
        %v1548 = vpop.f32.mrf.mxu0
        %v1549 = vadd.f32 0.0, %v1548
        %v1550 = vpop.f32.mrf.mxu0
        %v1551 = vadd.f32 0.0, %v1550
        %1552 = vmatprep.mubr.bf16.mxu0 0
        %1553 = vmatmul.mubr.bf16.gmra.mxu0 %v1415
        %v1554 = vpop.f32.mrf.mxu0
        %v1555 = vadd.f32 0.0, %v1554
        %v1556 = vpop.f32.mrf.mxu0
        %v1557 = vadd.f32 0.0, %v1556
        %v1558 = vpop.f32.mrf.mxu0
        %v1559 = vadd.f32 0.0, %v1558
        %v1560 = vpop.f32.mrf.mxu0
        %v1561 = vadd.f32 0.0, %v1560
        %1562 = vdwg.mxu0
        %1563 = vmatprep.subr.bf16.mxu0 0
        %1564 = vmatpush1.bf16.msra.mxu0 0
        %1565 = vmatprep.subr.bf16.mxu0 0
        %1566 = vmatpush1.bf16.msra.mxu0 0
        %1567 = vmatprep.subr.bf16.mxu0 0
        %1568 = vmatpush1.bf16.msra.mxu0 0
        %1569 = vmatprep.subr.bf16.mxu0 0
        %1570 = vmatpush1.bf16.msra.mxu0 0
        %1571 = vmatprep.subr.bf16.mxu0 0
        %1572 = vmatpush1.bf16.msra.mxu0 %v1384
        %1573 = vmatprep.subr.bf16.mxu0 0
        %1574 = vmatpush1.bf16.msra.mxu0 %v1379
        %1575 = vmatprep.subr.bf16.mxu0 0
        %1576 = vmatpush1.bf16.msra.mxu0 %v1374
        %1577 = vmatprep.subr.bf16.mxu0 0
        %1578 = vmatpush1.bf16.msra.mxu0 %v1369
        %1579 = vmatprep.subr.bf16.mxu0 0
        %1580 = vmatpush2.bf16.msra.mxu0 0
        %1581 = vmatprep.subr.bf16.mxu0 0
        %1582 = vmatpush2.bf16.msra.mxu0 0
        %1583 = vmatprep.subr.bf16.mxu0 0
        %1584 = vmatpush2.bf16.msra.mxu0 0
        %1585 = vmatprep.subr.bf16.mxu0 0
        %1586 = vmatpush2.bf16.msra.mxu0 0
        %1587 = vmatprep.subr.bf16.mxu0 0
        %1588 = vmatpush2.bf16.msra.mxu0 0
        %1589 = vmatprep.subr.bf16.mxu0 0
        %1590 = vmatpush2.bf16.msra.mxu0 0
        %1591 = vmatprep.subr.bf16.mxu0 0
        %1592 = vmatpush2.bf16.msra.mxu0 0
        %1593 = vmatprep.subr.bf16.mxu0 0
        %1594 = vmatpush2.bf16.msra.mxu0 0
        %1595 = vmatprep.mubr.bf16.mxu0 0
        %1596 = vmatmul.mubr.bf16.gmra.mxu0 %v1406
        %v1597 = vpop.f32.mrf.mxu0
        %v1598 = vadd.f32 0.0, %v1597
        %v1599 = vpop.f32.mrf.mxu0
        %v1600 = vpop.f32.mrf.mxu0
        %v1601 = vadd.f32 0.0, %v1600
        %v1602 = vpop.f32.mrf.mxu0
        %1603 = vmatprep.mubr.bf16.mxu0 0
        %1604 = vmatmul.mubr.bf16.gmra.mxu0 %v1409
        %v1605 = vpop.f32.mrf.mxu0
        %v1606 = vadd.f32 0.0, %v1605
        %v1607 = vpop.f32.mrf.mxu0
        %v1608 = vpop.f32.mrf.mxu0
        %v1609 = vadd.f32 0.0, %v1608
        %v1610 = vpop.f32.mrf.mxu0
        %1611 = vmatprep.mubr.bf16.mxu0 0
        %1612 = vmatmul.mubr.bf16.gmra.mxu0 %v1412
        %v1613 = vpop.f32.mrf.mxu0
        %v1614 = vadd.f32 0.0, %v1613
        %v1615 = vpop.f32.mrf.mxu0
        %v1616 = vpop.f32.mrf.mxu0
        %v1617 = vadd.f32 0.0, %v1616
        %v1618 = vpop.f32.mrf.mxu0
        %1619 = vmatprep.mubr.bf16.mxu0 0
        %1620 = vmatmul.mubr.bf16.gmra.mxu0 %v1415
        %v1621 = vpop.f32.mrf.mxu0
        %v1622 = vadd.f32 0.0, %v1621
        %v1623 = vpop.f32.mrf.mxu0
        %v1624 = vpop.f32.mrf.mxu0
        %v1625 = vadd.f32 0.0, %v1624
        %v1626 = vpop.f32.mrf.mxu0
        %1627 = vdwg.mxu0
        %v1628 = vadd.f32 %v1088, %v1452
        %v1629 = vadd.f32 %v1090, %v1454
        %v1630 = vadd.f32 %v1161, %v1525
        %v1631 = vadd.f32 %v1163, %v1527
        %v1632 = vadd.f32 %v1234, %v1598
        %v1633 = vadd.f32 %v1092, %v1456
        %v1634 = vadd.f32 %v1094, %v1458
        %v1635 = vadd.f32 %v1165, %v1529
        %v1636 = vadd.f32 %v1167, %v1531
        %v1637 = vadd.f32 %v1237, %v1601
        %v1638 = vadd.f32 %v1098, %v1462
        %v1639 = vadd.f32 %v1100, %v1464
        %v1640 = vadd.f32 %v1171, %v1535
        %v1641 = vadd.f32 %v1173, %v1537
        %v1642 = vadd.f32 %v1242, %v1606
        %v1643 = vadd.f32 %v1102, %v1466
        %v1644 = vadd.f32 %v1104, %v1468
        %v1645 = vadd.f32 %v1175, %v1539
        %v1646 = vadd.f32 %v1177, %v1541
        %v1647 = vadd.f32 %v1245, %v1609
        %v1648 = vadd.f32 %v1108, %v1472
        %v1649 = vadd.f32 %v1110, %v1474
        %v1650 = vadd.f32 %v1181, %v1545
        %v1651 = vadd.f32 %v1183, %v1547
        %v1652 = vadd.f32 %v1250, %v1614
        %v1653 = vadd.f32 %v1112, %v1476
        %v1654 = vadd.f32 %v1114, %v1478
        %v1655 = vadd.f32 %v1185, %v1549
        %v1656 = vadd.f32 %v1187, %v1551
        %v1657 = vadd.f32 %v1253, %v1617
        %v1658 = vadd.f32 %v1118, %v1482
        %v1659 = vadd.f32 %v1120, %v1484
        %v1660 = vadd.f32 %v1191, %v1555
        %v1661 = vadd.f32 %v1193, %v1557
        %v1662 = vadd.f32 %v1258, %v1622
        %v1663 = vadd.f32 %v1122, %v1486
        %v1664 = vadd.f32 %v1124, %v1488
        %v1665 = vadd.f32 %v1195, %v1559
        %v1666 = vadd.f32 %v1197, %v1561
        %v1667 = vadd.f32 %v1261, %v1625
        %s1668 = scalar_lea.vmem [#allocation4], 480
        %v1669 = vld [vmem:[%s1668] sm:$0xff]
        %v1670 = vld [vmem:[%s1668 + $0x8] sm:$0xff]
        %v1671 = vld [vmem:[%s1668 + $0x10] sm:$0xf]
        %v1672 = vld [vmem:[%s1668 + $0x14] sm:$0xff]
        %v1673 = vld [vmem:[%s1668 + $0x1c] sm:$0xff]
        %v1674 = vld [vmem:[%s1668 + $0x24] sm:$0xf]
        %v1675 = vld [vmem:[%s1668 + $0x28] sm:$0xff]
        %v1676 = vld [vmem:[%s1668 + $0x30] sm:$0xff]
        %v1677 = vld [vmem:[%s1668 + $0x38] sm:$0xf]
        %v1678 = vld [vmem:[%s1668 + $0x3c] sm:$0xff]
        %v1679 = vld [vmem:[%s1668 + $0x44] sm:$0xff]
        %v1680 = vld [vmem:[%s1668 + $0x4c] sm:$0xf]
        %v1681 = vld [vmem:[%s1668 + $0x50] sm:$0xff]
        %v1682 = vld [vmem:[%s1668 + $0x58] sm:$0xff]
        %v1683 = vld [vmem:[%s1668 + $0x60] sm:$0xf]
        %v1684 = vld [vmem:[%s1668 + $0x64] sm:$0xff]
        %v1685 = vld [vmem:[%s1668 + $0x6c] sm:$0xff]
        %v1686 = vld [vmem:[%s1668 + $0x74] sm:$0xf]
        %v1687 = vld [vmem:[%s1668 + $0x78] sm:$0xff]
        %v1688 = vld [vmem:[%s1668 + $0x80] sm:$0xff]
        %v1689 = vld [vmem:[%s1668 + $0x88] sm:$0xf]
        %v1690 = vld [vmem:[%s1668 + $0x8c] sm:$0xff]
        %v1691 = vld [vmem:[%s1668 + $0x94] sm:$0xff]
        %v1692 = vld [vmem:[%s1668 + $0x9c] sm:$0xf]
        %vm1693 = vsmask.f32 6400
        %v1694 = vrot.slane %v583, 1
        %v1695 = vrot.slane %v585, 2
        %v1696 = vor.u32 %v1694, %v1695
        %v1697 = vrot.slane %v594, 1
        %v1698 = vrot.slane %v590, 2
        %v1699 = vor.u32 %v1697, %v1698
        %v1700 = vsel %vm1693, %v1696, %v1699
        %v1701 = vrot.slane %v602, 1
        %v1702 = vrot.slane %v598, 2
        %v1703 = vor.u32 %v1701, %v1702
        %v1704 = vsel %vm1693, %v1699, %v1703
        %v1705 = vrot.slane %v610, 1
        %v1706 = vrot.slane %v606, 2
        %v1707 = vor.u32 %v1705, %v1706
        %v1708 = vsel %vm1693, %v1703, %v1707
        %v1733 = vunpack.c.l.b16 %v1669
        %v1734 = vunpack.c.h.b16 %v1669
        %v1735 = vunpack.c.l.b16 %v1670
        %v1736 = vunpack.c.h.b16 %v1670
        %v1737 = vunpack.c.l.b16 %v1671
        %v1738 = vunpack.c.l.b16 %v1672
        %v1739 = vunpack.c.h.b16 %v1672
        %v1740 = vunpack.c.l.b16 %v1673
        %v1741 = vunpack.c.h.b16 %v1673
        %v1742 = vunpack.c.l.b16 %v1674
        %v1743 = vunpack.c.l.b16 %v1675
        %v1744 = vunpack.c.h.b16 %v1675
        %v1745 = vunpack.c.l.b16 %v1676
        %v1746 = vunpack.c.h.b16 %v1676
        %v1747 = vunpack.c.l.b16 %v1677
        %v1748 = vunpack.c.l.b16 %v1678
        %v1749 = vunpack.c.h.b16 %v1678
        %v1750 = vunpack.c.l.b16 %v1679
        %v1751 = vunpack.c.h.b16 %v1679
        %v1752 = vunpack.c.l.b16 %v1680
        %v1753 = vunpack.c.l.b16 %v1681
        %v1754 = vunpack.c.h.b16 %v1681
        %v1755 = vunpack.c.l.b16 %v1682
        %v1756 = vunpack.c.h.b16 %v1682
        %v1757 = vunpack.c.l.b16 %v1683
        %v1758 = vunpack.c.l.b16 %v1684
        %v1759 = vunpack.c.h.b16 %v1684
        %v1760 = vunpack.c.l.b16 %v1685
        %v1761 = vunpack.c.h.b16 %v1685
        %v1762 = vunpack.c.l.b16 %v1686
        %v1763 = vunpack.c.l.b16 %v1687
        %v1764 = vunpack.c.h.b16 %v1687
        %v1765 = vunpack.c.l.b16 %v1688
        %v1766 = vunpack.c.h.b16 %v1688
        %v1767 = vunpack.c.l.b16 %v1689
        %v1768 = vunpack.c.l.b16 %v1690
        %v1769 = vunpack.c.h.b16 %v1690
        %v1770 = vunpack.c.l.b16 %v1691
        %v1771 = vunpack.c.h.b16 %v1691
        %v1772 = vunpack.c.l.b16 %v1692
        %v1773 = vpack.c.b16 %v1738, %v1733
        %v1774 = vpack.c.b16 %v1739, %v1734
        %v1775 = vpack.c.b16 %v1740, %v1735
        %v1776 = vpack.c.b16 %v1741, %v1736
        %v1777 = vpack.c.b16 %v1742, %v1737
        %v1778 = vpack.c.b16 %v1748, %v1743
        %v1779 = vpack.c.b16 %v1749, %v1744
        %v1780 = vpack.c.b16 %v1750, %v1745
        %v1781 = vpack.c.b16 %v1751, %v1746
        %v1782 = vpack.c.b16 %v1752, %v1747
        %v1783 = vpack.c.b16 %v1758, %v1753
        %v1784 = vpack.c.b16 %v1759, %v1754
        %v1785 = vpack.c.b16 %v1760, %v1755
        %v1786 = vpack.c.b16 %v1761, %v1756
        %v1787 = vpack.c.b16 %v1762, %v1757
        %v1788 = vpack.c.b16 %v1768, %v1763
        %v1789 = vpack.c.b16 %v1769, %v1764
        %v1790 = vpack.c.b16 %v1770, %v1765
        %v1791 = vpack.c.b16 %v1771, %v1766
        %v1792 = vpack.c.b16 %v1772, %v1767
        %v1814 = vsel %vm717, %v1700, 0
        %v1817 = vsel %vm717, %v1704, 0
        %v1820 = vsel %vm717, %v1708, 0
        %v1823 = vsel %vm717, %v1707, 0
        %1825 = vmatprep.subr.bf16.mxu0 0
        %1826 = vmatpush1.bf16.msra.mxu0 0
        %1827 = vmatprep.subr.bf16.mxu0 0
        %1828 = vmatpush1.bf16.msra.mxu0 0
        %1829 = vmatprep.subr.bf16.mxu0 0
        %1830 = vmatpush1.bf16.msra.mxu0 0
        %1831 = vmatprep.subr.bf16.mxu0 0
        %1832 = vmatpush1.bf16.msra.mxu0 0
        %1833 = vmatprep.subr.bf16.mxu0 %v1789
        %1834 = vmatpush1.bf16.msra.mxu0 %v1788
        %1835 = vmatprep.subr.bf16.mxu0 %v1784
        %1836 = vmatpush1.bf16.msra.mxu0 %v1783
        %1837 = vmatprep.subr.bf16.mxu0 %v1779
        %1838 = vmatpush1.bf16.msra.mxu0 %v1778
        %1839 = vmatprep.subr.bf16.mxu0 %v1774
        %1840 = vmatpush1.bf16.msra.mxu0 %v1773
        %1841 = vmatprep.subr.bf16.mxu0 0
        %1842 = vmatpush2.bf16.msra.mxu0 0
        %1843 = vmatprep.subr.bf16.mxu0 0
        %1844 = vmatpush2.bf16.msra.mxu0 0
        %1845 = vmatprep.subr.bf16.mxu0 0
        %1846 = vmatpush2.bf16.msra.mxu0 0
        %1847 = vmatprep.subr.bf16.mxu0 0
        %1848 = vmatpush2.bf16.msra.mxu0 0
        %1849 = vmatprep.subr.bf16.mxu0 0
        %1850 = vmatpush2.bf16.msra.mxu0 0
        %1851 = vmatprep.subr.bf16.mxu0 0
        %1852 = vmatpush2.bf16.msra.mxu0 0
        %1853 = vmatprep.subr.bf16.mxu0 0
        %1854 = vmatpush2.bf16.msra.mxu0 0
        %1855 = vmatprep.subr.bf16.mxu0 0
        %1856 = vmatpush2.bf16.msra.mxu0 0
        %1857 = vmatprep.mubr.bf16.mxu0 0
        %1858 = vmatmul.mubr.bf16.gmra.mxu0 %v1814
        %v1859 = vpop.f32.mrf.mxu0
        %v1860 = vadd.f32 0.0, %v1859
        %v1861 = vpop.f32.mrf.mxu0
        %v1862 = vadd.f32 0.0, %v1861
        %v1863 = vpop.f32.mrf.mxu0
        %v1864 = vadd.f32 0.0, %v1863
        %v1865 = vpop.f32.mrf.mxu0
        %v1866 = vadd.f32 0.0, %v1865
        %1867 = vmatprep.mubr.bf16.mxu0 0
        %1868 = vmatmul.mubr.bf16.gmra.mxu0 %v1817
        %v1869 = vpop.f32.mrf.mxu0
        %v1870 = vadd.f32 0.0, %v1869
        %v1871 = vpop.f32.mrf.mxu0
        %v1872 = vadd.f32 0.0, %v1871
        %v1873 = vpop.f32.mrf.mxu0
        %v1874 = vadd.f32 0.0, %v1873
        %v1875 = vpop.f32.mrf.mxu0
        %v1876 = vadd.f32 0.0, %v1875
        %1877 = vmatprep.mubr.bf16.mxu0 0
        %1878 = vmatmul.mubr.bf16.gmra.mxu0 %v1820
        %v1879 = vpop.f32.mrf.mxu0
        %v1880 = vadd.f32 0.0, %v1879
        %v1881 = vpop.f32.mrf.mxu0
        %v1882 = vadd.f32 0.0, %v1881
        %v1883 = vpop.f32.mrf.mxu0
        %v1884 = vadd.f32 0.0, %v1883
        %v1885 = vpop.f32.mrf.mxu0
        %v1886 = vadd.f32 0.0, %v1885
        %1887 = vmatprep.mubr.bf16.mxu0 0
        %1888 = vmatmul.mubr.bf16.gmra.mxu0 %v1823
        %v1889 = vpop.f32.mrf.mxu0
        %v1890 = vadd.f32 0.0, %v1889
        %v1891 = vpop.f32.mrf.mxu0
        %v1892 = vadd.f32 0.0, %v1891
        %v1893 = vpop.f32.mrf.mxu0
        %v1894 = vadd.f32 0.0, %v1893
        %v1895 = vpop.f32.mrf.mxu0
        %v1896 = vadd.f32 0.0, %v1895
        %1897 = vdwg.mxu0
        %1898 = vmatprep.subr.bf16.mxu0 0
        %1899 = vmatpush1.bf16.msra.mxu0 0
        %1900 = vmatprep.subr.bf16.mxu0 0
        %1901 = vmatpush1.bf16.msra.mxu0 0
        %1902 = vmatprep.subr.bf16.mxu0 0
        %1903 = vmatpush1.bf16.msra.mxu0 0
        %1904 = vmatprep.subr.bf16.mxu0 0
        %1905 = vmatpush1.bf16.msra.mxu0 0
        %1906 = vmatprep.subr.bf16.mxu0 %v1791
        %1907 = vmatpush1.bf16.msra.mxu0 %v1790
        %1908 = vmatprep.subr.bf16.mxu0 %v1786
        %1909 = vmatpush1.bf16.msra.mxu0 %v1785
        %1910 = vmatprep.subr.bf16.mxu0 %v1781
        %1911 = vmatpush1.bf16.msra.mxu0 %v1780
        %1912 = vmatprep.subr.bf16.mxu0 %v1776
        %1913 = vmatpush1.bf16.msra.mxu0 %v1775
        %1914 = vmatprep.subr.bf16.mxu0 0
        %1915 = vmatpush2.bf16.msra.mxu0 0
        %1916 = vmatprep.subr.bf16.mxu0 0
        %1917 = vmatpush2.bf16.msra.mxu0 0
        %1918 = vmatprep.subr.bf16.mxu0 0
        %1919 = vmatpush2.bf16.msra.mxu0 0
        %1920 = vmatprep.subr.bf16.mxu0 0
        %1921 = vmatpush2.bf16.msra.mxu0 0
        %1922 = vmatprep.subr.bf16.mxu0 0
        %1923 = vmatpush2.bf16.msra.mxu0 0
        %1924 = vmatprep.subr.bf16.mxu0 0
        %1925 = vmatpush2.bf16.msra.mxu0 0
        %1926 = vmatprep.subr.bf16.mxu0 0
        %1927 = vmatpush2.bf16.msra.mxu0 0
        %1928 = vmatprep.subr.bf16.mxu0 0
        %1929 = vmatpush2.bf16.msra.mxu0 0
        %1930 = vmatprep.mubr.bf16.mxu0 0
        %1931 = vmatmul.mubr.bf16.gmra.mxu0 %v1814
        %v1932 = vpop.f32.mrf.mxu0
        %v1933 = vadd.f32 0.0, %v1932
        %v1934 = vpop.f32.mrf.mxu0
        %v1935 = vadd.f32 0.0, %v1934
        %v1936 = vpop.f32.mrf.mxu0
        %v1937 = vadd.f32 0.0, %v1936
        %v1938 = vpop.f32.mrf.mxu0
        %v1939 = vadd.f32 0.0, %v1938
        %1940 = vmatprep.mubr.bf16.mxu0 0
        %1941 = vmatmul.mubr.bf16.gmra.mxu0 %v1817
        %v1942 = vpop.f32.mrf.mxu0
        %v1943 = vadd.f32 0.0, %v1942
        %v1944 = vpop.f32.mrf.mxu0
        %v1945 = vadd.f32 0.0, %v1944
        %v1946 = vpop.f32.mrf.mxu0
        %v1947 = vadd.f32 0.0, %v1946
        %v1948 = vpop.f32.mrf.mxu0
        %v1949 = vadd.f32 0.0, %v1948
        %1950 = vmatprep.mubr.bf16.mxu0 0
        %1951 = vmatmul.mubr.bf16.gmra.mxu0 %v1820
        %v1952 = vpop.f32.mrf.mxu0
        %v1953 = vadd.f32 0.0, %v1952
        %v1954 = vpop.f32.mrf.mxu0
        %v1955 = vadd.f32 0.0, %v1954
        %v1956 = vpop.f32.mrf.mxu0
        %v1957 = vadd.f32 0.0, %v1956
        %v1958 = vpop.f32.mrf.mxu0
        %v1959 = vadd.f32 0.0, %v1958
        %1960 = vmatprep.mubr.bf16.mxu0 0
        %1961 = vmatmul.mubr.bf16.gmra.mxu0 %v1823
        %v1962 = vpop.f32.mrf.mxu0
        %v1963 = vadd.f32 0.0, %v1962
        %v1964 = vpop.f32.mrf.mxu0
        %v1965 = vadd.f32 0.0, %v1964
        %v1966 = vpop.f32.mrf.mxu0
        %v1967 = vadd.f32 0.0, %v1966
        %v1968 = vpop.f32.mrf.mxu0
        %v1969 = vadd.f32 0.0, %v1968
        %1970 = vdwg.mxu0
        %1971 = vmatprep.subr.bf16.mxu0 0
        %1972 = vmatpush1.bf16.msra.mxu0 0
        %1973 = vmatprep.subr.bf16.mxu0 0
        %1974 = vmatpush1.bf16.msra.mxu0 0
        %1975 = vmatprep.subr.bf16.mxu0 0
        %1976 = vmatpush1.bf16.msra.mxu0 0
        %1977 = vmatprep.subr.bf16.mxu0 0
        %1978 = vmatpush1.bf16.msra.mxu0 0
        %1979 = vmatprep.subr.bf16.mxu0 0
        %1980 = vmatpush1.bf16.msra.mxu0 %v1792
        %1981 = vmatprep.subr.bf16.mxu0 0
        %1982 = vmatpush1.bf16.msra.mxu0 %v1787
        %1983 = vmatprep.subr.bf16.mxu0 0
        %1984 = vmatpush1.bf16.msra.mxu0 %v1782
        %1985 = vmatprep.subr.bf16.mxu0 0
        %1986 = vmatpush1.bf16.msra.mxu0 %v1777
        %1987 = vmatprep.subr.bf16.mxu0 0
        %1988 = vmatpush2.bf16.msra.mxu0 0
        %1989 = vmatprep.subr.bf16.mxu0 0
        %1990 = vmatpush2.bf16.msra.mxu0 0
        %1991 = vmatprep.subr.bf16.mxu0 0
        %1992 = vmatpush2.bf16.msra.mxu0 0
        %1993 = vmatprep.subr.bf16.mxu0 0
        %1994 = vmatpush2.bf16.msra.mxu0 0
        %1995 = vmatprep.subr.bf16.mxu0 0
        %1996 = vmatpush2.bf16.msra.mxu0 0
        %1997 = vmatprep.subr.bf16.mxu0 0
        %1998 = vmatpush2.bf16.msra.mxu0 0
        %1999 = vmatprep.subr.bf16.mxu0 0
        %2000 = vmatpush2.bf16.msra.mxu0 0
        %2001 = vmatprep.subr.bf16.mxu0 0
        %2002 = vmatpush2.bf16.msra.mxu0 0
        %2003 = vmatprep.mubr.bf16.mxu0 0
        %2004 = vmatmul.mubr.bf16.gmra.mxu0 %v1814
        %v2005 = vpop.f32.mrf.mxu0
        %v2006 = vadd.f32 0.0, %v2005
        %v2007 = vpop.f32.mrf.mxu0
        %v2008 = vpop.f32.mrf.mxu0
        %v2009 = vadd.f32 0.0, %v2008
        %v2010 = vpop.f32.mrf.mxu0
        %2011 = vmatprep.mubr.bf16.mxu0 0
        %2012 = vmatmul.mubr.bf16.gmra.mxu0 %v1817
        %v2013 = vpop.f32.mrf.mxu0
        %v2014 = vadd.f32 0.0, %v2013
        %v2015 = vpop.f32.mrf.mxu0
        %v2016 = vpop.f32.mrf.mxu0
        %v2017 = vadd.f32 0.0, %v2016
        %v2018 = vpop.f32.mrf.mxu0
        %2019 = vmatprep.mubr.bf16.mxu0 0
        %2020 = vmatmul.mubr.bf16.gmra.mxu0 %v1820
        %v2021 = vpop.f32.mrf.mxu0
        %v2022 = vadd.f32 0.0, %v2021
        %v2023 = vpop.f32.mrf.mxu0
        %v2024 = vpop.f32.mrf.mxu0
        %v2025 = vadd.f32 0.0, %v2024
        %v2026 = vpop.f32.mrf.mxu0
        %2027 = vmatprep.mubr.bf16.mxu0 0
        %2028 = vmatmul.mubr.bf16.gmra.mxu0 %v1823
        %v2029 = vpop.f32.mrf.mxu0
        %v2030 = vadd.f32 0.0, %v2029
        %v2031 = vpop.f32.mrf.mxu0
        %v2032 = vpop.f32.mrf.mxu0
        %v2033 = vadd.f32 0.0, %v2032
        %v2034 = vpop.f32.mrf.mxu0
        %2035 = vdwg.mxu0
        %v2036 = vadd.f32 %v1628, %v1860
        %v2037 = vadd.f32 %v1629, %v1862
        %v2038 = vadd.f32 %v1630, %v1933
        %v2039 = vadd.f32 %v1631, %v1935
        %v2040 = vadd.f32 %v1632, %v2006
        %v2041 = vadd.f32 %v1633, %v1864
        %v2042 = vadd.f32 %v1634, %v1866
        %v2043 = vadd.f32 %v1635, %v1937
        %v2044 = vadd.f32 %v1636, %v1939
        %v2045 = vadd.f32 %v1637, %v2009
        %v2046 = vadd.f32 %v1638, %v1870
        %v2047 = vadd.f32 %v1639, %v1872
        %v2048 = vadd.f32 %v1640, %v1943
        %v2049 = vadd.f32 %v1641, %v1945
        %v2050 = vadd.f32 %v1642, %v2014
        %v2051 = vadd.f32 %v1643, %v1874
        %v2052 = vadd.f32 %v1644, %v1876
        %v2053 = vadd.f32 %v1645, %v1947
        %v2054 = vadd.f32 %v1646, %v1949
        %v2055 = vadd.f32 %v1647, %v2017
        %v2056 = vadd.f32 %v1648, %v1880
        %v2057 = vadd.f32 %v1649, %v1882
        %v2058 = vadd.f32 %v1650, %v1953
        %v2059 = vadd.f32 %v1651, %v1955
        %v2060 = vadd.f32 %v1652, %v2022
        %v2061 = vadd.f32 %v1653, %v1884
        %v2062 = vadd.f32 %v1654, %v1886
        %v2063 = vadd.f32 %v1655, %v1957
        %v2064 = vadd.f32 %v1656, %v1959
        %v2065 = vadd.f32 %v1657, %v2025
        %v2066 = vadd.f32 %v1658, %v1890
        %v2067 = vadd.f32 %v1659, %v1892
        %v2068 = vadd.f32 %v1660, %v1963
        %v2069 = vadd.f32 %v1661, %v1965
        %v2070 = vadd.f32 %v1662, %v2030
        %v2071 = vadd.f32 %v1663, %v1894
        %v2072 = vadd.f32 %v1664, %v1896
        %v2073 = vadd.f32 %v1665, %v1967
        %v2074 = vadd.f32 %v1666, %v1969
        %v2075 = vadd.f32 %v1667, %v2033
        %s2076 = scalar_lea.vmem [#allocation4], 640
        %v2077 = vld [vmem:[%s2076] sm:$0xff]
        %v2078 = vld [vmem:[%s2076 + $0x8] sm:$0xff]
        %v2079 = vld [vmem:[%s2076 + $0x10] sm:$0xf]
        %v2080 = vld [vmem:[%s2076 + $0x14] sm:$0xff]
        %v2081 = vld [vmem:[%s2076 + $0x1c] sm:$0xff]
        %v2082 = vld [vmem:[%s2076 + $0x24] sm:$0xf]
        %v2083 = vld [vmem:[%s2076 + $0x28] sm:$0xff]
        %v2084 = vld [vmem:[%s2076 + $0x30] sm:$0xff]
        %v2085 = vld [vmem:[%s2076 + $0x38] sm:$0xf]
        %v2086 = vld [vmem:[%s2076 + $0x3c] sm:$0xff]
        %v2087 = vld [vmem:[%s2076 + $0x44] sm:$0xff]
        %v2088 = vld [vmem:[%s2076 + $0x4c] sm:$0xf]
        %v2089 = vld [vmem:[%s2076 + $0x50] sm:$0xff]
        %v2090 = vld [vmem:[%s2076 + $0x58] sm:$0xff]
        %v2091 = vld [vmem:[%s2076 + $0x60] sm:$0xf]
        %v2092 = vld [vmem:[%s2076 + $0x64] sm:$0xff]
        %v2093 = vld [vmem:[%s2076 + $0x6c] sm:$0xff]
        %v2094 = vld [vmem:[%s2076 + $0x74] sm:$0xf]
        %v2095 = vld [vmem:[%s2076 + $0x78] sm:$0xff]
        %v2096 = vld [vmem:[%s2076 + $0x80] sm:$0xff]
        %v2097 = vld [vmem:[%s2076 + $0x88] sm:$0xf]
        %v2098 = vld [vmem:[%s2076 + $0x8c] sm:$0xff]
        %v2099 = vld [vmem:[%s2076 + $0x94] sm:$0xff]
        %v2100 = vld [vmem:[%s2076 + $0x9c] sm:$0xf]
        %vm2101 = vcmask 1045504
        %v2102 = vrot.slane %v528, 2
        %v2103 = vrot.slane %v529, 2
        %v2104 = vsel %vm2101, %v2102, %v2103
        %v2105 = vrot.slane %v530, 2
        %v2106 = vsel %vm2101, %v2103, %v2105
        %v2107 = vrot.slane %v531, 2
        %v2108 = vsel %vm2101, %v2105, %v2107
        %v2133 = vunpack.c.l.b16 %v2077
        %v2134 = vunpack.c.h.b16 %v2077
        %v2135 = vunpack.c.l.b16 %v2078
        %v2136 = vunpack.c.h.b16 %v2078
        %v2137 = vunpack.c.l.b16 %v2079
        %v2138 = vunpack.c.l.b16 %v2080
        %v2139 = vunpack.c.h.b16 %v2080
        %v2140 = vunpack.c.l.b16 %v2081
        %v2141 = vunpack.c.h.b16 %v2081
        %v2142 = vunpack.c.l.b16 %v2082
        %v2143 = vunpack.c.l.b16 %v2083
        %v2144 = vunpack.c.h.b16 %v2083
        %v2145 = vunpack.c.l.b16 %v2084
        %v2146 = vunpack.c.h.b16 %v2084
        %v2147 = vunpack.c.l.b16 %v2085
        %v2148 = vunpack.c.l.b16 %v2086
        %v2149 = vunpack.c.h.b16 %v2086
        %v2150 = vunpack.c.l.b16 %v2087
        %v2151 = vunpack.c.h.b16 %v2087
        %v2152 = vunpack.c.l.b16 %v2088
        %v2153 = vunpack.c.l.b16 %v2089
        %v2154 = vunpack.c.h.b16 %v2089
        %v2155 = vunpack.c.l.b16 %v2090
        %v2156 = vunpack.c.h.b16 %v2090
        %v2157 = vunpack.c.l.b16 %v2091
        %v2158 = vunpack.c.l.b16 %v2092
        %v2159 = vunpack.c.h.b16 %v2092
        %v2160 = vunpack.c.l.b16 %v2093
        %v2161 = vunpack.c.h.b16 %v2093
        %v2162 = vunpack.c.l.b16 %v2094
        %v2163 = vunpack.c.l.b16 %v2095
        %v2164 = vunpack.c.h.b16 %v2095
        %v2165 = vunpack.c.l.b16 %v2096
        %v2166 = vunpack.c.h.b16 %v2096
        %v2167 = vunpack.c.l.b16 %v2097
        %v2168 = vunpack.c.l.b16 %v2098
        %v2169 = vunpack.c.h.b16 %v2098
        %v2170 = vunpack.c.l.b16 %v2099
        %v2171 = vunpack.c.h.b16 %v2099
        %v2172 = vunpack.c.l.b16 %v2100
        %v2173 = vpack.c.b16 %v2138, %v2133
        %v2174 = vpack.c.b16 %v2139, %v2134
        %v2175 = vpack.c.b16 %v2140, %v2135
        %v2176 = vpack.c.b16 %v2141, %v2136
        %v2177 = vpack.c.b16 %v2142, %v2137
        %v2178 = vpack.c.b16 %v2148, %v2143
        %v2179 = vpack.c.b16 %v2149, %v2144
        %v2180 = vpack.c.b16 %v2150, %v2145
        %v2181 = vpack.c.b16 %v2151, %v2146
        %v2182 = vpack.c.b16 %v2152, %v2147
        %v2183 = vpack.c.b16 %v2158, %v2153
        %v2184 = vpack.c.b16 %v2159, %v2154
        %v2185 = vpack.c.b16 %v2160, %v2155
        %v2186 = vpack.c.b16 %v2161, %v2156
        %v2187 = vpack.c.b16 %v2162, %v2157
        %v2188 = vpack.c.b16 %v2168, %v2163
        %v2189 = vpack.c.b16 %v2169, %v2164
        %v2190 = vpack.c.b16 %v2170, %v2165
        %v2191 = vpack.c.b16 %v2171, %v2166
        %v2192 = vpack.c.b16 %v2172, %v2167
        %v2214 = vsel %vm717, %v2104, 0
        %v2217 = vsel %vm717, %v2106, 0
        %v2220 = vsel %vm717, %v2108, 0
        %v2223 = vsel %vm717, %v2107, 0
        %2225 = vmatprep.subr.bf16.mxu0 0
        %2226 = vmatpush1.bf16.msra.mxu0 0
        %2227 = vmatprep.subr.bf16.mxu0 0
        %2228 = vmatpush1.bf16.msra.mxu0 0
        %2229 = vmatprep.subr.bf16.mxu0 0
        %2230 = vmatpush1.bf16.msra.mxu0 0
        %2231 = vmatprep.subr.bf16.mxu0 0
        %2232 = vmatpush1.bf16.msra.mxu0 0
        %2233 = vmatprep.subr.bf16.mxu0 %v2189
        %2234 = vmatpush1.bf16.msra.mxu0 %v2188
        %2235 = vmatprep.subr.bf16.mxu0 %v2184
        %2236 = vmatpush1.bf16.msra.mxu0 %v2183
        %2237 = vmatprep.subr.bf16.mxu0 %v2179
        %2238 = vmatpush1.bf16.msra.mxu0 %v2178
        %2239 = vmatprep.subr.bf16.mxu0 %v2174
        %2240 = vmatpush1.bf16.msra.mxu0 %v2173
        %2241 = vmatprep.subr.bf16.mxu0 0
        %2242 = vmatpush2.bf16.msra.mxu0 0
        %2243 = vmatprep.subr.bf16.mxu0 0
        %2244 = vmatpush2.bf16.msra.mxu0 0
        %2245 = vmatprep.subr.bf16.mxu0 0
        %2246 = vmatpush2.bf16.msra.mxu0 0
        %2247 = vmatprep.subr.bf16.mxu0 0
        %2248 = vmatpush2.bf16.msra.mxu0 0
        %2249 = vmatprep.subr.bf16.mxu0 0
        %2250 = vmatpush2.bf16.msra.mxu0 0
        %2251 = vmatprep.subr.bf16.mxu0 0
        %2252 = vmatpush2.bf16.msra.mxu0 0
        %2253 = vmatprep.subr.bf16.mxu0 0
        %2254 = vmatpush2.bf16.msra.mxu0 0
        %2255 = vmatprep.subr.bf16.mxu0 0
        %2256 = vmatpush2.bf16.msra.mxu0 0
        %2257 = vmatprep.mubr.bf16.mxu0 0
        %2258 = vmatmul.mubr.bf16.gmra.mxu0 %v2214
        %v2259 = vpop.f32.mrf.mxu0
        %v2260 = vadd.f32 0.0, %v2259
        %v2261 = vpop.f32.mrf.mxu0
        %v2262 = vadd.f32 0.0, %v2261
        %v2263 = vpop.f32.mrf.mxu0
        %v2264 = vadd.f32 0.0, %v2263
        %v2265 = vpop.f32.mrf.mxu0
        %v2266 = vadd.f32 0.0, %v2265
        %2267 = vmatprep.mubr.bf16.mxu0 0
        %2268 = vmatmul.mubr.bf16.gmra.mxu0 %v2217
        %v2269 = vpop.f32.mrf.mxu0
        %v2270 = vadd.f32 0.0, %v2269
        %v2271 = vpop.f32.mrf.mxu0
        %v2272 = vadd.f32 0.0, %v2271
        %v2273 = vpop.f32.mrf.mxu0
        %v2274 = vadd.f32 0.0, %v2273
        %v2275 = vpop.f32.mrf.mxu0
        %v2276 = vadd.f32 0.0, %v2275
        %2277 = vmatprep.mubr.bf16.mxu0 0
        %2278 = vmatmul.mubr.bf16.gmra.mxu0 %v2220
        %v2279 = vpop.f32.mrf.mxu0
        %v2280 = vadd.f32 0.0, %v2279
        %v2281 = vpop.f32.mrf.mxu0
        %v2282 = vadd.f32 0.0, %v2281
        %v2283 = vpop.f32.mrf.mxu0
        %v2284 = vadd.f32 0.0, %v2283
        %v2285 = vpop.f32.mrf.mxu0
        %v2286 = vadd.f32 0.0, %v2285
        %2287 = vmatprep.mubr.bf16.mxu0 0
        %2288 = vmatmul.mubr.bf16.gmra.mxu0 %v2223
        %v2289 = vpop.f32.mrf.mxu0
        %v2290 = vadd.f32 0.0, %v2289
        %v2291 = vpop.f32.mrf.mxu0
        %v2292 = vadd.f32 0.0, %v2291
        %v2293 = vpop.f32.mrf.mxu0
        %v2294 = vadd.f32 0.0, %v2293
        %v2295 = vpop.f32.mrf.mxu0
        %v2296 = vadd.f32 0.0, %v2295
        %2297 = vdwg.mxu0
        %2298 = vmatprep.subr.bf16.mxu0 0
        %2299 = vmatpush1.bf16.msra.mxu0 0
        %2300 = vmatprep.subr.bf16.mxu0 0
        %2301 = vmatpush1.bf16.msra.mxu0 0
        %2302 = vmatprep.subr.bf16.mxu0 0
        %2303 = vmatpush1.bf16.msra.mxu0 0
        %2304 = vmatprep.subr.bf16.mxu0 0
        %2305 = vmatpush1.bf16.msra.mxu0 0
        %2306 = vmatprep.subr.bf16.mxu0 %v2191
        %2307 = vmatpush1.bf16.msra.mxu0 %v2190
        %2308 = vmatprep.subr.bf16.mxu0 %v2186
        %2309 = vmatpush1.bf16.msra.mxu0 %v2185
        %2310 = vmatprep.subr.bf16.mxu0 %v2181
        %2311 = vmatpush1.bf16.msra.mxu0 %v2180
        %2312 = vmatprep.subr.bf16.mxu0 %v2176
        %2313 = vmatpush1.bf16.msra.mxu0 %v2175
        %2314 = vmatprep.subr.bf16.mxu0 0
        %2315 = vmatpush2.bf16.msra.mxu0 0
        %2316 = vmatprep.subr.bf16.mxu0 0
        %2317 = vmatpush2.bf16.msra.mxu0 0
        %2318 = vmatprep.subr.bf16.mxu0 0
        %2319 = vmatpush2.bf16.msra.mxu0 0
        %2320 = vmatprep.subr.bf16.mxu0 0
        %2321 = vmatpush2.bf16.msra.mxu0 0
        %2322 = vmatprep.subr.bf16.mxu0 0
        %2323 = vmatpush2.bf16.msra.mxu0 0
        %2324 = vmatprep.subr.bf16.mxu0 0
        %2325 = vmatpush2.bf16.msra.mxu0 0
        %2326 = vmatprep.subr.bf16.mxu0 0
        %2327 = vmatpush2.bf16.msra.mxu0 0
        %2328 = vmatprep.subr.bf16.mxu0 0
        %2329 = vmatpush2.bf16.msra.mxu0 0
        %2330 = vmatprep.mubr.bf16.mxu0 0
        %2331 = vmatmul.mubr.bf16.gmra.mxu0 %v2214
        %v2332 = vpop.f32.mrf.mxu0
        %v2333 = vadd.f32 0.0, %v2332
        %v2334 = vpop.f32.mrf.mxu0
        %v2335 = vadd.f32 0.0, %v2334
        %v2336 = vpop.f32.mrf.mxu0
        %v2337 = vadd.f32 0.0, %v2336
        %v2338 = vpop.f32.mrf.mxu0
        %v2339 = vadd.f32 0.0, %v2338
        %2340 = vmatprep.mubr.bf16.mxu0 0
        %2341 = vmatmul.mubr.bf16.gmra.mxu0 %v2217
        %v2342 = vpop.f32.mrf.mxu0
        %v2343 = vadd.f32 0.0, %v2342
        %v2344 = vpop.f32.mrf.mxu0
        %v2345 = vadd.f32 0.0, %v2344
        %v2346 = vpop.f32.mrf.mxu0
        %v2347 = vadd.f32 0.0, %v2346
        %v2348 = vpop.f32.mrf.mxu0
        %v2349 = vadd.f32 0.0, %v2348
        %2350 = vmatprep.mubr.bf16.mxu0 0
        %2351 = vmatmul.mubr.bf16.gmra.mxu0 %v2220
        %v2352 = vpop.f32.mrf.mxu0
        %v2353 = vadd.f32 0.0, %v2352
        %v2354 = vpop.f32.mrf.mxu0
        %v2355 = vadd.f32 0.0, %v2354
        %v2356 = vpop.f32.mrf.mxu0
        %v2357 = vadd.f32 0.0, %v2356
        %v2358 = vpop.f32.mrf.mxu0
        %v2359 = vadd.f32 0.0, %v2358
        %2360 = vmatprep.mubr.bf16.mxu0 0
        %2361 = vmatmul.mubr.bf16.gmra.mxu0 %v2223
        %v2362 = vpop.f32.mrf.mxu0
        %v2363 = vadd.f32 0.0, %v2362
        %v2364 = vpop.f32.mrf.mxu0
        %v2365 = vadd.f32 0.0, %v2364
        %v2366 = vpop.f32.mrf.mxu0
        %v2367 = vadd.f32 0.0, %v2366
        %v2368 = vpop.f32.mrf.mxu0
        %v2369 = vadd.f32 0.0, %v2368
        %2370 = vdwg.mxu0
        %2371 = vmatprep.subr.bf16.mxu0 0
        %2372 = vmatpush1.bf16.msra.mxu0 0
        %2373 = vmatprep.subr.bf16.mxu0 0
        %2374 = vmatpush1.bf16.msra.mxu0 0
        %2375 = vmatprep.subr.bf16.mxu0 0
        %2376 = vmatpush1.bf16.msra.mxu0 0
        %2377 = vmatprep.subr.bf16.mxu0 0
        %2378 = vmatpush1.bf16.msra.mxu0 0
        %2379 = vmatprep.subr.bf16.mxu0 0
        %2380 = vmatpush1.bf16.msra.mxu0 %v2192
        %2381 = vmatprep.subr.bf16.mxu0 0
        %2382 = vmatpush1.bf16.msra.mxu0 %v2187
        %2383 = vmatprep.subr.bf16.mxu0 0
        %2384 = vmatpush1.bf16.msra.mxu0 %v2182
        %2385 = vmatprep.subr.bf16.mxu0 0
        %2386 = vmatpush1.bf16.msra.mxu0 %v2177
        %2387 = vmatprep.subr.bf16.mxu0 0
        %2388 = vmatpush2.bf16.msra.mxu0 0
        %2389 = vmatprep.subr.bf16.mxu0 0
        %2390 = vmatpush2.bf16.msra.mxu0 0
        %2391 = vmatprep.subr.bf16.mxu0 0
        %2392 = vmatpush2.bf16.msra.mxu0 0
        %2393 = vmatprep.subr.bf16.mxu0 0
        %2394 = vmatpush2.bf16.msra.mxu0 0
        %2395 = vmatprep.subr.bf16.mxu0 0
        %2396 = vmatpush2.bf16.msra.mxu0 0
        %2397 = vmatprep.subr.bf16.mxu0 0
        %2398 = vmatpush2.bf16.msra.mxu0 0
        %2399 = vmatprep.subr.bf16.mxu0 0
        %2400 = vmatpush2.bf16.msra.mxu0 0
        %2401 = vmatprep.subr.bf16.mxu0 0
        %2402 = vmatpush2.bf16.msra.mxu0 0
        %2403 = vmatprep.mubr.bf16.mxu0 0
        %2404 = vmatmul.mubr.bf16.gmra.mxu0 %v2214
        %v2405 = vpop.f32.mrf.mxu0
        %v2406 = vadd.f32 0.0, %v2405
        %v2407 = vpop.f32.mrf.mxu0
        %v2408 = vpop.f32.mrf.mxu0
        %v2409 = vadd.f32 0.0, %v2408
        %v2410 = vpop.f32.mrf.mxu0
        %2411 = vmatprep.mubr.bf16.mxu0 0
        %2412 = vmatmul.mubr.bf16.gmra.mxu0 %v2217
        %v2413 = vpop.f32.mrf.mxu0
        %v2414 = vadd.f32 0.0, %v2413
        %v2415 = vpop.f32.mrf.mxu0
        %v2416 = vpop.f32.mrf.mxu0
        %v2417 = vadd.f32 0.0, %v2416
        %v2418 = vpop.f32.mrf.mxu0
        %2419 = vmatprep.mubr.bf16.mxu0 0
        %2420 = vmatmul.mubr.bf16.gmra.mxu0 %v2220
        %v2421 = vpop.f32.mrf.mxu0
        %v2422 = vadd.f32 0.0, %v2421
        %v2423 = vpop.f32.mrf.mxu0
        %v2424 = vpop.f32.mrf.mxu0
        %v2425 = vadd.f32 0.0, %v2424
        %v2426 = vpop.f32.mrf.mxu0
        %2427 = vmatprep.mubr.bf16.mxu0 0
        %2428 = vmatmul.mubr.bf16.gmra.mxu0 %v2223
        %v2429 = vpop.f32.mrf.mxu0
        %v2430 = vadd.f32 0.0, %v2429
        %v2431 = vpop.f32.mrf.mxu0
        %v2432 = vpop.f32.mrf.mxu0
        %v2433 = vadd.f32 0.0, %v2432
        %v2434 = vpop.f32.mrf.mxu0
        %2435 = vdwg.mxu0
        %v2436 = vadd.f32 %v2036, %v2260
        %v2437 = vadd.f32 %v2037, %v2262
        %v2438 = vadd.f32 %v2038, %v2333
        %v2439 = vadd.f32 %v2039, %v2335
        %v2440 = vadd.f32 %v2040, %v2406
        %v2441 = vadd.f32 %v2041, %v2264
        %v2442 = vadd.f32 %v2042, %v2266
        %v2443 = vadd.f32 %v2043, %v2337
        %v2444 = vadd.f32 %v2044, %v2339
        %v2445 = vadd.f32 %v2045, %v2409
        %v2446 = vadd.f32 %v2046, %v2270
        %v2447 = vadd.f32 %v2047, %v2272
        %v2448 = vadd.f32 %v2048, %v2343
        %v2449 = vadd.f32 %v2049, %v2345
        %v2450 = vadd.f32 %v2050, %v2414
        %v2451 = vadd.f32 %v2051, %v2274
        %v2452 = vadd.f32 %v2052, %v2276
        %v2453 = vadd.f32 %v2053, %v2347
        %v2454 = vadd.f32 %v2054, %v2349
        %v2455 = vadd.f32 %v2055, %v2417
        %v2456 = vadd.f32 %v2056, %v2280
        %v2457 = vadd.f32 %v2057, %v2282
        %v2458 = vadd.f32 %v2058, %v2353
        %v2459 = vadd.f32 %v2059, %v2355
        %v2460 = vadd.f32 %v2060, %v2422
        %v2461 = vadd.f32 %v2061, %v2284
        %v2462 = vadd.f32 %v2062, %v2286
        %v2463 = vadd.f32 %v2063, %v2357
        %v2464 = vadd.f32 %v2064, %v2359
        %v2465 = vadd.f32 %v2065, %v2425
        %v2466 = vadd.f32 %v2066, %v2290
        %v2467 = vadd.f32 %v2067, %v2292
        %v2468 = vadd.f32 %v2068, %v2363
        %v2469 = vadd.f32 %v2069, %v2365
        %v2470 = vadd.f32 %v2070, %v2430
        %v2471 = vadd.f32 %v2071, %v2294
        %v2472 = vadd.f32 %v2072, %v2296
        %v2473 = vadd.f32 %v2073, %v2367
        %v2474 = vadd.f32 %v2074, %v2369
        %v2475 = vadd.f32 %v2075, %v2433
        %v2476 = vpack.c.bf16 %v2441, %v2436
        %v2477 = vpack.c.bf16 %v2442, %v2437
        %v2478 = vpack.c.bf16 %v2443, %v2438
        %v2479 = vpack.c.bf16 %v2444, %v2439
        %v2480 = vpack.c.bf16 %v2445, %v2440
        %v2481 = vpack.c.bf16 %v2451, %v2446
        %v2482 = vpack.c.bf16 %v2452, %v2447
        %v2483 = vpack.c.bf16 %v2453, %v2448
        %v2484 = vpack.c.bf16 %v2454, %v2449
        %v2485 = vpack.c.bf16 %v2455, %v2450
        %v2486 = vpack.c.bf16 %v2461, %v2456
        %v2487 = vpack.c.bf16 %v2462, %v2457
        %v2488 = vpack.c.bf16 %v2463, %v2458
        %v2489 = vpack.c.bf16 %v2464, %v2459
        %v2490 = vpack.c.bf16 %v2465, %v2460
        %v2491 = vpack.c.bf16 %v2471, %v2466
        %v2492 = vpack.c.bf16 %v2472, %v2467
        %v2493 = vpack.c.bf16 %v2473, %v2468
        %v2494 = vpack.c.bf16 %v2474, %v2469
        %v2495 = vpack.c.bf16 %v2475, %v2470
        %v2496 = vld [vmem:[#allocation6] sm:$0xf]
        %v2497 = vld [vmem:[#allocation6 + $0x4] sm:$0xf]
        %v2498 = vld [vmem:[#allocation6 + $0x8] sm:$0xf]
        %v2499 = vld [vmem:[#allocation6 + $0xc] sm:$0x7]
        %v2504 = vunpack.c.l.b16 %v2496
        %v2505 = vunpack.c.l.b16 %v2497
        %v2506 = vunpack.c.l.b16 %v2498
        %v2507 = vunpack.c.l.b16 %v2499
        %v2508 = vpack.c.b16 %v2505, %v2504
        %v2509 = vpack.c.b16 %v2507, %v2506
        %vm2510 = vcmask 490496
        %v2512 = vsel %vm2510, %v2508, 0
        %v2515 = vsel %vm2510, %v2509, 0
        %vm2517 = vcmask 1045504
        %v2519 = vsel %vm2517, %v2491, 0
        %v2522 = vsel %vm2517, %v2492, 0
        %v2525 = vsel %vm2517, %v2493, 0
        %v2528 = vsel %vm2517, %v2494, 0
        %v2531 = vsel %vm2517, %v2495, 0
        %2533 = vmatprep.subr.bf16.mxu0 0
        %2534 = vmatpush1.bf16.msra.mxu0 0
        %2535 = vmatprep.subr.bf16.mxu0 0
        %2536 = vmatpush1.bf16.msra.mxu0 0
        %2537 = vmatprep.subr.bf16.mxu0 0
        %2538 = vmatpush1.bf16.msra.mxu0 0
        %2539 = vmatprep.subr.bf16.mxu0 0
        %2540 = vmatpush1.bf16.msra.mxu0 0
        %2541 = vmatprep.subr.bf16.mxu0 %v2522
        %2542 = vmatpush1.bf16.msra.mxu0 %v2519
        %2543 = vmatprep.subr.bf16.mxu0 %v2487
        %2544 = vmatpush1.bf16.msra.mxu0 %v2486
        %2545 = vmatprep.subr.bf16.mxu0 %v2482
        %2546 = vmatpush1.bf16.msra.mxu0 %v2481
        %2547 = vmatprep.subr.bf16.mxu0 %v2477
        %2548 = vmatpush1.bf16.msra.mxu0 %v2476
        %2549 = vmatprep.subr.bf16.mxu0 0
        %2550 = vmatpush2.bf16.msra.mxu0 0
        %2551 = vmatprep.subr.bf16.mxu0 0
        %2552 = vmatpush2.bf16.msra.mxu0 0
        %2553 = vmatprep.subr.bf16.mxu0 0
        %2554 = vmatpush2.bf16.msra.mxu0 0
        %2555 = vmatprep.subr.bf16.mxu0 0
        %2556 = vmatpush2.bf16.msra.mxu0 0
        %2557 = vmatprep.subr.bf16.mxu0 0
        %2558 = vmatpush2.bf16.msra.mxu0 0
        %2559 = vmatprep.subr.bf16.mxu0 0
        %2560 = vmatpush2.bf16.msra.mxu0 0
        %2561 = vmatprep.subr.bf16.mxu0 0
        %2562 = vmatpush2.bf16.msra.mxu0 0
        %2563 = vmatprep.subr.bf16.mxu0 0
        %2564 = vmatpush2.bf16.msra.mxu0 0
        %2565 = vmatprep.mubr.bf16.mxu0 0
        %2566 = vmatmul.mubr.bf16.gmra.mxu0 %v2512
        %v2567 = vpop.f32.mrf.mxu0
        %v2568 = vadd.f32 0.0, %v2567
        %v2569 = vpop.f32.mrf.mxu0
        %v2570 = vadd.f32 0.0, %v2569
        %v2571 = vpop.f32.mrf.mxu0
        %v2572 = vadd.f32 0.0, %v2571
        %v2573 = vpop.f32.mrf.mxu0
        %v2574 = vadd.f32 0.0, %v2573
        %2575 = vmatprep.mubr.bf16.mxu0 0
        %2576 = vmatmul.mubr.bf16.gmra.mxu0 %v2515
        %v2577 = vpop.f32.mrf.mxu0
        %v2578 = vadd.f32 0.0, %v2577
        %v2579 = vpop.f32.mrf.mxu0
        %v2580 = vadd.f32 0.0, %v2579
        %v2581 = vpop.f32.mrf.mxu0
        %v2582 = vadd.f32 0.0, %v2581
        %v2583 = vpop.f32.mrf.mxu0
        %v2584 = vadd.f32 0.0, %v2583
        %2585 = vdwg.mxu0
        %2586 = vmatprep.subr.bf16.mxu0 0
        %2587 = vmatpush1.bf16.msra.mxu0 0
        %2588 = vmatprep.subr.bf16.mxu0 0
        %2589 = vmatpush1.bf16.msra.mxu0 0
        %2590 = vmatprep.subr.bf16.mxu0 0
        %2591 = vmatpush1.bf16.msra.mxu0 0
        %2592 = vmatprep.subr.bf16.mxu0 0
        %2593 = vmatpush1.bf16.msra.mxu0 0
        %2594 = vmatprep.subr.bf16.mxu0 %v2528
        %2595 = vmatpush1.bf16.msra.mxu0 %v2525
        %2596 = vmatprep.subr.bf16.mxu0 %v2489
        %2597 = vmatpush1.bf16.msra.mxu0 %v2488
        %2598 = vmatprep.subr.bf16.mxu0 %v2484
        %2599 = vmatpush1.bf16.msra.mxu0 %v2483
        %2600 = vmatprep.subr.bf16.mxu0 %v2479
        %2601 = vmatpush1.bf16.msra.mxu0 %v2478
        %2602 = vmatprep.subr.bf16.mxu0 0
        %2603 = vmatpush2.bf16.msra.mxu0 0
        %2604 = vmatprep.subr.bf16.mxu0 0
        %2605 = vmatpush2.bf16.msra.mxu0 0
        %2606 = vmatprep.subr.bf16.mxu0 0
        %2607 = vmatpush2.bf16.msra.mxu0 0
        %2608 = vmatprep.subr.bf16.mxu0 0
        %2609 = vmatpush2.bf16.msra.mxu0 0
        %2610 = vmatprep.subr.bf16.mxu0 0
        %2611 = vmatpush2.bf16.msra.mxu0 0
        %2612 = vmatprep.subr.bf16.mxu0 0
        %2613 = vmatpush2.bf16.msra.mxu0 0
        %2614 = vmatprep.subr.bf16.mxu0 0
        %2615 = vmatpush2.bf16.msra.mxu0 0
        %2616 = vmatprep.subr.bf16.mxu0 0
        %2617 = vmatpush2.bf16.msra.mxu0 0
        %2618 = vmatprep.mubr.bf16.mxu0 0
        %2619 = vmatmul.mubr.bf16.gmra.mxu0 %v2512
        %v2620 = vpop.f32.mrf.mxu0
        %v2621 = vadd.f32 0.0, %v2620
        %v2622 = vpop.f32.mrf.mxu0
        %v2623 = vadd.f32 0.0, %v2622
        %v2624 = vpop.f32.mrf.mxu0
        %v2625 = vadd.f32 0.0, %v2624
        %v2626 = vpop.f32.mrf.mxu0
        %v2627 = vadd.f32 0.0, %v2626
        %2628 = vmatprep.mubr.bf16.mxu0 0
        %2629 = vmatmul.mubr.bf16.gmra.mxu0 %v2515
        %v2630 = vpop.f32.mrf.mxu0
        %v2631 = vadd.f32 0.0, %v2630
        %v2632 = vpop.f32.mrf.mxu0
        %v2633 = vadd.f32 0.0, %v2632
        %v2634 = vpop.f32.mrf.mxu0
        %v2635 = vadd.f32 0.0, %v2634
        %v2636 = vpop.f32.mrf.mxu0
        %v2637 = vadd.f32 0.0, %v2636
        %2638 = vdwg.mxu0
        %2639 = vmatprep.subr.bf16.mxu0 0
        %2640 = vmatpush1.bf16.msra.mxu0 0
        %2641 = vmatprep.subr.bf16.mxu0 0
        %2642 = vmatpush1.bf16.msra.mxu0 0
        %2643 = vmatprep.subr.bf16.mxu0 0
        %2644 = vmatpush1.bf16.msra.mxu0 0
        %2645 = vmatprep.subr.bf16.mxu0 0
        %2646 = vmatpush1.bf16.msra.mxu0 0
        %2647 = vmatprep.subr.bf16.mxu0 0
        %2648 = vmatpush1.bf16.msra.mxu0 %v2531
        %2649 = vmatprep.subr.bf16.mxu0 0
        %2650 = vmatpush1.bf16.msra.mxu0 %v2490
        %2651 = vmatprep.subr.bf16.mxu0 0
        %2652 = vmatpush1.bf16.msra.mxu0 %v2485
        %2653 = vmatprep.subr.bf16.mxu0 0
        %2654 = vmatpush1.bf16.msra.mxu0 %v2480
        %2655 = vmatprep.subr.bf16.mxu0 0
        %2656 = vmatpush2.bf16.msra.mxu0 0
        %2657 = vmatprep.subr.bf16.mxu0 0
        %2658 = vmatpush2.bf16.msra.mxu0 0
        %2659 = vmatprep.subr.bf16.mxu0 0
        %2660 = vmatpush2.bf16.msra.mxu0 0
        %2661 = vmatprep.subr.bf16.mxu0 0
        %2662 = vmatpush2.bf16.msra.mxu0 0
        %2663 = vmatprep.subr.bf16.mxu0 0
        %2664 = vmatpush2.bf16.msra.mxu0 0
        %2665 = vmatprep.subr.bf16.mxu0 0
        %2666 = vmatpush2.bf16.msra.mxu0 0
        %2667 = vmatprep.subr.bf16.mxu0 0
        %2668 = vmatpush2.bf16.msra.mxu0 0
        %2669 = vmatprep.subr.bf16.mxu0 0
        %2670 = vmatpush2.bf16.msra.mxu0 0
        %2671 = vmatprep.mubr.bf16.mxu0 0
        %2672 = vmatmul.mubr.bf16.gmra.mxu0 %v2512
        %v2673 = vpop.f32.mrf.mxu0
        %v2674 = vadd.f32 0.0, %v2673
        %v2675 = vpop.f32.mrf.mxu0
        %v2676 = vpop.f32.mrf.mxu0
        %v2677 = vadd.f32 0.0, %v2676
        %v2678 = vpop.f32.mrf.mxu0
        %2679 = vmatprep.mubr.bf16.mxu0 0
        %2680 = vmatmul.mubr.bf16.gmra.mxu0 %v2515
        %v2681 = vpop.f32.mrf.mxu0
        %v2682 = vadd.f32 0.0, %v2681
        %v2683 = vpop.f32.mrf.mxu0
        %v2684 = vpop.f32.mrf.mxu0
        %v2685 = vadd.f32 0.0, %v2684
        %v2686 = vpop.f32.mrf.mxu0
        %2687 = vdwg.mxu0
        %v2688 = vld [vmem:[#allocation7] sm:$0xf]
        %v2689 = vld [vmem:[#allocation7 + $0x4] sm:$0xf]
        %v2690 = vld [vmem:[#allocation7 + $0x8] sm:$0xf]
        %v2691 = vld [vmem:[#allocation7 + $0xc] sm:$0x7]
        %v2696 = vunpack.c.l.b16 %v2688
        %v2697 = vunpack.c.l.b16 %v2689
        %v2698 = vunpack.c.l.b16 %v2690
        %v2699 = vunpack.c.l.b16 %v2691
        %v2700 = vpack.c.b16 %v2697, %v2696
        %v2701 = vpack.c.b16 %v2699, %v2698
        %v2703 = vsel %vm2510, %v2700, 0
        %v2706 = vsel %vm2510, %v2701, 0
        %2708 = vmatprep.subr.bf16.mxu0 0
        %2709 = vmatpush1.bf16.msra.mxu0 0
        %2710 = vmatprep.subr.bf16.mxu0 0
        %2711 = vmatpush1.bf16.msra.mxu0 0
        %2712 = vmatprep.subr.bf16.mxu0 0
        %2713 = vmatpush1.bf16.msra.mxu0 0
        %2714 = vmatprep.subr.bf16.mxu0 0
        %2715 = vmatpush1.bf16.msra.mxu0 0
        %2716 = vmatprep.subr.bf16.mxu0 %v2522
        %2717 = vmatpush1.bf16.msra.mxu0 %v2519
        %2718 = vmatprep.subr.bf16.mxu0 %v2487
        %2719 = vmatpush1.bf16.msra.mxu0 %v2486
        %2720 = vmatprep.subr.bf16.mxu0 %v2482
        %2721 = vmatpush1.bf16.msra.mxu0 %v2481
        %2722 = vmatprep.subr.bf16.mxu0 %v2477
        %2723 = vmatpush1.bf16.msra.mxu0 %v2476
        %2724 = vmatprep.subr.bf16.mxu0 0
        %2725 = vmatpush2.bf16.msra.mxu0 0
        %2726 = vmatprep.subr.bf16.mxu0 0
        %2727 = vmatpush2.bf16.msra.mxu0 0
        %2728 = vmatprep.subr.bf16.mxu0 0
        %2729 = vmatpush2.bf16.msra.mxu0 0
        %2730 = vmatprep.subr.bf16.mxu0 0
        %2731 = vmatpush2.bf16.msra.mxu0 0
        %2732 = vmatprep.subr.bf16.mxu0 0
        %2733 = vmatpush2.bf16.msra.mxu0 0
        %2734 = vmatprep.subr.bf16.mxu0 0
        %2735 = vmatpush2.bf16.msra.mxu0 0
        %2736 = vmatprep.subr.bf16.mxu0 0
        %2737 = vmatpush2.bf16.msra.mxu0 0
        %2738 = vmatprep.subr.bf16.mxu0 0
        %2739 = vmatpush2.bf16.msra.mxu0 0
        %2740 = vmatprep.mubr.bf16.mxu0 0
        %2741 = vmatmul.mubr.bf16.gmra.mxu0 %v2703
        %v2742 = vpop.f32.mrf.mxu0
        %v2743 = vadd.f32 0.0, %v2742
        %v2744 = vpop.f32.mrf.mxu0
        %v2745 = vadd.f32 0.0, %v2744
        %v2746 = vpop.f32.mrf.mxu0
        %v2747 = vadd.f32 0.0, %v2746
        %v2748 = vpop.f32.mrf.mxu0
        %v2749 = vadd.f32 0.0, %v2748
        %2750 = vmatprep.mubr.bf16.mxu0 0
        %2751 = vmatmul.mubr.bf16.gmra.mxu0 %v2706
        %v2752 = vpop.f32.mrf.mxu0
        %v2753 = vadd.f32 0.0, %v2752
        %v2754 = vpop.f32.mrf.mxu0
        %v2755 = vadd.f32 0.0, %v2754
        %v2756 = vpop.f32.mrf.mxu0
        %v2757 = vadd.f32 0.0, %v2756
        %v2758 = vpop.f32.mrf.mxu0
        %v2759 = vadd.f32 0.0, %v2758
        %2760 = vdwg.mxu0
        %2761 = vmatprep.subr.bf16.mxu0 0
        %2762 = vmatpush1.bf16.msra.mxu0 0
        %2763 = vmatprep.subr.bf16.mxu0 0
        %2764 = vmatpush1.bf16.msra.mxu0 0
        %2765 = vmatprep.subr.bf16.mxu0 0
        %2766 = vmatpush1.bf16.msra.mxu0 0
        %2767 = vmatprep.subr.bf16.mxu0 0
        %2768 = vmatpush1.bf16.msra.mxu0 0
        %2769 = vmatprep.subr.bf16.mxu0 %v2528
        %2770 = vmatpush1.bf16.msra.mxu0 %v2525
        %2771 = vmatprep.subr.bf16.mxu0 %v2489
        %2772 = vmatpush1.bf16.msra.mxu0 %v2488
        %2773 = vmatprep.subr.bf16.mxu0 %v2484
        %2774 = vmatpush1.bf16.msra.mxu0 %v2483
        %2775 = vmatprep.subr.bf16.mxu0 %v2479
        %2776 = vmatpush1.bf16.msra.mxu0 %v2478
        %2777 = vmatprep.subr.bf16.mxu0 0
        %2778 = vmatpush2.bf16.msra.mxu0 0
        %2779 = vmatprep.subr.bf16.mxu0 0
        %2780 = vmatpush2.bf16.msra.mxu0 0
        %2781 = vmatprep.subr.bf16.mxu0 0
        %2782 = vmatpush2.bf16.msra.mxu0 0
        %2783 = vmatprep.subr.bf16.mxu0 0
        %2784 = vmatpush2.bf16.msra.mxu0 0
        %2785 = vmatprep.subr.bf16.mxu0 0
        %2786 = vmatpush2.bf16.msra.mxu0 0
        %2787 = vmatprep.subr.bf16.mxu0 0
        %2788 = vmatpush2.bf16.msra.mxu0 0
        %2789 = vmatprep.subr.bf16.mxu0 0
        %2790 = vmatpush2.bf16.msra.mxu0 0
        %2791 = vmatprep.subr.bf16.mxu0 0
        %2792 = vmatpush2.bf16.msra.mxu0 0
        %2793 = vmatprep.mubr.bf16.mxu0 0
        %2794 = vmatmul.mubr.bf16.gmra.mxu0 %v2703
        %v2795 = vpop.f32.mrf.mxu0
        %v2796 = vadd.f32 0.0, %v2795
        %v2797 = vpop.f32.mrf.mxu0
        %v2798 = vadd.f32 0.0, %v2797
        %v2799 = vpop.f32.mrf.mxu0
        %v2800 = vadd.f32 0.0, %v2799
        %v2801 = vpop.f32.mrf.mxu0
        %v2802 = vadd.f32 0.0, %v2801
        %2803 = vmatprep.mubr.bf16.mxu0 0
        %2804 = vmatmul.mubr.bf16.gmra.mxu0 %v2706
        %v2805 = vpop.f32.mrf.mxu0
        %v2806 = vadd.f32 0.0, %v2805
        %v2807 = vpop.f32.mrf.mxu0
        %v2808 = vadd.f32 0.0, %v2807
        %v2809 = vpop.f32.mrf.mxu0
        %v2810 = vadd.f32 0.0, %v2809
        %v2811 = vpop.f32.mrf.mxu0
        %v2812 = vadd.f32 0.0, %v2811
        %2813 = vdwg.mxu0
        %2814 = vmatprep.subr.bf16.mxu0 0
        %2815 = vmatpush1.bf16.msra.mxu0 0
        %2816 = vmatprep.subr.bf16.mxu0 0
        %2817 = vmatpush1.bf16.msra.mxu0 0
        %2818 = vmatprep.subr.bf16.mxu0 0
        %2819 = vmatpush1.bf16.msra.mxu0 0
        %2820 = vmatprep.subr.bf16.mxu0 0
        %2821 = vmatpush1.bf16.msra.mxu0 0
        %2822 = vmatprep.subr.bf16.mxu0 0
        %2823 = vmatpush1.bf16.msra.mxu0 %v2531
        %2824 = vmatprep.subr.bf16.mxu0 0
        %2825 = vmatpush1.bf16.msra.mxu0 %v2490
        %2826 = vmatprep.subr.bf16.mxu0 0
        %2827 = vmatpush1.bf16.msra.mxu0 %v2485
        %2828 = vmatprep.subr.bf16.mxu0 0
        %2829 = vmatpush1.bf16.msra.mxu0 %v2480
        %2830 = vmatprep.subr.bf16.mxu0 0
        %2831 = vmatpush2.bf16.msra.mxu0 0
        %2832 = vmatprep.subr.bf16.mxu0 0
        %2833 = vmatpush2.bf16.msra.mxu0 0
        %2834 = vmatprep.subr.bf16.mxu0 0
        %2835 = vmatpush2.bf16.msra.mxu0 0
        %2836 = vmatprep.subr.bf16.mxu0 0
        %2837 = vmatpush2.bf16.msra.mxu0 0
        %2838 = vmatprep.subr.bf16.mxu0 0
        %2839 = vmatpush2.bf16.msra.mxu0 0
        %2840 = vmatprep.subr.bf16.mxu0 0
        %2841 = vmatpush2.bf16.msra.mxu0 0
        %2842 = vmatprep.subr.bf16.mxu0 0
        %2843 = vmatpush2.bf16.msra.mxu0 0
        %2844 = vmatprep.subr.bf16.mxu0 0
        %2845 = vmatpush2.bf16.msra.mxu0 0
        %2846 = vmatprep.mubr.bf16.mxu0 0
        %2847 = vmatmul.mubr.bf16.gmra.mxu0 %v2703
        %v2848 = vpop.f32.mrf.mxu0
        %v2849 = vadd.f32 0.0, %v2848
        %v2850 = vpop.f32.mrf.mxu0
        %v2851 = vpop.f32.mrf.mxu0
        %v2852 = vadd.f32 0.0, %v2851
        %v2853 = vpop.f32.mrf.mxu0
        %2854 = vmatprep.mubr.bf16.mxu0 0
        %2855 = vmatmul.mubr.bf16.gmra.mxu0 %v2706
        %v2856 = vpop.f32.mrf.mxu0
        %v2857 = vadd.f32 0.0, %v2856
        %v2858 = vpop.f32.mrf.mxu0
        %v2859 = vpop.f32.mrf.mxu0
        %v2860 = vadd.f32 0.0, %v2859
        %v2861 = vpop.f32.mrf.mxu0
        %2862 = vdwg.mxu0
        %v2863 = vmax.f32 %v2568, %v2743
        %v2864 = vmax.f32 %v2570, %v2745
        %v2865 = vmax.f32 %v2621, %v2796
        %v2866 = vmax.f32 %v2623, %v2798
        %v2867 = vmax.f32 %v2674, %v2849
        %v2868 = vmax.f32 %v2572, %v2747
        %v2869 = vmax.f32 %v2574, %v2749
        %v2870 = vmax.f32 %v2625, %v2800
        %v2871 = vmax.f32 %v2627, %v2802
        %v2872 = vmax.f32 %v2677, %v2852
        %v2873 = vmax.f32 %v2578, %v2753
        %v2874 = vmax.f32 %v2580, %v2755
        %v2875 = vmax.f32 %v2631, %v2806
        %v2876 = vmax.f32 %v2633, %v2808
        %v2877 = vmax.f32 %v2682, %v2857
        %v2878 = vmax.f32 %v2582, %v2757
        %v2879 = vmax.f32 %v2584, %v2759
        %v2880 = vmax.f32 %v2635, %v2810
        %v2881 = vmax.f32 %v2637, %v2812
        %v2882 = vmax.f32 %v2685, %v2860
        %2903 = vrot.lane.b32.xlu0 %v2863, 118
        %v2904 = vpop.permute.xlu0 %2903
        %2905 = vrot.lane.b32.xlu0 %v2864, 118
        %v2906 = vpop.permute.xlu0 %2905
        %2907 = vrot.lane.b32.xlu0 %v2865, 118
        %v2908 = vpop.permute.xlu0 %2907
        %2909 = vrot.lane.b32.xlu0 %v2866, 118
        %v2910 = vpop.permute.xlu0 %2909
        %2911 = vrot.lane.b32.xlu0 %v2867, 118
        %v2912 = vpop.permute.xlu0 %2911
        %2913 = vrot.lane.b32.xlu0 %v2868, 118
        %v2914 = vpop.permute.xlu0 %2913
        %2915 = vrot.lane.b32.xlu0 %v2869, 118
        %v2916 = vpop.permute.xlu0 %2915
        %2917 = vrot.lane.b32.xlu0 %v2870, 118
        %v2918 = vpop.permute.xlu0 %2917
        %2919 = vrot.lane.b32.xlu0 %v2871, 118
        %v2920 = vpop.permute.xlu0 %2919
        %2921 = vrot.lane.b32.xlu0 %v2872, 118
        %v2922 = vpop.permute.xlu0 %2921
        %2923 = vrot.lane.b32.xlu0 %v2873, 118
        %v2924 = vpop.permute.xlu0 %2923
        %2925 = vrot.lane.b32.xlu0 %v2874, 118
        %v2926 = vpop.permute.xlu0 %2925
        %2927 = vrot.lane.b32.xlu0 %v2875, 118
        %v2928 = vpop.permute.xlu0 %2927
        %2929 = vrot.lane.b32.xlu0 %v2876, 118
        %v2930 = vpop.permute.xlu0 %2929
        %2931 = vrot.lane.b32.xlu0 %v2877, 118
        %v2932 = vpop.permute.xlu0 %2931
        %2933 = vrot.lane.b32.xlu0 %v2878, 118
        %v2934 = vpop.permute.xlu0 %2933
        %2935 = vrot.lane.b32.xlu0 %v2879, 118
        %v2936 = vpop.permute.xlu0 %2935
        %2937 = vrot.lane.b32.xlu0 %v2880, 118
        %v2938 = vpop.permute.xlu0 %2937
        %2939 = vrot.lane.b32.xlu0 %v2881, 118
        %v2940 = vpop.permute.xlu0 %2939
        %2941 = vrot.lane.b32.xlu0 %v2882, 118
        %v2942 = vpop.permute.xlu0 %2941
        %vm2943 = vcmask 965632
        %v2944 = vsel %vm2943, %v2904, %v2906
        %v2945 = vsel %vm2943, %v2906, %v2908
        %v2946 = vsel %vm2943, %v2908, %v2910
        %v2947 = vsel %vm2943, %v2910, %v2912
        %v2948 = vsel %vm2943, %v2914, %v2916
        %v2949 = vsel %vm2943, %v2916, %v2918
        %v2950 = vsel %vm2943, %v2918, %v2920
        %v2951 = vsel %vm2943, %v2920, %v2922
        %v2952 = vsel %vm2943, %v2924, %v2926
        %v2953 = vsel %vm2943, %v2926, %v2928
        %v2954 = vsel %vm2943, %v2928, %v2930
        %v2955 = vsel %vm2943, %v2930, %v2932
        %v2956 = vsel %vm2943, %v2934, %v2936
        %v2957 = vsel %vm2943, %v2936, %v2938
        %v2958 = vsel %vm2943, %v2938, %v2940
        %v2959 = vsel %vm2943, %v2940, %v2942
        %v2980 = vmax.f32 %v2863, %v2944
        %v2981 = vmax.f32 %v2864, %v2945
        %v2982 = vmax.f32 %v2865, %v2946
        %v2983 = vmax.f32 %v2866, %v2947
        %v2984 = vmax.f32 %v2867, %v2912
        %v2985 = vmax.f32 %v2868, %v2948
        %v2986 = vmax.f32 %v2869, %v2949
        %v2987 = vmax.f32 %v2870, %v2950
        %v2988 = vmax.f32 %v2871, %v2951
        %v2989 = vmax.f32 %v2872, %v2922
        %v2990 = vmax.f32 %v2873, %v2952
        %v2991 = vmax.f32 %v2874, %v2953
        %v2992 = vmax.f32 %v2875, %v2954
        %v2993 = vmax.f32 %v2876, %v2955
        %v2994 = vmax.f32 %v2877, %v2932
        %v2995 = vmax.f32 %v2878, %v2956
        %v2996 = vmax.f32 %v2879, %v2957
        %v2997 = vmax.f32 %v2880, %v2958
        %v2998 = vmax.f32 %v2881, %v2959
        %v2999 = vmax.f32 %v2882, %v2942
        %v3000 = vpack.c.bf16 %v2985, %v2980
        %v3001 = vpack.c.bf16 %v2986, %v2981
        %v3002 = vpack.c.bf16 %v2987, %v2982
        %v3003 = vpack.c.bf16 %v2988, %v2983
        %v3004 = vpack.c.bf16 %v2989, %v2984
        %v3005 = vpack.c.bf16 %v2995, %v2990
        %v3006 = vpack.c.bf16 %v2996, %v2991
        %v3007 = vpack.c.bf16 %v2997, %v2992
        %v3008 = vpack.c.bf16 %v2998, %v2993
        %v3009 = vpack.c.bf16 %v2999, %v2994
        %v3010 = vld [vmem:[%s4] sm:$0xff]
        %v3011 = vld [vmem:[%s4 + $0x8] sm:$0xf]
        %v3012 = vld [vmem:[%s4 + $0xc] sm:$0xff]
        %v3013 = vld [vmem:[%s4 + $0x14] sm:$0xf]
        %v3014 = vld [vmem:[%s4 + $0x18] sm:$0xff]
        %v3015 = vld [vmem:[%s4 + $0x20] sm:$0xf]
        %v3016 = vld [vmem:[%s4 + $0x24] sm:$0xff]
        %v3017 = vld [vmem:[%s4 + $0x2c] sm:$0xf]
        %v3018 = vld [vmem:[%s4 + $0x30] sm:$0xff]
        %v3019 = vld [vmem:[%s4 + $0x38] sm:$0xf]
        %v3020 = vld [vmem:[%s4 + $0x3c] sm:$0xff]
        %v3021 = vld [vmem:[%s4 + $0x44] sm:$0xf]
        %v3022 = vld [vmem:[%s4 + $0x48] sm:$0xff]
        %v3023 = vld [vmem:[%s4 + $0x50] sm:$0xf]
        %v3024 = vld [vmem:[%s4 + $0x54] sm:$0xff]
        %v3025 = vld [vmem:[%s4 + $0x5c] sm:$0xf]
        %v3026 = vld [vmem:[%s4 + $0x60] sm:$0xff]
        %v3027 = vld [vmem:[%s4 + $0x68] sm:$0xf]
        %v3028 = vld [vmem:[%s4 + $0x6c] sm:$0xff]
        %v3029 = vld [vmem:[%s4 + $0x74] sm:$0xf]
        %v3030 = vld [vmem:[%s4 + $0x78] sm:$0xff]
        %v3031 = vld [vmem:[%s4 + $0x80] sm:$0xf]
        %v3032 = vld [vmem:[%s4 + $0x84] sm:$0xff]
        %v3033 = vld [vmem:[%s4 + $0x8c] sm:$0xf]
        %v3034 = vld [vmem:[%s4 + $0x90] sm:$0xff]
        %v3035 = vld [vmem:[%s4 + $0x98] sm:$0xf]
        %v3036 = vld [vmem:[%s4 + $0x9c] sm:$0xff]
        %v3037 = vld [vmem:[%s4 + $0xa4] sm:$0xf]
        %v3038 = vld [vmem:[%s4 + $0xa8] sm:$0xff]
        %v3039 = vld [vmem:[%s4 + $0xb0] sm:$0xf]
        %v3040 = vld [vmem:[%s4 + $0xb4] sm:$0xff]
        %v3041 = vld [vmem:[%s4 + $0xbc] sm:$0xf]
        %v3042 = vld [vmem:[%s4 + $0xc0] sm:$0xff]
        %v3043 = vld [vmem:[%s4 + $0xc8] sm:$0xf]
        %v3044 = vld [vmem:[%s4 + $0xcc] sm:$0xff]
        %v3045 = vld [vmem:[%s4 + $0xd4] sm:$0xf]
        %v3046 = vld [vmem:[%s4 + $0xd8] sm:$0xff]
        %v3047 = vld [vmem:[%s4 + $0xe0] sm:$0xf]
        %v3048 = vld [vmem:[%s4 + $0xe4] sm:$0xff]
        %v3049 = vld [vmem:[%s4 + $0xec] sm:$0xf]
        %v3050 = vld [vmem:[%s4 + $0xf0] sm:$0xff]
        %v3051 = vld [vmem:[%s4 + $0xf8] sm:$0xf]
        %v3052 = vld [vmem:[%s4 + $0xfc] sm:$0xff]
        %v3053 = vld [vmem:[%s4 + $0x104] sm:$0xf]
        %v3054 = vld [vmem:[%s4 + $0x108] sm:$0xff]
        %v3055 = vld [vmem:[%s4 + $0x110] sm:$0xf]
        %v3056 = vld [vmem:[%s4 + $0x114] sm:$0xff]
        %v3057 = vld [vmem:[%s4 + $0x11c] sm:$0xf]
        %v3058 = vld [vmem:[%s4 + $0x120] sm:$0xff]
        %v3059 = vld [vmem:[%s4 + $0x128] sm:$0xf]
        %v3060 = vld [vmem:[%s4 + $0x12c] sm:$0xff]
        %v3061 = vld [vmem:[%s4 + $0x134] sm:$0xf]
        %v3062 = vld [vmem:[%s4 + $0x138] sm:$0xff]
        %v3063 = vld [vmem:[%s4 + $0x140] sm:$0xf]
        %v3064 = vld [vmem:[%s4 + $0x144] sm:$0xff]
        %v3065 = vld [vmem:[%s4 + $0x14c] sm:$0xf]
        %v3066 = vld [vmem:[%s4 + $0x150] sm:$0xff]
        %v3067 = vld [vmem:[%s4 + $0x158] sm:$0xf]
        %v3068 = vld [vmem:[%s4 + $0x15c] sm:$0xff]
        %v3069 = vld [vmem:[%s4 + $0x164] sm:$0xf]
        %v3070 = vld [vmem:[%s4 + $0x168] sm:$0xff]
        %v3071 = vld [vmem:[%s4 + $0x170] sm:$0xf]
        %v3072 = vld [vmem:[%s4 + $0x174] sm:$0xff]
        %v3073 = vld [vmem:[%s4 + $0x17c] sm:$0xf]
        %v3074 = vld [vmem:[%s4 + $0x180] sm:$0xff]
        %v3075 = vld [vmem:[%s4 + $0x188] sm:$0xf]
        %v3076 = vld [vmem:[%s4 + $0x18c] sm:$0xff]
        %v3077 = vld [vmem:[%s4 + $0x194] sm:$0xf]
        %v3078 = vld [vmem:[%s4 + $0x198] sm:$0xff]
        %v3079 = vld [vmem:[%s4 + $0x1a0] sm:$0xf]
        %v3080 = vld [vmem:[%s4 + $0x1a4] sm:$0xff]
        %v3081 = vld [vmem:[%s4 + $0x1ac] sm:$0xf]
        %v3082 = vld [vmem:[%s4 + $0x1b0] sm:$0xff]
        %v3083 = vld [vmem:[%s4 + $0x1b8] sm:$0xf]
        %v3084 = vld [vmem:[%s4 + $0x1bc] sm:$0xff]
        %v3085 = vld [vmem:[%s4 + $0x1c4] sm:$0xf]
        %v3086 = vld [vmem:[%s4 + $0x1c8] sm:$0xff]
        %v3087 = vld [vmem:[%s4 + $0x1d0] sm:$0xf]
        %v3088 = vld [vmem:[%s4 + $0x1d4] sm:$0xff]
        %v3089 = vld [vmem:[%s4 + $0x1dc] sm:$0xf]
        %v3090 = vld [vmem:[%s4 + $0x1e0] sm:$0xff]
        %v3091 = vld [vmem:[%s4 + $0x1e8] sm:$0xf]
        %v3092 = vld [vmem:[%s4 + $0x1ec] sm:$0xff]
        %v3093 = vld [vmem:[%s4 + $0x1f4] sm:$0xf]
        %v3094 = vld [vmem:[%s4 + $0x1f8] sm:$0xff]
        %v3095 = vld [vmem:[%s4 + $0x200] sm:$0xf]
        %v3096 = vld [vmem:[%s4 + $0x204] sm:$0xff]
        %v3097 = vld [vmem:[%s4 + $0x20c] sm:$0xf]
        %v3098 = vld [vmem:[%s4 + $0x210] sm:$0xff]
        %v3099 = vld [vmem:[%s4 + $0x218] sm:$0xf]
        %v3100 = vld [vmem:[%s4 + $0x21c] sm:$0xff]
        %v3101 = vld [vmem:[%s4 + $0x224] sm:$0xf]
        %v3102 = vld [vmem:[%s4 + $0x228] sm:$0xff]
        %v3103 = vld [vmem:[%s4 + $0x230] sm:$0xf]
        %v3104 = vld [vmem:[%s4 + $0x234] sm:$0xff]
        %v3105 = vld [vmem:[%s4 + $0x23c] sm:$0xf]
        %v3106 = vld [vmem:[%s4 + $0x240] sm:$0xff]
        %v3107 = vld [vmem:[%s4 + $0x248] sm:$0xf]
        %v3108 = vld [vmem:[%s4 + $0x24c] sm:$0xff]
        %v3109 = vld [vmem:[%s4 + $0x254] sm:$0xf]
        %v3110 = vld [vmem:[%s4 + $0x258] sm:$0xff]
        %v3111 = vld [vmem:[%s4 + $0x260] sm:$0xf]
        %v3112 = vld [vmem:[%s4 + $0x264] sm:$0xff]
        %v3113 = vld [vmem:[%s4 + $0x26c] sm:$0xf]
        %v3114 = vld [vmem:[%s4 + $0x270] sm:$0xff]
        %v3115 = vld [vmem:[%s4 + $0x278] sm:$0xf]
        %v3116 = vld [vmem:[%s4 + $0x27c] sm:$0xff]
        %v3117 = vld [vmem:[%s4 + $0x284] sm:$0xf]
        %v3118 = vld [vmem:[%s4 + $0x288] sm:$0xff]
        %v3119 = vld [vmem:[%s4 + $0x290] sm:$0xf]
        %v3120 = vld [vmem:[%s4 + $0x294] sm:$0xff]
        %v3121 = vld [vmem:[%s4 + $0x29c] sm:$0xf]
        %v3122 = vld [vmem:[%s4 + $0x2a0] sm:$0xff]
        %v3123 = vld [vmem:[%s4 + $0x2a8] sm:$0xf]
        %v3124 = vld [vmem:[%s4 + $0x2ac] sm:$0xff]
        %v3125 = vld [vmem:[%s4 + $0x2b4] sm:$0xf]
        %v3126 = vld [vmem:[%s4 + $0x2b8] sm:$0xff]
        %v3127 = vld [vmem:[%s4 + $0x2c0] sm:$0xf]
        %v3128 = vld [vmem:[%s4 + $0x2c4] sm:$0xff]
        %v3129 = vld [vmem:[%s4 + $0x2cc] sm:$0xf]
        %v3130 = vld [vmem:[%s4 + $0x2d0] sm:$0xff]
        %v3131 = vld [vmem:[%s4 + $0x2d8] sm:$0xf]
        %v3132 = vld [vmem:[%s4 + $0x2dc] sm:$0xff]
        %v3133 = vld [vmem:[%s4 + $0x2e4] sm:$0xf]
        %v3134 = vld [vmem:[%s4 + $0x2e8] sm:$0xff]
        %v3135 = vld [vmem:[%s4 + $0x2f0] sm:$0xf]
        %v3136 = vld [vmem:[%s4 + $0x2f4] sm:$0xff]
        %v3137 = vld [vmem:[%s4 + $0x2fc] sm:$0xf]
        %v3138 = vld [vmem:[%s4 + $0x300] sm:$0xff]
        %v3139 = vld [vmem:[%s4 + $0x308] sm:$0xf]
        %v3140 = vld [vmem:[%s4 + $0x30c] sm:$0xff]
        %v3141 = vld [vmem:[%s4 + $0x314] sm:$0xf]
        %v3142 = vld [vmem:[%s4 + $0x318] sm:$0xff]
        %v3143 = vld [vmem:[%s4 + $0x320] sm:$0xf]
        %v3144 = vld [vmem:[%s4 + $0x324] sm:$0xff]
        %v3145 = vld [vmem:[%s4 + $0x32c] sm:$0xf]
        %v3146 = vld [vmem:[%s4 + $0x330] sm:$0xff]
        %v3147 = vld [vmem:[%s4 + $0x338] sm:$0xf]
        %v3148 = vld [vmem:[%s4 + $0x33c] sm:$0xff]
        %v3149 = vld [vmem:[%s4 + $0x344] sm:$0xf]
        %v3150 = vld [vmem:[%s4 + $0x348] sm:$0xff]
        %v3151 = vld [vmem:[%s4 + $0x350] sm:$0xf]
        %v3152 = vld [vmem:[%s4 + $0x354] sm:$0xff]
        %v3153 = vld [vmem:[%s4 + $0x35c] sm:$0xf]
        %v3154 = vld [vmem:[%s4 + $0x360] sm:$0xff]
        %v3155 = vld [vmem:[%s4 + $0x368] sm:$0xf]
        %v3156 = vld [vmem:[%s4 + $0x36c] sm:$0x77]
        %v3157 = vld [vmem:[%s4 + $0x374] sm:$0x7]
        %v3158 = vld [vmem:[#allocation9] sm:$0x7]
        %v3160 = vlaneseq
        %v3161 = vshrl.u32 %v3160, 7
        %v3162 = vsub.s32 0, %v3161
        %v3163 = vrot.slane %v3158, %v3162
        %v3164 = vlaneseq
        %v3165 = vshrl.u32 %v3164, 7
        %v3166 = vsub.s32 1, %v3165
        %v3167 = vrot.slane %v3158, %v3166
        %v3168 = vlaneseq
        %v3169 = vshrl.u32 %v3168, 7
        %v3170 = vsub.s32 2, %v3169
        %v3171 = vrot.slane %v3158, %v3170
        %v3323 = vunpack.c.l.b16 %v3010
        %v3324 = vunpack.c.h.b16 %v3010
        %v3325 = vunpack.c.l.b16 %v3011
        %v3326 = vunpack.c.l.b16 %v3012
        %v3327 = vunpack.c.h.b16 %v3012
        %v3328 = vunpack.c.l.b16 %v3013
        %v3329 = vunpack.c.l.b16 %v3014
        %v3330 = vunpack.c.h.b16 %v3014
        %v3331 = vunpack.c.l.b16 %v3015
        %v3332 = vunpack.c.l.b16 %v3016
        %v3333 = vunpack.c.h.b16 %v3016
        %v3334 = vunpack.c.l.b16 %v3017
        %v3335 = vunpack.c.l.b16 %v3018
        %v3336 = vunpack.c.h.b16 %v3018
        %v3337 = vunpack.c.l.b16 %v3019
        %v3338 = vunpack.c.l.b16 %v3020
        %v3339 = vunpack.c.h.b16 %v3020
        %v3340 = vunpack.c.l.b16 %v3021
        %v3341 = vunpack.c.l.b16 %v3022
        %v3342 = vunpack.c.h.b16 %v3022
        %v3343 = vunpack.c.l.b16 %v3023
        %v3344 = vunpack.c.l.b16 %v3024
        %v3345 = vunpack.c.h.b16 %v3024
        %v3346 = vunpack.c.l.b16 %v3025
        %v3347 = vunpack.c.l.b16 %v3026
        %v3348 = vunpack.c.h.b16 %v3026
        %v3349 = vunpack.c.l.b16 %v3027
        %v3350 = vunpack.c.l.b16 %v3028
        %v3351 = vunpack.c.h.b16 %v3028
        %v3352 = vunpack.c.l.b16 %v3029
        %v3353 = vunpack.c.l.b16 %v3030
        %v3354 = vunpack.c.h.b16 %v3030
        %v3355 = vunpack.c.l.b16 %v3031
        %v3356 = vunpack.c.l.b16 %v3032
        %v3357 = vunpack.c.h.b16 %v3032
        %v3358 = vunpack.c.l.b16 %v3033
        %v3359 = vunpack.c.l.b16 %v3034
        %v3360 = vunpack.c.h.b16 %v3034
        %v3361 = vunpack.c.l.b16 %v3035
        %v3362 = vunpack.c.l.b16 %v3036
        %v3363 = vunpack.c.h.b16 %v3036
        %v3364 = vunpack.c.l.b16 %v3037
        %v3365 = vunpack.c.l.b16 %v3038
        %v3366 = vunpack.c.h.b16 %v3038
        %v3367 = vunpack.c.l.b16 %v3039
        %v3368 = vunpack.c.l.b16 %v3040
        %v3369 = vunpack.c.h.b16 %v3040
        %v3370 = vunpack.c.l.b16 %v3041
        %v3371 = vunpack.c.l.b16 %v3042
        %v3372 = vunpack.c.h.b16 %v3042
        %v3373 = vunpack.c.l.b16 %v3043
        %v3374 = vunpack.c.l.b16 %v3044
        %v3375 = vunpack.c.h.b16 %v3044
        %v3376 = vunpack.c.l.b16 %v3045
        %v3377 = vunpack.c.l.b16 %v3046
        %v3378 = vunpack.c.h.b16 %v3046
        %v3379 = vunpack.c.l.b16 %v3047
        %v3380 = vunpack.c.l.b16 %v3048
        %v3381 = vunpack.c.h.b16 %v3048
        %v3382 = vunpack.c.l.b16 %v3049
        %v3383 = vunpack.c.l.b16 %v3050
        %v3384 = vunpack.c.h.b16 %v3050
        %v3385 = vunpack.c.l.b16 %v3051
        %v3386 = vunpack.c.l.b16 %v3052
        %v3387 = vunpack.c.h.b16 %v3052
        %v3388 = vunpack.c.l.b16 %v3053
        %v3389 = vunpack.c.l.b16 %v3054
        %v3390 = vunpack.c.h.b16 %v3054
        %v3391 = vunpack.c.l.b16 %v3055
        %v3392 = vunpack.c.l.b16 %v3056
        %v3393 = vunpack.c.h.b16 %v3056
        %v3394 = vunpack.c.l.b16 %v3057
        %v3395 = vunpack.c.l.b16 %v3058
        %v3396 = vunpack.c.h.b16 %v3058
        %v3397 = vunpack.c.l.b16 %v3059
        %v3398 = vunpack.c.l.b16 %v3060
        %v3399 = vunpack.c.h.b16 %v3060
        %v3400 = vunpack.c.l.b16 %v3061
        %v3401 = vunpack.c.l.b16 %v3062
        %v3402 = vunpack.c.h.b16 %v3062
        %v3403 = vunpack.c.l.b16 %v3063
        %v3404 = vunpack.c.l.b16 %v3064
        %v3405 = vunpack.c.h.b16 %v3064
        %v3406 = vunpack.c.l.b16 %v3065
        %v3407 = vunpack.c.l.b16 %v3066
        %v3408 = vunpack.c.h.b16 %v3066
        %v3409 = vunpack.c.l.b16 %v3067
        %v3410 = vunpack.c.l.b16 %v3068
        %v3411 = vunpack.c.h.b16 %v3068
        %v3412 = vunpack.c.l.b16 %v3069
        %v3413 = vunpack.c.l.b16 %v3070
        %v3414 = vunpack.c.h.b16 %v3070
        %v3415 = vunpack.c.l.b16 %v3071
        %v3416 = vunpack.c.l.b16 %v3072
        %v3417 = vunpack.c.h.b16 %v3072
        %v3418 = vunpack.c.l.b16 %v3073
        %v3419 = vunpack.c.l.b16 %v3074
        %v3420 = vunpack.c.h.b16 %v3074
        %v3421 = vunpack.c.l.b16 %v3075
        %v3422 = vunpack.c.l.b16 %v3076
        %v3423 = vunpack.c.h.b16 %v3076
        %v3424 = vunpack.c.l.b16 %v3077
        %v3425 = vunpack.c.l.b16 %v3078
        %v3426 = vunpack.c.h.b16 %v3078
        %v3427 = vunpack.c.l.b16 %v3079
        %v3428 = vunpack.c.l.b16 %v3080
        %v3429 = vunpack.c.h.b16 %v3080
        %v3430 = vunpack.c.l.b16 %v3081
        %v3431 = vunpack.c.l.b16 %v3082
        %v3432 = vunpack.c.h.b16 %v3082
        %v3433 = vunpack.c.l.b16 %v3083
        %v3434 = vunpack.c.l.b16 %v3084
        %v3435 = vunpack.c.h.b16 %v3084
        %v3436 = vunpack.c.l.b16 %v3085
        %v3437 = vunpack.c.l.b16 %v3086
        %v3438 = vunpack.c.h.b16 %v3086
        %v3439 = vunpack.c.l.b16 %v3087
        %v3440 = vunpack.c.l.b16 %v3088
        %v3441 = vunpack.c.h.b16 %v3088
        %v3442 = vunpack.c.l.b16 %v3089
        %v3443 = vunpack.c.l.b16 %v3090
        %v3444 = vunpack.c.h.b16 %v3090
        %v3445 = vunpack.c.l.b16 %v3091
        %v3446 = vunpack.c.l.b16 %v3092
        %v3447 = vunpack.c.h.b16 %v3092
        %v3448 = vunpack.c.l.b16 %v3093
        %v3449 = vunpack.c.l.b16 %v3094
        %v3450 = vunpack.c.h.b16 %v3094
        %v3451 = vunpack.c.l.b16 %v3095
        %v3452 = vunpack.c.l.b16 %v3096
        %v3453 = vunpack.c.h.b16 %v3096
        %v3454 = vunpack.c.l.b16 %v3097
        %v3455 = vunpack.c.l.b16 %v3098
        %v3456 = vunpack.c.h.b16 %v3098
        %v3457 = vunpack.c.l.b16 %v3099
        %v3458 = vunpack.c.l.b16 %v3100
        %v3459 = vunpack.c.h.b16 %v3100
        %v3460 = vunpack.c.l.b16 %v3101
        %v3461 = vunpack.c.l.b16 %v3102
        %v3462 = vunpack.c.h.b16 %v3102
        %v3463 = vunpack.c.l.b16 %v3103
        %v3464 = vunpack.c.l.b16 %v3104
        %v3465 = vunpack.c.h.b16 %v3104
        %v3466 = vunpack.c.l.b16 %v3105
        %v3467 = vunpack.c.l.b16 %v3106
        %v3468 = vunpack.c.h.b16 %v3106
        %v3469 = vunpack.c.l.b16 %v3107
        %v3470 = vunpack.c.l.b16 %v3108
        %v3471 = vunpack.c.h.b16 %v3108
        %v3472 = vunpack.c.l.b16 %v3109
        %v3473 = vunpack.c.l.b16 %v3110
        %v3474 = vunpack.c.h.b16 %v3110
        %v3475 = vunpack.c.l.b16 %v3111
        %v3476 = vunpack.c.l.b16 %v3112
        %v3477 = vunpack.c.h.b16 %v3112
        %v3478 = vunpack.c.l.b16 %v3113
        %v3479 = vunpack.c.l.b16 %v3114
        %v3480 = vunpack.c.h.b16 %v3114
        %v3481 = vunpack.c.l.b16 %v3115
        %v3482 = vunpack.c.l.b16 %v3116
        %v3483 = vunpack.c.h.b16 %v3116
        %v3484 = vunpack.c.l.b16 %v3117
        %v3485 = vunpack.c.l.b16 %v3118
        %v3486 = vunpack.c.h.b16 %v3118
        %v3487 = vunpack.c.l.b16 %v3119
        %v3488 = vunpack.c.l.b16 %v3120
        %v3489 = vunpack.c.h.b16 %v3120
        %v3490 = vunpack.c.l.b16 %v3121
        %v3491 = vunpack.c.l.b16 %v3122
        %v3492 = vunpack.c.h.b16 %v3122
        %v3493 = vunpack.c.l.b16 %v3123
        %v3494 = vunpack.c.l.b16 %v3124
        %v3495 = vunpack.c.h.b16 %v3124
        %v3496 = vunpack.c.l.b16 %v3125
        %v3497 = vunpack.c.l.b16 %v3126
        %v3498 = vunpack.c.h.b16 %v3126
        %v3499 = vunpack.c.l.b16 %v3127
        %v3500 = vunpack.c.l.b16 %v3128
        %v3501 = vunpack.c.h.b16 %v3128
        %v3502 = vunpack.c.l.b16 %v3129
        %v3503 = vunpack.c.l.b16 %v3130
        %v3504 = vunpack.c.h.b16 %v3130
        %v3505 = vunpack.c.l.b16 %v3131
        %v3506 = vunpack.c.l.b16 %v3132
        %v3507 = vunpack.c.h.b16 %v3132
        %v3508 = vunpack.c.l.b16 %v3133
        %v3509 = vunpack.c.l.b16 %v3134
        %v3510 = vunpack.c.h.b16 %v3134
        %v3511 = vunpack.c.l.b16 %v3135
        %v3512 = vunpack.c.l.b16 %v3136
        %v3513 = vunpack.c.h.b16 %v3136
        %v3514 = vunpack.c.l.b16 %v3137
        %v3515 = vunpack.c.l.b16 %v3138
        %v3516 = vunpack.c.h.b16 %v3138
        %v3517 = vunpack.c.l.b16 %v3139
        %v3518 = vunpack.c.l.b16 %v3140
        %v3519 = vunpack.c.h.b16 %v3140
        %v3520 = vunpack.c.l.b16 %v3141
        %v3521 = vunpack.c.l.b16 %v3142
        %v3522 = vunpack.c.h.b16 %v3142
        %v3523 = vunpack.c.l.b16 %v3143
        %v3524 = vunpack.c.l.b16 %v3144
        %v3525 = vunpack.c.h.b16 %v3144
        %v3526 = vunpack.c.l.b16 %v3145
        %v3527 = vunpack.c.l.b16 %v3146
        %v3528 = vunpack.c.h.b16 %v3146
        %v3529 = vunpack.c.l.b16 %v3147
        %v3530 = vunpack.c.l.b16 %v3148
        %v3531 = vunpack.c.h.b16 %v3148
        %v3532 = vunpack.c.l.b16 %v3149
        %v3533 = vunpack.c.l.b16 %v3150
        %v3534 = vunpack.c.h.b16 %v3150
        %v3535 = vunpack.c.l.b16 %v3151
        %v3536 = vunpack.c.l.b16 %v3152
        %v3537 = vunpack.c.h.b16 %v3152
        %v3538 = vunpack.c.l.b16 %v3153
        %v3539 = vunpack.c.l.b16 %v3154
        %v3540 = vunpack.c.h.b16 %v3154
        %v3541 = vunpack.c.l.b16 %v3155
        %v3542 = vunpack.c.l.b16 %v3156
        %v3543 = vunpack.c.h.b16 %v3156
        %v3544 = vunpack.c.l.b16 %v3157
        %v3545 = vpack.c.b16 %v3326, %v3323
        %v3546 = vpack.c.b16 %v3327, %v3324
        %v3547 = vpack.c.b16 %v3328, %v3325
        %v3548 = vpack.c.b16 %v3332, %v3329
        %v3549 = vpack.c.b16 %v3333, %v3330
        %v3550 = vpack.c.b16 %v3334, %v3331
        %v3551 = vpack.c.b16 %v3338, %v3335
        %v3552 = vpack.c.b16 %v3339, %v3336
        %v3553 = vpack.c.b16 %v3340, %v3337
        %v3554 = vpack.c.b16 %v3344, %v3341
        %v3555 = vpack.c.b16 %v3345, %v3342
        %v3556 = vpack.c.b16 %v3346, %v3343
        %v3557 = vpack.c.b16 %v3350, %v3347
        %v3558 = vpack.c.b16 %v3351, %v3348
        %v3559 = vpack.c.b16 %v3352, %v3349
        %v3560 = vpack.c.b16 %v3356, %v3353
        %v3561 = vpack.c.b16 %v3357, %v3354
        %v3562 = vpack.c.b16 %v3358, %v3355
        %v3563 = vpack.c.b16 %v3362, %v3359
        %v3564 = vpack.c.b16 %v3363, %v3360
        %v3565 = vpack.c.b16 %v3364, %v3361
        %v3566 = vpack.c.b16 %v3368, %v3365
        %v3567 = vpack.c.b16 %v3369, %v3366
        %v3568 = vpack.c.b16 %v3370, %v3367
        %v3569 = vpack.c.b16 %v3374, %v3371
        %v3570 = vpack.c.b16 %v3375, %v3372
        %v3571 = vpack.c.b16 %v3376, %v3373
        %v3572 = vpack.c.b16 %v3380, %v3377
        %v3573 = vpack.c.b16 %v3381, %v3378
        %v3574 = vpack.c.b16 %v3382, %v3379
        %v3575 = vpack.c.b16 %v3386, %v3383
        %v3576 = vpack.c.b16 %v3387, %v3384
        %v3577 = vpack.c.b16 %v3388, %v3385
        %v3578 = vpack.c.b16 %v3392, %v3389
        %v3579 = vpack.c.b16 %v3393, %v3390
        %v3580 = vpack.c.b16 %v3394, %v3391
        %v3581 = vpack.c.b16 %v3398, %v3395
        %v3582 = vpack.c.b16 %v3399, %v3396
        %v3583 = vpack.c.b16 %v3400, %v3397
        %v3584 = vpack.c.b16 %v3404, %v3401
        %v3585 = vpack.c.b16 %v3405, %v3402
        %v3586 = vpack.c.b16 %v3406, %v3403
        %v3587 = vpack.c.b16 %v3410, %v3407
        %v3588 = vpack.c.b16 %v3411, %v3408
        %v3589 = vpack.c.b16 %v3412, %v3409
        %v3590 = vpack.c.b16 %v3416, %v3413
        %v3591 = vpack.c.b16 %v3417, %v3414
        %v3592 = vpack.c.b16 %v3418, %v3415
        %v3593 = vpack.c.b16 %v3422, %v3419
        %v3594 = vpack.c.b16 %v3423, %v3420
        %v3595 = vpack.c.b16 %v3424, %v3421
        %v3596 = vpack.c.b16 %v3428, %v3425
        %v3597 = vpack.c.b16 %v3429, %v3426
        %v3598 = vpack.c.b16 %v3430, %v3427
        %v3599 = vpack.c.b16 %v3434, %v3431
        %v3600 = vpack.c.b16 %v3435, %v3432
        %v3601 = vpack.c.b16 %v3436, %v3433
        %v3602 = vpack.c.b16 %v3440, %v3437
        %v3603 = vpack.c.b16 %v3441, %v3438
        %v3604 = vpack.c.b16 %v3442, %v3439
        %v3605 = vpack.c.b16 %v3446, %v3443
        %v3606 = vpack.c.b16 %v3447, %v3444
        %v3607 = vpack.c.b16 %v3448, %v3445
        %v3608 = vpack.c.b16 %v3452, %v3449
        %v3609 = vpack.c.b16 %v3453, %v3450
        %v3610 = vpack.c.b16 %v3454, %v3451
        %v3611 = vpack.c.b16 %v3458, %v3455
        %v3612 = vpack.c.b16 %v3459, %v3456
        %v3613 = vpack.c.b16 %v3460, %v3457
        %v3614 = vpack.c.b16 %v3464, %v3461
        %v3615 = vpack.c.b16 %v3465, %v3462
        %v3616 = vpack.c.b16 %v3466, %v3463
        %v3617 = vpack.c.b16 %v3470, %v3467
        %v3618 = vpack.c.b16 %v3471, %v3468
        %v3619 = vpack.c.b16 %v3472, %v3469
        %v3620 = vpack.c.b16 %v3476, %v3473
        %v3621 = vpack.c.b16 %v3477, %v3474
        %v3622 = vpack.c.b16 %v3478, %v3475
        %v3623 = vpack.c.b16 %v3482, %v3479
        %v3624 = vpack.c.b16 %v3483, %v3480
        %v3625 = vpack.c.b16 %v3484, %v3481
        %v3626 = vpack.c.b16 %v3488, %v3485
        %v3627 = vpack.c.b16 %v3489, %v3486
        %v3628 = vpack.c.b16 %v3490, %v3487
        %v3629 = vpack.c.b16 %v3494, %v3491
        %v3630 = vpack.c.b16 %v3495, %v3492
        %v3631 = vpack.c.b16 %v3496, %v3493
        %v3632 = vpack.c.b16 %v3500, %v3497
        %v3633 = vpack.c.b16 %v3501, %v3498
        %v3634 = vpack.c.b16 %v3502, %v3499
        %v3635 = vpack.c.b16 %v3506, %v3503
        %v3636 = vpack.c.b16 %v3507, %v3504
        %v3637 = vpack.c.b16 %v3508, %v3505
        %v3638 = vpack.c.b16 %v3512, %v3509
        %v3639 = vpack.c.b16 %v3513, %v3510
        %v3640 = vpack.c.b16 %v3514, %v3511
        %v3641 = vpack.c.b16 %v3518, %v3515
        %v3642 = vpack.c.b16 %v3519, %v3516
        %v3643 = vpack.c.b16 %v3520, %v3517
        %v3644 = vpack.c.b16 %v3524, %v3521
        %v3645 = vpack.c.b16 %v3525, %v3522
        %v3646 = vpack.c.b16 %v3526, %v3523
        %v3647 = vpack.c.b16 %v3530, %v3527
        %v3648 = vpack.c.b16 %v3531, %v3528
        %v3649 = vpack.c.b16 %v3532, %v3529
        %v3650 = vpack.c.b16 %v3536, %v3533
        %v3651 = vpack.c.b16 %v3537, %v3534
        %v3652 = vpack.c.b16 %v3538, %v3535
        %v3653 = vpack.c.b16 %v3542, %v3539
        %v3654 = vpack.c.b16 %v3543, %v3540
        %v3655 = vpack.c.b16 %v3544, %v3541
        %vm3764 = vcmask 637952
        %v3766 = vsel %vm3764, %v3004, 0
        %v3769 = vsel %vm3764, %v3009, 0
        %vm3771 = vcmask 1046528
        %v3773 = vsel %vm3771, %v3653, 0
        %v3776 = vsel %vm3771, %v3654, 0
        %v3779 = vsel %vm3771, %v3655, 0
        %3781 = vmatprep.subr.bf16.mxu0 %v3567
        %3782 = vmatpush1.bf16.msra.mxu0 %v3566
        %3783 = vmatprep.subr.bf16.mxu0 %v3564
        %3784 = vmatpush1.bf16.msra.mxu0 %v3563
        %3785 = vmatprep.subr.bf16.mxu0 %v3561
        %3786 = vmatpush1.bf16.msra.mxu0 %v3560
        %3787 = vmatprep.subr.bf16.mxu0 %v3558
        %3788 = vmatpush1.bf16.msra.mxu0 %v3557
        %3789 = vmatprep.subr.bf16.mxu0 %v3555
        %3790 = vmatpush1.bf16.msra.mxu0 %v3554
        %3791 = vmatprep.subr.bf16.mxu0 %v3552
        %3792 = vmatpush1.bf16.msra.mxu0 %v3551
        %3793 = vmatprep.subr.bf16.mxu0 %v3549
        %3794 = vmatpush1.bf16.msra.mxu0 %v3548
        %3795 = vmatprep.subr.bf16.mxu0 %v3546
        %3796 = vmatpush1.bf16.msra.mxu0 %v3545
        %3797 = vmatprep.subr.bf16.mxu0 %v3591
        %3798 = vmatpush2.bf16.msra.mxu0 %v3590
        %3799 = vmatprep.subr.bf16.mxu0 %v3588
        %3800 = vmatpush2.bf16.msra.mxu0 %v3587
        %3801 = vmatprep.subr.bf16.mxu0 %v3585
        %3802 = vmatpush2.bf16.msra.mxu0 %v3584
        %3803 = vmatprep.subr.bf16.mxu0 %v3582
        %3804 = vmatpush2.bf16.msra.mxu0 %v3581
        %3805 = vmatprep.subr.bf16.mxu0 %v3579
        %3806 = vmatpush2.bf16.msra.mxu0 %v3578
        %3807 = vmatprep.subr.bf16.mxu0 %v3576
        %3808 = vmatpush2.bf16.msra.mxu0 %v3575
        %3809 = vmatprep.subr.bf16.mxu0 %v3573
        %3810 = vmatpush2.bf16.msra.mxu0 %v3572
        %3811 = vmatprep.subr.bf16.mxu0 %v3570
        %3812 = vmatpush2.bf16.msra.mxu0 %v3569
        %3813 = vmatprep.mubr.bf16.mxu0 %v3001
        %3814 = vmatmul.mubr.bf16.gmra.mxu0 %v3000
        %v3815 = vpop.f32.mrf.mxu0
        %v3816 = vadd.f32 %v3163, %v3815
        %v3817 = vpop.f32.mrf.mxu0
        %v3818 = vadd.f32 %v3167, %v3817
        %v3819 = vpop.f32.mrf.mxu0
        %v3820 = vadd.f32 %v3163, %v3819
        %v3821 = vpop.f32.mrf.mxu0
        %v3822 = vadd.f32 %v3167, %v3821
        %3823 = vmatprep.mubr.bf16.mxu0 %v3006
        %3824 = vmatmul.mubr.bf16.gmra.mxu0 %v3005
        %v3825 = vpop.f32.mrf.mxu0
        %v3826 = vadd.f32 %v3163, %v3825
        %v3827 = vpop.f32.mrf.mxu0
        %v3828 = vadd.f32 %v3167, %v3827
        %v3829 = vpop.f32.mrf.mxu0
        %v3830 = vadd.f32 %v3163, %v3829
        %v3831 = vpop.f32.mrf.mxu0
        %v3832 = vadd.f32 %v3167, %v3831
        %3833 = vdwg.mxu0
        %3834 = vmatprep.subr.bf16.mxu0 %v3615
        %3835 = vmatpush1.bf16.msra.mxu0 %v3614
        %3836 = vmatprep.subr.bf16.mxu0 %v3612
        %3837 = vmatpush1.bf16.msra.mxu0 %v3611
        %3838 = vmatprep.subr.bf16.mxu0 %v3609
        %3839 = vmatpush1.bf16.msra.mxu0 %v3608
        %3840 = vmatprep.subr.bf16.mxu0 %v3606
        %3841 = vmatpush1.bf16.msra.mxu0 %v3605
        %3842 = vmatprep.subr.bf16.mxu0 %v3603
        %3843 = vmatpush1.bf16.msra.mxu0 %v3602
        %3844 = vmatprep.subr.bf16.mxu0 %v3600
        %3845 = vmatpush1.bf16.msra.mxu0 %v3599
        %3846 = vmatprep.subr.bf16.mxu0 %v3597
        %3847 = vmatpush1.bf16.msra.mxu0 %v3596
        %3848 = vmatprep.subr.bf16.mxu0 %v3594
        %3849 = vmatpush1.bf16.msra.mxu0 %v3593
        %3850 = vmatprep.subr.bf16.mxu0 %v3639
        %3851 = vmatpush2.bf16.msra.mxu0 %v3638
        %3852 = vmatprep.subr.bf16.mxu0 %v3636
        %3853 = vmatpush2.bf16.msra.mxu0 %v3635
        %3854 = vmatprep.subr.bf16.mxu0 %v3633
        %3855 = vmatpush2.bf16.msra.mxu0 %v3632
        %3856 = vmatprep.subr.bf16.mxu0 %v3630
        %3857 = vmatpush2.bf16.msra.mxu0 %v3629
        %3858 = vmatprep.subr.bf16.mxu0 %v3627
        %3859 = vmatpush2.bf16.msra.mxu0 %v3626
        %3860 = vmatprep.subr.bf16.mxu0 %v3624
        %3861 = vmatpush2.bf16.msra.mxu0 %v3623
        %3862 = vmatprep.subr.bf16.mxu0 %v3621
        %3863 = vmatpush2.bf16.msra.mxu0 %v3620
        %3864 = vmatprep.subr.bf16.mxu0 %v3618
        %3865 = vmatpush2.bf16.msra.mxu0 %v3617
        %3866 = vmatprep.mubr.bf16.mxu0 %v3003
        %3867 = vmatmul.mubr.bf16.gmra.mxu0 %v3002
        %v3868 = vpop.f32.mrf.mxu0
        %v3869 = vadd.f32 %v3816, %v3868
        %v3870 = vpop.f32.mrf.mxu0
        %v3871 = vadd.f32 %v3818, %v3870
        %v3872 = vpop.f32.mrf.mxu0
        %v3873 = vadd.f32 %v3820, %v3872
        %v3874 = vpop.f32.mrf.mxu0
        %v3875 = vadd.f32 %v3822, %v3874
        %3876 = vmatprep.mubr.bf16.mxu0 %v3008
        %3877 = vmatmul.mubr.bf16.gmra.mxu0 %v3007
        %v3878 = vpop.f32.mrf.mxu0
        %v3879 = vadd.f32 %v3826, %v3878
        %v3880 = vpop.f32.mrf.mxu0
        %v3881 = vadd.f32 %v3828, %v3880
        %v3882 = vpop.f32.mrf.mxu0
        %v3883 = vadd.f32 %v3830, %v3882
        %v3884 = vpop.f32.mrf.mxu0
        %v3885 = vadd.f32 %v3832, %v3884
        %3886 = vdwg.mxu0
        %3887 = vmatprep.subr.bf16.mxu0 0
        %3888 = vmatpush1.bf16.msra.mxu0 0
        %3889 = vmatprep.subr.bf16.mxu0 0
        %3890 = vmatpush1.bf16.msra.mxu0 0
        %3891 = vmatprep.subr.bf16.mxu0 0
        %3892 = vmatpush1.bf16.msra.mxu0 0
        %3893 = vmatprep.subr.bf16.mxu0 %v3776
        %3894 = vmatpush1.bf16.msra.mxu0 %v3773
        %3895 = vmatprep.subr.bf16.mxu0 %v3651
        %3896 = vmatpush1.bf16.msra.mxu0 %v3650
        %3897 = vmatprep.subr.bf16.mxu0 %v3648
        %3898 = vmatpush1.bf16.msra.mxu0 %v3647
        %3899 = vmatprep.subr.bf16.mxu0 %v3645
        %3900 = vmatpush1.bf16.msra.mxu0 %v3644
        %3901 = vmatprep.subr.bf16.mxu0 %v3642
        %3902 = vmatpush1.bf16.msra.mxu0 %v3641
        %3903 = vmatprep.subr.bf16.mxu0 0
        %3904 = vmatpush2.bf16.msra.mxu0 0
        %3905 = vmatprep.subr.bf16.mxu0 0
        %3906 = vmatpush2.bf16.msra.mxu0 0
        %3907 = vmatprep.subr.bf16.mxu0 0
        %3908 = vmatpush2.bf16.msra.mxu0 0
        %3909 = vmatprep.subr.bf16.mxu0 0
        %3910 = vmatpush2.bf16.msra.mxu0 0
        %3911 = vmatprep.subr.bf16.mxu0 0
        %3912 = vmatpush2.bf16.msra.mxu0 0
        %3913 = vmatprep.subr.bf16.mxu0 0
        %3914 = vmatpush2.bf16.msra.mxu0 0
        %3915 = vmatprep.subr.bf16.mxu0 0
        %3916 = vmatpush2.bf16.msra.mxu0 0
        %3917 = vmatprep.subr.bf16.mxu0 0
        %3918 = vmatpush2.bf16.msra.mxu0 0
        %3919 = vmatprep.mubr.bf16.mxu0 0
        %3920 = vmatmul.mubr.bf16.gmra.mxu0 %v3766
        %v3921 = vpop.f32.mrf.mxu0
        %v3922 = vadd.f32 %v3869, %v3921
        %v3923 = vpop.f32.mrf.mxu0
        %v3924 = vadd.f32 %v3871, %v3923
        %v3925 = vpop.f32.mrf.mxu0
        %v3926 = vadd.f32 %v3873, %v3925
        %v3927 = vpop.f32.mrf.mxu0
        %v3928 = vadd.f32 %v3875, %v3927
        %3929 = vmatprep.mubr.bf16.mxu0 0
        %3930 = vmatmul.mubr.bf16.gmra.mxu0 %v3769
        %v3931 = vpop.f32.mrf.mxu0
        %v3932 = vadd.f32 %v3879, %v3931
        %v3933 = vpop.f32.mrf.mxu0
        %v3934 = vadd.f32 %v3881, %v3933
        %v3935 = vpop.f32.mrf.mxu0
        %v3936 = vadd.f32 %v3883, %v3935
        %v3937 = vpop.f32.mrf.mxu0
        %v3938 = vadd.f32 %v3885, %v3937
        %3939 = vdwg.mxu0
        %3940 = vmatprep.subr.bf16.mxu0 0
        %3941 = vmatpush1.bf16.msra.mxu0 %v3568
        %3942 = vmatprep.subr.bf16.mxu0 0
        %3943 = vmatpush1.bf16.msra.mxu0 %v3565
        %3944 = vmatprep.subr.bf16.mxu0 0
        %3945 = vmatpush1.bf16.msra.mxu0 %v3562
        %3946 = vmatprep.subr.bf16.mxu0 0
        %3947 = vmatpush1.bf16.msra.mxu0 %v3559
        %3948 = vmatprep.subr.bf16.mxu0 0
        %3949 = vmatpush1.bf16.msra.mxu0 %v3556
        %3950 = vmatprep.subr.bf16.mxu0 0
        %3951 = vmatpush1.bf16.msra.mxu0 %v3553
        %3952 = vmatprep.subr.bf16.mxu0 0
        %3953 = vmatpush1.bf16.msra.mxu0 %v3550
        %3954 = vmatprep.subr.bf16.mxu0 0
        %3955 = vmatpush1.bf16.msra.mxu0 %v3547
        %3956 = vmatprep.subr.bf16.mxu0 0
        %3957 = vmatpush2.bf16.msra.mxu0 %v3592
        %3958 = vmatprep.subr.bf16.mxu0 0
        %3959 = vmatpush2.bf16.msra.mxu0 %v3589
        %3960 = vmatprep.subr.bf16.mxu0 0
        %3961 = vmatpush2.bf16.msra.mxu0 %v3586
        %3962 = vmatprep.subr.bf16.mxu0 0
        %3963 = vmatpush2.bf16.msra.mxu0 %v3583
        %3964 = vmatprep.subr.bf16.mxu0 0
        %3965 = vmatpush2.bf16.msra.mxu0 %v3580
        %3966 = vmatprep.subr.bf16.mxu0 0
        %3967 = vmatpush2.bf16.msra.mxu0 %v3577
        %3968 = vmatprep.subr.bf16.mxu0 0
        %3969 = vmatpush2.bf16.msra.mxu0 %v3574
        %3970 = vmatprep.subr.bf16.mxu0 0
        %3971 = vmatpush2.bf16.msra.mxu0 %v3571
        %3972 = vmatprep.mubr.bf16.mxu0 %v3001
        %3973 = vmatmul.mubr.bf16.gmra.mxu0 %v3000
        %v3974 = vpop.f32.mrf.mxu0
        %v3975 = vadd.f32 %v3171, %v3974
        %v3976 = vpop.f32.mrf.mxu0
        %v3977 = vpop.f32.mrf.mxu0
        %v3978 = vadd.f32 %v3171, %v3977
        %v3979 = vpop.f32.mrf.mxu0
        %3980 = vmatprep.mubr.bf16.mxu0 %v3006
        %3981 = vmatmul.mubr.bf16.gmra.mxu0 %v3005
        %v3982 = vpop.f32.mrf.mxu0
        %v3983 = vadd.f32 %v3171, %v3982
        %v3984 = vpop.f32.mrf.mxu0
        %v3985 = vpop.f32.mrf.mxu0
        %v3986 = vadd.f32 %v3171, %v3985
        %v3987 = vpop.f32.mrf.mxu0
        %3988 = vdwg.mxu0
        %3989 = vmatprep.subr.bf16.mxu0 0
        %3990 = vmatpush1.bf16.msra.mxu0 %v3616
        %3991 = vmatprep.subr.bf16.mxu0 0
        %3992 = vmatpush1.bf16.msra.mxu0 %v3613
        %3993 = vmatprep.subr.bf16.mxu0 0
        %3994 = vmatpush1.bf16.msra.mxu0 %v3610
        %3995 = vmatprep.subr.bf16.mxu0 0
        %3996 = vmatpush1.bf16.msra.mxu0 %v3607
        %3997 = vmatprep.subr.bf16.mxu0 0
        %3998 = vmatpush1.bf16.msra.mxu0 %v3604
        %3999 = vmatprep.subr.bf16.mxu0 0
        %4000 = vmatpush1.bf16.msra.mxu0 %v3601
        %4001 = vmatprep.subr.bf16.mxu0 0
        %4002 = vmatpush1.bf16.msra.mxu0 %v3598
        %4003 = vmatprep.subr.bf16.mxu0 0
        %4004 = vmatpush1.bf16.msra.mxu0 %v3595
        %4005 = vmatprep.subr.bf16.mxu0 0
        %4006 = vmatpush2.bf16.msra.mxu0 %v3640
        %4007 = vmatprep.subr.bf16.mxu0 0
        %4008 = vmatpush2.bf16.msra.mxu0 %v3637
        %4009 = vmatprep.subr.bf16.mxu0 0
        %4010 = vmatpush2.bf16.msra.mxu0 %v3634
        %4011 = vmatprep.subr.bf16.mxu0 0
        %4012 = vmatpush2.bf16.msra.mxu0 %v3631
        %4013 = vmatprep.subr.bf16.mxu0 0
        %4014 = vmatpush2.bf16.msra.mxu0 %v3628
        %4015 = vmatprep.subr.bf16.mxu0 0
        %4016 = vmatpush2.bf16.msra.mxu0 %v3625
        %4017 = vmatprep.subr.bf16.mxu0 0
        %4018 = vmatpush2.bf16.msra.mxu0 %v3622
        %4019 = vmatprep.subr.bf16.mxu0 0
        %4020 = vmatpush2.bf16.msra.mxu0 %v3619
        %4021 = vmatprep.mubr.bf16.mxu0 %v3003
        %4022 = vmatmul.mubr.bf16.gmra.mxu0 %v3002
        %v4023 = vpop.f32.mrf.mxu0
        %v4024 = vadd.f32 %v3975, %v4023
        %v4025 = vpop.f32.mrf.mxu0
        %v4026 = vpop.f32.mrf.mxu0
        %v4027 = vadd.f32 %v3978, %v4026
        %v4028 = vpop.f32.mrf.mxu0
        %4029 = vmatprep.mubr.bf16.mxu0 %v3008
        %4030 = vmatmul.mubr.bf16.gmra.mxu0 %v3007
        %v4031 = vpop.f32.mrf.mxu0
        %v4032 = vadd.f32 %v3983, %v4031
        %v4033 = vpop.f32.mrf.mxu0
        %v4034 = vpop.f32.mrf.mxu0
        %v4035 = vadd.f32 %v3986, %v4034
        %v4036 = vpop.f32.mrf.mxu0
        %4037 = vdwg.mxu0
        %4038 = vmatprep.subr.bf16.mxu0 0
        %4039 = vmatpush1.bf16.msra.mxu0 0
        %4040 = vmatprep.subr.bf16.mxu0 0
        %4041 = vmatpush1.bf16.msra.mxu0 0
        %4042 = vmatprep.subr.bf16.mxu0 0
        %4043 = vmatpush1.bf16.msra.mxu0 0
        %4044 = vmatprep.subr.bf16.mxu0 0
        %4045 = vmatpush1.bf16.msra.mxu0 %v3779
        %4046 = vmatprep.subr.bf16.mxu0 0
        %4047 = vmatpush1.bf16.msra.mxu0 %v3652
        %4048 = vmatprep.subr.bf16.mxu0 0
        %4049 = vmatpush1.bf16.msra.mxu0 %v3649
        %4050 = vmatprep.subr.bf16.mxu0 0
        %4051 = vmatpush1.bf16.msra.mxu0 %v3646
        %4052 = vmatprep.subr.bf16.mxu0 0
        %4053 = vmatpush1.bf16.msra.mxu0 %v3643
        %4054 = vmatprep.subr.bf16.mxu0 0
        %4055 = vmatpush2.bf16.msra.mxu0 0
        %4056 = vmatprep.subr.bf16.mxu0 0
        %4057 = vmatpush2.bf16.msra.mxu0 0
        %4058 = vmatprep.subr.bf16.mxu0 0
        %4059 = vmatpush2.bf16.msra.mxu0 0
        %4060 = vmatprep.subr.bf16.mxu0 0
        %4061 = vmatpush2.bf16.msra.mxu0 0
        %4062 = vmatprep.subr.bf16.mxu0 0
        %4063 = vmatpush2.bf16.msra.mxu0 0
        %4064 = vmatprep.subr.bf16.mxu0 0
        %4065 = vmatpush2.bf16.msra.mxu0 0
        %4066 = vmatprep.subr.bf16.mxu0 0
        %4067 = vmatpush2.bf16.msra.mxu0 0
        %4068 = vmatprep.subr.bf16.mxu0 0
        %4069 = vmatpush2.bf16.msra.mxu0 0
        %4070 = vmatprep.mubr.bf16.mxu0 0
        %4071 = vmatmul.mubr.bf16.gmra.mxu0 %v3766
        %v4072 = vpop.f32.mrf.mxu0
        %v4073 = vadd.f32 %v4024, %v4072
        %v4074 = vpop.f32.mrf.mxu0
        %v4075 = vpop.f32.mrf.mxu0
        %v4076 = vadd.f32 %v4027, %v4075
        %v4077 = vpop.f32.mrf.mxu0
        %4078 = vmatprep.mubr.bf16.mxu0 0
        %4079 = vmatmul.mubr.bf16.gmra.mxu0 %v3769
        %v4080 = vpop.f32.mrf.mxu0
        %v4081 = vadd.f32 %v4032, %v4080
        %v4082 = vpop.f32.mrf.mxu0
        %v4083 = vpop.f32.mrf.mxu0
        %v4084 = vadd.f32 %v4035, %v4083
        %v4085 = vpop.f32.mrf.mxu0
        %4086 = vdwg.mxu0
        %v4087 = vmax.f32 %v3922, 0.0
        %v4088 = vmax.f32 %v3924, 0.0
        %v4089 = vmax.f32 %v4073, 0.0
        %v4090 = vmax.f32 %v3926, 0.0
        %v4091 = vmax.f32 %v3928, 0.0
        %v4092 = vmax.f32 %v4076, 0.0
        %v4093 = vmax.f32 %v3932, 0.0
        %v4094 = vmax.f32 %v3934, 0.0
        %v4095 = vmax.f32 %v4081, 0.0
        %v4096 = vmax.f32 %v3936, 0.0
        %v4097 = vmax.f32 %v3938, 0.0
        %v4098 = vmax.f32 %v4084, 0.0
        %v4099 = vpack.c.bf16 %v4090, %v4087
        %v4100 = vpack.c.bf16 %v4091, %v4088
        %v4101 = vpack.c.bf16 %v4092, %v4089
        %v4102 = vpack.c.bf16 %v4096, %v4093
        %v4103 = vpack.c.bf16 %v4097, %v4094
        %v4104 = vpack.c.bf16 %v4098, %v4095
        %v4105 = vld [vmem:[#allocation10] sm:$0xff]
        %v4106 = vld [vmem:[#allocation10 + $0x8] sm:$0xff]
        %v4107 = vld [vmem:[#allocation10 + $0x10] sm:$0xf]
        %v4108 = vld [vmem:[#allocation10 + $0x14] sm:$0xff]
        %v4109 = vld [vmem:[#allocation10 + $0x1c] sm:$0xff]
        %v4110 = vld [vmem:[#allocation10 + $0x24] sm:$0xf]
        %v4111 = vld [vmem:[#allocation10 + $0x28] sm:$0xff]
        %v4112 = vld [vmem:[#allocation10 + $0x30] sm:$0xff]
        %v4113 = vld [vmem:[#allocation10 + $0x38] sm:$0xf]
        %v4114 = vld [vmem:[#allocation10 + $0x3c] sm:$0xff]
        %v4115 = vld [vmem:[#allocation10 + $0x44] sm:$0xff]
        %v4116 = vld [vmem:[#allocation10 + $0x4c] sm:$0xf]
        %v4117 = vld [vmem:[#allocation10 + $0x50] sm:$0xff]
        %v4118 = vld [vmem:[#allocation10 + $0x58] sm:$0xff]
        %v4119 = vld [vmem:[#allocation10 + $0x60] sm:$0xf]
        %v4120 = vld [vmem:[#allocation10 + $0x64] sm:$0xff]
        %v4121 = vld [vmem:[#allocation10 + $0x6c] sm:$0xff]
        %v4122 = vld [vmem:[#allocation10 + $0x74] sm:$0xf]
        %v4123 = vld [vmem:[#allocation10 + $0x78] sm:$0xff]
        %v4124 = vld [vmem:[#allocation10 + $0x80] sm:$0xff]
        %v4125 = vld [vmem:[#allocation10 + $0x88] sm:$0xf]
        %v4126 = vld [vmem:[#allocation10 + $0x8c] sm:$0xff]
        %v4127 = vld [vmem:[#allocation10 + $0x94] sm:$0xff]
        %v4128 = vld [vmem:[#allocation10 + $0x9c] sm:$0xf]
        %v4129 = vld [vmem:[#allocation10 + $0xa0] sm:$0xff]
        %v4130 = vld [vmem:[#allocation10 + $0xa8] sm:$0xff]
        %v4131 = vld [vmem:[#allocation10 + $0xb0] sm:$0xf]
        %v4132 = vld [vmem:[#allocation10 + $0xb4] sm:$0xff]
        %v4133 = vld [vmem:[#allocation10 + $0xbc] sm:$0xff]
        %v4134 = vld [vmem:[#allocation10 + $0xc4] sm:$0xf]
        %v4135 = vld [vmem:[#allocation10 + $0xc8] sm:$0xff]
        %v4136 = vld [vmem:[#allocation10 + $0xd0] sm:$0xff]
        %v4137 = vld [vmem:[#allocation10 + $0xd8] sm:$0xf]
        %v4138 = vld [vmem:[#allocation10 + $0xdc] sm:$0xff]
        %v4139 = vld [vmem:[#allocation10 + $0xe4] sm:$0xff]
        %v4140 = vld [vmem:[#allocation10 + $0xec] sm:$0xf]
        %v4141 = vld [vmem:[#allocation10 + $0xf0] sm:$0xff]
        %v4142 = vld [vmem:[#allocation10 + $0xf8] sm:$0xff]
        %v4143 = vld [vmem:[#allocation10 + $0x100] sm:$0xf]
        %v4144 = vld [vmem:[#allocation10 + $0x104] sm:$0xff]
        %v4145 = vld [vmem:[#allocation10 + $0x10c] sm:$0xff]
        %v4146 = vld [vmem:[#allocation10 + $0x114] sm:$0xf]
        %v4147 = vld [vmem:[#allocation10 + $0x118] sm:$0xff]
        %v4148 = vld [vmem:[#allocation10 + $0x120] sm:$0xff]
        %v4149 = vld [vmem:[#allocation10 + $0x128] sm:$0xf]
        %v4150 = vld [vmem:[#allocation10 + $0x12c] sm:$0xff]
        %v4151 = vld [vmem:[#allocation10 + $0x134] sm:$0xff]
        %v4152 = vld [vmem:[#allocation10 + $0x13c] sm:$0xf]
        %v4153 = vld [vmem:[#allocation10 + $0x140] sm:$0xff]
        %v4154 = vld [vmem:[#allocation10 + $0x148] sm:$0xff]
        %v4155 = vld [vmem:[#allocation10 + $0x150] sm:$0xf]
        %v4156 = vld [vmem:[#allocation10 + $0x154] sm:$0xff]
        %v4157 = vld [vmem:[#allocation10 + $0x15c] sm:$0xff]
        %v4158 = vld [vmem:[#allocation10 + $0x164] sm:$0xf]
        %v4159 = vld [vmem:[#allocation10 + $0x168] sm:$0xff]
        %v4160 = vld [vmem:[#allocation10 + $0x170] sm:$0xff]
        %v4161 = vld [vmem:[#allocation10 + $0x178] sm:$0xf]
        %v4162 = vld [vmem:[#allocation10 + $0x17c] sm:$0xff]
        %v4163 = vld [vmem:[#allocation10 + $0x184] sm:$0xff]
        %v4164 = vld [vmem:[#allocation10 + $0x18c] sm:$0xf]
        %v4165 = vld [vmem:[#allocation10 + $0x190] sm:$0xff]
        %v4166 = vld [vmem:[#allocation10 + $0x198] sm:$0xff]
        %v4167 = vld [vmem:[#allocation10 + $0x1a0] sm:$0xf]
        %v4168 = vld [vmem:[#allocation10 + $0x1a4] sm:$0xff]
        %v4169 = vld [vmem:[#allocation10 + $0x1ac] sm:$0xff]
        %v4170 = vld [vmem:[#allocation10 + $0x1b4] sm:$0xf]
        %v4171 = vld [vmem:[#allocation10 + $0x1b8] sm:$0xff]
        %v4172 = vld [vmem:[#allocation10 + $0x1c0] sm:$0xff]
        %v4173 = vld [vmem:[#allocation10 + $0x1c8] sm:$0xf]
        %v4174 = vld [vmem:[#allocation10 + $0x1cc] sm:$0xff]
        %v4175 = vld [vmem:[#allocation10 + $0x1d4] sm:$0xff]
        %v4176 = vld [vmem:[#allocation10 + $0x1dc] sm:$0xf]
        %v4177 = vld [vmem:[#allocation10 + $0x1e0] sm:$0xff]
        %v4178 = vld [vmem:[#allocation10 + $0x1e8] sm:$0xff]
        %v4179 = vld [vmem:[#allocation10 + $0x1f0] sm:$0xf]
        %v4180 = vld [vmem:[#allocation10 + $0x1f4] sm:$0xff]
        %v4181 = vld [vmem:[#allocation10 + $0x1fc] sm:$0xff]
        %v4182 = vld [vmem:[#allocation10 + $0x204] sm:$0xf]
        %v4183 = vld [vmem:[#allocation10 + $0x208] sm:$0xff]
        %v4184 = vld [vmem:[#allocation10 + $0x210] sm:$0xff]
        %v4185 = vld [vmem:[#allocation10 + $0x218] sm:$0xf]
        %v4186 = vld [vmem:[#allocation10 + $0x21c] sm:$0xff]
        %v4187 = vld [vmem:[#allocation10 + $0x224] sm:$0xff]
        %v4188 = vld [vmem:[#allocation10 + $0x22c] sm:$0xf]
        %v4189 = vld [vmem:[#allocation10 + $0x230] sm:$0xff]
        %v4190 = vld [vmem:[#allocation10 + $0x238] sm:$0xff]
        %v4191 = vld [vmem:[#allocation10 + $0x240] sm:$0xf]
        %v4192 = vld [vmem:[#allocation10 + $0x244] sm:$0xff]
        %v4193 = vld [vmem:[#allocation10 + $0x24c] sm:$0xff]
        %v4194 = vld [vmem:[#allocation10 + $0x254] sm:$0xf]
        %v4195 = vld [vmem:[#allocation10 + $0x258] sm:$0xff]
        %v4196 = vld [vmem:[#allocation10 + $0x260] sm:$0xff]
        %v4197 = vld [vmem:[#allocation10 + $0x268] sm:$0xf]
        %v4198 = vld [vmem:[#allocation10 + $0x26c] sm:$0xff]
        %v4199 = vld [vmem:[#allocation10 + $0x274] sm:$0xff]
        %v4200 = vld [vmem:[#allocation10 + $0x27c] sm:$0xf]
        %v4201 = vld [vmem:[#allocation10 + $0x280] sm:$0xff]
        %v4202 = vld [vmem:[#allocation10 + $0x288] sm:$0xff]
        %v4203 = vld [vmem:[#allocation10 + $0x290] sm:$0xf]
        %v4204 = vld [vmem:[#allocation10 + $0x294] sm:$0xff]
        %v4205 = vld [vmem:[#allocation10 + $0x29c] sm:$0xff]
        %v4206 = vld [vmem:[#allocation10 + $0x2a4] sm:$0xf]
        %v4207 = vld [vmem:[#allocation10 + $0x2a8] sm:$0xff]
        %v4208 = vld [vmem:[#allocation10 + $0x2b0] sm:$0xff]
        %v4209 = vld [vmem:[#allocation10 + $0x2b8] sm:$0xf]
        %v4210 = vld [vmem:[#allocation10 + $0x2bc] sm:$0xff]
        %v4211 = vld [vmem:[#allocation10 + $0x2c4] sm:$0xff]
        %v4212 = vld [vmem:[#allocation10 + $0x2cc] sm:$0xf]
        %v4213 = vld [vmem:[#allocation10 + $0x2d0] sm:$0xff]
        %v4214 = vld [vmem:[#allocation10 + $0x2d8] sm:$0xff]
        %v4215 = vld [vmem:[#allocation10 + $0x2e0] sm:$0xf]
        %v4216 = vld [vmem:[#allocation10 + $0x2e4] sm:$0x33]
        %v4217 = vld [vmem:[#allocation10 + $0x2ec] sm:$0x33]
        %v4218 = vld [vmem:[#allocation10 + $0x2f4] sm:$0x3]
        %s4219 = scalar_lea.vmem [#allocation10], 760
        %v4220 = vld [vmem:[%s4219] sm:$0xff]
        %v4221 = vld [vmem:[%s4219 + $0x8] sm:$0xff]
        %v4222 = vld [vmem:[%s4219 + $0x10] sm:$0xf]
        %v4223 = vld [vmem:[%s4219 + $0x14] sm:$0xff]
        %v4224 = vld [vmem:[%s4219 + $0x1c] sm:$0xff]
        %v4225 = vld [vmem:[%s4219 + $0x24] sm:$0xf]
        %v4226 = vld [vmem:[%s4219 + $0x28] sm:$0xff]
        %v4227 = vld [vmem:[%s4219 + $0x30] sm:$0xff]
        %v4228 = vld [vmem:[%s4219 + $0x38] sm:$0xf]
        %v4229 = vld [vmem:[%s4219 + $0x3c] sm:$0xff]
        %v4230 = vld [vmem:[%s4219 + $0x44] sm:$0xff]
        %v4231 = vld [vmem:[%s4219 + $0x4c] sm:$0xf]
        %v4232 = vld [vmem:[%s4219 + $0x50] sm:$0xff]
        %v4233 = vld [vmem:[%s4219 + $0x58] sm:$0xff]
        %v4234 = vld [vmem:[%s4219 + $0x60] sm:$0xf]
        %v4235 = vld [vmem:[%s4219 + $0x64] sm:$0xff]
        %v4236 = vld [vmem:[%s4219 + $0x6c] sm:$0xff]
        %v4237 = vld [vmem:[%s4219 + $0x74] sm:$0xf]
        %v4238 = vld [vmem:[%s4219 + $0x78] sm:$0xff]
        %v4239 = vld [vmem:[%s4219 + $0x80] sm:$0xff]
        %v4240 = vld [vmem:[%s4219 + $0x88] sm:$0xf]
        %v4241 = vld [vmem:[%s4219 + $0x8c] sm:$0xff]
        %v4242 = vld [vmem:[%s4219 + $0x94] sm:$0xff]
        %v4243 = vld [vmem:[%s4219 + $0x9c] sm:$0xf]
        %v4244 = vld [vmem:[%s4219 + $0xa0] sm:$0xff]
        %v4245 = vld [vmem:[%s4219 + $0xa8] sm:$0xff]
        %v4246 = vld [vmem:[%s4219 + $0xb0] sm:$0xf]
        %v4247 = vld [vmem:[%s4219 + $0xb4] sm:$0xff]
        %v4248 = vld [vmem:[%s4219 + $0xbc] sm:$0xff]
        %v4249 = vld [vmem:[%s4219 + $0xc4] sm:$0xf]
        %v4250 = vld [vmem:[%s4219 + $0xc8] sm:$0xff]
        %v4251 = vld [vmem:[%s4219 + $0xd0] sm:$0xff]
        %v4252 = vld [vmem:[%s4219 + $0xd8] sm:$0xf]
        %v4253 = vld [vmem:[%s4219 + $0xdc] sm:$0xff]
        %v4254 = vld [vmem:[%s4219 + $0xe4] sm:$0xff]
        %v4255 = vld [vmem:[%s4219 + $0xec] sm:$0xf]
        %v4256 = vld [vmem:[%s4219 + $0xf0] sm:$0xff]
        %v4257 = vld [vmem:[%s4219 + $0xf8] sm:$0xff]
        %v4258 = vld [vmem:[%s4219 + $0x100] sm:$0xf]
        %v4259 = vld [vmem:[%s4219 + $0x104] sm:$0xff]
        %v4260 = vld [vmem:[%s4219 + $0x10c] sm:$0xff]
        %v4261 = vld [vmem:[%s4219 + $0x114] sm:$0xf]
        %v4262 = vld [vmem:[%s4219 + $0x118] sm:$0xff]
        %v4263 = vld [vmem:[%s4219 + $0x120] sm:$0xff]
        %v4264 = vld [vmem:[%s4219 + $0x128] sm:$0xf]
        %v4265 = vld [vmem:[%s4219 + $0x12c] sm:$0xff]
        %v4266 = vld [vmem:[%s4219 + $0x134] sm:$0xff]
        %v4267 = vld [vmem:[%s4219 + $0x13c] sm:$0xf]
        %v4268 = vld [vmem:[%s4219 + $0x140] sm:$0xff]
        %v4269 = vld [vmem:[%s4219 + $0x148] sm:$0xff]
        %v4270 = vld [vmem:[%s4219 + $0x150] sm:$0xf]
        %v4271 = vld [vmem:[%s4219 + $0x154] sm:$0xff]
        %v4272 = vld [vmem:[%s4219 + $0x15c] sm:$0xff]
        %v4273 = vld [vmem:[%s4219 + $0x164] sm:$0xf]
        %v4274 = vld [vmem:[%s4219 + $0x168] sm:$0xff]
        %v4275 = vld [vmem:[%s4219 + $0x170] sm:$0xff]
        %v4276 = vld [vmem:[%s4219 + $0x178] sm:$0xf]
        %v4277 = vld [vmem:[%s4219 + $0x17c] sm:$0xff]
        %v4278 = vld [vmem:[%s4219 + $0x184] sm:$0xff]
        %v4279 = vld [vmem:[%s4219 + $0x18c] sm:$0xf]
        %v4280 = vld [vmem:[%s4219 + $0x190] sm:$0xff]
        %v4281 = vld [vmem:[%s4219 + $0x198] sm:$0xff]
        %v4282 = vld [vmem:[%s4219 + $0x1a0] sm:$0xf]
        %v4283 = vld [vmem:[%s4219 + $0x1a4] sm:$0xff]
        %v4284 = vld [vmem:[%s4219 + $0x1ac] sm:$0xff]
        %v4285 = vld [vmem:[%s4219 + $0x1b4] sm:$0xf]
        %v4286 = vld [vmem:[%s4219 + $0x1b8] sm:$0xff]
        %v4287 = vld [vmem:[%s4219 + $0x1c0] sm:$0xff]
        %v4288 = vld [vmem:[%s4219 + $0x1c8] sm:$0xf]
        %v4289 = vld [vmem:[%s4219 + $0x1cc] sm:$0xff]
        %v4290 = vld [vmem:[%s4219 + $0x1d4] sm:$0xff]
        %v4291 = vld [vmem:[%s4219 + $0x1dc] sm:$0xf]
        %v4292 = vld [vmem:[%s4219 + $0x1e0] sm:$0xff]
        %v4293 = vld [vmem:[%s4219 + $0x1e8] sm:$0xff]
        %v4294 = vld [vmem:[%s4219 + $0x1f0] sm:$0xf]
        %v4295 = vld [vmem:[%s4219 + $0x1f4] sm:$0xff]
        %v4296 = vld [vmem:[%s4219 + $0x1fc] sm:$0xff]
        %v4297 = vld [vmem:[%s4219 + $0x204] sm:$0xf]
        %v4298 = vld [vmem:[%s4219 + $0x208] sm:$0xff]
        %v4299 = vld [vmem:[%s4219 + $0x210] sm:$0xff]
        %v4300 = vld [vmem:[%s4219 + $0x218] sm:$0xf]
        %v4301 = vld [vmem:[%s4219 + $0x21c] sm:$0xff]
        %v4302 = vld [vmem:[%s4219 + $0x224] sm:$0xff]
        %v4303 = vld [vmem:[%s4219 + $0x22c] sm:$0xf]
        %v4304 = vld [vmem:[%s4219 + $0x230] sm:$0xff]
        %v4305 = vld [vmem:[%s4219 + $0x238] sm:$0xff]
        %v4306 = vld [vmem:[%s4219 + $0x240] sm:$0xf]
        %v4307 = vld [vmem:[%s4219 + $0x244] sm:$0xff]
        %v4308 = vld [vmem:[%s4219 + $0x24c] sm:$0xff]
        %v4309 = vld [vmem:[%s4219 + $0x254] sm:$0xf]
        %v4310 = vld [vmem:[%s4219 + $0x258] sm:$0xff]
        %v4311 = vld [vmem:[%s4219 + $0x260] sm:$0xff]
        %v4312 = vld [vmem:[%s4219 + $0x268] sm:$0xf]
        %v4313 = vld [vmem:[%s4219 + $0x26c] sm:$0xff]
        %v4314 = vld [vmem:[%s4219 + $0x274] sm:$0xff]
        %v4315 = vld [vmem:[%s4219 + $0x27c] sm:$0xf]
        %v4316 = vld [vmem:[%s4219 + $0x280] sm:$0xff]
        %v4317 = vld [vmem:[%s4219 + $0x288] sm:$0xff]
        %v4318 = vld [vmem:[%s4219 + $0x290] sm:$0xf]
        %v4319 = vld [vmem:[%s4219 + $0x294] sm:$0xff]
        %v4320 = vld [vmem:[%s4219 + $0x29c] sm:$0xff]
        %v4321 = vld [vmem:[%s4219 + $0x2a4] sm:$0xf]
        %v4322 = vld [vmem:[%s4219 + $0x2a8] sm:$0xff]
        %v4323 = vld [vmem:[%s4219 + $0x2b0] sm:$0xff]
        %v4324 = vld [vmem:[%s4219 + $0x2b8] sm:$0xf]
        %v4325 = vld [vmem:[%s4219 + $0x2bc] sm:$0xff]
        %v4326 = vld [vmem:[%s4219 + $0x2c4] sm:$0xff]
        %v4327 = vld [vmem:[%s4219 + $0x2cc] sm:$0xf]
        %v4328 = vld [vmem:[%s4219 + $0x2d0] sm:$0xff]
        %v4329 = vld [vmem:[%s4219 + $0x2d8] sm:$0xff]
        %v4330 = vld [vmem:[%s4219 + $0x2e0] sm:$0xf]
        %v4331 = vld [vmem:[%s4219 + $0x2e4] sm:$0x33]
        %v4332 = vld [vmem:[%s4219 + $0x2ec] sm:$0x33]
        %v4333 = vld [vmem:[%s4219 + $0x2f4] sm:$0x3]
        %v4335 = vshrl.u32 %v4099, 16
        %v4337 = vshll.u32 %v4099, 16
        %v4339 = vrot.slane %v4337, 1
        %v4340 = vor.u32 %v4335, %v4339
        %v4342 = vshll.u32 %v4102, 16
        %v4344 = vrot.slane %v4342, 1
        %v4345 = vsel %vm581, %v4340, %v4344
        %v4347 = vshrl.u32 %v4100, 16
        %v4349 = vshll.u32 %v4100, 16
        %v4351 = vrot.slane %v4349, 1
        %v4352 = vor.u32 %v4347, %v4351
        %v4354 = vshll.u32 %v4103, 16
        %v4356 = vrot.slane %v4354, 1
        %v4357 = vsel %vm581, %v4352, %v4356
        %v4359 = vshrl.u32 %v4101, 16
        %v4361 = vshll.u32 %v4101, 16
        %v4363 = vrot.slane %v4361, 1
        %v4364 = vor.u32 %v4359, %v4363
        %v4366 = vshll.u32 %v4104, 16
        %v4368 = vrot.slane %v4366, 1
        %v4369 = vsel %vm581, %v4364, %v4368
        %v4370 = vshrl.u32 %v4102, 16
        %v4372 = vor.u32 %v4370, %v4344
        %v4373 = vshrl.u32 %v4103, 16
        %v4375 = vor.u32 %v4373, %v4356
        %v4376 = vshrl.u32 %v4104, 16
        %v4378 = vor.u32 %v4376, %v4368
        %v4497 = vunpack.c.l.b16 %v4220
        %v4498 = vunpack.c.h.b16 %v4220
        %v4499 = vunpack.c.l.b16 %v4221
        %v4500 = vunpack.c.h.b16 %v4221
        %v4501 = vunpack.c.l.b16 %v4222
        %v4502 = vunpack.c.l.b16 %v4223
        %v4503 = vunpack.c.h.b16 %v4223
        %v4504 = vunpack.c.l.b16 %v4224
        %v4505 = vunpack.c.h.b16 %v4224
        %v4506 = vunpack.c.l.b16 %v4225
        %v4507 = vunpack.c.l.b16 %v4226
        %v4508 = vunpack.c.h.b16 %v4226
        %v4509 = vunpack.c.l.b16 %v4227
        %v4510 = vunpack.c.h.b16 %v4227
        %v4511 = vunpack.c.l.b16 %v4228
        %v4512 = vunpack.c.l.b16 %v4229
        %v4513 = vunpack.c.h.b16 %v4229
        %v4514 = vunpack.c.l.b16 %v4230
        %v4515 = vunpack.c.h.b16 %v4230
        %v4516 = vunpack.c.l.b16 %v4231
        %v4517 = vunpack.c.l.b16 %v4232
        %v4518 = vunpack.c.h.b16 %v4232
        %v4519 = vunpack.c.l.b16 %v4233
        %v4520 = vunpack.c.h.b16 %v4233
        %v4521 = vunpack.c.l.b16 %v4234
        %v4522 = vunpack.c.l.b16 %v4235
        %v4523 = vunpack.c.h.b16 %v4235
        %v4524 = vunpack.c.l.b16 %v4236
        %v4525 = vunpack.c.h.b16 %v4236
        %v4526 = vunpack.c.l.b16 %v4237
        %v4527 = vunpack.c.l.b16 %v4238
        %v4528 = vunpack.c.h.b16 %v4238
        %v4529 = vunpack.c.l.b16 %v4239
        %v4530 = vunpack.c.h.b16 %v4239
        %v4531 = vunpack.c.l.b16 %v4240
        %v4532 = vunpack.c.l.b16 %v4241
        %v4533 = vunpack.c.h.b16 %v4241
        %v4534 = vunpack.c.l.b16 %v4242
        %v4535 = vunpack.c.h.b16 %v4242
        %v4536 = vunpack.c.l.b16 %v4243
        %v4537 = vunpack.c.l.b16 %v4244
        %v4538 = vunpack.c.h.b16 %v4244
        %v4539 = vunpack.c.l.b16 %v4245
        %v4540 = vunpack.c.h.b16 %v4245
        %v4541 = vunpack.c.l.b16 %v4246
        %v4542 = vunpack.c.l.b16 %v4247
        %v4543 = vunpack.c.h.b16 %v4247
        %v4544 = vunpack.c.l.b16 %v4248
        %v4545 = vunpack.c.h.b16 %v4248
        %v4546 = vunpack.c.l.b16 %v4249
        %v4547 = vunpack.c.l.b16 %v4250
        %v4548 = vunpack.c.h.b16 %v4250
        %v4549 = vunpack.c.l.b16 %v4251
        %v4550 = vunpack.c.h.b16 %v4251
        %v4551 = vunpack.c.l.b16 %v4252
        %v4552 = vunpack.c.l.b16 %v4253
        %v4553 = vunpack.c.h.b16 %v4253
        %v4554 = vunpack.c.l.b16 %v4254
        %v4555 = vunpack.c.h.b16 %v4254
        %v4556 = vunpack.c.l.b16 %v4255
        %v4557 = vunpack.c.l.b16 %v4256
        %v4558 = vunpack.c.h.b16 %v4256
        %v4559 = vunpack.c.l.b16 %v4257
        %v4560 = vunpack.c.h.b16 %v4257
        %v4561 = vunpack.c.l.b16 %v4258
        %v4562 = vunpack.c.l.b16 %v4259
        %v4563 = vunpack.c.h.b16 %v4259
        %v4564 = vunpack.c.l.b16 %v4260
        %v4565 = vunpack.c.h.b16 %v4260
        %v4566 = vunpack.c.l.b16 %v4261
        %v4567 = vunpack.c.l.b16 %v4262
        %v4568 = vunpack.c.h.b16 %v4262
        %v4569 = vunpack.c.l.b16 %v4263
        %v4570 = vunpack.c.h.b16 %v4263
        %v4571 = vunpack.c.l.b16 %v4264
        %v4572 = vunpack.c.l.b16 %v4265
        %v4573 = vunpack.c.h.b16 %v4265
        %v4574 = vunpack.c.l.b16 %v4266
        %v4575 = vunpack.c.h.b16 %v4266
        %v4576 = vunpack.c.l.b16 %v4267
        %v4577 = vunpack.c.l.b16 %v4268
        %v4578 = vunpack.c.h.b16 %v4268
        %v4579 = vunpack.c.l.b16 %v4269
        %v4580 = vunpack.c.h.b16 %v4269
        %v4581 = vunpack.c.l.b16 %v4270
        %v4582 = vunpack.c.l.b16 %v4271
        %v4583 = vunpack.c.h.b16 %v4271
        %v4584 = vunpack.c.l.b16 %v4272
        %v4585 = vunpack.c.h.b16 %v4272
        %v4586 = vunpack.c.l.b16 %v4273
        %v4587 = vunpack.c.l.b16 %v4274
        %v4588 = vunpack.c.h.b16 %v4274
        %v4589 = vunpack.c.l.b16 %v4275
        %v4590 = vunpack.c.h.b16 %v4275
        %v4591 = vunpack.c.l.b16 %v4276
        %v4592 = vunpack.c.l.b16 %v4277
        %v4593 = vunpack.c.h.b16 %v4277
        %v4594 = vunpack.c.l.b16 %v4278
        %v4595 = vunpack.c.h.b16 %v4278
        %v4596 = vunpack.c.l.b16 %v4279
        %v4597 = vunpack.c.l.b16 %v4280
        %v4598 = vunpack.c.h.b16 %v4280
        %v4599 = vunpack.c.l.b16 %v4281
        %v4600 = vunpack.c.h.b16 %v4281
        %v4601 = vunpack.c.l.b16 %v4282
        %v4602 = vunpack.c.l.b16 %v4283
        %v4603 = vunpack.c.h.b16 %v4283
        %v4604 = vunpack.c.l.b16 %v4284
        %v4605 = vunpack.c.h.b16 %v4284
        %v4606 = vunpack.c.l.b16 %v4285
        %v4607 = vunpack.c.l.b16 %v4286
        %v4608 = vunpack.c.h.b16 %v4286
        %v4609 = vunpack.c.l.b16 %v4287
        %v4610 = vunpack.c.h.b16 %v4287
        %v4611 = vunpack.c.l.b16 %v4288
        %v4612 = vunpack.c.l.b16 %v4289
        %v4613 = vunpack.c.h.b16 %v4289
        %v4614 = vunpack.c.l.b16 %v4290
        %v4615 = vunpack.c.h.b16 %v4290
        %v4616 = vunpack.c.l.b16 %v4291
        %v4617 = vunpack.c.l.b16 %v4292
        %v4618 = vunpack.c.h.b16 %v4292
        %v4619 = vunpack.c.l.b16 %v4293
        %v4620 = vunpack.c.h.b16 %v4293
        %v4621 = vunpack.c.l.b16 %v4294
        %v4622 = vunpack.c.l.b16 %v4295
        %v4623 = vunpack.c.h.b16 %v4295
        %v4624 = vunpack.c.l.b16 %v4296
        %v4625 = vunpack.c.h.b16 %v4296
        %v4626 = vunpack.c.l.b16 %v4297
        %v4627 = vunpack.c.l.b16 %v4298
        %v4628 = vunpack.c.h.b16 %v4298
        %v4629 = vunpack.c.l.b16 %v4299
        %v4630 = vunpack.c.h.b16 %v4299
        %v4631 = vunpack.c.l.b16 %v4300
        %v4632 = vunpack.c.l.b16 %v4301
        %v4633 = vunpack.c.h.b16 %v4301
        %v4634 = vunpack.c.l.b16 %v4302
        %v4635 = vunpack.c.h.b16 %v4302
        %v4636 = vunpack.c.l.b16 %v4303
        %v4637 = vunpack.c.l.b16 %v4304
        %v4638 = vunpack.c.h.b16 %v4304
        %v4639 = vunpack.c.l.b16 %v4305
        %v4640 = vunpack.c.h.b16 %v4305
        %v4641 = vunpack.c.l.b16 %v4306
        %v4642 = vunpack.c.l.b16 %v4307
        %v4643 = vunpack.c.h.b16 %v4307
        %v4644 = vunpack.c.l.b16 %v4308
        %v4645 = vunpack.c.h.b16 %v4308
        %v4646 = vunpack.c.l.b16 %v4309
        %v4647 = vunpack.c.l.b16 %v4310
        %v4648 = vunpack.c.h.b16 %v4310
        %v4649 = vunpack.c.l.b16 %v4311
        %v4650 = vunpack.c.h.b16 %v4311
        %v4651 = vunpack.c.l.b16 %v4312
        %v4652 = vunpack.c.l.b16 %v4313
        %v4653 = vunpack.c.h.b16 %v4313
        %v4654 = vunpack.c.l.b16 %v4314
        %v4655 = vunpack.c.h.b16 %v4314
        %v4656 = vunpack.c.l.b16 %v4315
        %v4657 = vunpack.c.l.b16 %v4316
        %v4658 = vunpack.c.h.b16 %v4316
        %v4659 = vunpack.c.l.b16 %v4317
        %v4660 = vunpack.c.h.b16 %v4317
        %v4661 = vunpack.c.l.b16 %v4318
        %v4662 = vunpack.c.l.b16 %v4319
        %v4663 = vunpack.c.h.b16 %v4319
        %v4664 = vunpack.c.l.b16 %v4320
        %v4665 = vunpack.c.h.b16 %v4320
        %v4666 = vunpack.c.l.b16 %v4321
        %v4667 = vunpack.c.l.b16 %v4322
        %v4668 = vunpack.c.h.b16 %v4322
        %v4669 = vunpack.c.l.b16 %v4323
        %v4670 = vunpack.c.h.b16 %v4323
        %v4671 = vunpack.c.l.b16 %v4324
        %v4672 = vunpack.c.l.b16 %v4325
        %v4673 = vunpack.c.h.b16 %v4325
        %v4674 = vunpack.c.l.b16 %v4326
        %v4675 = vunpack.c.h.b16 %v4326
        %v4676 = vunpack.c.l.b16 %v4327
        %v4677 = vunpack.c.l.b16 %v4328
        %v4678 = vunpack.c.h.b16 %v4328
        %v4679 = vunpack.c.l.b16 %v4329
        %v4680 = vunpack.c.h.b16 %v4329
        %v4681 = vunpack.c.l.b16 %v4330
        %v4682 = vunpack.c.l.b16 %v4331
        %v4683 = vunpack.c.h.b16 %v4331
        %v4684 = vunpack.c.l.b16 %v4332
        %v4685 = vunpack.c.h.b16 %v4332
        %v4686 = vunpack.c.l.b16 %v4333
        %v4687 = vpack.c.b16 %v4502, %v4497
        %v4688 = vpack.c.b16 %v4503, %v4498
        %v4689 = vpack.c.b16 %v4504, %v4499
        %v4690 = vpack.c.b16 %v4505, %v4500
        %v4691 = vpack.c.b16 %v4506, %v4501
        %v4692 = vpack.c.b16 %v4512, %v4507
        %v4693 = vpack.c.b16 %v4513, %v4508
        %v4694 = vpack.c.b16 %v4514, %v4509
        %v4695 = vpack.c.b16 %v4515, %v4510
        %v4696 = vpack.c.b16 %v4516, %v4511
        %v4697 = vpack.c.b16 %v4522, %v4517
        %v4698 = vpack.c.b16 %v4523, %v4518
        %v4699 = vpack.c.b16 %v4524, %v4519
        %v4700 = vpack.c.b16 %v4525, %v4520
        %v4701 = vpack.c.b16 %v4526, %v4521
        %v4702 = vpack.c.b16 %v4532, %v4527
        %v4703 = vpack.c.b16 %v4533, %v4528
        %v4704 = vpack.c.b16 %v4534, %v4529
        %v4705 = vpack.c.b16 %v4535, %v4530
        %v4706 = vpack.c.b16 %v4536, %v4531
        %v4707 = vpack.c.b16 %v4542, %v4537
        %v4708 = vpack.c.b16 %v4543, %v4538
        %v4709 = vpack.c.b16 %v4544, %v4539
        %v4710 = vpack.c.b16 %v4545, %v4540
        %v4711 = vpack.c.b16 %v4546, %v4541
        %v4712 = vpack.c.b16 %v4552, %v4547
        %v4713 = vpack.c.b16 %v4553, %v4548
        %v4714 = vpack.c.b16 %v4554, %v4549
        %v4715 = vpack.c.b16 %v4555, %v4550
        %v4716 = vpack.c.b16 %v4556, %v4551
        %v4717 = vpack.c.b16 %v4562, %v4557
        %v4718 = vpack.c.b16 %v4563, %v4558
        %v4719 = vpack.c.b16 %v4564, %v4559
        %v4720 = vpack.c.b16 %v4565, %v4560
        %v4721 = vpack.c.b16 %v4566, %v4561
        %v4722 = vpack.c.b16 %v4572, %v4567
        %v4723 = vpack.c.b16 %v4573, %v4568
        %v4724 = vpack.c.b16 %v4574, %v4569
        %v4725 = vpack.c.b16 %v4575, %v4570
        %v4726 = vpack.c.b16 %v4576, %v4571
        %v4727 = vpack.c.b16 %v4582, %v4577
        %v4728 = vpack.c.b16 %v4583, %v4578
        %v4729 = vpack.c.b16 %v4584, %v4579
        %v4730 = vpack.c.b16 %v4585, %v4580
        %v4731 = vpack.c.b16 %v4586, %v4581
        %v4732 = vpack.c.b16 %v4592, %v4587
        %v4733 = vpack.c.b16 %v4593, %v4588
        %v4734 = vpack.c.b16 %v4594, %v4589
        %v4735 = vpack.c.b16 %v4595, %v4590
        %v4736 = vpack.c.b16 %v4596, %v4591
        %v4737 = vpack.c.b16 %v4602, %v4597
        %v4738 = vpack.c.b16 %v4603, %v4598
        %v4739 = vpack.c.b16 %v4604, %v4599
        %v4740 = vpack.c.b16 %v4605, %v4600
        %v4741 = vpack.c.b16 %v4606, %v4601
        %v4742 = vpack.c.b16 %v4612, %v4607
        %v4743 = vpack.c.b16 %v4613, %v4608
        %v4744 = vpack.c.b16 %v4614, %v4609
        %v4745 = vpack.c.b16 %v4615, %v4610
        %v4746 = vpack.c.b16 %v4616, %v4611
        %v4747 = vpack.c.b16 %v4622, %v4617
        %v4748 = vpack.c.b16 %v4623, %v4618
        %v4749 = vpack.c.b16 %v4624, %v4619
        %v4750 = vpack.c.b16 %v4625, %v4620
        %v4751 = vpack.c.b16 %v4626, %v4621
        %v4752 = vpack.c.b16 %v4632, %v4627
        %v4753 = vpack.c.b16 %v4633, %v4628
        %v4754 = vpack.c.b16 %v4634, %v4629
        %v4755 = vpack.c.b16 %v4635, %v4630
        %v4756 = vpack.c.b16 %v4636, %v4631
        %v4757 = vpack.c.b16 %v4642, %v4637
        %v4758 = vpack.c.b16 %v4643, %v4638
        %v4759 = vpack.c.b16 %v4644, %v4639
        %v4760 = vpack.c.b16 %v4645, %v4640
        %v4761 = vpack.c.b16 %v4646, %v4641
        %v4762 = vpack.c.b16 %v4652, %v4647
        %v4763 = vpack.c.b16 %v4653, %v4648
        %v4764 = vpack.c.b16 %v4654, %v4649
        %v4765 = vpack.c.b16 %v4655, %v4650
        %v4766 = vpack.c.b16 %v4656, %v4651
        %v4767 = vpack.c.b16 %v4662, %v4657
        %v4768 = vpack.c.b16 %v4663, %v4658
        %v4769 = vpack.c.b16 %v4664, %v4659
        %v4770 = vpack.c.b16 %v4665, %v4660
        %v4771 = vpack.c.b16 %v4666, %v4661
        %v4772 = vpack.c.b16 %v4672, %v4667
        %v4773 = vpack.c.b16 %v4673, %v4668
        %v4774 = vpack.c.b16 %v4674, %v4669
        %v4775 = vpack.c.b16 %v4675, %v4670
        %v4776 = vpack.c.b16 %v4676, %v4671
        %v4777 = vpack.c.b16 %v4682, %v4677
        %v4778 = vpack.c.b16 %v4683, %v4678
        %v4779 = vpack.c.b16 %v4684, %v4679
        %v4780 = vpack.c.b16 %v4685, %v4680
        %v4781 = vpack.c.b16 %v4686, %v4681
        %vm4872 = vcmask 359424
        %v4874 = vsel %vm4872, %v4369, 0
        %v4877 = vsel %vm4872, %v4378, 0
        %v4880 = vsel %vm2517, %v4777, 0
        %v4883 = vsel %vm2517, %v4778, 0
        %v4886 = vsel %vm2517, %v4779, 0
        %v4889 = vsel %vm2517, %v4780, 0
        %v4892 = vsel %vm2517, %v4781, 0
        %4894 = vmatprep.subr.bf16.mxu0 %v4723
        %4895 = vmatpush1.bf16.msra.mxu0 %v4722
        %4896 = vmatprep.subr.bf16.mxu0 %v4718
        %4897 = vmatpush1.bf16.msra.mxu0 %v4717
        %4898 = vmatprep.subr.bf16.mxu0 %v4713
        %4899 = vmatpush1.bf16.msra.mxu0 %v4712
        %4900 = vmatprep.subr.bf16.mxu0 %v4708
        %4901 = vmatpush1.bf16.msra.mxu0 %v4707
        %4902 = vmatprep.subr.bf16.mxu0 %v4703
        %4903 = vmatpush1.bf16.msra.mxu0 %v4702
        %4904 = vmatprep.subr.bf16.mxu0 %v4698
        %4905 = vmatpush1.bf16.msra.mxu0 %v4697
        %4906 = vmatprep.subr.bf16.mxu0 %v4693
        %4907 = vmatpush1.bf16.msra.mxu0 %v4692
        %4908 = vmatprep.subr.bf16.mxu0 %v4688
        %4909 = vmatpush1.bf16.msra.mxu0 %v4687
        %4910 = vmatprep.subr.bf16.mxu0 %v4763
        %4911 = vmatpush2.bf16.msra.mxu0 %v4762
        %4912 = vmatprep.subr.bf16.mxu0 %v4758
        %4913 = vmatpush2.bf16.msra.mxu0 %v4757
        %4914 = vmatprep.subr.bf16.mxu0 %v4753
        %4915 = vmatpush2.bf16.msra.mxu0 %v4752
        %4916 = vmatprep.subr.bf16.mxu0 %v4748
        %4917 = vmatpush2.bf16.msra.mxu0 %v4747
        %4918 = vmatprep.subr.bf16.mxu0 %v4743
        %4919 = vmatpush2.bf16.msra.mxu0 %v4742
        %4920 = vmatprep.subr.bf16.mxu0 %v4738
        %4921 = vmatpush2.bf16.msra.mxu0 %v4737
        %4922 = vmatprep.subr.bf16.mxu0 %v4733
        %4923 = vmatpush2.bf16.msra.mxu0 %v4732
        %4924 = vmatprep.subr.bf16.mxu0 %v4728
        %4925 = vmatpush2.bf16.msra.mxu0 %v4727
        %4926 = vmatprep.mubr.bf16.mxu0 %v4357
        %4927 = vmatmul.mubr.bf16.gmra.mxu0 %v4345
        %v4928 = vpop.f32.mrf.mxu0
        %v4929 = vadd.f32 0.0, %v4928
        %v4930 = vpop.f32.mrf.mxu0
        %v4931 = vadd.f32 0.0, %v4930
        %v4932 = vpop.f32.mrf.mxu0
        %v4933 = vadd.f32 0.0, %v4932
        %v4934 = vpop.f32.mrf.mxu0
        %v4935 = vadd.f32 0.0, %v4934
        %4936 = vmatprep.mubr.bf16.mxu0 %v4375
        %4937 = vmatmul.mubr.bf16.gmra.mxu0 %v4372
        %v4938 = vpop.f32.mrf.mxu0
        %v4939 = vadd.f32 0.0, %v4938
        %v4940 = vpop.f32.mrf.mxu0
        %v4941 = vadd.f32 0.0, %v4940
        %v4942 = vpop.f32.mrf.mxu0
        %v4943 = vadd.f32 0.0, %v4942
        %v4944 = vpop.f32.mrf.mxu0
        %v4945 = vadd.f32 0.0, %v4944
        %4946 = vdwg.mxu0
        %4947 = vmatprep.subr.bf16.mxu0 0
        %4948 = vmatpush1.bf16.msra.mxu0 0
        %4949 = vmatprep.subr.bf16.mxu0 0
        %4950 = vmatpush1.bf16.msra.mxu0 0
        %4951 = vmatprep.subr.bf16.mxu0 0
        %4952 = vmatpush1.bf16.msra.mxu0 0
        %4953 = vmatprep.subr.bf16.mxu0 0
        %4954 = vmatpush1.bf16.msra.mxu0 0
        %4955 = vmatprep.subr.bf16.mxu0 0
        %4956 = vmatpush1.bf16.msra.mxu0 0
        %4957 = vmatprep.subr.bf16.mxu0 %v4883
        %4958 = vmatpush1.bf16.msra.mxu0 %v4880
        %4959 = vmatprep.subr.bf16.mxu0 %v4773
        %4960 = vmatpush1.bf16.msra.mxu0 %v4772
        %4961 = vmatprep.subr.bf16.mxu0 %v4768
        %4962 = vmatpush1.bf16.msra.mxu0 %v4767
        %4963 = vmatprep.subr.bf16.mxu0 0
        %4964 = vmatpush2.bf16.msra.mxu0 0
        %4965 = vmatprep.subr.bf16.mxu0 0
        %4966 = vmatpush2.bf16.msra.mxu0 0
        %4967 = vmatprep.subr.bf16.mxu0 0
        %4968 = vmatpush2.bf16.msra.mxu0 0
        %4969 = vmatprep.subr.bf16.mxu0 0
        %4970 = vmatpush2.bf16.msra.mxu0 0
        %4971 = vmatprep.subr.bf16.mxu0 0
        %4972 = vmatpush2.bf16.msra.mxu0 0
        %4973 = vmatprep.subr.bf16.mxu0 0
        %4974 = vmatpush2.bf16.msra.mxu0 0
        %4975 = vmatprep.subr.bf16.mxu0 0
        %4976 = vmatpush2.bf16.msra.mxu0 0
        %4977 = vmatprep.subr.bf16.mxu0 0
        %4978 = vmatpush2.bf16.msra.mxu0 0
        %4979 = vmatprep.mubr.bf16.mxu0 0
        %4980 = vmatmul.mubr.bf16.gmra.mxu0 %v4874
        %v4981 = vpop.f32.mrf.mxu0
        %v4982 = vadd.f32 %v4929, %v4981
        %v4983 = vpop.f32.mrf.mxu0
        %v4984 = vadd.f32 %v4931, %v4983
        %v4985 = vpop.f32.mrf.mxu0
        %v4986 = vadd.f32 %v4933, %v4985
        %v4987 = vpop.f32.mrf.mxu0
        %v4988 = vadd.f32 %v4935, %v4987
        %4989 = vmatprep.mubr.bf16.mxu0 0
        %4990 = vmatmul.mubr.bf16.gmra.mxu0 %v4877
        %v4991 = vpop.f32.mrf.mxu0
        %v4992 = vadd.f32 %v4939, %v4991
        %v4993 = vpop.f32.mrf.mxu0
        %v4994 = vadd.f32 %v4941, %v4993
        %v4995 = vpop.f32.mrf.mxu0
        %v4996 = vadd.f32 %v4943, %v4995
        %v4997 = vpop.f32.mrf.mxu0
        %v4998 = vadd.f32 %v4945, %v4997
        %4999 = vdwg.mxu0
        %5000 = vmatprep.subr.bf16.mxu0 %v4725
        %5001 = vmatpush1.bf16.msra.mxu0 %v4724
        %5002 = vmatprep.subr.bf16.mxu0 %v4720
        %5003 = vmatpush1.bf16.msra.mxu0 %v4719
        %5004 = vmatprep.subr.bf16.mxu0 %v4715
        %5005 = vmatpush1.bf16.msra.mxu0 %v4714
        %5006 = vmatprep.subr.bf16.mxu0 %v4710
        %5007 = vmatpush1.bf16.msra.mxu0 %v4709
        %5008 = vmatprep.subr.bf16.mxu0 %v4705
        %5009 = vmatpush1.bf16.msra.mxu0 %v4704
        %5010 = vmatprep.subr.bf16.mxu0 %v4700
        %5011 = vmatpush1.bf16.msra.mxu0 %v4699
        %5012 = vmatprep.subr.bf16.mxu0 %v4695
        %5013 = vmatpush1.bf16.msra.mxu0 %v4694
        %5014 = vmatprep.subr.bf16.mxu0 %v4690
        %5015 = vmatpush1.bf16.msra.mxu0 %v4689
        %5016 = vmatprep.subr.bf16.mxu0 %v4765
        %5017 = vmatpush2.bf16.msra.mxu0 %v4764
        %5018 = vmatprep.subr.bf16.mxu0 %v4760
        %5019 = vmatpush2.bf16.msra.mxu0 %v4759
        %5020 = vmatprep.subr.bf16.mxu0 %v4755
        %5021 = vmatpush2.bf16.msra.mxu0 %v4754
        %5022 = vmatprep.subr.bf16.mxu0 %v4750
        %5023 = vmatpush2.bf16.msra.mxu0 %v4749
        %5024 = vmatprep.subr.bf16.mxu0 %v4745
        %5025 = vmatpush2.bf16.msra.mxu0 %v4744
        %5026 = vmatprep.subr.bf16.mxu0 %v4740
        %5027 = vmatpush2.bf16.msra.mxu0 %v4739
        %5028 = vmatprep.subr.bf16.mxu0 %v4735
        %5029 = vmatpush2.bf16.msra.mxu0 %v4734
        %5030 = vmatprep.subr.bf16.mxu0 %v4730
        %5031 = vmatpush2.bf16.msra.mxu0 %v4729
        %5032 = vmatprep.mubr.bf16.mxu0 %v4357
        %5033 = vmatmul.mubr.bf16.gmra.mxu0 %v4345
        %v5034 = vpop.f32.mrf.mxu0
        %v5035 = vadd.f32 0.0, %v5034
        %v5036 = vpop.f32.mrf.mxu0
        %v5037 = vadd.f32 0.0, %v5036
        %v5038 = vpop.f32.mrf.mxu0
        %v5039 = vadd.f32 0.0, %v5038
        %v5040 = vpop.f32.mrf.mxu0
        %v5041 = vadd.f32 0.0, %v5040
        %5042 = vmatprep.mubr.bf16.mxu0 %v4375
        %5043 = vmatmul.mubr.bf16.gmra.mxu0 %v4372
        %v5044 = vpop.f32.mrf.mxu0
        %v5045 = vadd.f32 0.0, %v5044
        %v5046 = vpop.f32.mrf.mxu0
        %v5047 = vadd.f32 0.0, %v5046
        %v5048 = vpop.f32.mrf.mxu0
        %v5049 = vadd.f32 0.0, %v5048
        %v5050 = vpop.f32.mrf.mxu0
        %v5051 = vadd.f32 0.0, %v5050
        %5052 = vdwg.mxu0
        %5053 = vmatprep.subr.bf16.mxu0 0
        %5054 = vmatpush1.bf16.msra.mxu0 0
        %5055 = vmatprep.subr.bf16.mxu0 0
        %5056 = vmatpush1.bf16.msra.mxu0 0
        %5057 = vmatprep.subr.bf16.mxu0 0
        %5058 = vmatpush1.bf16.msra.mxu0 0
        %5059 = vmatprep.subr.bf16.mxu0 0
        %5060 = vmatpush1.bf16.msra.mxu0 0
        %5061 = vmatprep.subr.bf16.mxu0 0
        %5062 = vmatpush1.bf16.msra.mxu0 0
        %5063 = vmatprep.subr.bf16.mxu0 %v4889
        %5064 = vmatpush1.bf16.msra.mxu0 %v4886
        %5065 = vmatprep.subr.bf16.mxu0 %v4775
        %5066 = vmatpush1.bf16.msra.mxu0 %v4774
        %5067 = vmatprep.subr.bf16.mxu0 %v4770
        %5068 = vmatpush1.bf16.msra.mxu0 %v4769
        %5069 = vmatprep.subr.bf16.mxu0 0
        %5070 = vmatpush2.bf16.msra.mxu0 0
        %5071 = vmatprep.subr.bf16.mxu0 0
        %5072 = vmatpush2.bf16.msra.mxu0 0
        %5073 = vmatprep.subr.bf16.mxu0 0
        %5074 = vmatpush2.bf16.msra.mxu0 0
        %5075 = vmatprep.subr.bf16.mxu0 0
        %5076 = vmatpush2.bf16.msra.mxu0 0
        %5077 = vmatprep.subr.bf16.mxu0 0
        %5078 = vmatpush2.bf16.msra.mxu0 0
        %5079 = vmatprep.subr.bf16.mxu0 0
        %5080 = vmatpush2.bf16.msra.mxu0 0
        %5081 = vmatprep.subr.bf16.mxu0 0
        %5082 = vmatpush2.bf16.msra.mxu0 0
        %5083 = vmatprep.subr.bf16.mxu0 0
        %5084 = vmatpush2.bf16.msra.mxu0 0
        %5085 = vmatprep.mubr.bf16.mxu0 0
        %5086 = vmatmul.mubr.bf16.gmra.mxu0 %v4874
        %v5087 = vpop.f32.mrf.mxu0
        %v5088 = vadd.f32 %v5035, %v5087
        %v5089 = vpop.f32.mrf.mxu0
        %v5090 = vadd.f32 %v5037, %v5089
        %v5091 = vpop.f32.mrf.mxu0
        %v5092 = vadd.f32 %v5039, %v5091
        %v5093 = vpop.f32.mrf.mxu0
        %v5094 = vadd.f32 %v5041, %v5093
        %5095 = vmatprep.mubr.bf16.mxu0 0
        %5096 = vmatmul.mubr.bf16.gmra.mxu0 %v4877
        %v5097 = vpop.f32.mrf.mxu0
        %v5098 = vadd.f32 %v5045, %v5097
        %v5099 = vpop.f32.mrf.mxu0
        %v5100 = vadd.f32 %v5047, %v5099
        %v5101 = vpop.f32.mrf.mxu0
        %v5102 = vadd.f32 %v5049, %v5101
        %v5103 = vpop.f32.mrf.mxu0
        %v5104 = vadd.f32 %v5051, %v5103
        %5105 = vdwg.mxu0
        %5106 = vmatprep.subr.bf16.mxu0 0
        %5107 = vmatpush1.bf16.msra.mxu0 %v4726
        %5108 = vmatprep.subr.bf16.mxu0 0
        %5109 = vmatpush1.bf16.msra.mxu0 %v4721
        %5110 = vmatprep.subr.bf16.mxu0 0
        %5111 = vmatpush1.bf16.msra.mxu0 %v4716
        %5112 = vmatprep.subr.bf16.mxu0 0
        %5113 = vmatpush1.bf16.msra.mxu0 %v4711
        %5114 = vmatprep.subr.bf16.mxu0 0
        %5115 = vmatpush1.bf16.msra.mxu0 %v4706
        %5116 = vmatprep.subr.bf16.mxu0 0
        %5117 = vmatpush1.bf16.msra.mxu0 %v4701
        %5118 = vmatprep.subr.bf16.mxu0 0
        %5119 = vmatpush1.bf16.msra.mxu0 %v4696
        %5120 = vmatprep.subr.bf16.mxu0 0
        %5121 = vmatpush1.bf16.msra.mxu0 %v4691
        %5122 = vmatprep.subr.bf16.mxu0 0
        %5123 = vmatpush2.bf16.msra.mxu0 %v4766
        %5124 = vmatprep.subr.bf16.mxu0 0
        %5125 = vmatpush2.bf16.msra.mxu0 %v4761
        %5126 = vmatprep.subr.bf16.mxu0 0
        %5127 = vmatpush2.bf16.msra.mxu0 %v4756
        %5128 = vmatprep.subr.bf16.mxu0 0
        %5129 = vmatpush2.bf16.msra.mxu0 %v4751
        %5130 = vmatprep.subr.bf16.mxu0 0
        %5131 = vmatpush2.bf16.msra.mxu0 %v4746
        %5132 = vmatprep.subr.bf16.mxu0 0
        %5133 = vmatpush2.bf16.msra.mxu0 %v4741
        %5134 = vmatprep.subr.bf16.mxu0 0
        %5135 = vmatpush2.bf16.msra.mxu0 %v4736
        %5136 = vmatprep.subr.bf16.mxu0 0
        %5137 = vmatpush2.bf16.msra.mxu0 %v4731
        %5138 = vmatprep.mubr.bf16.mxu0 %v4357
        %5139 = vmatmul.mubr.bf16.gmra.mxu0 %v4345
        %v5140 = vpop.f32.mrf.mxu0
        %v5141 = vadd.f32 0.0, %v5140
        %v5142 = vpop.f32.mrf.mxu0
        %v5143 = vpop.f32.mrf.mxu0
        %v5144 = vadd.f32 0.0, %v5143
        %v5145 = vpop.f32.mrf.mxu0
        %5146 = vmatprep.mubr.bf16.mxu0 %v4375
        %5147 = vmatmul.mubr.bf16.gmra.mxu0 %v4372
        %v5148 = vpop.f32.mrf.mxu0
        %v5149 = vadd.f32 0.0, %v5148
        %v5150 = vpop.f32.mrf.mxu0
        %v5151 = vpop.f32.mrf.mxu0
        %v5152 = vadd.f32 0.0, %v5151
        %v5153 = vpop.f32.mrf.mxu0
        %5154 = vdwg.mxu0
        %5155 = vmatprep.subr.bf16.mxu0 0
        %5156 = vmatpush1.bf16.msra.mxu0 0
        %5157 = vmatprep.subr.bf16.mxu0 0
        %5158 = vmatpush1.bf16.msra.mxu0 0
        %5159 = vmatprep.subr.bf16.mxu0 0
        %5160 = vmatpush1.bf16.msra.mxu0 0
        %5161 = vmatprep.subr.bf16.mxu0 0
        %5162 = vmatpush1.bf16.msra.mxu0 0
        %5163 = vmatprep.subr.bf16.mxu0 0
        %5164 = vmatpush1.bf16.msra.mxu0 0
        %5165 = vmatprep.subr.bf16.mxu0 0
        %5166 = vmatpush1.bf16.msra.mxu0 %v4892
        %5167 = vmatprep.subr.bf16.mxu0 0
        %5168 = vmatpush1.bf16.msra.mxu0 %v4776
        %5169 = vmatprep.subr.bf16.mxu0 0
        %5170 = vmatpush1.bf16.msra.mxu0 %v4771
        %5171 = vmatprep.subr.bf16.mxu0 0
        %5172 = vmatpush2.bf16.msra.mxu0 0
        %5173 = vmatprep.subr.bf16.mxu0 0
        %5174 = vmatpush2.bf16.msra.mxu0 0
        %5175 = vmatprep.subr.bf16.mxu0 0
        %5176 = vmatpush2.bf16.msra.mxu0 0
        %5177 = vmatprep.subr.bf16.mxu0 0
        %5178 = vmatpush2.bf16.msra.mxu0 0
        %5179 = vmatprep.subr.bf16.mxu0 0
        %5180 = vmatpush2.bf16.msra.mxu0 0
        %5181 = vmatprep.subr.bf16.mxu0 0
        %5182 = vmatpush2.bf16.msra.mxu0 0
        %5183 = vmatprep.subr.bf16.mxu0 0
        %5184 = vmatpush2.bf16.msra.mxu0 0
        %5185 = vmatprep.subr.bf16.mxu0 0
        %5186 = vmatpush2.bf16.msra.mxu0 0
        %5187 = vmatprep.mubr.bf16.mxu0 0
        %5188 = vmatmul.mubr.bf16.gmra.mxu0 %v4874
        %v5189 = vpop.f32.mrf.mxu0
        %v5190 = vadd.f32 %v5141, %v5189
        %v5191 = vpop.f32.mrf.mxu0
        %v5192 = vpop.f32.mrf.mxu0
        %v5193 = vadd.f32 %v5144, %v5192
        %v5194 = vpop.f32.mrf.mxu0
        %5195 = vmatprep.mubr.bf16.mxu0 0
        %5196 = vmatmul.mubr.bf16.gmra.mxu0 %v4877
        %v5197 = vpop.f32.mrf.mxu0
        %v5198 = vadd.f32 %v5149, %v5197
        %v5199 = vpop.f32.mrf.mxu0
        %v5200 = vpop.f32.mrf.mxu0
        %v5201 = vadd.f32 %v5152, %v5200
        %v5202 = vpop.f32.mrf.mxu0
        %5203 = vdwg.mxu0
        %v5318 = vunpack.c.l.b16 %v4105
        %v5319 = vunpack.c.h.b16 %v4105
        %v5320 = vunpack.c.l.b16 %v4106
        %v5321 = vunpack.c.h.b16 %v4106
        %v5322 = vunpack.c.l.b16 %v4107
        %v5323 = vunpack.c.l.b16 %v4108
        %v5324 = vunpack.c.h.b16 %v4108
        %v5325 = vunpack.c.l.b16 %v4109
        %v5326 = vunpack.c.h.b16 %v4109
        %v5327 = vunpack.c.l.b16 %v4110
        %v5328 = vunpack.c.l.b16 %v4111
        %v5329 = vunpack.c.h.b16 %v4111
        %v5330 = vunpack.c.l.b16 %v4112
        %v5331 = vunpack.c.h.b16 %v4112
        %v5332 = vunpack.c.l.b16 %v4113
        %v5333 = vunpack.c.l.b16 %v4114
        %v5334 = vunpack.c.h.b16 %v4114
        %v5335 = vunpack.c.l.b16 %v4115
        %v5336 = vunpack.c.h.b16 %v4115
        %v5337 = vunpack.c.l.b16 %v4116
        %v5338 = vunpack.c.l.b16 %v4117
        %v5339 = vunpack.c.h.b16 %v4117
        %v5340 = vunpack.c.l.b16 %v4118
        %v5341 = vunpack.c.h.b16 %v4118
        %v5342 = vunpack.c.l.b16 %v4119
        %v5343 = vunpack.c.l.b16 %v4120
        %v5344 = vunpack.c.h.b16 %v4120
        %v5345 = vunpack.c.l.b16 %v4121
        %v5346 = vunpack.c.h.b16 %v4121
        %v5347 = vunpack.c.l.b16 %v4122
        %v5348 = vunpack.c.l.b16 %v4123
        %v5349 = vunpack.c.h.b16 %v4123
        %v5350 = vunpack.c.l.b16 %v4124
        %v5351 = vunpack.c.h.b16 %v4124
        %v5352 = vunpack.c.l.b16 %v4125
        %v5353 = vunpack.c.l.b16 %v4126
        %v5354 = vunpack.c.h.b16 %v4126
        %v5355 = vunpack.c.l.b16 %v4127
        %v5356 = vunpack.c.h.b16 %v4127
        %v5357 = vunpack.c.l.b16 %v4128
        %v5358 = vunpack.c.l.b16 %v4129
        %v5359 = vunpack.c.h.b16 %v4129
        %v5360 = vunpack.c.l.b16 %v4130
        %v5361 = vunpack.c.h.b16 %v4130
        %v5362 = vunpack.c.l.b16 %v4131
        %v5363 = vunpack.c.l.b16 %v4132
        %v5364 = vunpack.c.h.b16 %v4132
        %v5365 = vunpack.c.l.b16 %v4133
        %v5366 = vunpack.c.h.b16 %v4133
        %v5367 = vunpack.c.l.b16 %v4134
        %v5368 = vunpack.c.l.b16 %v4135
        %v5369 = vunpack.c.h.b16 %v4135
        %v5370 = vunpack.c.l.b16 %v4136
        %v5371 = vunpack.c.h.b16 %v4136
        %v5372 = vunpack.c.l.b16 %v4137
        %v5373 = vunpack.c.l.b16 %v4138
        %v5374 = vunpack.c.h.b16 %v4138
        %v5375 = vunpack.c.l.b16 %v4139
        %v5376 = vunpack.c.h.b16 %v4139
        %v5377 = vunpack.c.l.b16 %v4140
        %v5378 = vunpack.c.l.b16 %v4141
        %v5379 = vunpack.c.h.b16 %v4141
        %v5380 = vunpack.c.l.b16 %v4142
        %v5381 = vunpack.c.h.b16 %v4142
        %v5382 = vunpack.c.l.b16 %v4143
        %v5383 = vunpack.c.l.b16 %v4144
        %v5384 = vunpack.c.h.b16 %v4144
        %v5385 = vunpack.c.l.b16 %v4145
        %v5386 = vunpack.c.h.b16 %v4145
        %v5387 = vunpack.c.l.b16 %v4146
        %v5388 = vunpack.c.l.b16 %v4147
        %v5389 = vunpack.c.h.b16 %v4147
        %v5390 = vunpack.c.l.b16 %v4148
        %v5391 = vunpack.c.h.b16 %v4148
        %v5392 = vunpack.c.l.b16 %v4149
        %v5393 = vunpack.c.l.b16 %v4150
        %v5394 = vunpack.c.h.b16 %v4150
        %v5395 = vunpack.c.l.b16 %v4151
        %v5396 = vunpack.c.h.b16 %v4151
        %v5397 = vunpack.c.l.b16 %v4152
        %v5398 = vunpack.c.l.b16 %v4153
        %v5399 = vunpack.c.h.b16 %v4153
        %v5400 = vunpack.c.l.b16 %v4154
        %v5401 = vunpack.c.h.b16 %v4154
        %v5402 = vunpack.c.l.b16 %v4155
        %v5403 = vunpack.c.l.b16 %v4156
        %v5404 = vunpack.c.h.b16 %v4156
        %v5405 = vunpack.c.l.b16 %v4157
        %v5406 = vunpack.c.h.b16 %v4157
        %v5407 = vunpack.c.l.b16 %v4158
        %v5408 = vunpack.c.l.b16 %v4159
        %v5409 = vunpack.c.h.b16 %v4159
        %v5410 = vunpack.c.l.b16 %v4160
        %v5411 = vunpack.c.h.b16 %v4160
        %v5412 = vunpack.c.l.b16 %v4161
        %v5413 = vunpack.c.l.b16 %v4162
        %v5414 = vunpack.c.h.b16 %v4162
        %v5415 = vunpack.c.l.b16 %v4163
        %v5416 = vunpack.c.h.b16 %v4163
        %v5417 = vunpack.c.l.b16 %v4164
        %v5418 = vunpack.c.l.b16 %v4165
        %v5419 = vunpack.c.h.b16 %v4165
        %v5420 = vunpack.c.l.b16 %v4166
        %v5421 = vunpack.c.h.b16 %v4166
        %v5422 = vunpack.c.l.b16 %v4167
        %v5423 = vunpack.c.l.b16 %v4168
        %v5424 = vunpack.c.h.b16 %v4168
        %v5425 = vunpack.c.l.b16 %v4169
        %v5426 = vunpack.c.h.b16 %v4169
        %v5427 = vunpack.c.l.b16 %v4170
        %v5428 = vunpack.c.l.b16 %v4171
        %v5429 = vunpack.c.h.b16 %v4171
        %v5430 = vunpack.c.l.b16 %v4172
        %v5431 = vunpack.c.h.b16 %v4172
        %v5432 = vunpack.c.l.b16 %v4173
        %v5433 = vunpack.c.l.b16 %v4174
        %v5434 = vunpack.c.h.b16 %v4174
        %v5435 = vunpack.c.l.b16 %v4175
        %v5436 = vunpack.c.h.b16 %v4175
        %v5437 = vunpack.c.l.b16 %v4176
        %v5438 = vunpack.c.l.b16 %v4177
        %v5439 = vunpack.c.h.b16 %v4177
        %v5440 = vunpack.c.l.b16 %v4178
        %v5441 = vunpack.c.h.b16 %v4178
        %v5442 = vunpack.c.l.b16 %v4179
        %v5443 = vunpack.c.l.b16 %v4180
        %v5444 = vunpack.c.h.b16 %v4180
        %v5445 = vunpack.c.l.b16 %v4181
        %v5446 = vunpack.c.h.b16 %v4181
        %v5447 = vunpack.c.l.b16 %v4182
        %v5448 = vunpack.c.l.b16 %v4183
        %v5449 = vunpack.c.h.b16 %v4183
        %v5450 = vunpack.c.l.b16 %v4184
        %v5451 = vunpack.c.h.b16 %v4184
        %v5452 = vunpack.c.l.b16 %v4185
        %v5453 = vunpack.c.l.b16 %v4186
        %v5454 = vunpack.c.h.b16 %v4186
        %v5455 = vunpack.c.l.b16 %v4187
        %v5456 = vunpack.c.h.b16 %v4187
        %v5457 = vunpack.c.l.b16 %v4188
        %v5458 = vunpack.c.l.b16 %v4189
        %v5459 = vunpack.c.h.b16 %v4189
        %v5460 = vunpack.c.l.b16 %v4190
        %v5461 = vunpack.c.h.b16 %v4190
        %v5462 = vunpack.c.l.b16 %v4191
        %v5463 = vunpack.c.l.b16 %v4192
        %v5464 = vunpack.c.h.b16 %v4192
        %v5465 = vunpack.c.l.b16 %v4193
        %v5466 = vunpack.c.h.b16 %v4193
        %v5467 = vunpack.c.l.b16 %v4194
        %v5468 = vunpack.c.l.b16 %v4195
        %v5469 = vunpack.c.h.b16 %v4195
        %v5470 = vunpack.c.l.b16 %v4196
        %v5471 = vunpack.c.h.b16 %v4196
        %v5472 = vunpack.c.l.b16 %v4197
        %v5473 = vunpack.c.l.b16 %v4198
        %v5474 = vunpack.c.h.b16 %v4198
        %v5475 = vunpack.c.l.b16 %v4199
        %v5476 = vunpack.c.h.b16 %v4199
        %v5477 = vunpack.c.l.b16 %v4200
        %v5478 = vunpack.c.l.b16 %v4201
        %v5479 = vunpack.c.h.b16 %v4201
        %v5480 = vunpack.c.l.b16 %v4202
        %v5481 = vunpack.c.h.b16 %v4202
        %v5482 = vunpack.c.l.b16 %v4203
        %v5483 = vunpack.c.l.b16 %v4204
        %v5484 = vunpack.c.h.b16 %v4204
        %v5485 = vunpack.c.l.b16 %v4205
        %v5486 = vunpack.c.h.b16 %v4205
        %v5487 = vunpack.c.l.b16 %v4206
        %v5488 = vunpack.c.l.b16 %v4207
        %v5489 = vunpack.c.h.b16 %v4207
        %v5490 = vunpack.c.l.b16 %v4208
        %v5491 = vunpack.c.h.b16 %v4208
        %v5492 = vunpack.c.l.b16 %v4209
        %v5493 = vunpack.c.l.b16 %v4210
        %v5494 = vunpack.c.h.b16 %v4210
        %v5495 = vunpack.c.l.b16 %v4211
        %v5496 = vunpack.c.h.b16 %v4211
        %v5497 = vunpack.c.l.b16 %v4212
        %v5498 = vunpack.c.l.b16 %v4213
        %v5499 = vunpack.c.h.b16 %v4213
        %v5500 = vunpack.c.l.b16 %v4214
        %v5501 = vunpack.c.h.b16 %v4214
        %v5502 = vunpack.c.l.b16 %v4215
        %v5503 = vunpack.c.l.b16 %v4216
        %v5504 = vunpack.c.h.b16 %v4216
        %v5505 = vunpack.c.l.b16 %v4217
        %v5506 = vunpack.c.h.b16 %v4217
        %v5507 = vunpack.c.l.b16 %v4218
        %v5508 = vpack.c.b16 %v5323, %v5318
        %v5509 = vpack.c.b16 %v5324, %v5319
        %v5510 = vpack.c.b16 %v5325, %v5320
        %v5511 = vpack.c.b16 %v5326, %v5321
        %v5512 = vpack.c.b16 %v5327, %v5322
        %v5513 = vpack.c.b16 %v5333, %v5328
        %v5514 = vpack.c.b16 %v5334, %v5329
        %v5515 = vpack.c.b16 %v5335, %v5330
        %v5516 = vpack.c.b16 %v5336, %v5331
        %v5517 = vpack.c.b16 %v5337, %v5332
        %v5518 = vpack.c.b16 %v5343, %v5338
        %v5519 = vpack.c.b16 %v5344, %v5339
        %v5520 = vpack.c.b16 %v5345, %v5340
        %v5521 = vpack.c.b16 %v5346, %v5341
        %v5522 = vpack.c.b16 %v5347, %v5342
        %v5523 = vpack.c.b16 %v5353, %v5348
        %v5524 = vpack.c.b16 %v5354, %v5349
        %v5525 = vpack.c.b16 %v5355, %v5350
        %v5526 = vpack.c.b16 %v5356, %v5351
        %v5527 = vpack.c.b16 %v5357, %v5352
        %v5528 = vpack.c.b16 %v5363, %v5358
        %v5529 = vpack.c.b16 %v5364, %v5359
        %v5530 = vpack.c.b16 %v5365, %v5360
        %v5531 = vpack.c.b16 %v5366, %v5361
        %v5532 = vpack.c.b16 %v5367, %v5362
        %v5533 = vpack.c.b16 %v5373, %v5368
        %v5534 = vpack.c.b16 %v5374, %v5369
        %v5535 = vpack.c.b16 %v5375, %v5370
        %v5536 = vpack.c.b16 %v5376, %v5371
        %v5537 = vpack.c.b16 %v5377, %v5372
        %v5538 = vpack.c.b16 %v5383, %v5378
        %v5539 = vpack.c.b16 %v5384, %v5379
        %v5540 = vpack.c.b16 %v5385, %v5380
        %v5541 = vpack.c.b16 %v5386, %v5381
        %v5542 = vpack.c.b16 %v5387, %v5382
        %v5543 = vpack.c.b16 %v5393, %v5388
        %v5544 = vpack.c.b16 %v5394, %v5389
        %v5545 = vpack.c.b16 %v5395, %v5390
        %v5546 = vpack.c.b16 %v5396, %v5391
        %v5547 = vpack.c.b16 %v5397, %v5392
        %v5548 = vpack.c.b16 %v5403, %v5398
        %v5549 = vpack.c.b16 %v5404, %v5399
        %v5550 = vpack.c.b16 %v5405, %v5400
        %v5551 = vpack.c.b16 %v5406, %v5401
        %v5552 = vpack.c.b16 %v5407, %v5402
        %v5553 = vpack.c.b16 %v5413, %v5408
        %v5554 = vpack.c.b16 %v5414, %v5409
        %v5555 = vpack.c.b16 %v5415, %v5410
        %v5556 = vpack.c.b16 %v5416, %v5411
        %v5557 = vpack.c.b16 %v5417, %v5412
        %v5558 = vpack.c.b16 %v5423, %v5418
        %v5559 = vpack.c.b16 %v5424, %v5419
        %v5560 = vpack.c.b16 %v5425, %v5420
        %v5561 = vpack.c.b16 %v5426, %v5421
        %v5562 = vpack.c.b16 %v5427, %v5422
        %v5563 = vpack.c.b16 %v5433, %v5428
        %v5564 = vpack.c.b16 %v5434, %v5429
        %v5565 = vpack.c.b16 %v5435, %v5430
        %v5566 = vpack.c.b16 %v5436, %v5431
        %v5567 = vpack.c.b16 %v5437, %v5432
        %v5568 = vpack.c.b16 %v5443, %v5438
        %v5569 = vpack.c.b16 %v5444, %v5439
        %v5570 = vpack.c.b16 %v5445, %v5440
        %v5571 = vpack.c.b16 %v5446, %v5441
        %v5572 = vpack.c.b16 %v5447, %v5442
        %v5573 = vpack.c.b16 %v5453, %v5448
        %v5574 = vpack.c.b16 %v5454, %v5449
        %v5575 = vpack.c.b16 %v5455, %v5450
        %v5576 = vpack.c.b16 %v5456, %v5451
        %v5577 = vpack.c.b16 %v5457, %v5452
        %v5578 = vpack.c.b16 %v5463, %v5458
        %v5579 = vpack.c.b16 %v5464, %v5459
        %v5580 = vpack.c.b16 %v5465, %v5460
        %v5581 = vpack.c.b16 %v5466, %v5461
        %v5582 = vpack.c.b16 %v5467, %v5462
        %v5583 = vpack.c.b16 %v5473, %v5468
        %v5584 = vpack.c.b16 %v5474, %v5469
        %v5585 = vpack.c.b16 %v5475, %v5470
        %v5586 = vpack.c.b16 %v5476, %v5471
        %v5587 = vpack.c.b16 %v5477, %v5472
        %v5588 = vpack.c.b16 %v5483, %v5478
        %v5589 = vpack.c.b16 %v5484, %v5479
        %v5590 = vpack.c.b16 %v5485, %v5480
        %v5591 = vpack.c.b16 %v5486, %v5481
        %v5592 = vpack.c.b16 %v5487, %v5482
        %v5593 = vpack.c.b16 %v5493, %v5488
        %v5594 = vpack.c.b16 %v5494, %v5489
        %v5595 = vpack.c.b16 %v5495, %v5490
        %v5596 = vpack.c.b16 %v5496, %v5491
        %v5597 = vpack.c.b16 %v5497, %v5492
        %v5598 = vpack.c.b16 %v5503, %v5498
        %v5599 = vpack.c.b16 %v5504, %v5499
        %v5600 = vpack.c.b16 %v5505, %v5500
        %v5601 = vpack.c.b16 %v5506, %v5501
        %v5602 = vpack.c.b16 %v5507, %v5502
        %v5693 = vsel %vm4872, %v4101, 0
        %v5695 = vsel %vm4872, %v4104, 0
        %v5698 = vsel %vm2517, %v5598, 0
        %v5701 = vsel %vm2517, %v5599, 0
        %v5704 = vsel %vm2517, %v5600, 0
        %v5707 = vsel %vm2517, %v5601, 0
        %v5710 = vsel %vm2517, %v5602, 0
        %5712 = vmatprep.subr.bf16.mxu0 %v5544
        %5713 = vmatpush1.bf16.msra.mxu0 %v5543
        %5714 = vmatprep.subr.bf16.mxu0 %v5539
        %5715 = vmatpush1.bf16.msra.mxu0 %v5538
        %5716 = vmatprep.subr.bf16.mxu0 %v5534
        %5717 = vmatpush1.bf16.msra.mxu0 %v5533
        %5718 = vmatprep.subr.bf16.mxu0 %v5529
        %5719 = vmatpush1.bf16.msra.mxu0 %v5528
        %5720 = vmatprep.subr.bf16.mxu0 %v5524
        %5721 = vmatpush1.bf16.msra.mxu0 %v5523
        %5722 = vmatprep.subr.bf16.mxu0 %v5519
        %5723 = vmatpush1.bf16.msra.mxu0 %v5518
        %5724 = vmatprep.subr.bf16.mxu0 %v5514
        %5725 = vmatpush1.bf16.msra.mxu0 %v5513
        %5726 = vmatprep.subr.bf16.mxu0 %v5509
        %5727 = vmatpush1.bf16.msra.mxu0 %v5508
        %5728 = vmatprep.subr.bf16.mxu0 %v5584
        %5729 = vmatpush2.bf16.msra.mxu0 %v5583
        %5730 = vmatprep.subr.bf16.mxu0 %v5579
        %5731 = vmatpush2.bf16.msra.mxu0 %v5578
        %5732 = vmatprep.subr.bf16.mxu0 %v5574
        %5733 = vmatpush2.bf16.msra.mxu0 %v5573
        %5734 = vmatprep.subr.bf16.mxu0 %v5569
        %5735 = vmatpush2.bf16.msra.mxu0 %v5568
        %5736 = vmatprep.subr.bf16.mxu0 %v5564
        %5737 = vmatpush2.bf16.msra.mxu0 %v5563
        %5738 = vmatprep.subr.bf16.mxu0 %v5559
        %5739 = vmatpush2.bf16.msra.mxu0 %v5558
        %5740 = vmatprep.subr.bf16.mxu0 %v5554
        %5741 = vmatpush2.bf16.msra.mxu0 %v5553
        %5742 = vmatprep.subr.bf16.mxu0 %v5549
        %5743 = vmatpush2.bf16.msra.mxu0 %v5548
        %5744 = vmatprep.mubr.bf16.mxu0 %v4100
        %5745 = vmatmul.mubr.bf16.gmra.mxu0 %v4099
        %v5746 = vpop.f32.mrf.mxu0
        %v5747 = vadd.f32 %v4982, %v5746
        %v5748 = vpop.f32.mrf.mxu0
        %v5749 = vadd.f32 %v4984, %v5748
        %v5750 = vpop.f32.mrf.mxu0
        %v5751 = vadd.f32 %v4986, %v5750
        %v5752 = vpop.f32.mrf.mxu0
        %v5753 = vadd.f32 %v4988, %v5752
        %5754 = vmatprep.mubr.bf16.mxu0 %v4103
        %5755 = vmatmul.mubr.bf16.gmra.mxu0 %v4102
        %v5756 = vpop.f32.mrf.mxu0
        %v5757 = vadd.f32 %v4992, %v5756
        %v5758 = vpop.f32.mrf.mxu0
        %v5759 = vadd.f32 %v4994, %v5758
        %v5760 = vpop.f32.mrf.mxu0
        %v5761 = vadd.f32 %v4996, %v5760
        %v5762 = vpop.f32.mrf.mxu0
        %v5763 = vadd.f32 %v4998, %v5762
        %5764 = vdwg.mxu0
        %5765 = vmatprep.subr.bf16.mxu0 0
        %5766 = vmatpush1.bf16.msra.mxu0 0
        %5767 = vmatprep.subr.bf16.mxu0 0
        %5768 = vmatpush1.bf16.msra.mxu0 0
        %5769 = vmatprep.subr.bf16.mxu0 0
        %5770 = vmatpush1.bf16.msra.mxu0 0
        %5771 = vmatprep.subr.bf16.mxu0 0
        %5772 = vmatpush1.bf16.msra.mxu0 0
        %5773 = vmatprep.subr.bf16.mxu0 0
        %5774 = vmatpush1.bf16.msra.mxu0 0
        %5775 = vmatprep.subr.bf16.mxu0 %v5701
        %5776 = vmatpush1.bf16.msra.mxu0 %v5698
        %5777 = vmatprep.subr.bf16.mxu0 %v5594
        %5778 = vmatpush1.bf16.msra.mxu0 %v5593
        %5779 = vmatprep.subr.bf16.mxu0 %v5589
        %5780 = vmatpush1.bf16.msra.mxu0 %v5588
        %5781 = vmatprep.subr.bf16.mxu0 0
        %5782 = vmatpush2.bf16.msra.mxu0 0
        %5783 = vmatprep.subr.bf16.mxu0 0
        %5784 = vmatpush2.bf16.msra.mxu0 0
        %5785 = vmatprep.subr.bf16.mxu0 0
        %5786 = vmatpush2.bf16.msra.mxu0 0
        %5787 = vmatprep.subr.bf16.mxu0 0
        %5788 = vmatpush2.bf16.msra.mxu0 0
        %5789 = vmatprep.subr.bf16.mxu0 0
        %5790 = vmatpush2.bf16.msra.mxu0 0
        %5791 = vmatprep.subr.bf16.mxu0 0
        %5792 = vmatpush2.bf16.msra.mxu0 0
        %5793 = vmatprep.subr.bf16.mxu0 0
        %5794 = vmatpush2.bf16.msra.mxu0 0
        %5795 = vmatprep.subr.bf16.mxu0 0
        %5796 = vmatpush2.bf16.msra.mxu0 0
        %5797 = vmatprep.mubr.bf16.mxu0 0
        %5798 = vmatmul.mubr.bf16.gmra.mxu0 %v5693
        %v5799 = vpop.f32.mrf.mxu0
        %v5800 = vadd.f32 %v5747, %v5799
        %v5801 = vpop.f32.mrf.mxu0
        %v5802 = vadd.f32 %v5749, %v5801
        %v5803 = vpop.f32.mrf.mxu0
        %v5804 = vadd.f32 %v5751, %v5803
        %v5805 = vpop.f32.mrf.mxu0
        %v5806 = vadd.f32 %v5753, %v5805
        %5807 = vmatprep.mubr.bf16.mxu0 0
        %5808 = vmatmul.mubr.bf16.gmra.mxu0 %v5695
        %v5809 = vpop.f32.mrf.mxu0
        %v5810 = vadd.f32 %v5757, %v5809
        %v5811 = vpop.f32.mrf.mxu0
        %v5812 = vadd.f32 %v5759, %v5811
        %v5813 = vpop.f32.mrf.mxu0
        %v5814 = vadd.f32 %v5761, %v5813
        %v5815 = vpop.f32.mrf.mxu0
        %v5816 = vadd.f32 %v5763, %v5815
        %5817 = vdwg.mxu0
        %5818 = vmatprep.subr.bf16.mxu0 %v5546
        %5819 = vmatpush1.bf16.msra.mxu0 %v5545
        %5820 = vmatprep.subr.bf16.mxu0 %v5541
        %5821 = vmatpush1.bf16.msra.mxu0 %v5540
        %5822 = vmatprep.subr.bf16.mxu0 %v5536
        %5823 = vmatpush1.bf16.msra.mxu0 %v5535
        %5824 = vmatprep.subr.bf16.mxu0 %v5531
        %5825 = vmatpush1.bf16.msra.mxu0 %v5530
        %5826 = vmatprep.subr.bf16.mxu0 %v5526
        %5827 = vmatpush1.bf16.msra.mxu0 %v5525
        %5828 = vmatprep.subr.bf16.mxu0 %v5521
        %5829 = vmatpush1.bf16.msra.mxu0 %v5520
        %5830 = vmatprep.subr.bf16.mxu0 %v5516
        %5831 = vmatpush1.bf16.msra.mxu0 %v5515
        %5832 = vmatprep.subr.bf16.mxu0 %v5511
        %5833 = vmatpush1.bf16.msra.mxu0 %v5510
        %5834 = vmatprep.subr.bf16.mxu0 %v5586
        %5835 = vmatpush2.bf16.msra.mxu0 %v5585
        %5836 = vmatprep.subr.bf16.mxu0 %v5581
        %5837 = vmatpush2.bf16.msra.mxu0 %v5580
        %5838 = vmatprep.subr.bf16.mxu0 %v5576
        %5839 = vmatpush2.bf16.msra.mxu0 %v5575
        %5840 = vmatprep.subr.bf16.mxu0 %v5571
        %5841 = vmatpush2.bf16.msra.mxu0 %v5570
        %5842 = vmatprep.subr.bf16.mxu0 %v5566
        %5843 = vmatpush2.bf16.msra.mxu0 %v5565
        %5844 = vmatprep.subr.bf16.mxu0 %v5561
        %5845 = vmatpush2.bf16.msra.mxu0 %v5560
        %5846 = vmatprep.subr.bf16.mxu0 %v5556
        %5847 = vmatpush2.bf16.msra.mxu0 %v5555
        %5848 = vmatprep.subr.bf16.mxu0 %v5551
        %5849 = vmatpush2.bf16.msra.mxu0 %v5550
        %5850 = vmatprep.mubr.bf16.mxu0 %v4100
        %5851 = vmatmul.mubr.bf16.gmra.mxu0 %v4099
        %v5852 = vpop.f32.mrf.mxu0
        %v5853 = vadd.f32 %v5088, %v5852
        %v5854 = vpop.f32.mrf.mxu0
        %v5855 = vadd.f32 %v5090, %v5854
        %v5856 = vpop.f32.mrf.mxu0
        %v5857 = vadd.f32 %v5092, %v5856
        %v5858 = vpop.f32.mrf.mxu0
        %v5859 = vadd.f32 %v5094, %v5858
        %5860 = vmatprep.mubr.bf16.mxu0 %v4103
        %5861 = vmatmul.mubr.bf16.gmra.mxu0 %v4102
        %v5862 = vpop.f32.mrf.mxu0
        %v5863 = vadd.f32 %v5098, %v5862
        %v5864 = vpop.f32.mrf.mxu0
        %v5865 = vadd.f32 %v5100, %v5864
        %v5866 = vpop.f32.mrf.mxu0
        %v5867 = vadd.f32 %v5102, %v5866
        %v5868 = vpop.f32.mrf.mxu0
        %v5869 = vadd.f32 %v5104, %v5868
        %5870 = vdwg.mxu0
        %5871 = vmatprep.subr.bf16.mxu0 0
        %5872 = vmatpush1.bf16.msra.mxu0 0
        %5873 = vmatprep.subr.bf16.mxu0 0
        %5874 = vmatpush1.bf16.msra.mxu0 0
        %5875 = vmatprep.subr.bf16.mxu0 0
        %5876 = vmatpush1.bf16.msra.mxu0 0
        %5877 = vmatprep.subr.bf16.mxu0 0
        %5878 = vmatpush1.bf16.msra.mxu0 0
        %5879 = vmatprep.subr.bf16.mxu0 0
        %5880 = vmatpush1.bf16.msra.mxu0 0
        %5881 = vmatprep.subr.bf16.mxu0 %v5707
        %5882 = vmatpush1.bf16.msra.mxu0 %v5704
        %5883 = vmatprep.subr.bf16.mxu0 %v5596
        %5884 = vmatpush1.bf16.msra.mxu0 %v5595
        %5885 = vmatprep.subr.bf16.mxu0 %v5591
        %5886 = vmatpush1.bf16.msra.mxu0 %v5590
        %5887 = vmatprep.subr.bf16.mxu0 0
        %5888 = vmatpush2.bf16.msra.mxu0 0
        %5889 = vmatprep.subr.bf16.mxu0 0
        %5890 = vmatpush2.bf16.msra.mxu0 0
        %5891 = vmatprep.subr.bf16.mxu0 0
        %5892 = vmatpush2.bf16.msra.mxu0 0
        %5893 = vmatprep.subr.bf16.mxu0 0
        %5894 = vmatpush2.bf16.msra.mxu0 0
        %5895 = vmatprep.subr.bf16.mxu0 0
        %5896 = vmatpush2.bf16.msra.mxu0 0
        %5897 = vmatprep.subr.bf16.mxu0 0
        %5898 = vmatpush2.bf16.msra.mxu0 0
        %5899 = vmatprep.subr.bf16.mxu0 0
        %5900 = vmatpush2.bf16.msra.mxu0 0
        %5901 = vmatprep.subr.bf16.mxu0 0
        %5902 = vmatpush2.bf16.msra.mxu0 0
        %5903 = vmatprep.mubr.bf16.mxu0 0
        %5904 = vmatmul.mubr.bf16.gmra.mxu0 %v5693
        %v5905 = vpop.f32.mrf.mxu0
        %v5906 = vadd.f32 %v5853, %v5905
        %v5907 = vpop.f32.mrf.mxu0
        %v5908 = vadd.f32 %v5855, %v5907
        %v5909 = vpop.f32.mrf.mxu0
        %v5910 = vadd.f32 %v5857, %v5909
        %v5911 = vpop.f32.mrf.mxu0
        %v5912 = vadd.f32 %v5859, %v5911
        %5913 = vmatprep.mubr.bf16.mxu0 0
        %5914 = vmatmul.mubr.bf16.gmra.mxu0 %v5695
        %v5915 = vpop.f32.mrf.mxu0
        %v5916 = vadd.f32 %v5863, %v5915
        %v5917 = vpop.f32.mrf.mxu0
        %v5918 = vadd.f32 %v5865, %v5917
        %v5919 = vpop.f32.mrf.mxu0
        %v5920 = vadd.f32 %v5867, %v5919
        %v5921 = vpop.f32.mrf.mxu0
        %v5922 = vadd.f32 %v5869, %v5921
        %5923 = vdwg.mxu0
        %5924 = vmatprep.subr.bf16.mxu0 0
        %5925 = vmatpush1.bf16.msra.mxu0 %v5547
        %5926 = vmatprep.subr.bf16.mxu0 0
        %5927 = vmatpush1.bf16.msra.mxu0 %v5542
        %5928 = vmatprep.subr.bf16.mxu0 0
        %5929 = vmatpush1.bf16.msra.mxu0 %v5537
        %5930 = vmatprep.subr.bf16.mxu0 0
        %5931 = vmatpush1.bf16.msra.mxu0 %v5532
        %5932 = vmatprep.subr.bf16.mxu0 0
        %5933 = vmatpush1.bf16.msra.mxu0 %v5527
        %5934 = vmatprep.subr.bf16.mxu0 0
        %5935 = vmatpush1.bf16.msra.mxu0 %v5522
        %5936 = vmatprep.subr.bf16.mxu0 0
        %5937 = vmatpush1.bf16.msra.mxu0 %v5517
        %5938 = vmatprep.subr.bf16.mxu0 0
        %5939 = vmatpush1.bf16.msra.mxu0 %v5512
        %5940 = vmatprep.subr.bf16.mxu0 0
        %5941 = vmatpush2.bf16.msra.mxu0 %v5587
        %5942 = vmatprep.subr.bf16.mxu0 0
        %5943 = vmatpush2.bf16.msra.mxu0 %v5582
        %5944 = vmatprep.subr.bf16.mxu0 0
        %5945 = vmatpush2.bf16.msra.mxu0 %v5577
        %5946 = vmatprep.subr.bf16.mxu0 0
        %5947 = vmatpush2.bf16.msra.mxu0 %v5572
        %5948 = vmatprep.subr.bf16.mxu0 0
        %5949 = vmatpush2.bf16.msra.mxu0 %v5567
        %5950 = vmatprep.subr.bf16.mxu0 0
        %5951 = vmatpush2.bf16.msra.mxu0 %v5562
        %5952 = vmatprep.subr.bf16.mxu0 0
        %5953 = vmatpush2.bf16.msra.mxu0 %v5557
        %5954 = vmatprep.subr.bf16.mxu0 0
        %5955 = vmatpush2.bf16.msra.mxu0 %v5552
        %5956 = vmatprep.mubr.bf16.mxu0 %v4100
        %5957 = vmatmul.mubr.bf16.gmra.mxu0 %v4099
        %v5958 = vpop.f32.mrf.mxu0
        %v5959 = vadd.f32 %v5190, %v5958
        %v5960 = vpop.f32.mrf.mxu0
        %v5961 = vpop.f32.mrf.mxu0
        %v5962 = vadd.f32 %v5193, %v5961
        %v5963 = vpop.f32.mrf.mxu0
        %5964 = vmatprep.mubr.bf16.mxu0 %v4103
        %5965 = vmatmul.mubr.bf16.gmra.mxu0 %v4102
        %v5966 = vpop.f32.mrf.mxu0
        %v5967 = vadd.f32 %v5198, %v5966
        %v5968 = vpop.f32.mrf.mxu0
        %v5969 = vpop.f32.mrf.mxu0
        %v5970 = vadd.f32 %v5201, %v5969
        %v5971 = vpop.f32.mrf.mxu0
        %5972 = vdwg.mxu0
        %5973 = vmatprep.subr.bf16.mxu0 0
        %5974 = vmatpush1.bf16.msra.mxu0 0
        %5975 = vmatprep.subr.bf16.mxu0 0
        %5976 = vmatpush1.bf16.msra.mxu0 0
        %5977 = vmatprep.subr.bf16.mxu0 0
        %5978 = vmatpush1.bf16.msra.mxu0 0
        %5979 = vmatprep.subr.bf16.mxu0 0
        %5980 = vmatpush1.bf16.msra.mxu0 0
        %5981 = vmatprep.subr.bf16.mxu0 0
        %5982 = vmatpush1.bf16.msra.mxu0 0
        %5983 = vmatprep.subr.bf16.mxu0 0
        %5984 = vmatpush1.bf16.msra.mxu0 %v5710
        %5985 = vmatprep.subr.bf16.mxu0 0
        %5986 = vmatpush1.bf16.msra.mxu0 %v5597
        %5987 = vmatprep.subr.bf16.mxu0 0
        %5988 = vmatpush1.bf16.msra.mxu0 %v5592
        %5989 = vmatprep.subr.bf16.mxu0 0
        %5990 = vmatpush2.bf16.msra.mxu0 0
        %5991 = vmatprep.subr.bf16.mxu0 0
        %5992 = vmatpush2.bf16.msra.mxu0 0
        %5993 = vmatprep.subr.bf16.mxu0 0
        %5994 = vmatpush2.bf16.msra.mxu0 0
        %5995 = vmatprep.subr.bf16.mxu0 0
        %5996 = vmatpush2.bf16.msra.mxu0 0
        %5997 = vmatprep.subr.bf16.mxu0 0
        %5998 = vmatpush2.bf16.msra.mxu0 0
        %5999 = vmatprep.subr.bf16.mxu0 0
        %6000 = vmatpush2.bf16.msra.mxu0 0
        %6001 = vmatprep.subr.bf16.mxu0 0
        %6002 = vmatpush2.bf16.msra.mxu0 0
        %6003 = vmatprep.subr.bf16.mxu0 0
        %6004 = vmatpush2.bf16.msra.mxu0 0
        %6005 = vmatprep.mubr.bf16.mxu0 0
        %6006 = vmatmul.mubr.bf16.gmra.mxu0 %v5693
        %v6007 = vpop.f32.mrf.mxu0
        %v6008 = vadd.f32 %v5959, %v6007
        %v6009 = vpop.f32.mrf.mxu0
        %v6010 = vpop.f32.mrf.mxu0
        %v6011 = vadd.f32 %v5962, %v6010
        %v6012 = vpop.f32.mrf.mxu0
        %6013 = vmatprep.mubr.bf16.mxu0 0
        %6014 = vmatmul.mubr.bf16.gmra.mxu0 %v5695
        %v6015 = vpop.f32.mrf.mxu0
        %v6016 = vadd.f32 %v5967, %v6015
        %v6017 = vpop.f32.mrf.mxu0
        %v6018 = vpop.f32.mrf.mxu0
        %v6019 = vadd.f32 %v5970, %v6018
        %v6020 = vpop.f32.mrf.mxu0
        %6021 = vdwg.mxu0
        %s6022 = scalar_lea.vmem [#allocation10], 1520
        %v6023 = vld [vmem:[%s6022] sm:$0xff]
        %v6024 = vld [vmem:[%s6022 + $0x8] sm:$0xff]
        %v6025 = vld [vmem:[%s6022 + $0x10] sm:$0xf]
        %v6026 = vld [vmem:[%s6022 + $0x14] sm:$0xff]
        %v6027 = vld [vmem:[%s6022 + $0x1c] sm:$0xff]
        %v6028 = vld [vmem:[%s6022 + $0x24] sm:$0xf]
        %v6029 = vld [vmem:[%s6022 + $0x28] sm:$0xff]
        %v6030 = vld [vmem:[%s6022 + $0x30] sm:$0xff]
        %v6031 = vld [vmem:[%s6022 + $0x38] sm:$0xf]
        %v6032 = vld [vmem:[%s6022 + $0x3c] sm:$0xff]
        %v6033 = vld [vmem:[%s6022 + $0x44] sm:$0xff]
        %v6034 = vld [vmem:[%s6022 + $0x4c] sm:$0xf]
        %v6035 = vld [vmem:[%s6022 + $0x50] sm:$0xff]
        %v6036 = vld [vmem:[%s6022 + $0x58] sm:$0xff]
        %v6037 = vld [vmem:[%s6022 + $0x60] sm:$0xf]
        %v6038 = vld [vmem:[%s6022 + $0x64] sm:$0xff]
        %v6039 = vld [vmem:[%s6022 + $0x6c] sm:$0xff]
        %v6040 = vld [vmem:[%s6022 + $0x74] sm:$0xf]
        %v6041 = vld [vmem:[%s6022 + $0x78] sm:$0xff]
        %v6042 = vld [vmem:[%s6022 + $0x80] sm:$0xff]
        %v6043 = vld [vmem:[%s6022 + $0x88] sm:$0xf]
        %v6044 = vld [vmem:[%s6022 + $0x8c] sm:$0xff]
        %v6045 = vld [vmem:[%s6022 + $0x94] sm:$0xff]
        %v6046 = vld [vmem:[%s6022 + $0x9c] sm:$0xf]
        %v6047 = vld [vmem:[%s6022 + $0xa0] sm:$0xff]
        %v6048 = vld [vmem:[%s6022 + $0xa8] sm:$0xff]
        %v6049 = vld [vmem:[%s6022 + $0xb0] sm:$0xf]
        %v6050 = vld [vmem:[%s6022 + $0xb4] sm:$0xff]
        %v6051 = vld [vmem:[%s6022 + $0xbc] sm:$0xff]
        %v6052 = vld [vmem:[%s6022 + $0xc4] sm:$0xf]
        %v6053 = vld [vmem:[%s6022 + $0xc8] sm:$0xff]
        %v6054 = vld [vmem:[%s6022 + $0xd0] sm:$0xff]
        %v6055 = vld [vmem:[%s6022 + $0xd8] sm:$0xf]
        %v6056 = vld [vmem:[%s6022 + $0xdc] sm:$0xff]
        %v6057 = vld [vmem:[%s6022 + $0xe4] sm:$0xff]
        %v6058 = vld [vmem:[%s6022 + $0xec] sm:$0xf]
        %v6059 = vld [vmem:[%s6022 + $0xf0] sm:$0xff]
        %v6060 = vld [vmem:[%s6022 + $0xf8] sm:$0xff]
        %v6061 = vld [vmem:[%s6022 + $0x100] sm:$0xf]
        %v6062 = vld [vmem:[%s6022 + $0x104] sm:$0xff]
        %v6063 = vld [vmem:[%s6022 + $0x10c] sm:$0xff]
        %v6064 = vld [vmem:[%s6022 + $0x114] sm:$0xf]
        %v6065 = vld [vmem:[%s6022 + $0x118] sm:$0xff]
        %v6066 = vld [vmem:[%s6022 + $0x120] sm:$0xff]
        %v6067 = vld [vmem:[%s6022 + $0x128] sm:$0xf]
        %v6068 = vld [vmem:[%s6022 + $0x12c] sm:$0xff]
        %v6069 = vld [vmem:[%s6022 + $0x134] sm:$0xff]
        %v6070 = vld [vmem:[%s6022 + $0x13c] sm:$0xf]
        %v6071 = vld [vmem:[%s6022 + $0x140] sm:$0xff]
        %v6072 = vld [vmem:[%s6022 + $0x148] sm:$0xff]
        %v6073 = vld [vmem:[%s6022 + $0x150] sm:$0xf]
        %v6074 = vld [vmem:[%s6022 + $0x154] sm:$0xff]
        %v6075 = vld [vmem:[%s6022 + $0x15c] sm:$0xff]
        %v6076 = vld [vmem:[%s6022 + $0x164] sm:$0xf]
        %v6077 = vld [vmem:[%s6022 + $0x168] sm:$0xff]
        %v6078 = vld [vmem:[%s6022 + $0x170] sm:$0xff]
        %v6079 = vld [vmem:[%s6022 + $0x178] sm:$0xf]
        %v6080 = vld [vmem:[%s6022 + $0x17c] sm:$0xff]
        %v6081 = vld [vmem:[%s6022 + $0x184] sm:$0xff]
        %v6082 = vld [vmem:[%s6022 + $0x18c] sm:$0xf]
        %v6083 = vld [vmem:[%s6022 + $0x190] sm:$0xff]
        %v6084 = vld [vmem:[%s6022 + $0x198] sm:$0xff]
        %v6085 = vld [vmem:[%s6022 + $0x1a0] sm:$0xf]
        %v6086 = vld [vmem:[%s6022 + $0x1a4] sm:$0xff]
        %v6087 = vld [vmem:[%s6022 + $0x1ac] sm:$0xff]
        %v6088 = vld [vmem:[%s6022 + $0x1b4] sm:$0xf]
        %v6089 = vld [vmem:[%s6022 + $0x1b8] sm:$0xff]
        %v6090 = vld [vmem:[%s6022 + $0x1c0] sm:$0xff]
        %v6091 = vld [vmem:[%s6022 + $0x1c8] sm:$0xf]
        %v6092 = vld [vmem:[%s6022 + $0x1cc] sm:$0xff]
        %v6093 = vld [vmem:[%s6022 + $0x1d4] sm:$0xff]
        %v6094 = vld [vmem:[%s6022 + $0x1dc] sm:$0xf]
        %v6095 = vld [vmem:[%s6022 + $0x1e0] sm:$0xff]
        %v6096 = vld [vmem:[%s6022 + $0x1e8] sm:$0xff]
        %v6097 = vld [vmem:[%s6022 + $0x1f0] sm:$0xf]
        %v6098 = vld [vmem:[%s6022 + $0x1f4] sm:$0xff]
        %v6099 = vld [vmem:[%s6022 + $0x1fc] sm:$0xff]
        %v6100 = vld [vmem:[%s6022 + $0x204] sm:$0xf]
        %v6101 = vld [vmem:[%s6022 + $0x208] sm:$0xff]
        %v6102 = vld [vmem:[%s6022 + $0x210] sm:$0xff]
        %v6103 = vld [vmem:[%s6022 + $0x218] sm:$0xf]
        %v6104 = vld [vmem:[%s6022 + $0x21c] sm:$0xff]
        %v6105 = vld [vmem:[%s6022 + $0x224] sm:$0xff]
        %v6106 = vld [vmem:[%s6022 + $0x22c] sm:$0xf]
        %v6107 = vld [vmem:[%s6022 + $0x230] sm:$0xff]
        %v6108 = vld [vmem:[%s6022 + $0x238] sm:$0xff]
        %v6109 = vld [vmem:[%s6022 + $0x240] sm:$0xf]
        %v6110 = vld [vmem:[%s6022 + $0x244] sm:$0xff]
        %v6111 = vld [vmem:[%s6022 + $0x24c] sm:$0xff]
        %v6112 = vld [vmem:[%s6022 + $0x254] sm:$0xf]
        %v6113 = vld [vmem:[%s6022 + $0x258] sm:$0xff]
        %v6114 = vld [vmem:[%s6022 + $0x260] sm:$0xff]
        %v6115 = vld [vmem:[%s6022 + $0x268] sm:$0xf]
        %v6116 = vld [vmem:[%s6022 + $0x26c] sm:$0xff]
        %v6117 = vld [vmem:[%s6022 + $0x274] sm:$0xff]
        %v6118 = vld [vmem:[%s6022 + $0x27c] sm:$0xf]
        %v6119 = vld [vmem:[%s6022 + $0x280] sm:$0xff]
        %v6120 = vld [vmem:[%s6022 + $0x288] sm:$0xff]
        %v6121 = vld [vmem:[%s6022 + $0x290] sm:$0xf]
        %v6122 = vld [vmem:[%s6022 + $0x294] sm:$0xff]
        %v6123 = vld [vmem:[%s6022 + $0x29c] sm:$0xff]
        %v6124 = vld [vmem:[%s6022 + $0x2a4] sm:$0xf]
        %v6125 = vld [vmem:[%s6022 + $0x2a8] sm:$0xff]
        %v6126 = vld [vmem:[%s6022 + $0x2b0] sm:$0xff]
        %v6127 = vld [vmem:[%s6022 + $0x2b8] sm:$0xf]
        %v6128 = vld [vmem:[%s6022 + $0x2bc] sm:$0xff]
        %v6129 = vld [vmem:[%s6022 + $0x2c4] sm:$0xff]
        %v6130 = vld [vmem:[%s6022 + $0x2cc] sm:$0xf]
        %v6131 = vld [vmem:[%s6022 + $0x2d0] sm:$0xff]
        %v6132 = vld [vmem:[%s6022 + $0x2d8] sm:$0xff]
        %v6133 = vld [vmem:[%s6022 + $0x2e0] sm:$0xf]
        %v6134 = vld [vmem:[%s6022 + $0x2e4] sm:$0x33]
        %v6135 = vld [vmem:[%s6022 + $0x2ec] sm:$0x33]
        %v6136 = vld [vmem:[%s6022 + $0x2f4] sm:$0x3]
        %v6143 = vrot.slane %v4099, 1
        %v6144 = vrot.slane %v4102, 1
        %v6145 = vsel %vm1293, %v6143, %v6144
        %v6146 = vrot.slane %v4100, 1
        %v6147 = vrot.slane %v4103, 1
        %v6148 = vsel %vm1293, %v6146, %v6147
        %v6149 = vrot.slane %v4101, 1
        %v6150 = vrot.slane %v4104, 1
        %v6151 = vsel %vm1293, %v6149, %v6150
        %v6270 = vunpack.c.l.b16 %v6023
        %v6271 = vunpack.c.h.b16 %v6023
        %v6272 = vunpack.c.l.b16 %v6024
        %v6273 = vunpack.c.h.b16 %v6024
        %v6274 = vunpack.c.l.b16 %v6025
        %v6275 = vunpack.c.l.b16 %v6026
        %v6276 = vunpack.c.h.b16 %v6026
        %v6277 = vunpack.c.l.b16 %v6027
        %v6278 = vunpack.c.h.b16 %v6027
        %v6279 = vunpack.c.l.b16 %v6028
        %v6280 = vunpack.c.l.b16 %v6029
        %v6281 = vunpack.c.h.b16 %v6029
        %v6282 = vunpack.c.l.b16 %v6030
        %v6283 = vunpack.c.h.b16 %v6030
        %v6284 = vunpack.c.l.b16 %v6031
        %v6285 = vunpack.c.l.b16 %v6032
        %v6286 = vunpack.c.h.b16 %v6032
        %v6287 = vunpack.c.l.b16 %v6033
        %v6288 = vunpack.c.h.b16 %v6033
        %v6289 = vunpack.c.l.b16 %v6034
        %v6290 = vunpack.c.l.b16 %v6035
        %v6291 = vunpack.c.h.b16 %v6035
        %v6292 = vunpack.c.l.b16 %v6036
        %v6293 = vunpack.c.h.b16 %v6036
        %v6294 = vunpack.c.l.b16 %v6037
        %v6295 = vunpack.c.l.b16 %v6038
        %v6296 = vunpack.c.h.b16 %v6038
        %v6297 = vunpack.c.l.b16 %v6039
        %v6298 = vunpack.c.h.b16 %v6039
        %v6299 = vunpack.c.l.b16 %v6040
        %v6300 = vunpack.c.l.b16 %v6041
        %v6301 = vunpack.c.h.b16 %v6041
        %v6302 = vunpack.c.l.b16 %v6042
        %v6303 = vunpack.c.h.b16 %v6042
        %v6304 = vunpack.c.l.b16 %v6043
        %v6305 = vunpack.c.l.b16 %v6044
        %v6306 = vunpack.c.h.b16 %v6044
        %v6307 = vunpack.c.l.b16 %v6045
        %v6308 = vunpack.c.h.b16 %v6045
        %v6309 = vunpack.c.l.b16 %v6046
        %v6310 = vunpack.c.l.b16 %v6047
        %v6311 = vunpack.c.h.b16 %v6047
        %v6312 = vunpack.c.l.b16 %v6048
        %v6313 = vunpack.c.h.b16 %v6048
        %v6314 = vunpack.c.l.b16 %v6049
        %v6315 = vunpack.c.l.b16 %v6050
        %v6316 = vunpack.c.h.b16 %v6050
        %v6317 = vunpack.c.l.b16 %v6051
        %v6318 = vunpack.c.h.b16 %v6051
        %v6319 = vunpack.c.l.b16 %v6052
        %v6320 = vunpack.c.l.b16 %v6053
        %v6321 = vunpack.c.h.b16 %v6053
        %v6322 = vunpack.c.l.b16 %v6054
        %v6323 = vunpack.c.h.b16 %v6054
        %v6324 = vunpack.c.l.b16 %v6055
        %v6325 = vunpack.c.l.b16 %v6056
        %v6326 = vunpack.c.h.b16 %v6056
        %v6327 = vunpack.c.l.b16 %v6057
        %v6328 = vunpack.c.h.b16 %v6057
        %v6329 = vunpack.c.l.b16 %v6058
        %v6330 = vunpack.c.l.b16 %v6059
        %v6331 = vunpack.c.h.b16 %v6059
        %v6332 = vunpack.c.l.b16 %v6060
        %v6333 = vunpack.c.h.b16 %v6060
        %v6334 = vunpack.c.l.b16 %v6061
        %v6335 = vunpack.c.l.b16 %v6062
        %v6336 = vunpack.c.h.b16 %v6062
        %v6337 = vunpack.c.l.b16 %v6063
        %v6338 = vunpack.c.h.b16 %v6063
        %v6339 = vunpack.c.l.b16 %v6064
        %v6340 = vunpack.c.l.b16 %v6065
        %v6341 = vunpack.c.h.b16 %v6065
        %v6342 = vunpack.c.l.b16 %v6066
        %v6343 = vunpack.c.h.b16 %v6066
        %v6344 = vunpack.c.l.b16 %v6067
        %v6345 = vunpack.c.l.b16 %v6068
        %v6346 = vunpack.c.h.b16 %v6068
        %v6347 = vunpack.c.l.b16 %v6069
        %v6348 = vunpack.c.h.b16 %v6069
        %v6349 = vunpack.c.l.b16 %v6070
        %v6350 = vunpack.c.l.b16 %v6071
        %v6351 = vunpack.c.h.b16 %v6071
        %v6352 = vunpack.c.l.b16 %v6072
        %v6353 = vunpack.c.h.b16 %v6072
        %v6354 = vunpack.c.l.b16 %v6073
        %v6355 = vunpack.c.l.b16 %v6074
        %v6356 = vunpack.c.h.b16 %v6074
        %v6357 = vunpack.c.l.b16 %v6075
        %v6358 = vunpack.c.h.b16 %v6075
        %v6359 = vunpack.c.l.b16 %v6076
        %v6360 = vunpack.c.l.b16 %v6077
        %v6361 = vunpack.c.h.b16 %v6077
        %v6362 = vunpack.c.l.b16 %v6078
        %v6363 = vunpack.c.h.b16 %v6078
        %v6364 = vunpack.c.l.b16 %v6079
        %v6365 = vunpack.c.l.b16 %v6080
        %v6366 = vunpack.c.h.b16 %v6080
        %v6367 = vunpack.c.l.b16 %v6081
        %v6368 = vunpack.c.h.b16 %v6081
        %v6369 = vunpack.c.l.b16 %v6082
        %v6370 = vunpack.c.l.b16 %v6083
        %v6371 = vunpack.c.h.b16 %v6083
        %v6372 = vunpack.c.l.b16 %v6084
        %v6373 = vunpack.c.h.b16 %v6084
        %v6374 = vunpack.c.l.b16 %v6085
        %v6375 = vunpack.c.l.b16 %v6086
        %v6376 = vunpack.c.h.b16 %v6086
        %v6377 = vunpack.c.l.b16 %v6087
        %v6378 = vunpack.c.h.b16 %v6087
        %v6379 = vunpack.c.l.b16 %v6088
        %v6380 = vunpack.c.l.b16 %v6089
        %v6381 = vunpack.c.h.b16 %v6089
        %v6382 = vunpack.c.l.b16 %v6090
        %v6383 = vunpack.c.h.b16 %v6090
        %v6384 = vunpack.c.l.b16 %v6091
        %v6385 = vunpack.c.l.b16 %v6092
        %v6386 = vunpack.c.h.b16 %v6092
        %v6387 = vunpack.c.l.b16 %v6093
        %v6388 = vunpack.c.h.b16 %v6093
        %v6389 = vunpack.c.l.b16 %v6094
        %v6390 = vunpack.c.l.b16 %v6095
        %v6391 = vunpack.c.h.b16 %v6095
        %v6392 = vunpack.c.l.b16 %v6096
        %v6393 = vunpack.c.h.b16 %v6096
        %v6394 = vunpack.c.l.b16 %v6097
        %v6395 = vunpack.c.l.b16 %v6098
        %v6396 = vunpack.c.h.b16 %v6098
        %v6397 = vunpack.c.l.b16 %v6099
        %v6398 = vunpack.c.h.b16 %v6099
        %v6399 = vunpack.c.l.b16 %v6100
        %v6400 = vunpack.c.l.b16 %v6101
        %v6401 = vunpack.c.h.b16 %v6101
        %v6402 = vunpack.c.l.b16 %v6102
        %v6403 = vunpack.c.h.b16 %v6102
        %v6404 = vunpack.c.l.b16 %v6103
        %v6405 = vunpack.c.l.b16 %v6104
        %v6406 = vunpack.c.h.b16 %v6104
        %v6407 = vunpack.c.l.b16 %v6105
        %v6408 = vunpack.c.h.b16 %v6105
        %v6409 = vunpack.c.l.b16 %v6106
        %v6410 = vunpack.c.l.b16 %v6107
        %v6411 = vunpack.c.h.b16 %v6107
        %v6412 = vunpack.c.l.b16 %v6108
        %v6413 = vunpack.c.h.b16 %v6108
        %v6414 = vunpack.c.l.b16 %v6109
        %v6415 = vunpack.c.l.b16 %v6110
        %v6416 = vunpack.c.h.b16 %v6110
        %v6417 = vunpack.c.l.b16 %v6111
        %v6418 = vunpack.c.h.b16 %v6111
        %v6419 = vunpack.c.l.b16 %v6112
        %v6420 = vunpack.c.l.b16 %v6113
        %v6421 = vunpack.c.h.b16 %v6113
        %v6422 = vunpack.c.l.b16 %v6114
        %v6423 = vunpack.c.h.b16 %v6114
        %v6424 = vunpack.c.l.b16 %v6115
        %v6425 = vunpack.c.l.b16 %v6116
        %v6426 = vunpack.c.h.b16 %v6116
        %v6427 = vunpack.c.l.b16 %v6117
        %v6428 = vunpack.c.h.b16 %v6117
        %v6429 = vunpack.c.l.b16 %v6118
        %v6430 = vunpack.c.l.b16 %v6119
        %v6431 = vunpack.c.h.b16 %v6119
        %v6432 = vunpack.c.l.b16 %v6120
        %v6433 = vunpack.c.h.b16 %v6120
        %v6434 = vunpack.c.l.b16 %v6121
        %v6435 = vunpack.c.l.b16 %v6122
        %v6436 = vunpack.c.h.b16 %v6122
        %v6437 = vunpack.c.l.b16 %v6123
        %v6438 = vunpack.c.h.b16 %v6123
        %v6439 = vunpack.c.l.b16 %v6124
        %v6440 = vunpack.c.l.b16 %v6125
        %v6441 = vunpack.c.h.b16 %v6125
        %v6442 = vunpack.c.l.b16 %v6126
        %v6443 = vunpack.c.h.b16 %v6126
        %v6444 = vunpack.c.l.b16 %v6127
        %v6445 = vunpack.c.l.b16 %v6128
        %v6446 = vunpack.c.h.b16 %v6128
        %v6447 = vunpack.c.l.b16 %v6129
        %v6448 = vunpack.c.h.b16 %v6129
        %v6449 = vunpack.c.l.b16 %v6130
        %v6450 = vunpack.c.l.b16 %v6131
        %v6451 = vunpack.c.h.b16 %v6131
        %v6452 = vunpack.c.l.b16 %v6132
        %v6453 = vunpack.c.h.b16 %v6132
        %v6454 = vunpack.c.l.b16 %v6133
        %v6455 = vunpack.c.l.b16 %v6134
        %v6456 = vunpack.c.h.b16 %v6134
        %v6457 = vunpack.c.l.b16 %v6135
        %v6458 = vunpack.c.h.b16 %v6135
        %v6459 = vunpack.c.l.b16 %v6136
        %v6460 = vpack.c.b16 %v6275, %v6270
        %v6461 = vpack.c.b16 %v6276, %v6271
        %v6462 = vpack.c.b16 %v6277, %v6272
        %v6463 = vpack.c.b16 %v6278, %v6273
        %v6464 = vpack.c.b16 %v6279, %v6274
        %v6465 = vpack.c.b16 %v6285, %v6280
        %v6466 = vpack.c.b16 %v6286, %v6281
        %v6467 = vpack.c.b16 %v6287, %v6282
        %v6468 = vpack.c.b16 %v6288, %v6283
        %v6469 = vpack.c.b16 %v6289, %v6284
        %v6470 = vpack.c.b16 %v6295, %v6290
        %v6471 = vpack.c.b16 %v6296, %v6291
        %v6472 = vpack.c.b16 %v6297, %v6292
        %v6473 = vpack.c.b16 %v6298, %v6293
        %v6474 = vpack.c.b16 %v6299, %v6294
        %v6475 = vpack.c.b16 %v6305, %v6300
        %v6476 = vpack.c.b16 %v6306, %v6301
        %v6477 = vpack.c.b16 %v6307, %v6302
        %v6478 = vpack.c.b16 %v6308, %v6303
        %v6479 = vpack.c.b16 %v6309, %v6304
        %v6480 = vpack.c.b16 %v6315, %v6310
        %v6481 = vpack.c.b16 %v6316, %v6311
        %v6482 = vpack.c.b16 %v6317, %v6312
        %v6483 = vpack.c.b16 %v6318, %v6313
        %v6484 = vpack.c.b16 %v6319, %v6314
        %v6485 = vpack.c.b16 %v6325, %v6320
        %v6486 = vpack.c.b16 %v6326, %v6321
        %v6487 = vpack.c.b16 %v6327, %v6322
        %v6488 = vpack.c.b16 %v6328, %v6323
        %v6489 = vpack.c.b16 %v6329, %v6324
        %v6490 = vpack.c.b16 %v6335, %v6330
        %v6491 = vpack.c.b16 %v6336, %v6331
        %v6492 = vpack.c.b16 %v6337, %v6332
        %v6493 = vpack.c.b16 %v6338, %v6333
        %v6494 = vpack.c.b16 %v6339, %v6334
        %v6495 = vpack.c.b16 %v6345, %v6340
        %v6496 = vpack.c.b16 %v6346, %v6341
        %v6497 = vpack.c.b16 %v6347, %v6342
        %v6498 = vpack.c.b16 %v6348, %v6343
        %v6499 = vpack.c.b16 %v6349, %v6344
        %v6500 = vpack.c.b16 %v6355, %v6350
        %v6501 = vpack.c.b16 %v6356, %v6351
        %v6502 = vpack.c.b16 %v6357, %v6352
        %v6503 = vpack.c.b16 %v6358, %v6353
        %v6504 = vpack.c.b16 %v6359, %v6354
        %v6505 = vpack.c.b16 %v6365, %v6360
        %v6506 = vpack.c.b16 %v6366, %v6361
        %v6507 = vpack.c.b16 %v6367, %v6362
        %v6508 = vpack.c.b16 %v6368, %v6363
        %v6509 = vpack.c.b16 %v6369, %v6364
        %v6510 = vpack.c.b16 %v6375, %v6370
        %v6511 = vpack.c.b16 %v6376, %v6371
        %v6512 = vpack.c.b16 %v6377, %v6372
        %v6513 = vpack.c.b16 %v6378, %v6373
        %v6514 = vpack.c.b16 %v6379, %v6374
        %v6515 = vpack.c.b16 %v6385, %v6380
        %v6516 = vpack.c.b16 %v6386, %v6381
        %v6517 = vpack.c.b16 %v6387, %v6382
        %v6518 = vpack.c.b16 %v6388, %v6383
        %v6519 = vpack.c.b16 %v6389, %v6384
        %v6520 = vpack.c.b16 %v6395, %v6390
        %v6521 = vpack.c.b16 %v6396, %v6391
        %v6522 = vpack.c.b16 %v6397, %v6392
        %v6523 = vpack.c.b16 %v6398, %v6393
        %v6524 = vpack.c.b16 %v6399, %v6394
        %v6525 = vpack.c.b16 %v6405, %v6400
        %v6526 = vpack.c.b16 %v6406, %v6401
        %v6527 = vpack.c.b16 %v6407, %v6402
        %v6528 = vpack.c.b16 %v6408, %v6403
        %v6529 = vpack.c.b16 %v6409, %v6404
        %v6530 = vpack.c.b16 %v6415, %v6410
        %v6531 = vpack.c.b16 %v6416, %v6411
        %v6532 = vpack.c.b16 %v6417, %v6412
        %v6533 = vpack.c.b16 %v6418, %v6413
        %v6534 = vpack.c.b16 %v6419, %v6414
        %v6535 = vpack.c.b16 %v6425, %v6420
        %v6536 = vpack.c.b16 %v6426, %v6421
        %v6537 = vpack.c.b16 %v6427, %v6422
        %v6538 = vpack.c.b16 %v6428, %v6423
        %v6539 = vpack.c.b16 %v6429, %v6424
        %v6540 = vpack.c.b16 %v6435, %v6430
        %v6541 = vpack.c.b16 %v6436, %v6431
        %v6542 = vpack.c.b16 %v6437, %v6432
        %v6543 = vpack.c.b16 %v6438, %v6433
        %v6544 = vpack.c.b16 %v6439, %v6434
        %v6545 = vpack.c.b16 %v6445, %v6440
        %v6546 = vpack.c.b16 %v6446, %v6441
        %v6547 = vpack.c.b16 %v6447, %v6442
        %v6548 = vpack.c.b16 %v6448, %v6443
        %v6549 = vpack.c.b16 %v6449, %v6444
        %v6550 = vpack.c.b16 %v6455, %v6450
        %v6551 = vpack.c.b16 %v6456, %v6451
        %v6552 = vpack.c.b16 %v6457, %v6452
        %v6553 = vpack.c.b16 %v6458, %v6453
        %v6554 = vpack.c.b16 %v6459, %v6454
        %v6646 = vsel %vm4872, %v6151, 0
        %v6649 = vsel %vm4872, %v6150, 0
        %v6652 = vsel %vm2517, %v6550, 0
        %v6655 = vsel %vm2517, %v6551, 0
        %v6658 = vsel %vm2517, %v6552, 0
        %v6661 = vsel %vm2517, %v6553, 0
        %v6664 = vsel %vm2517, %v6554, 0
        %6666 = vmatprep.subr.bf16.mxu0 %v6496
        %6667 = vmatpush1.bf16.msra.mxu0 %v6495
        %6668 = vmatprep.subr.bf16.mxu0 %v6491
        %6669 = vmatpush1.bf16.msra.mxu0 %v6490
        %6670 = vmatprep.subr.bf16.mxu0 %v6486
        %6671 = vmatpush1.bf16.msra.mxu0 %v6485
        %6672 = vmatprep.subr.bf16.mxu0 %v6481
        %6673 = vmatpush1.bf16.msra.mxu0 %v6480
        %6674 = vmatprep.subr.bf16.mxu0 %v6476
        %6675 = vmatpush1.bf16.msra.mxu0 %v6475
        %6676 = vmatprep.subr.bf16.mxu0 %v6471
        %6677 = vmatpush1.bf16.msra.mxu0 %v6470
        %6678 = vmatprep.subr.bf16.mxu0 %v6466
        %6679 = vmatpush1.bf16.msra.mxu0 %v6465
        %6680 = vmatprep.subr.bf16.mxu0 %v6461
        %6681 = vmatpush1.bf16.msra.mxu0 %v6460
        %6682 = vmatprep.subr.bf16.mxu0 %v6536
        %6683 = vmatpush2.bf16.msra.mxu0 %v6535
        %6684 = vmatprep.subr.bf16.mxu0 %v6531
        %6685 = vmatpush2.bf16.msra.mxu0 %v6530
        %6686 = vmatprep.subr.bf16.mxu0 %v6526
        %6687 = vmatpush2.bf16.msra.mxu0 %v6525
        %6688 = vmatprep.subr.bf16.mxu0 %v6521
        %6689 = vmatpush2.bf16.msra.mxu0 %v6520
        %6690 = vmatprep.subr.bf16.mxu0 %v6516
        %6691 = vmatpush2.bf16.msra.mxu0 %v6515
        %6692 = vmatprep.subr.bf16.mxu0 %v6511
        %6693 = vmatpush2.bf16.msra.mxu0 %v6510
        %6694 = vmatprep.subr.bf16.mxu0 %v6506
        %6695 = vmatpush2.bf16.msra.mxu0 %v6505
        %6696 = vmatprep.subr.bf16.mxu0 %v6501
        %6697 = vmatpush2.bf16.msra.mxu0 %v6500
        %6698 = vmatprep.mubr.bf16.mxu0 %v6148
        %6699 = vmatmul.mubr.bf16.gmra.mxu0 %v6145
        %v6700 = vpop.f32.mrf.mxu0
        %v6701 = vadd.f32 0.0, %v6700
        %v6702 = vpop.f32.mrf.mxu0
        %v6703 = vadd.f32 0.0, %v6702
        %v6704 = vpop.f32.mrf.mxu0
        %v6705 = vadd.f32 0.0, %v6704
        %v6706 = vpop.f32.mrf.mxu0
        %v6707 = vadd.f32 0.0, %v6706
        %6708 = vmatprep.mubr.bf16.mxu0 %v6147
        %6709 = vmatmul.mubr.bf16.gmra.mxu0 %v6144
        %v6710 = vpop.f32.mrf.mxu0
        %v6711 = vadd.f32 0.0, %v6710
        %v6712 = vpop.f32.mrf.mxu0
        %v6713 = vadd.f32 0.0, %v6712
        %v6714 = vpop.f32.mrf.mxu0
        %v6715 = vadd.f32 0.0, %v6714
        %v6716 = vpop.f32.mrf.mxu0
        %v6717 = vadd.f32 0.0, %v6716
        %6718 = vdwg.mxu0
        %6719 = vmatprep.subr.bf16.mxu0 0
        %6720 = vmatpush1.bf16.msra.mxu0 0
        %6721 = vmatprep.subr.bf16.mxu0 0
        %6722 = vmatpush1.bf16.msra.mxu0 0
        %6723 = vmatprep.subr.bf16.mxu0 0
        %6724 = vmatpush1.bf16.msra.mxu0 0
        %6725 = vmatprep.subr.bf16.mxu0 0
        %6726 = vmatpush1.bf16.msra.mxu0 0
        %6727 = vmatprep.subr.bf16.mxu0 0
        %6728 = vmatpush1.bf16.msra.mxu0 0
        %6729 = vmatprep.subr.bf16.mxu0 %v6655
        %6730 = vmatpush1.bf16.msra.mxu0 %v6652
        %6731 = vmatprep.subr.bf16.mxu0 %v6546
        %6732 = vmatpush1.bf16.msra.mxu0 %v6545
        %6733 = vmatprep.subr.bf16.mxu0 %v6541
        %6734 = vmatpush1.bf16.msra.mxu0 %v6540
        %6735 = vmatprep.subr.bf16.mxu0 0
        %6736 = vmatpush2.bf16.msra.mxu0 0
        %6737 = vmatprep.subr.bf16.mxu0 0
        %6738 = vmatpush2.bf16.msra.mxu0 0
        %6739 = vmatprep.subr.bf16.mxu0 0
        %6740 = vmatpush2.bf16.msra.mxu0 0
        %6741 = vmatprep.subr.bf16.mxu0 0
        %6742 = vmatpush2.bf16.msra.mxu0 0
        %6743 = vmatprep.subr.bf16.mxu0 0
        %6744 = vmatpush2.bf16.msra.mxu0 0
        %6745 = vmatprep.subr.bf16.mxu0 0
        %6746 = vmatpush2.bf16.msra.mxu0 0
        %6747 = vmatprep.subr.bf16.mxu0 0
        %6748 = vmatpush2.bf16.msra.mxu0 0
        %6749 = vmatprep.subr.bf16.mxu0 0
        %6750 = vmatpush2.bf16.msra.mxu0 0
        %6751 = vmatprep.mubr.bf16.mxu0 0
        %6752 = vmatmul.mubr.bf16.gmra.mxu0 %v6646
        %v6753 = vpop.f32.mrf.mxu0
        %v6754 = vadd.f32 %v6701, %v6753
        %v6755 = vpop.f32.mrf.mxu0
        %v6756 = vadd.f32 %v6703, %v6755
        %v6757 = vpop.f32.mrf.mxu0
        %v6758 = vadd.f32 %v6705, %v6757
        %v6759 = vpop.f32.mrf.mxu0
        %v6760 = vadd.f32 %v6707, %v6759
        %6761 = vmatprep.mubr.bf16.mxu0 0
        %6762 = vmatmul.mubr.bf16.gmra.mxu0 %v6649
        %v6763 = vpop.f32.mrf.mxu0
        %v6764 = vadd.f32 %v6711, %v6763
        %v6765 = vpop.f32.mrf.mxu0
        %v6766 = vadd.f32 %v6713, %v6765
        %v6767 = vpop.f32.mrf.mxu0
        %v6768 = vadd.f32 %v6715, %v6767
        %v6769 = vpop.f32.mrf.mxu0
        %v6770 = vadd.f32 %v6717, %v6769
        %6771 = vdwg.mxu0
        %6772 = vmatprep.subr.bf16.mxu0 %v6498
        %6773 = vmatpush1.bf16.msra.mxu0 %v6497
        %6774 = vmatprep.subr.bf16.mxu0 %v6493
        %6775 = vmatpush1.bf16.msra.mxu0 %v6492
        %6776 = vmatprep.subr.bf16.mxu0 %v6488
        %6777 = vmatpush1.bf16.msra.mxu0 %v6487
        %6778 = vmatprep.subr.bf16.mxu0 %v6483
        %6779 = vmatpush1.bf16.msra.mxu0 %v6482
        %6780 = vmatprep.subr.bf16.mxu0 %v6478
        %6781 = vmatpush1.bf16.msra.mxu0 %v6477
        %6782 = vmatprep.subr.bf16.mxu0 %v6473
        %6783 = vmatpush1.bf16.msra.mxu0 %v6472
        %6784 = vmatprep.subr.bf16.mxu0 %v6468
        %6785 = vmatpush1.bf16.msra.mxu0 %v6467
        %6786 = vmatprep.subr.bf16.mxu0 %v6463
        %6787 = vmatpush1.bf16.msra.mxu0 %v6462
        %6788 = vmatprep.subr.bf16.mxu0 %v6538
        %6789 = vmatpush2.bf16.msra.mxu0 %v6537
        %6790 = vmatprep.subr.bf16.mxu0 %v6533
        %6791 = vmatpush2.bf16.msra.mxu0 %v6532
        %6792 = vmatprep.subr.bf16.mxu0 %v6528
        %6793 = vmatpush2.bf16.msra.mxu0 %v6527
        %6794 = vmatprep.subr.bf16.mxu0 %v6523
        %6795 = vmatpush2.bf16.msra.mxu0 %v6522
        %6796 = vmatprep.subr.bf16.mxu0 %v6518
        %6797 = vmatpush2.bf16.msra.mxu0 %v6517
        %6798 = vmatprep.subr.bf16.mxu0 %v6513
        %6799 = vmatpush2.bf16.msra.mxu0 %v6512
        %6800 = vmatprep.subr.bf16.mxu0 %v6508
        %6801 = vmatpush2.bf16.msra.mxu0 %v6507
        %6802 = vmatprep.subr.bf16.mxu0 %v6503
        %6803 = vmatpush2.bf16.msra.mxu0 %v6502
        %6804 = vmatprep.mubr.bf16.mxu0 %v6148
        %6805 = vmatmul.mubr.bf16.gmra.mxu0 %v6145
        %v6806 = vpop.f32.mrf.mxu0
        %v6807 = vadd.f32 0.0, %v6806
        %v6808 = vpop.f32.mrf.mxu0
        %v6809 = vadd.f32 0.0, %v6808
        %v6810 = vpop.f32.mrf.mxu0
        %v6811 = vadd.f32 0.0, %v6810
        %v6812 = vpop.f32.mrf.mxu0
        %v6813 = vadd.f32 0.0, %v6812
        %6814 = vmatprep.mubr.bf16.mxu0 %v6147
        %6815 = vmatmul.mubr.bf16.gmra.mxu0 %v6144
        %v6816 = vpop.f32.mrf.mxu0
        %v6817 = vadd.f32 0.0, %v6816
        %v6818 = vpop.f32.mrf.mxu0
        %v6819 = vadd.f32 0.0, %v6818
        %v6820 = vpop.f32.mrf.mxu0
        %v6821 = vadd.f32 0.0, %v6820
        %v6822 = vpop.f32.mrf.mxu0
        %v6823 = vadd.f32 0.0, %v6822
        %6824 = vdwg.mxu0
        %6825 = vmatprep.subr.bf16.mxu0 0
        %6826 = vmatpush1.bf16.msra.mxu0 0
        %6827 = vmatprep.subr.bf16.mxu0 0
        %6828 = vmatpush1.bf16.msra.mxu0 0
        %6829 = vmatprep.subr.bf16.mxu0 0
        %6830 = vmatpush1.bf16.msra.mxu0 0
        %6831 = vmatprep.subr.bf16.mxu0 0
        %6832 = vmatpush1.bf16.msra.mxu0 0
        %6833 = vmatprep.subr.bf16.mxu0 0
        %6834 = vmatpush1.bf16.msra.mxu0 0
        %6835 = vmatprep.subr.bf16.mxu0 %v6661
        %6836 = vmatpush1.bf16.msra.mxu0 %v6658
        %6837 = vmatprep.subr.bf16.mxu0 %v6548
        %6838 = vmatpush1.bf16.msra.mxu0 %v6547
        %6839 = vmatprep.subr.bf16.mxu0 %v6543
        %6840 = vmatpush1.bf16.msra.mxu0 %v6542
        %6841 = vmatprep.subr.bf16.mxu0 0
        %6842 = vmatpush2.bf16.msra.mxu0 0
        %6843 = vmatprep.subr.bf16.mxu0 0
        %6844 = vmatpush2.bf16.msra.mxu0 0
        %6845 = vmatprep.subr.bf16.mxu0 0
        %6846 = vmatpush2.bf16.msra.mxu0 0
        %6847 = vmatprep.subr.bf16.mxu0 0
        %6848 = vmatpush2.bf16.msra.mxu0 0
        %6849 = vmatprep.subr.bf16.mxu0 0
        %6850 = vmatpush2.bf16.msra.mxu0 0
        %6851 = vmatprep.subr.bf16.mxu0 0
        %6852 = vmatpush2.bf16.msra.mxu0 0
        %6853 = vmatprep.subr.bf16.mxu0 0
        %6854 = vmatpush2.bf16.msra.mxu0 0
        %6855 = vmatprep.subr.bf16.mxu0 0
        %6856 = vmatpush2.bf16.msra.mxu0 0
        %6857 = vmatprep.mubr.bf16.mxu0 0
        %6858 = vmatmul.mubr.bf16.gmra.mxu0 %v6646
        %v6859 = vpop.f32.mrf.mxu0
        %v6860 = vadd.f32 %v6807, %v6859
        %v6861 = vpop.f32.mrf.mxu0
        %v6862 = vadd.f32 %v6809, %v6861
        %v6863 = vpop.f32.mrf.mxu0
        %v6864 = vadd.f32 %v6811, %v6863
        %v6865 = vpop.f32.mrf.mxu0
        %v6866 = vadd.f32 %v6813, %v6865
        %6867 = vmatprep.mubr.bf16.mxu0 0
        %6868 = vmatmul.mubr.bf16.gmra.mxu0 %v6649
        %v6869 = vpop.f32.mrf.mxu0
        %v6870 = vadd.f32 %v6817, %v6869
        %v6871 = vpop.f32.mrf.mxu0
        %v6872 = vadd.f32 %v6819, %v6871
        %v6873 = vpop.f32.mrf.mxu0
        %v6874 = vadd.f32 %v6821, %v6873
        %v6875 = vpop.f32.mrf.mxu0
        %v6876 = vadd.f32 %v6823, %v6875
        %6877 = vdwg.mxu0
        %6878 = vmatprep.subr.bf16.mxu0 0
        %6879 = vmatpush1.bf16.msra.mxu0 %v6499
        %6880 = vmatprep.subr.bf16.mxu0 0
        %6881 = vmatpush1.bf16.msra.mxu0 %v6494
        %6882 = vmatprep.subr.bf16.mxu0 0
        %6883 = vmatpush1.bf16.msra.mxu0 %v6489
        %6884 = vmatprep.subr.bf16.mxu0 0
        %6885 = vmatpush1.bf16.msra.mxu0 %v6484
        %6886 = vmatprep.subr.bf16.mxu0 0
        %6887 = vmatpush1.bf16.msra.mxu0 %v6479
        %6888 = vmatprep.subr.bf16.mxu0 0
        %6889 = vmatpush1.bf16.msra.mxu0 %v6474
        %6890 = vmatprep.subr.bf16.mxu0 0
        %6891 = vmatpush1.bf16.msra.mxu0 %v6469
        %6892 = vmatprep.subr.bf16.mxu0 0
        %6893 = vmatpush1.bf16.msra.mxu0 %v6464
        %6894 = vmatprep.subr.bf16.mxu0 0
        %6895 = vmatpush2.bf16.msra.mxu0 %v6539
        %6896 = vmatprep.subr.bf16.mxu0 0
        %6897 = vmatpush2.bf16.msra.mxu0 %v6534
        %6898 = vmatprep.subr.bf16.mxu0 0
        %6899 = vmatpush2.bf16.msra.mxu0 %v6529
        %6900 = vmatprep.subr.bf16.mxu0 0
        %6901 = vmatpush2.bf16.msra.mxu0 %v6524
        %6902 = vmatprep.subr.bf16.mxu0 0
        %6903 = vmatpush2.bf16.msra.mxu0 %v6519
        %6904 = vmatprep.subr.bf16.mxu0 0
        %6905 = vmatpush2.bf16.msra.mxu0 %v6514
        %6906 = vmatprep.subr.bf16.mxu0 0
        %6907 = vmatpush2.bf16.msra.mxu0 %v6509
        %6908 = vmatprep.subr.bf16.mxu0 0
        %6909 = vmatpush2.bf16.msra.mxu0 %v6504
        %6910 = vmatprep.mubr.bf16.mxu0 %v6148
        %6911 = vmatmul.mubr.bf16.gmra.mxu0 %v6145
        %v6912 = vpop.f32.mrf.mxu0
        %v6913 = vadd.f32 0.0, %v6912
        %v6914 = vpop.f32.mrf.mxu0
        %v6915 = vpop.f32.mrf.mxu0
        %v6916 = vadd.f32 0.0, %v6915
        %v6917 = vpop.f32.mrf.mxu0
        %6918 = vmatprep.mubr.bf16.mxu0 %v6147
        %6919 = vmatmul.mubr.bf16.gmra.mxu0 %v6144
        %v6920 = vpop.f32.mrf.mxu0
        %v6921 = vadd.f32 0.0, %v6920
        %v6922 = vpop.f32.mrf.mxu0
        %v6923 = vpop.f32.mrf.mxu0
        %v6924 = vadd.f32 0.0, %v6923
        %v6925 = vpop.f32.mrf.mxu0
        %6926 = vdwg.mxu0
        %6927 = vmatprep.subr.bf16.mxu0 0
        %6928 = vmatpush1.bf16.msra.mxu0 0
        %6929 = vmatprep.subr.bf16.mxu0 0
        %6930 = vmatpush1.bf16.msra.mxu0 0
        %6931 = vmatprep.subr.bf16.mxu0 0
        %6932 = vmatpush1.bf16.msra.mxu0 0
        %6933 = vmatprep.subr.bf16.mxu0 0
        %6934 = vmatpush1.bf16.msra.mxu0 0
        %6935 = vmatprep.subr.bf16.mxu0 0
        %6936 = vmatpush1.bf16.msra.mxu0 0
        %6937 = vmatprep.subr.bf16.mxu0 0
        %6938 = vmatpush1.bf16.msra.mxu0 %v6664
        %6939 = vmatprep.subr.bf16.mxu0 0
        %6940 = vmatpush1.bf16.msra.mxu0 %v6549
        %6941 = vmatprep.subr.bf16.mxu0 0
        %6942 = vmatpush1.bf16.msra.mxu0 %v6544
        %6943 = vmatprep.subr.bf16.mxu0 0
        %6944 = vmatpush2.bf16.msra.mxu0 0
        %6945 = vmatprep.subr.bf16.mxu0 0
        %6946 = vmatpush2.bf16.msra.mxu0 0
        %6947 = vmatprep.subr.bf16.mxu0 0
        %6948 = vmatpush2.bf16.msra.mxu0 0
        %6949 = vmatprep.subr.bf16.mxu0 0
        %6950 = vmatpush2.bf16.msra.mxu0 0
        %6951 = vmatprep.subr.bf16.mxu0 0
        %6952 = vmatpush2.bf16.msra.mxu0 0
        %6953 = vmatprep.subr.bf16.mxu0 0
        %6954 = vmatpush2.bf16.msra.mxu0 0
        %6955 = vmatprep.subr.bf16.mxu0 0
        %6956 = vmatpush2.bf16.msra.mxu0 0
        %6957 = vmatprep.subr.bf16.mxu0 0
        %6958 = vmatpush2.bf16.msra.mxu0 0
        %6959 = vmatprep.mubr.bf16.mxu0 0
        %6960 = vmatmul.mubr.bf16.gmra.mxu0 %v6646
        %v6961 = vpop.f32.mrf.mxu0
        %v6962 = vadd.f32 %v6913, %v6961
        %v6963 = vpop.f32.mrf.mxu0
        %v6964 = vpop.f32.mrf.mxu0
        %v6965 = vadd.f32 %v6916, %v6964
        %v6966 = vpop.f32.mrf.mxu0
        %6967 = vmatprep.mubr.bf16.mxu0 0
        %6968 = vmatmul.mubr.bf16.gmra.mxu0 %v6649
        %v6969 = vpop.f32.mrf.mxu0
        %v6970 = vadd.f32 %v6921, %v6969
        %v6971 = vpop.f32.mrf.mxu0
        %v6972 = vpop.f32.mrf.mxu0
        %v6973 = vadd.f32 %v6924, %v6972
        %v6974 = vpop.f32.mrf.mxu0
        %6975 = vdwg.mxu0
        %v6976 = vadd.f32 %v5800, %v6754
        %v6977 = vadd.f32 %v5802, %v6756
        %v6978 = vadd.f32 %v5906, %v6860
        %v6979 = vadd.f32 %v5908, %v6862
        %v6980 = vadd.f32 %v6008, %v6962
        %v6981 = vadd.f32 %v5804, %v6758
        %v6982 = vadd.f32 %v5806, %v6760
        %v6983 = vadd.f32 %v5910, %v6864
        %v6984 = vadd.f32 %v5912, %v6866
        %v6985 = vadd.f32 %v6011, %v6965
        %v6986 = vadd.f32 %v5810, %v6764
        %v6987 = vadd.f32 %v5812, %v6766
        %v6988 = vadd.f32 %v5916, %v6870
        %v6989 = vadd.f32 %v5918, %v6872
        %v6990 = vadd.f32 %v6016, %v6970
        %v6991 = vadd.f32 %v5814, %v6768
        %v6992 = vadd.f32 %v5816, %v6770
        %v6993 = vadd.f32 %v5920, %v6874
        %v6994 = vadd.f32 %v5922, %v6876
        %v6995 = vadd.f32 %v6019, %v6973
        %s6996 = scalar_lea.vmem [#allocation10], 2280
        %v6997 = vld [vmem:[%s6996] sm:$0xff]
        %v6998 = vld [vmem:[%s6996 + $0x8] sm:$0xff]
        %v6999 = vld [vmem:[%s6996 + $0x10] sm:$0xf]
        %v7000 = vld [vmem:[%s6996 + $0x14] sm:$0xff]
        %v7001 = vld [vmem:[%s6996 + $0x1c] sm:$0xff]
        %v7002 = vld [vmem:[%s6996 + $0x24] sm:$0xf]
        %v7003 = vld [vmem:[%s6996 + $0x28] sm:$0xff]
        %v7004 = vld [vmem:[%s6996 + $0x30] sm:$0xff]
        %v7005 = vld [vmem:[%s6996 + $0x38] sm:$0xf]
        %v7006 = vld [vmem:[%s6996 + $0x3c] sm:$0xff]
        %v7007 = vld [vmem:[%s6996 + $0x44] sm:$0xff]
        %v7008 = vld [vmem:[%s6996 + $0x4c] sm:$0xf]
        %v7009 = vld [vmem:[%s6996 + $0x50] sm:$0xff]
        %v7010 = vld [vmem:[%s6996 + $0x58] sm:$0xff]
        %v7011 = vld [vmem:[%s6996 + $0x60] sm:$0xf]
        %v7012 = vld [vmem:[%s6996 + $0x64] sm:$0xff]
        %v7013 = vld [vmem:[%s6996 + $0x6c] sm:$0xff]
        %v7014 = vld [vmem:[%s6996 + $0x74] sm:$0xf]
        %v7015 = vld [vmem:[%s6996 + $0x78] sm:$0xff]
        %v7016 = vld [vmem:[%s6996 + $0x80] sm:$0xff]
        %v7017 = vld [vmem:[%s6996 + $0x88] sm:$0xf]
        %v7018 = vld [vmem:[%s6996 + $0x8c] sm:$0xff]
        %v7019 = vld [vmem:[%s6996 + $0x94] sm:$0xff]
        %v7020 = vld [vmem:[%s6996 + $0x9c] sm:$0xf]
        %v7021 = vld [vmem:[%s6996 + $0xa0] sm:$0xff]
        %v7022 = vld [vmem:[%s6996 + $0xa8] sm:$0xff]
        %v7023 = vld [vmem:[%s6996 + $0xb0] sm:$0xf]
        %v7024 = vld [vmem:[%s6996 + $0xb4] sm:$0xff]
        %v7025 = vld [vmem:[%s6996 + $0xbc] sm:$0xff]
        %v7026 = vld [vmem:[%s6996 + $0xc4] sm:$0xf]
        %v7027 = vld [vmem:[%s6996 + $0xc8] sm:$0xff]
        %v7028 = vld [vmem:[%s6996 + $0xd0] sm:$0xff]
        %v7029 = vld [vmem:[%s6996 + $0xd8] sm:$0xf]
        %v7030 = vld [vmem:[%s6996 + $0xdc] sm:$0xff]
        %v7031 = vld [vmem:[%s6996 + $0xe4] sm:$0xff]
        %v7032 = vld [vmem:[%s6996 + $0xec] sm:$0xf]
        %v7033 = vld [vmem:[%s6996 + $0xf0] sm:$0xff]
        %v7034 = vld [vmem:[%s6996 + $0xf8] sm:$0xff]
        %v7035 = vld [vmem:[%s6996 + $0x100] sm:$0xf]
        %v7036 = vld [vmem:[%s6996 + $0x104] sm:$0xff]
        %v7037 = vld [vmem:[%s6996 + $0x10c] sm:$0xff]
        %v7038 = vld [vmem:[%s6996 + $0x114] sm:$0xf]
        %v7039 = vld [vmem:[%s6996 + $0x118] sm:$0xff]
        %v7040 = vld [vmem:[%s6996 + $0x120] sm:$0xff]
        %v7041 = vld [vmem:[%s6996 + $0x128] sm:$0xf]
        %v7042 = vld [vmem:[%s6996 + $0x12c] sm:$0xff]
        %v7043 = vld [vmem:[%s6996 + $0x134] sm:$0xff]
        %v7044 = vld [vmem:[%s6996 + $0x13c] sm:$0xf]
        %v7045 = vld [vmem:[%s6996 + $0x140] sm:$0xff]
        %v7046 = vld [vmem:[%s6996 + $0x148] sm:$0xff]
        %v7047 = vld [vmem:[%s6996 + $0x150] sm:$0xf]
        %v7048 = vld [vmem:[%s6996 + $0x154] sm:$0xff]
        %v7049 = vld [vmem:[%s6996 + $0x15c] sm:$0xff]
        %v7050 = vld [vmem:[%s6996 + $0x164] sm:$0xf]
        %v7051 = vld [vmem:[%s6996 + $0x168] sm:$0xff]
        %v7052 = vld [vmem:[%s6996 + $0x170] sm:$0xff]
        %v7053 = vld [vmem:[%s6996 + $0x178] sm:$0xf]
        %v7054 = vld [vmem:[%s6996 + $0x17c] sm:$0xff]
        %v7055 = vld [vmem:[%s6996 + $0x184] sm:$0xff]
        %v7056 = vld [vmem:[%s6996 + $0x18c] sm:$0xf]
        %v7057 = vld [vmem:[%s6996 + $0x190] sm:$0xff]
        %v7058 = vld [vmem:[%s6996 + $0x198] sm:$0xff]
        %v7059 = vld [vmem:[%s6996 + $0x1a0] sm:$0xf]
        %v7060 = vld [vmem:[%s6996 + $0x1a4] sm:$0xff]
        %v7061 = vld [vmem:[%s6996 + $0x1ac] sm:$0xff]
        %v7062 = vld [vmem:[%s6996 + $0x1b4] sm:$0xf]
        %v7063 = vld [vmem:[%s6996 + $0x1b8] sm:$0xff]
        %v7064 = vld [vmem:[%s6996 + $0x1c0] sm:$0xff]
        %v7065 = vld [vmem:[%s6996 + $0x1c8] sm:$0xf]
        %v7066 = vld [vmem:[%s6996 + $0x1cc] sm:$0xff]
        %v7067 = vld [vmem:[%s6996 + $0x1d4] sm:$0xff]
        %v7068 = vld [vmem:[%s6996 + $0x1dc] sm:$0xf]
        %v7069 = vld [vmem:[%s6996 + $0x1e0] sm:$0xff]
        %v7070 = vld [vmem:[%s6996 + $0x1e8] sm:$0xff]
        %v7071 = vld [vmem:[%s6996 + $0x1f0] sm:$0xf]
        %v7072 = vld [vmem:[%s6996 + $0x1f4] sm:$0xff]
        %v7073 = vld [vmem:[%s6996 + $0x1fc] sm:$0xff]
        %v7074 = vld [vmem:[%s6996 + $0x204] sm:$0xf]
        %v7075 = vld [vmem:[%s6996 + $0x208] sm:$0xff]
        %v7076 = vld [vmem:[%s6996 + $0x210] sm:$0xff]
        %v7077 = vld [vmem:[%s6996 + $0x218] sm:$0xf]
        %v7078 = vld [vmem:[%s6996 + $0x21c] sm:$0xff]
        %v7079 = vld [vmem:[%s6996 + $0x224] sm:$0xff]
        %v7080 = vld [vmem:[%s6996 + $0x22c] sm:$0xf]
        %v7081 = vld [vmem:[%s6996 + $0x230] sm:$0xff]
        %v7082 = vld [vmem:[%s6996 + $0x238] sm:$0xff]
        %v7083 = vld [vmem:[%s6996 + $0x240] sm:$0xf]
        %v7084 = vld [vmem:[%s6996 + $0x244] sm:$0xff]
        %v7085 = vld [vmem:[%s6996 + $0x24c] sm:$0xff]
        %v7086 = vld [vmem:[%s6996 + $0x254] sm:$0xf]
        %v7087 = vld [vmem:[%s6996 + $0x258] sm:$0xff]
        %v7088 = vld [vmem:[%s6996 + $0x260] sm:$0xff]
        %v7089 = vld [vmem:[%s6996 + $0x268] sm:$0xf]
        %v7090 = vld [vmem:[%s6996 + $0x26c] sm:$0xff]
        %v7091 = vld [vmem:[%s6996 + $0x274] sm:$0xff]
        %v7092 = vld [vmem:[%s6996 + $0x27c] sm:$0xf]
        %v7093 = vld [vmem:[%s6996 + $0x280] sm:$0xff]
        %v7094 = vld [vmem:[%s6996 + $0x288] sm:$0xff]
        %v7095 = vld [vmem:[%s6996 + $0x290] sm:$0xf]
        %v7096 = vld [vmem:[%s6996 + $0x294] sm:$0xff]
        %v7097 = vld [vmem:[%s6996 + $0x29c] sm:$0xff]
        %v7098 = vld [vmem:[%s6996 + $0x2a4] sm:$0xf]
        %v7099 = vld [vmem:[%s6996 + $0x2a8] sm:$0xff]
        %v7100 = vld [vmem:[%s6996 + $0x2b0] sm:$0xff]
        %v7101 = vld [vmem:[%s6996 + $0x2b8] sm:$0xf]
        %v7102 = vld [vmem:[%s6996 + $0x2bc] sm:$0xff]
        %v7103 = vld [vmem:[%s6996 + $0x2c4] sm:$0xff]
        %v7104 = vld [vmem:[%s6996 + $0x2cc] sm:$0xf]
        %v7105 = vld [vmem:[%s6996 + $0x2d0] sm:$0xff]
        %v7106 = vld [vmem:[%s6996 + $0x2d8] sm:$0xff]
        %v7107 = vld [vmem:[%s6996 + $0x2e0] sm:$0xf]
        %v7108 = vld [vmem:[%s6996 + $0x2e4] sm:$0x33]
        %v7109 = vld [vmem:[%s6996 + $0x2ec] sm:$0x33]
        %v7110 = vld [vmem:[%s6996 + $0x2f4] sm:$0x3]
        %v7111 = vrot.slane %v4335, 1
        %v7112 = vrot.slane %v4337, 2
        %v7113 = vor.u32 %v7111, %v7112
        %v7114 = vrot.slane %v4370, 1
        %v7115 = vrot.slane %v4342, 2
        %v7116 = vor.u32 %v7114, %v7115
        %v7117 = vsel %vm1693, %v7113, %v7116
        %v7118 = vrot.slane %v4347, 1
        %v7119 = vrot.slane %v4349, 2
        %v7120 = vor.u32 %v7118, %v7119
        %v7121 = vrot.slane %v4373, 1
        %v7122 = vrot.slane %v4354, 2
        %v7123 = vor.u32 %v7121, %v7122
        %v7124 = vsel %vm1693, %v7120, %v7123
        %v7125 = vrot.slane %v4359, 1
        %v7126 = vrot.slane %v4361, 2
        %v7127 = vor.u32 %v7125, %v7126
        %v7128 = vrot.slane %v4376, 1
        %v7129 = vrot.slane %v4366, 2
        %v7130 = vor.u32 %v7128, %v7129
        %v7131 = vsel %vm1693, %v7127, %v7130
        %v7250 = vunpack.c.l.b16 %v6997
        %v7251 = vunpack.c.h.b16 %v6997
        %v7252 = vunpack.c.l.b16 %v6998
        %v7253 = vunpack.c.h.b16 %v6998
        %v7254 = vunpack.c.l.b16 %v6999
        %v7255 = vunpack.c.l.b16 %v7000
        %v7256 = vunpack.c.h.b16 %v7000
        %v7257 = vunpack.c.l.b16 %v7001
        %v7258 = vunpack.c.h.b16 %v7001
        %v7259 = vunpack.c.l.b16 %v7002
        %v7260 = vunpack.c.l.b16 %v7003
        %v7261 = vunpack.c.h.b16 %v7003
        %v7262 = vunpack.c.l.b16 %v7004
        %v7263 = vunpack.c.h.b16 %v7004
        %v7264 = vunpack.c.l.b16 %v7005
        %v7265 = vunpack.c.l.b16 %v7006
        %v7266 = vunpack.c.h.b16 %v7006
        %v7267 = vunpack.c.l.b16 %v7007
        %v7268 = vunpack.c.h.b16 %v7007
        %v7269 = vunpack.c.l.b16 %v7008
        %v7270 = vunpack.c.l.b16 %v7009
        %v7271 = vunpack.c.h.b16 %v7009
        %v7272 = vunpack.c.l.b16 %v7010
        %v7273 = vunpack.c.h.b16 %v7010
        %v7274 = vunpack.c.l.b16 %v7011
        %v7275 = vunpack.c.l.b16 %v7012
        %v7276 = vunpack.c.h.b16 %v7012
        %v7277 = vunpack.c.l.b16 %v7013
        %v7278 = vunpack.c.h.b16 %v7013
        %v7279 = vunpack.c.l.b16 %v7014
        %v7280 = vunpack.c.l.b16 %v7015
        %v7281 = vunpack.c.h.b16 %v7015
        %v7282 = vunpack.c.l.b16 %v7016
        %v7283 = vunpack.c.h.b16 %v7016
        %v7284 = vunpack.c.l.b16 %v7017
        %v7285 = vunpack.c.l.b16 %v7018
        %v7286 = vunpack.c.h.b16 %v7018
        %v7287 = vunpack.c.l.b16 %v7019
        %v7288 = vunpack.c.h.b16 %v7019
        %v7289 = vunpack.c.l.b16 %v7020
        %v7290 = vunpack.c.l.b16 %v7021
        %v7291 = vunpack.c.h.b16 %v7021
        %v7292 = vunpack.c.l.b16 %v7022
        %v7293 = vunpack.c.h.b16 %v7022
        %v7294 = vunpack.c.l.b16 %v7023
        %v7295 = vunpack.c.l.b16 %v7024
        %v7296 = vunpack.c.h.b16 %v7024
        %v7297 = vunpack.c.l.b16 %v7025
        %v7298 = vunpack.c.h.b16 %v7025
        %v7299 = vunpack.c.l.b16 %v7026
        %v7300 = vunpack.c.l.b16 %v7027
        %v7301 = vunpack.c.h.b16 %v7027
        %v7302 = vunpack.c.l.b16 %v7028
        %v7303 = vunpack.c.h.b16 %v7028
        %v7304 = vunpack.c.l.b16 %v7029
        %v7305 = vunpack.c.l.b16 %v7030
        %v7306 = vunpack.c.h.b16 %v7030
        %v7307 = vunpack.c.l.b16 %v7031
        %v7308 = vunpack.c.h.b16 %v7031
        %v7309 = vunpack.c.l.b16 %v7032
        %v7310 = vunpack.c.l.b16 %v7033
        %v7311 = vunpack.c.h.b16 %v7033
        %v7312 = vunpack.c.l.b16 %v7034
        %v7313 = vunpack.c.h.b16 %v7034
        %v7314 = vunpack.c.l.b16 %v7035
        %v7315 = vunpack.c.l.b16 %v7036
        %v7316 = vunpack.c.h.b16 %v7036
        %v7317 = vunpack.c.l.b16 %v7037
        %v7318 = vunpack.c.h.b16 %v7037
        %v7319 = vunpack.c.l.b16 %v7038
        %v7320 = vunpack.c.l.b16 %v7039
        %v7321 = vunpack.c.h.b16 %v7039
        %v7322 = vunpack.c.l.b16 %v7040
        %v7323 = vunpack.c.h.b16 %v7040
        %v7324 = vunpack.c.l.b16 %v7041
        %v7325 = vunpack.c.l.b16 %v7042
        %v7326 = vunpack.c.h.b16 %v7042
        %v7327 = vunpack.c.l.b16 %v7043
        %v7328 = vunpack.c.h.b16 %v7043
        %v7329 = vunpack.c.l.b16 %v7044
        %v7330 = vunpack.c.l.b16 %v7045
        %v7331 = vunpack.c.h.b16 %v7045
        %v7332 = vunpack.c.l.b16 %v7046
        %v7333 = vunpack.c.h.b16 %v7046
        %v7334 = vunpack.c.l.b16 %v7047
        %v7335 = vunpack.c.l.b16 %v7048
        %v7336 = vunpack.c.h.b16 %v7048
        %v7337 = vunpack.c.l.b16 %v7049
        %v7338 = vunpack.c.h.b16 %v7049
        %v7339 = vunpack.c.l.b16 %v7050
        %v7340 = vunpack.c.l.b16 %v7051
        %v7341 = vunpack.c.h.b16 %v7051
        %v7342 = vunpack.c.l.b16 %v7052
        %v7343 = vunpack.c.h.b16 %v7052
        %v7344 = vunpack.c.l.b16 %v7053
        %v7345 = vunpack.c.l.b16 %v7054
        %v7346 = vunpack.c.h.b16 %v7054
        %v7347 = vunpack.c.l.b16 %v7055
        %v7348 = vunpack.c.h.b16 %v7055
        %v7349 = vunpack.c.l.b16 %v7056
        %v7350 = vunpack.c.l.b16 %v7057
        %v7351 = vunpack.c.h.b16 %v7057
        %v7352 = vunpack.c.l.b16 %v7058
        %v7353 = vunpack.c.h.b16 %v7058
        %v7354 = vunpack.c.l.b16 %v7059
        %v7355 = vunpack.c.l.b16 %v7060
        %v7356 = vunpack.c.h.b16 %v7060
        %v7357 = vunpack.c.l.b16 %v7061
        %v7358 = vunpack.c.h.b16 %v7061
        %v7359 = vunpack.c.l.b16 %v7062
        %v7360 = vunpack.c.l.b16 %v7063
        %v7361 = vunpack.c.h.b16 %v7063
        %v7362 = vunpack.c.l.b16 %v7064
        %v7363 = vunpack.c.h.b16 %v7064
        %v7364 = vunpack.c.l.b16 %v7065
        %v7365 = vunpack.c.l.b16 %v7066
        %v7366 = vunpack.c.h.b16 %v7066
        %v7367 = vunpack.c.l.b16 %v7067
        %v7368 = vunpack.c.h.b16 %v7067
        %v7369 = vunpack.c.l.b16 %v7068
        %v7370 = vunpack.c.l.b16 %v7069
        %v7371 = vunpack.c.h.b16 %v7069
        %v7372 = vunpack.c.l.b16 %v7070
        %v7373 = vunpack.c.h.b16 %v7070
        %v7374 = vunpack.c.l.b16 %v7071
        %v7375 = vunpack.c.l.b16 %v7072
        %v7376 = vunpack.c.h.b16 %v7072
        %v7377 = vunpack.c.l.b16 %v7073
        %v7378 = vunpack.c.h.b16 %v7073
        %v7379 = vunpack.c.l.b16 %v7074
        %v7380 = vunpack.c.l.b16 %v7075
        %v7381 = vunpack.c.h.b16 %v7075
        %v7382 = vunpack.c.l.b16 %v7076
        %v7383 = vunpack.c.h.b16 %v7076
        %v7384 = vunpack.c.l.b16 %v7077
        %v7385 = vunpack.c.l.b16 %v7078
        %v7386 = vunpack.c.h.b16 %v7078
        %v7387 = vunpack.c.l.b16 %v7079
        %v7388 = vunpack.c.h.b16 %v7079
        %v7389 = vunpack.c.l.b16 %v7080
        %v7390 = vunpack.c.l.b16 %v7081
        %v7391 = vunpack.c.h.b16 %v7081
        %v7392 = vunpack.c.l.b16 %v7082
        %v7393 = vunpack.c.h.b16 %v7082
        %v7394 = vunpack.c.l.b16 %v7083
        %v7395 = vunpack.c.l.b16 %v7084
        %v7396 = vunpack.c.h.b16 %v7084
        %v7397 = vunpack.c.l.b16 %v7085
        %v7398 = vunpack.c.h.b16 %v7085
        %v7399 = vunpack.c.l.b16 %v7086
        %v7400 = vunpack.c.l.b16 %v7087
        %v7401 = vunpack.c.h.b16 %v7087
        %v7402 = vunpack.c.l.b16 %v7088
        %v7403 = vunpack.c.h.b16 %v7088
        %v7404 = vunpack.c.l.b16 %v7089
        %v7405 = vunpack.c.l.b16 %v7090
        %v7406 = vunpack.c.h.b16 %v7090
        %v7407 = vunpack.c.l.b16 %v7091
        %v7408 = vunpack.c.h.b16 %v7091
        %v7409 = vunpack.c.l.b16 %v7092
        %v7410 = vunpack.c.l.b16 %v7093
        %v7411 = vunpack.c.h.b16 %v7093
        %v7412 = vunpack.c.l.b16 %v7094
        %v7413 = vunpack.c.h.b16 %v7094
        %v7414 = vunpack.c.l.b16 %v7095
        %v7415 = vunpack.c.l.b16 %v7096
        %v7416 = vunpack.c.h.b16 %v7096
        %v7417 = vunpack.c.l.b16 %v7097
        %v7418 = vunpack.c.h.b16 %v7097
        %v7419 = vunpack.c.l.b16 %v7098
        %v7420 = vunpack.c.l.b16 %v7099
        %v7421 = vunpack.c.h.b16 %v7099
        %v7422 = vunpack.c.l.b16 %v7100
        %v7423 = vunpack.c.h.b16 %v7100
        %v7424 = vunpack.c.l.b16 %v7101
        %v7425 = vunpack.c.l.b16 %v7102
        %v7426 = vunpack.c.h.b16 %v7102
        %v7427 = vunpack.c.l.b16 %v7103
        %v7428 = vunpack.c.h.b16 %v7103
        %v7429 = vunpack.c.l.b16 %v7104
        %v7430 = vunpack.c.l.b16 %v7105
        %v7431 = vunpack.c.h.b16 %v7105
        %v7432 = vunpack.c.l.b16 %v7106
        %v7433 = vunpack.c.h.b16 %v7106
        %v7434 = vunpack.c.l.b16 %v7107
        %v7435 = vunpack.c.l.b16 %v7108
        %v7436 = vunpack.c.h.b16 %v7108
        %v7437 = vunpack.c.l.b16 %v7109
        %v7438 = vunpack.c.h.b16 %v7109
        %v7439 = vunpack.c.l.b16 %v7110
        %v7440 = vpack.c.b16 %v7255, %v7250
        %v7441 = vpack.c.b16 %v7256, %v7251
        %v7442 = vpack.c.b16 %v7257, %v7252
        %v7443 = vpack.c.b16 %v7258, %v7253
        %v7444 = vpack.c.b16 %v7259, %v7254
        %v7445 = vpack.c.b16 %v7265, %v7260
        %v7446 = vpack.c.b16 %v7266, %v7261
        %v7447 = vpack.c.b16 %v7267, %v7262
        %v7448 = vpack.c.b16 %v7268, %v7263
        %v7449 = vpack.c.b16 %v7269, %v7264
        %v7450 = vpack.c.b16 %v7275, %v7270
        %v7451 = vpack.c.b16 %v7276, %v7271
        %v7452 = vpack.c.b16 %v7277, %v7272
        %v7453 = vpack.c.b16 %v7278, %v7273
        %v7454 = vpack.c.b16 %v7279, %v7274
        %v7455 = vpack.c.b16 %v7285, %v7280
        %v7456 = vpack.c.b16 %v7286, %v7281
        %v7457 = vpack.c.b16 %v7287, %v7282
        %v7458 = vpack.c.b16 %v7288, %v7283
        %v7459 = vpack.c.b16 %v7289, %v7284
        %v7460 = vpack.c.b16 %v7295, %v7290
        %v7461 = vpack.c.b16 %v7296, %v7291
        %v7462 = vpack.c.b16 %v7297, %v7292
        %v7463 = vpack.c.b16 %v7298, %v7293
        %v7464 = vpack.c.b16 %v7299, %v7294
        %v7465 = vpack.c.b16 %v7305, %v7300
        %v7466 = vpack.c.b16 %v7306, %v7301
        %v7467 = vpack.c.b16 %v7307, %v7302
        %v7468 = vpack.c.b16 %v7308, %v7303
        %v7469 = vpack.c.b16 %v7309, %v7304
        %v7470 = vpack.c.b16 %v7315, %v7310
        %v7471 = vpack.c.b16 %v7316, %v7311
        %v7472 = vpack.c.b16 %v7317, %v7312
        %v7473 = vpack.c.b16 %v7318, %v7313
        %v7474 = vpack.c.b16 %v7319, %v7314
        %v7475 = vpack.c.b16 %v7325, %v7320
        %v7476 = vpack.c.b16 %v7326, %v7321
        %v7477 = vpack.c.b16 %v7327, %v7322
        %v7478 = vpack.c.b16 %v7328, %v7323
        %v7479 = vpack.c.b16 %v7329, %v7324
        %v7480 = vpack.c.b16 %v7335, %v7330
        %v7481 = vpack.c.b16 %v7336, %v7331
        %v7482 = vpack.c.b16 %v7337, %v7332
        %v7483 = vpack.c.b16 %v7338, %v7333
        %v7484 = vpack.c.b16 %v7339, %v7334
        %v7485 = vpack.c.b16 %v7345, %v7340
        %v7486 = vpack.c.b16 %v7346, %v7341
        %v7487 = vpack.c.b16 %v7347, %v7342
        %v7488 = vpack.c.b16 %v7348, %v7343
        %v7489 = vpack.c.b16 %v7349, %v7344
        %v7490 = vpack.c.b16 %v7355, %v7350
        %v7491 = vpack.c.b16 %v7356, %v7351
        %v7492 = vpack.c.b16 %v7357, %v7352
        %v7493 = vpack.c.b16 %v7358, %v7353
        %v7494 = vpack.c.b16 %v7359, %v7354
        %v7495 = vpack.c.b16 %v7365, %v7360
        %v7496 = vpack.c.b16 %v7366, %v7361
        %v7497 = vpack.c.b16 %v7367, %v7362
        %v7498 = vpack.c.b16 %v7368, %v7363
        %v7499 = vpack.c.b16 %v7369, %v7364
        %v7500 = vpack.c.b16 %v7375, %v7370
        %v7501 = vpack.c.b16 %v7376, %v7371
        %v7502 = vpack.c.b16 %v7377, %v7372
        %v7503 = vpack.c.b16 %v7378, %v7373
        %v7504 = vpack.c.b16 %v7379, %v7374
        %v7505 = vpack.c.b16 %v7385, %v7380
        %v7506 = vpack.c.b16 %v7386, %v7381
        %v7507 = vpack.c.b16 %v7387, %v7382
        %v7508 = vpack.c.b16 %v7388, %v7383
        %v7509 = vpack.c.b16 %v7389, %v7384
        %v7510 = vpack.c.b16 %v7395, %v7390
        %v7511 = vpack.c.b16 %v7396, %v7391
        %v7512 = vpack.c.b16 %v7397, %v7392
        %v7513 = vpack.c.b16 %v7398, %v7393
        %v7514 = vpack.c.b16 %v7399, %v7394
        %v7515 = vpack.c.b16 %v7405, %v7400
        %v7516 = vpack.c.b16 %v7406, %v7401
        %v7517 = vpack.c.b16 %v7407, %v7402
        %v7518 = vpack.c.b16 %v7408, %v7403
        %v7519 = vpack.c.b16 %v7409, %v7404
        %v7520 = vpack.c.b16 %v7415, %v7410
        %v7521 = vpack.c.b16 %v7416, %v7411
        %v7522 = vpack.c.b16 %v7417, %v7412
        %v7523 = vpack.c.b16 %v7418, %v7413
        %v7524 = vpack.c.b16 %v7419, %v7414
        %v7525 = vpack.c.b16 %v7425, %v7420
        %v7526 = vpack.c.b16 %v7426, %v7421
        %v7527 = vpack.c.b16 %v7427, %v7422
        %v7528 = vpack.c.b16 %v7428, %v7423
        %v7529 = vpack.c.b16 %v7429, %v7424
        %v7530 = vpack.c.b16 %v7435, %v7430
        %v7531 = vpack.c.b16 %v7436, %v7431
        %v7532 = vpack.c.b16 %v7437, %v7432
        %v7533 = vpack.c.b16 %v7438, %v7433
        %v7534 = vpack.c.b16 %v7439, %v7434
        %v7626 = vsel %vm4872, %v7131, 0
        %v7629 = vsel %vm4872, %v7130, 0
        %v7632 = vsel %vm2517, %v7530, 0
        %v7635 = vsel %vm2517, %v7531, 0
        %v7638 = vsel %vm2517, %v7532, 0
        %v7641 = vsel %vm2517, %v7533, 0
        %v7644 = vsel %vm2517, %v7534, 0
        %7646 = vmatprep.subr.bf16.mxu0 %v7476
        %7647 = vmatpush1.bf16.msra.mxu0 %v7475
        %7648 = vmatprep.subr.bf16.mxu0 %v7471
        %7649 = vmatpush1.bf16.msra.mxu0 %v7470
        %7650 = vmatprep.subr.bf16.mxu0 %v7466
        %7651 = vmatpush1.bf16.msra.mxu0 %v7465
        %7652 = vmatprep.subr.bf16.mxu0 %v7461
        %7653 = vmatpush1.bf16.msra.mxu0 %v7460
        %7654 = vmatprep.subr.bf16.mxu0 %v7456
        %7655 = vmatpush1.bf16.msra.mxu0 %v7455
        %7656 = vmatprep.subr.bf16.mxu0 %v7451
        %7657 = vmatpush1.bf16.msra.mxu0 %v7450
        %7658 = vmatprep.subr.bf16.mxu0 %v7446
        %7659 = vmatpush1.bf16.msra.mxu0 %v7445
        %7660 = vmatprep.subr.bf16.mxu0 %v7441
        %7661 = vmatpush1.bf16.msra.mxu0 %v7440
        %7662 = vmatprep.subr.bf16.mxu0 %v7516
        %7663 = vmatpush2.bf16.msra.mxu0 %v7515
        %7664 = vmatprep.subr.bf16.mxu0 %v7511
        %7665 = vmatpush2.bf16.msra.mxu0 %v7510
        %7666 = vmatprep.subr.bf16.mxu0 %v7506
        %7667 = vmatpush2.bf16.msra.mxu0 %v7505
        %7668 = vmatprep.subr.bf16.mxu0 %v7501
        %7669 = vmatpush2.bf16.msra.mxu0 %v7500
        %7670 = vmatprep.subr.bf16.mxu0 %v7496
        %7671 = vmatpush2.bf16.msra.mxu0 %v7495
        %7672 = vmatprep.subr.bf16.mxu0 %v7491
        %7673 = vmatpush2.bf16.msra.mxu0 %v7490
        %7674 = vmatprep.subr.bf16.mxu0 %v7486
        %7675 = vmatpush2.bf16.msra.mxu0 %v7485
        %7676 = vmatprep.subr.bf16.mxu0 %v7481
        %7677 = vmatpush2.bf16.msra.mxu0 %v7480
        %7678 = vmatprep.mubr.bf16.mxu0 %v7124
        %7679 = vmatmul.mubr.bf16.gmra.mxu0 %v7117
        %v7680 = vpop.f32.mrf.mxu0
        %v7681 = vadd.f32 0.0, %v7680
        %v7682 = vpop.f32.mrf.mxu0
        %v7683 = vadd.f32 0.0, %v7682
        %v7684 = vpop.f32.mrf.mxu0
        %v7685 = vadd.f32 0.0, %v7684
        %v7686 = vpop.f32.mrf.mxu0
        %v7687 = vadd.f32 0.0, %v7686
        %7688 = vmatprep.mubr.bf16.mxu0 %v7123
        %7689 = vmatmul.mubr.bf16.gmra.mxu0 %v7116
        %v7690 = vpop.f32.mrf.mxu0
        %v7691 = vadd.f32 0.0, %v7690
        %v7692 = vpop.f32.mrf.mxu0
        %v7693 = vadd.f32 0.0, %v7692
        %v7694 = vpop.f32.mrf.mxu0
        %v7695 = vadd.f32 0.0, %v7694
        %v7696 = vpop.f32.mrf.mxu0
        %v7697 = vadd.f32 0.0, %v7696
        %7698 = vdwg.mxu0
        %7699 = vmatprep.subr.bf16.mxu0 0
        %7700 = vmatpush1.bf16.msra.mxu0 0
        %7701 = vmatprep.subr.bf16.mxu0 0
        %7702 = vmatpush1.bf16.msra.mxu0 0
        %7703 = vmatprep.subr.bf16.mxu0 0
        %7704 = vmatpush1.bf16.msra.mxu0 0
        %7705 = vmatprep.subr.bf16.mxu0 0
        %7706 = vmatpush1.bf16.msra.mxu0 0
        %7707 = vmatprep.subr.bf16.mxu0 0
        %7708 = vmatpush1.bf16.msra.mxu0 0
        %7709 = vmatprep.subr.bf16.mxu0 %v7635
        %7710 = vmatpush1.bf16.msra.mxu0 %v7632
        %7711 = vmatprep.subr.bf16.mxu0 %v7526
        %7712 = vmatpush1.bf16.msra.mxu0 %v7525
        %7713 = vmatprep.subr.bf16.mxu0 %v7521
        %7714 = vmatpush1.bf16.msra.mxu0 %v7520
        %7715 = vmatprep.subr.bf16.mxu0 0
        %7716 = vmatpush2.bf16.msra.mxu0 0
        %7717 = vmatprep.subr.bf16.mxu0 0
        %7718 = vmatpush2.bf16.msra.mxu0 0
        %7719 = vmatprep.subr.bf16.mxu0 0
        %7720 = vmatpush2.bf16.msra.mxu0 0
        %7721 = vmatprep.subr.bf16.mxu0 0
        %7722 = vmatpush2.bf16.msra.mxu0 0
        %7723 = vmatprep.subr.bf16.mxu0 0
        %7724 = vmatpush2.bf16.msra.mxu0 0
        %7725 = vmatprep.subr.bf16.mxu0 0
        %7726 = vmatpush2.bf16.msra.mxu0 0
        %7727 = vmatprep.subr.bf16.mxu0 0
        %7728 = vmatpush2.bf16.msra.mxu0 0
        %7729 = vmatprep.subr.bf16.mxu0 0
        %7730 = vmatpush2.bf16.msra.mxu0 0
        %7731 = vmatprep.mubr.bf16.mxu0 0
        %7732 = vmatmul.mubr.bf16.gmra.mxu0 %v7626
        %v7733 = vpop.f32.mrf.mxu0
        %v7734 = vadd.f32 %v7681, %v7733
        %v7735 = vpop.f32.mrf.mxu0
        %v7736 = vadd.f32 %v7683, %v7735
        %v7737 = vpop.f32.mrf.mxu0
        %v7738 = vadd.f32 %v7685, %v7737
        %v7739 = vpop.f32.mrf.mxu0
        %v7740 = vadd.f32 %v7687, %v7739
        %7741 = vmatprep.mubr.bf16.mxu0 0
        %7742 = vmatmul.mubr.bf16.gmra.mxu0 %v7629
        %v7743 = vpop.f32.mrf.mxu0
        %v7744 = vadd.f32 %v7691, %v7743
        %v7745 = vpop.f32.mrf.mxu0
        %v7746 = vadd.f32 %v7693, %v7745
        %v7747 = vpop.f32.mrf.mxu0
        %v7748 = vadd.f32 %v7695, %v7747
        %v7749 = vpop.f32.mrf.mxu0
        %v7750 = vadd.f32 %v7697, %v7749
        %7751 = vdwg.mxu0
        %7752 = vmatprep.subr.bf16.mxu0 %v7478
        %7753 = vmatpush1.bf16.msra.mxu0 %v7477
        %7754 = vmatprep.subr.bf16.mxu0 %v7473
        %7755 = vmatpush1.bf16.msra.mxu0 %v7472
        %7756 = vmatprep.subr.bf16.mxu0 %v7468
        %7757 = vmatpush1.bf16.msra.mxu0 %v7467
        %7758 = vmatprep.subr.bf16.mxu0 %v7463
        %7759 = vmatpush1.bf16.msra.mxu0 %v7462
        %7760 = vmatprep.subr.bf16.mxu0 %v7458
        %7761 = vmatpush1.bf16.msra.mxu0 %v7457
        %7762 = vmatprep.subr.bf16.mxu0 %v7453
        %7763 = vmatpush1.bf16.msra.mxu0 %v7452
        %7764 = vmatprep.subr.bf16.mxu0 %v7448
        %7765 = vmatpush1.bf16.msra.mxu0 %v7447
        %7766 = vmatprep.subr.bf16.mxu0 %v7443
        %7767 = vmatpush1.bf16.msra.mxu0 %v7442
        %7768 = vmatprep.subr.bf16.mxu0 %v7518
        %7769 = vmatpush2.bf16.msra.mxu0 %v7517
        %7770 = vmatprep.subr.bf16.mxu0 %v7513
        %7771 = vmatpush2.bf16.msra.mxu0 %v7512
        %7772 = vmatprep.subr.bf16.mxu0 %v7508
        %7773 = vmatpush2.bf16.msra.mxu0 %v7507
        %7774 = vmatprep.subr.bf16.mxu0 %v7503
        %7775 = vmatpush2.bf16.msra.mxu0 %v7502
        %7776 = vmatprep.subr.bf16.mxu0 %v7498
        %7777 = vmatpush2.bf16.msra.mxu0 %v7497
        %7778 = vmatprep.subr.bf16.mxu0 %v7493
        %7779 = vmatpush2.bf16.msra.mxu0 %v7492
        %7780 = vmatprep.subr.bf16.mxu0 %v7488
        %7781 = vmatpush2.bf16.msra.mxu0 %v7487
        %7782 = vmatprep.subr.bf16.mxu0 %v7483
        %7783 = vmatpush2.bf16.msra.mxu0 %v7482
        %7784 = vmatprep.mubr.bf16.mxu0 %v7124
        %7785 = vmatmul.mubr.bf16.gmra.mxu0 %v7117
        %v7786 = vpop.f32.mrf.mxu0
        %v7787 = vadd.f32 0.0, %v7786
        %v7788 = vpop.f32.mrf.mxu0
        %v7789 = vadd.f32 0.0, %v7788
        %v7790 = vpop.f32.mrf.mxu0
        %v7791 = vadd.f32 0.0, %v7790
        %v7792 = vpop.f32.mrf.mxu0
        %v7793 = vadd.f32 0.0, %v7792
        %7794 = vmatprep.mubr.bf16.mxu0 %v7123
        %7795 = vmatmul.mubr.bf16.gmra.mxu0 %v7116
        %v7796 = vpop.f32.mrf.mxu0
        %v7797 = vadd.f32 0.0, %v7796
        %v7798 = vpop.f32.mrf.mxu0
        %v7799 = vadd.f32 0.0, %v7798
        %v7800 = vpop.f32.mrf.mxu0
        %v7801 = vadd.f32 0.0, %v7800
        %v7802 = vpop.f32.mrf.mxu0
        %v7803 = vadd.f32 0.0, %v7802
        %7804 = vdwg.mxu0
        %7805 = vmatprep.subr.bf16.mxu0 0
        %7806 = vmatpush1.bf16.msra.mxu0 0
        %7807 = vmatprep.subr.bf16.mxu0 0
        %7808 = vmatpush1.bf16.msra.mxu0 0
        %7809 = vmatprep.subr.bf16.mxu0 0
        %7810 = vmatpush1.bf16.msra.mxu0 0
        %7811 = vmatprep.subr.bf16.mxu0 0
        %7812 = vmatpush1.bf16.msra.mxu0 0
        %7813 = vmatprep.subr.bf16.mxu0 0
        %7814 = vmatpush1.bf16.msra.mxu0 0
        %7815 = vmatprep.subr.bf16.mxu0 %v7641
        %7816 = vmatpush1.bf16.msra.mxu0 %v7638
        %7817 = vmatprep.subr.bf16.mxu0 %v7528
        %7818 = vmatpush1.bf16.msra.mxu0 %v7527
        %7819 = vmatprep.subr.bf16.mxu0 %v7523
        %7820 = vmatpush1.bf16.msra.mxu0 %v7522
        %7821 = vmatprep.subr.bf16.mxu0 0
        %7822 = vmatpush2.bf16.msra.mxu0 0
        %7823 = vmatprep.subr.bf16.mxu0 0
        %7824 = vmatpush2.bf16.msra.mxu0 0
        %7825 = vmatprep.subr.bf16.mxu0 0
        %7826 = vmatpush2.bf16.msra.mxu0 0
        %7827 = vmatprep.subr.bf16.mxu0 0
        %7828 = vmatpush2.bf16.msra.mxu0 0
        %7829 = vmatprep.subr.bf16.mxu0 0
        %7830 = vmatpush2.bf16.msra.mxu0 0
        %7831 = vmatprep.subr.bf16.mxu0 0
        %7832 = vmatpush2.bf16.msra.mxu0 0
        %7833 = vmatprep.subr.bf16.mxu0 0
        %7834 = vmatpush2.bf16.msra.mxu0 0
        %7835 = vmatprep.subr.bf16.mxu0 0
        %7836 = vmatpush2.bf16.msra.mxu0 0
        %7837 = vmatprep.mubr.bf16.mxu0 0
        %7838 = vmatmul.mubr.bf16.gmra.mxu0 %v7626
        %v7839 = vpop.f32.mrf.mxu0
        %v7840 = vadd.f32 %v7787, %v7839
        %v7841 = vpop.f32.mrf.mxu0
        %v7842 = vadd.f32 %v7789, %v7841
        %v7843 = vpop.f32.mrf.mxu0
        %v7844 = vadd.f32 %v7791, %v7843
        %v7845 = vpop.f32.mrf.mxu0
        %v7846 = vadd.f32 %v7793, %v7845
        %7847 = vmatprep.mubr.bf16.mxu0 0
        %7848 = vmatmul.mubr.bf16.gmra.mxu0 %v7629
        %v7849 = vpop.f32.mrf.mxu0
        %v7850 = vadd.f32 %v7797, %v7849
        %v7851 = vpop.f32.mrf.mxu0
        %v7852 = vadd.f32 %v7799, %v7851
        %v7853 = vpop.f32.mrf.mxu0
        %v7854 = vadd.f32 %v7801, %v7853
        %v7855 = vpop.f32.mrf.mxu0
        %v7856 = vadd.f32 %v7803, %v7855
        %7857 = vdwg.mxu0
        %7858 = vmatprep.subr.bf16.mxu0 0
        %7859 = vmatpush1.bf16.msra.mxu0 %v7479
        %7860 = vmatprep.subr.bf16.mxu0 0
        %7861 = vmatpush1.bf16.msra.mxu0 %v7474
        %7862 = vmatprep.subr.bf16.mxu0 0
        %7863 = vmatpush1.bf16.msra.mxu0 %v7469
        %7864 = vmatprep.subr.bf16.mxu0 0
        %7865 = vmatpush1.bf16.msra.mxu0 %v7464
        %7866 = vmatprep.subr.bf16.mxu0 0
        %7867 = vmatpush1.bf16.msra.mxu0 %v7459
        %7868 = vmatprep.subr.bf16.mxu0 0
        %7869 = vmatpush1.bf16.msra.mxu0 %v7454
        %7870 = vmatprep.subr.bf16.mxu0 0
        %7871 = vmatpush1.bf16.msra.mxu0 %v7449
        %7872 = vmatprep.subr.bf16.mxu0 0
        %7873 = vmatpush1.bf16.msra.mxu0 %v7444
        %7874 = vmatprep.subr.bf16.mxu0 0
        %7875 = vmatpush2.bf16.msra.mxu0 %v7519
        %7876 = vmatprep.subr.bf16.mxu0 0
        %7877 = vmatpush2.bf16.msra.mxu0 %v7514
        %7878 = vmatprep.subr.bf16.mxu0 0
        %7879 = vmatpush2.bf16.msra.mxu0 %v7509
        %7880 = vmatprep.subr.bf16.mxu0 0
        %7881 = vmatpush2.bf16.msra.mxu0 %v7504
        %7882 = vmatprep.subr.bf16.mxu0 0
        %7883 = vmatpush2.bf16.msra.mxu0 %v7499
        %7884 = vmatprep.subr.bf16.mxu0 0
        %7885 = vmatpush2.bf16.msra.mxu0 %v7494
        %7886 = vmatprep.subr.bf16.mxu0 0
        %7887 = vmatpush2.bf16.msra.mxu0 %v7489
        %7888 = vmatprep.subr.bf16.mxu0 0
        %7889 = vmatpush2.bf16.msra.mxu0 %v7484
        %7890 = vmatprep.mubr.bf16.mxu0 %v7124
        %7891 = vmatmul.mubr.bf16.gmra.mxu0 %v7117
        %v7892 = vpop.f32.mrf.mxu0
        %v7893 = vadd.f32 0.0, %v7892
        %v7894 = vpop.f32.mrf.mxu0
        %v7895 = vpop.f32.mrf.mxu0
        %v7896 = vadd.f32 0.0, %v7895
        %v7897 = vpop.f32.mrf.mxu0
        %7898 = vmatprep.mubr.bf16.mxu0 %v7123
        %7899 = vmatmul.mubr.bf16.gmra.mxu0 %v7116
        %v7900 = vpop.f32.mrf.mxu0
        %v7901 = vadd.f32 0.0, %v7900
        %v7902 = vpop.f32.mrf.mxu0
        %v7903 = vpop.f32.mrf.mxu0
        %v7904 = vadd.f32 0.0, %v7903
        %v7905 = vpop.f32.mrf.mxu0
        %7906 = vdwg.mxu0
        %7907 = vmatprep.subr.bf16.mxu0 0
        %7908 = vmatpush1.bf16.msra.mxu0 0
        %7909 = vmatprep.subr.bf16.mxu0 0
        %7910 = vmatpush1.bf16.msra.mxu0 0
        %7911 = vmatprep.subr.bf16.mxu0 0
        %7912 = vmatpush1.bf16.msra.mxu0 0
        %7913 = vmatprep.subr.bf16.mxu0 0
        %7914 = vmatpush1.bf16.msra.mxu0 0
        %7915 = vmatprep.subr.bf16.mxu0 0
        %7916 = vmatpush1.bf16.msra.mxu0 0
        %7917 = vmatprep.subr.bf16.mxu0 0
        %7918 = vmatpush1.bf16.msra.mxu0 %v7644
        %7919 = vmatprep.subr.bf16.mxu0 0
        %7920 = vmatpush1.bf16.msra.mxu0 %v7529
        %7921 = vmatprep.subr.bf16.mxu0 0
        %7922 = vmatpush1.bf16.msra.mxu0 %v7524
        %7923 = vmatprep.subr.bf16.mxu0 0
        %7924 = vmatpush2.bf16.msra.mxu0 0
        %7925 = vmatprep.subr.bf16.mxu0 0
        %7926 = vmatpush2.bf16.msra.mxu0 0
        %7927 = vmatprep.subr.bf16.mxu0 0
        %7928 = vmatpush2.bf16.msra.mxu0 0
        %7929 = vmatprep.subr.bf16.mxu0 0
        %7930 = vmatpush2.bf16.msra.mxu0 0
        %7931 = vmatprep.subr.bf16.mxu0 0
        %7932 = vmatpush2.bf16.msra.mxu0 0
        %7933 = vmatprep.subr.bf16.mxu0 0
        %7934 = vmatpush2.bf16.msra.mxu0 0
        %7935 = vmatprep.subr.bf16.mxu0 0
        %7936 = vmatpush2.bf16.msra.mxu0 0
        %7937 = vmatprep.subr.bf16.mxu0 0
        %7938 = vmatpush2.bf16.msra.mxu0 0
        %7939 = vmatprep.mubr.bf16.mxu0 0
        %7940 = vmatmul.mubr.bf16.gmra.mxu0 %v7626
        %v7941 = vpop.f32.mrf.mxu0
        %v7942 = vadd.f32 %v7893, %v7941
        %v7943 = vpop.f32.mrf.mxu0
        %v7944 = vpop.f32.mrf.mxu0
        %v7945 = vadd.f32 %v7896, %v7944
        %v7946 = vpop.f32.mrf.mxu0
        %7947 = vmatprep.mubr.bf16.mxu0 0
        %7948 = vmatmul.mubr.bf16.gmra.mxu0 %v7629
        %v7949 = vpop.f32.mrf.mxu0
        %v7950 = vadd.f32 %v7901, %v7949
        %v7951 = vpop.f32.mrf.mxu0
        %v7952 = vpop.f32.mrf.mxu0
        %v7953 = vadd.f32 %v7904, %v7952
        %v7954 = vpop.f32.mrf.mxu0
        %7955 = vdwg.mxu0
        %v7956 = vadd.f32 %v6976, %v7734
        %v7957 = vadd.f32 %v6977, %v7736
        %v7958 = vadd.f32 %v6978, %v7840
        %v7959 = vadd.f32 %v6979, %v7842
        %v7960 = vadd.f32 %v6980, %v7942
        %v7961 = vadd.f32 %v6981, %v7738
        %v7962 = vadd.f32 %v6982, %v7740
        %v7963 = vadd.f32 %v6983, %v7844
        %v7964 = vadd.f32 %v6984, %v7846
        %v7965 = vadd.f32 %v6985, %v7945
        %v7966 = vadd.f32 %v6986, %v7744
        %v7967 = vadd.f32 %v6987, %v7746
        %v7968 = vadd.f32 %v6988, %v7850
        %v7969 = vadd.f32 %v6989, %v7852
        %v7970 = vadd.f32 %v6990, %v7950
        %v7971 = vadd.f32 %v6991, %v7748
        %v7972 = vadd.f32 %v6992, %v7750
        %v7973 = vadd.f32 %v6993, %v7854
        %v7974 = vadd.f32 %v6994, %v7856
        %v7975 = vadd.f32 %v6995, %v7953
        %s7976 = scalar_lea.vmem [#allocation10], 3040
        %v7977 = vld [vmem:[%s7976] sm:$0xff]
        %v7978 = vld [vmem:[%s7976 + $0x8] sm:$0xff]
        %v7979 = vld [vmem:[%s7976 + $0x10] sm:$0xf]
        %v7980 = vld [vmem:[%s7976 + $0x14] sm:$0xff]
        %v7981 = vld [vmem:[%s7976 + $0x1c] sm:$0xff]
        %v7982 = vld [vmem:[%s7976 + $0x24] sm:$0xf]
        %v7983 = vld [vmem:[%s7976 + $0x28] sm:$0xff]
        %v7984 = vld [vmem:[%s7976 + $0x30] sm:$0xff]
        %v7985 = vld [vmem:[%s7976 + $0x38] sm:$0xf]
        %v7986 = vld [vmem:[%s7976 + $0x3c] sm:$0xff]
        %v7987 = vld [vmem:[%s7976 + $0x44] sm:$0xff]
        %v7988 = vld [vmem:[%s7976 + $0x4c] sm:$0xf]
        %v7989 = vld [vmem:[%s7976 + $0x50] sm:$0xff]
        %v7990 = vld [vmem:[%s7976 + $0x58] sm:$0xff]
        %v7991 = vld [vmem:[%s7976 + $0x60] sm:$0xf]
        %v7992 = vld [vmem:[%s7976 + $0x64] sm:$0xff]
        %v7993 = vld [vmem:[%s7976 + $0x6c] sm:$0xff]
        %v7994 = vld [vmem:[%s7976 + $0x74] sm:$0xf]
        %v7995 = vld [vmem:[%s7976 + $0x78] sm:$0xff]
        %v7996 = vld [vmem:[%s7976 + $0x80] sm:$0xff]
        %v7997 = vld [vmem:[%s7976 + $0x88] sm:$0xf]
        %v7998 = vld [vmem:[%s7976 + $0x8c] sm:$0xff]
        %v7999 = vld [vmem:[%s7976 + $0x94] sm:$0xff]
        %v8000 = vld [vmem:[%s7976 + $0x9c] sm:$0xf]
        %v8001 = vld [vmem:[%s7976 + $0xa0] sm:$0xff]
        %v8002 = vld [vmem:[%s7976 + $0xa8] sm:$0xff]
        %v8003 = vld [vmem:[%s7976 + $0xb0] sm:$0xf]
        %v8004 = vld [vmem:[%s7976 + $0xb4] sm:$0xff]
        %v8005 = vld [vmem:[%s7976 + $0xbc] sm:$0xff]
        %v8006 = vld [vmem:[%s7976 + $0xc4] sm:$0xf]
        %v8007 = vld [vmem:[%s7976 + $0xc8] sm:$0xff]
        %v8008 = vld [vmem:[%s7976 + $0xd0] sm:$0xff]
        %v8009 = vld [vmem:[%s7976 + $0xd8] sm:$0xf]
        %v8010 = vld [vmem:[%s7976 + $0xdc] sm:$0xff]
        %v8011 = vld [vmem:[%s7976 + $0xe4] sm:$0xff]
        %v8012 = vld [vmem:[%s7976 + $0xec] sm:$0xf]
        %v8013 = vld [vmem:[%s7976 + $0xf0] sm:$0xff]
        %v8014 = vld [vmem:[%s7976 + $0xf8] sm:$0xff]
        %v8015 = vld [vmem:[%s7976 + $0x100] sm:$0xf]
        %v8016 = vld [vmem:[%s7976 + $0x104] sm:$0xff]
        %v8017 = vld [vmem:[%s7976 + $0x10c] sm:$0xff]
        %v8018 = vld [vmem:[%s7976 + $0x114] sm:$0xf]
        %v8019 = vld [vmem:[%s7976 + $0x118] sm:$0xff]
        %v8020 = vld [vmem:[%s7976 + $0x120] sm:$0xff]
        %v8021 = vld [vmem:[%s7976 + $0x128] sm:$0xf]
        %v8022 = vld [vmem:[%s7976 + $0x12c] sm:$0xff]
        %v8023 = vld [vmem:[%s7976 + $0x134] sm:$0xff]
        %v8024 = vld [vmem:[%s7976 + $0x13c] sm:$0xf]
        %v8025 = vld [vmem:[%s7976 + $0x140] sm:$0xff]
        %v8026 = vld [vmem:[%s7976 + $0x148] sm:$0xff]
        %v8027 = vld [vmem:[%s7976 + $0x150] sm:$0xf]
        %v8028 = vld [vmem:[%s7976 + $0x154] sm:$0xff]
        %v8029 = vld [vmem:[%s7976 + $0x15c] sm:$0xff]
        %v8030 = vld [vmem:[%s7976 + $0x164] sm:$0xf]
        %v8031 = vld [vmem:[%s7976 + $0x168] sm:$0xff]
        %v8032 = vld [vmem:[%s7976 + $0x170] sm:$0xff]
        %v8033 = vld [vmem:[%s7976 + $0x178] sm:$0xf]
        %v8034 = vld [vmem:[%s7976 + $0x17c] sm:$0xff]
        %v8035 = vld [vmem:[%s7976 + $0x184] sm:$0xff]
        %v8036 = vld [vmem:[%s7976 + $0x18c] sm:$0xf]
        %v8037 = vld [vmem:[%s7976 + $0x190] sm:$0xff]
        %v8038 = vld [vmem:[%s7976 + $0x198] sm:$0xff]
        %v8039 = vld [vmem:[%s7976 + $0x1a0] sm:$0xf]
        %v8040 = vld [vmem:[%s7976 + $0x1a4] sm:$0xff]
        %v8041 = vld [vmem:[%s7976 + $0x1ac] sm:$0xff]
        %v8042 = vld [vmem:[%s7976 + $0x1b4] sm:$0xf]
        %v8043 = vld [vmem:[%s7976 + $0x1b8] sm:$0xff]
        %v8044 = vld [vmem:[%s7976 + $0x1c0] sm:$0xff]
        %v8045 = vld [vmem:[%s7976 + $0x1c8] sm:$0xf]
        %v8046 = vld [vmem:[%s7976 + $0x1cc] sm:$0xff]
        %v8047 = vld [vmem:[%s7976 + $0x1d4] sm:$0xff]
        %v8048 = vld [vmem:[%s7976 + $0x1dc] sm:$0xf]
        %v8049 = vld [vmem:[%s7976 + $0x1e0] sm:$0xff]
        %v8050 = vld [vmem:[%s7976 + $0x1e8] sm:$0xff]
        %v8051 = vld [vmem:[%s7976 + $0x1f0] sm:$0xf]
        %v8052 = vld [vmem:[%s7976 + $0x1f4] sm:$0xff]
        %v8053 = vld [vmem:[%s7976 + $0x1fc] sm:$0xff]
        %v8054 = vld [vmem:[%s7976 + $0x204] sm:$0xf]
        %v8055 = vld [vmem:[%s7976 + $0x208] sm:$0xff]
        %v8056 = vld [vmem:[%s7976 + $0x210] sm:$0xff]
        %v8057 = vld [vmem:[%s7976 + $0x218] sm:$0xf]
        %v8058 = vld [vmem:[%s7976 + $0x21c] sm:$0xff]
        %v8059 = vld [vmem:[%s7976 + $0x224] sm:$0xff]
        %v8060 = vld [vmem:[%s7976 + $0x22c] sm:$0xf]
        %v8061 = vld [vmem:[%s7976 + $0x230] sm:$0xff]
        %v8062 = vld [vmem:[%s7976 + $0x238] sm:$0xff]
        %v8063 = vld [vmem:[%s7976 + $0x240] sm:$0xf]
        %v8064 = vld [vmem:[%s7976 + $0x244] sm:$0xff]
        %v8065 = vld [vmem:[%s7976 + $0x24c] sm:$0xff]
        %v8066 = vld [vmem:[%s7976 + $0x254] sm:$0xf]
        %v8067 = vld [vmem:[%s7976 + $0x258] sm:$0xff]
        %v8068 = vld [vmem:[%s7976 + $0x260] sm:$0xff]
        %v8069 = vld [vmem:[%s7976 + $0x268] sm:$0xf]
        %v8070 = vld [vmem:[%s7976 + $0x26c] sm:$0xff]
        %v8071 = vld [vmem:[%s7976 + $0x274] sm:$0xff]
        %v8072 = vld [vmem:[%s7976 + $0x27c] sm:$0xf]
        %v8073 = vld [vmem:[%s7976 + $0x280] sm:$0xff]
        %v8074 = vld [vmem:[%s7976 + $0x288] sm:$0xff]
        %v8075 = vld [vmem:[%s7976 + $0x290] sm:$0xf]
        %v8076 = vld [vmem:[%s7976 + $0x294] sm:$0xff]
        %v8077 = vld [vmem:[%s7976 + $0x29c] sm:$0xff]
        %v8078 = vld [vmem:[%s7976 + $0x2a4] sm:$0xf]
        %v8079 = vld [vmem:[%s7976 + $0x2a8] sm:$0xff]
        %v8080 = vld [vmem:[%s7976 + $0x2b0] sm:$0xff]
        %v8081 = vld [vmem:[%s7976 + $0x2b8] sm:$0xf]
        %v8082 = vld [vmem:[%s7976 + $0x2bc] sm:$0xff]
        %v8083 = vld [vmem:[%s7976 + $0x2c4] sm:$0xff]
        %v8084 = vld [vmem:[%s7976 + $0x2cc] sm:$0xf]
        %v8085 = vld [vmem:[%s7976 + $0x2d0] sm:$0xff]
        %v8086 = vld [vmem:[%s7976 + $0x2d8] sm:$0xff]
        %v8087 = vld [vmem:[%s7976 + $0x2e0] sm:$0xf]
        %v8088 = vld [vmem:[%s7976 + $0x2e4] sm:$0x33]
        %v8089 = vld [vmem:[%s7976 + $0x2ec] sm:$0x33]
        %v8090 = vld [vmem:[%s7976 + $0x2f4] sm:$0x3]
        %v8091 = vrot.slane %v4099, 2
        %v8092 = vrot.slane %v4102, 2
        %v8093 = vsel %vm2101, %v8091, %v8092
        %v8094 = vrot.slane %v4100, 2
        %v8095 = vrot.slane %v4103, 2
        %v8096 = vsel %vm2101, %v8094, %v8095
        %v8097 = vrot.slane %v4101, 2
        %v8098 = vrot.slane %v4104, 2
        %v8099 = vsel %vm2101, %v8097, %v8098
        %v8218 = vunpack.c.l.b16 %v7977
        %v8219 = vunpack.c.h.b16 %v7977
        %v8220 = vunpack.c.l.b16 %v7978
        %v8221 = vunpack.c.h.b16 %v7978
        %v8222 = vunpack.c.l.b16 %v7979
        %v8223 = vunpack.c.l.b16 %v7980
        %v8224 = vunpack.c.h.b16 %v7980
        %v8225 = vunpack.c.l.b16 %v7981
        %v8226 = vunpack.c.h.b16 %v7981
        %v8227 = vunpack.c.l.b16 %v7982
        %v8228 = vunpack.c.l.b16 %v7983
        %v8229 = vunpack.c.h.b16 %v7983
        %v8230 = vunpack.c.l.b16 %v7984
        %v8231 = vunpack.c.h.b16 %v7984
        %v8232 = vunpack.c.l.b16 %v7985
        %v8233 = vunpack.c.l.b16 %v7986
        %v8234 = vunpack.c.h.b16 %v7986
        %v8235 = vunpack.c.l.b16 %v7987
        %v8236 = vunpack.c.h.b16 %v7987
        %v8237 = vunpack.c.l.b16 %v7988
        %v8238 = vunpack.c.l.b16 %v7989
        %v8239 = vunpack.c.h.b16 %v7989
        %v8240 = vunpack.c.l.b16 %v7990
        %v8241 = vunpack.c.h.b16 %v7990
        %v8242 = vunpack.c.l.b16 %v7991
        %v8243 = vunpack.c.l.b16 %v7992
        %v8244 = vunpack.c.h.b16 %v7992
        %v8245 = vunpack.c.l.b16 %v7993
        %v8246 = vunpack.c.h.b16 %v7993
        %v8247 = vunpack.c.l.b16 %v7994
        %v8248 = vunpack.c.l.b16 %v7995
        %v8249 = vunpack.c.h.b16 %v7995
        %v8250 = vunpack.c.l.b16 %v7996
        %v8251 = vunpack.c.h.b16 %v7996
        %v8252 = vunpack.c.l.b16 %v7997
        %v8253 = vunpack.c.l.b16 %v7998
        %v8254 = vunpack.c.h.b16 %v7998
        %v8255 = vunpack.c.l.b16 %v7999
        %v8256 = vunpack.c.h.b16 %v7999
        %v8257 = vunpack.c.l.b16 %v8000
        %v8258 = vunpack.c.l.b16 %v8001
        %v8259 = vunpack.c.h.b16 %v8001
        %v8260 = vunpack.c.l.b16 %v8002
        %v8261 = vunpack.c.h.b16 %v8002
        %v8262 = vunpack.c.l.b16 %v8003
        %v8263 = vunpack.c.l.b16 %v8004
        %v8264 = vunpack.c.h.b16 %v8004
        %v8265 = vunpack.c.l.b16 %v8005
        %v8266 = vunpack.c.h.b16 %v8005
        %v8267 = vunpack.c.l.b16 %v8006
        %v8268 = vunpack.c.l.b16 %v8007
        %v8269 = vunpack.c.h.b16 %v8007
        %v8270 = vunpack.c.l.b16 %v8008
        %v8271 = vunpack.c.h.b16 %v8008
        %v8272 = vunpack.c.l.b16 %v8009
        %v8273 = vunpack.c.l.b16 %v8010
        %v8274 = vunpack.c.h.b16 %v8010
        %v8275 = vunpack.c.l.b16 %v8011
        %v8276 = vunpack.c.h.b16 %v8011
        %v8277 = vunpack.c.l.b16 %v8012
        %v8278 = vunpack.c.l.b16 %v8013
        %v8279 = vunpack.c.h.b16 %v8013
        %v8280 = vunpack.c.l.b16 %v8014
        %v8281 = vunpack.c.h.b16 %v8014
        %v8282 = vunpack.c.l.b16 %v8015
        %v8283 = vunpack.c.l.b16 %v8016
        %v8284 = vunpack.c.h.b16 %v8016
        %v8285 = vunpack.c.l.b16 %v8017
        %v8286 = vunpack.c.h.b16 %v8017
        %v8287 = vunpack.c.l.b16 %v8018
        %v8288 = vunpack.c.l.b16 %v8019
        %v8289 = vunpack.c.h.b16 %v8019
        %v8290 = vunpack.c.l.b16 %v8020
        %v8291 = vunpack.c.h.b16 %v8020
        %v8292 = vunpack.c.l.b16 %v8021
        %v8293 = vunpack.c.l.b16 %v8022
        %v8294 = vunpack.c.h.b16 %v8022
        %v8295 = vunpack.c.l.b16 %v8023
        %v8296 = vunpack.c.h.b16 %v8023
        %v8297 = vunpack.c.l.b16 %v8024
        %v8298 = vunpack.c.l.b16 %v8025
        %v8299 = vunpack.c.h.b16 %v8025
        %v8300 = vunpack.c.l.b16 %v8026
        %v8301 = vunpack.c.h.b16 %v8026
        %v8302 = vunpack.c.l.b16 %v8027
        %v8303 = vunpack.c.l.b16 %v8028
        %v8304 = vunpack.c.h.b16 %v8028
        %v8305 = vunpack.c.l.b16 %v8029
        %v8306 = vunpack.c.h.b16 %v8029
        %v8307 = vunpack.c.l.b16 %v8030
        %v8308 = vunpack.c.l.b16 %v8031
        %v8309 = vunpack.c.h.b16 %v8031
        %v8310 = vunpack.c.l.b16 %v8032
        %v8311 = vunpack.c.h.b16 %v8032
        %v8312 = vunpack.c.l.b16 %v8033
        %v8313 = vunpack.c.l.b16 %v8034
        %v8314 = vunpack.c.h.b16 %v8034
        %v8315 = vunpack.c.l.b16 %v8035
        %v8316 = vunpack.c.h.b16 %v8035
        %v8317 = vunpack.c.l.b16 %v8036
        %v8318 = vunpack.c.l.b16 %v8037
        %v8319 = vunpack.c.h.b16 %v8037
        %v8320 = vunpack.c.l.b16 %v8038
        %v8321 = vunpack.c.h.b16 %v8038
        %v8322 = vunpack.c.l.b16 %v8039
        %v8323 = vunpack.c.l.b16 %v8040
        %v8324 = vunpack.c.h.b16 %v8040
        %v8325 = vunpack.c.l.b16 %v8041
        %v8326 = vunpack.c.h.b16 %v8041
        %v8327 = vunpack.c.l.b16 %v8042
        %v8328 = vunpack.c.l.b16 %v8043
        %v8329 = vunpack.c.h.b16 %v8043
        %v8330 = vunpack.c.l.b16 %v8044
        %v8331 = vunpack.c.h.b16 %v8044
        %v8332 = vunpack.c.l.b16 %v8045
        %v8333 = vunpack.c.l.b16 %v8046
        %v8334 = vunpack.c.h.b16 %v8046
        %v8335 = vunpack.c.l.b16 %v8047
        %v8336 = vunpack.c.h.b16 %v8047
        %v8337 = vunpack.c.l.b16 %v8048
        %v8338 = vunpack.c.l.b16 %v8049
        %v8339 = vunpack.c.h.b16 %v8049
        %v8340 = vunpack.c.l.b16 %v8050
        %v8341 = vunpack.c.h.b16 %v8050
        %v8342 = vunpack.c.l.b16 %v8051
        %v8343 = vunpack.c.l.b16 %v8052
        %v8344 = vunpack.c.h.b16 %v8052
        %v8345 = vunpack.c.l.b16 %v8053
        %v8346 = vunpack.c.h.b16 %v8053
        %v8347 = vunpack.c.l.b16 %v8054
        %v8348 = vunpack.c.l.b16 %v8055
        %v8349 = vunpack.c.h.b16 %v8055
        %v8350 = vunpack.c.l.b16 %v8056
        %v8351 = vunpack.c.h.b16 %v8056
        %v8352 = vunpack.c.l.b16 %v8057
        %v8353 = vunpack.c.l.b16 %v8058
        %v8354 = vunpack.c.h.b16 %v8058
        %v8355 = vunpack.c.l.b16 %v8059
        %v8356 = vunpack.c.h.b16 %v8059
        %v8357 = vunpack.c.l.b16 %v8060
        %v8358 = vunpack.c.l.b16 %v8061
        %v8359 = vunpack.c.h.b16 %v8061
        %v8360 = vunpack.c.l.b16 %v8062
        %v8361 = vunpack.c.h.b16 %v8062
        %v8362 = vunpack.c.l.b16 %v8063
        %v8363 = vunpack.c.l.b16 %v8064
        %v8364 = vunpack.c.h.b16 %v8064
        %v8365 = vunpack.c.l.b16 %v8065
        %v8366 = vunpack.c.h.b16 %v8065
        %v8367 = vunpack.c.l.b16 %v8066
        %v8368 = vunpack.c.l.b16 %v8067
        %v8369 = vunpack.c.h.b16 %v8067
        %v8370 = vunpack.c.l.b16 %v8068
        %v8371 = vunpack.c.h.b16 %v8068
        %v8372 = vunpack.c.l.b16 %v8069
        %v8373 = vunpack.c.l.b16 %v8070
        %v8374 = vunpack.c.h.b16 %v8070
        %v8375 = vunpack.c.l.b16 %v8071
        %v8376 = vunpack.c.h.b16 %v8071
        %v8377 = vunpack.c.l.b16 %v8072
        %v8378 = vunpack.c.l.b16 %v8073
        %v8379 = vunpack.c.h.b16 %v8073
        %v8380 = vunpack.c.l.b16 %v8074
        %v8381 = vunpack.c.h.b16 %v8074
        %v8382 = vunpack.c.l.b16 %v8075
        %v8383 = vunpack.c.l.b16 %v8076
        %v8384 = vunpack.c.h.b16 %v8076
        %v8385 = vunpack.c.l.b16 %v8077
        %v8386 = vunpack.c.h.b16 %v8077
        %v8387 = vunpack.c.l.b16 %v8078
        %v8388 = vunpack.c.l.b16 %v8079
        %v8389 = vunpack.c.h.b16 %v8079
        %v8390 = vunpack.c.l.b16 %v8080
        %v8391 = vunpack.c.h.b16 %v8080
        %v8392 = vunpack.c.l.b16 %v8081
        %v8393 = vunpack.c.l.b16 %v8082
        %v8394 = vunpack.c.h.b16 %v8082
        %v8395 = vunpack.c.l.b16 %v8083
        %v8396 = vunpack.c.h.b16 %v8083
        %v8397 = vunpack.c.l.b16 %v8084
        %v8398 = vunpack.c.l.b16 %v8085
        %v8399 = vunpack.c.h.b16 %v8085
        %v8400 = vunpack.c.l.b16 %v8086
        %v8401 = vunpack.c.h.b16 %v8086
        %v8402 = vunpack.c.l.b16 %v8087
        %v8403 = vunpack.c.l.b16 %v8088
        %v8404 = vunpack.c.h.b16 %v8088
        %v8405 = vunpack.c.l.b16 %v8089
        %v8406 = vunpack.c.h.b16 %v8089
        %v8407 = vunpack.c.l.b16 %v8090
        %v8408 = vpack.c.b16 %v8223, %v8218
        %v8409 = vpack.c.b16 %v8224, %v8219
        %v8410 = vpack.c.b16 %v8225, %v8220
        %v8411 = vpack.c.b16 %v8226, %v8221
        %v8412 = vpack.c.b16 %v8227, %v8222
        %v8413 = vpack.c.b16 %v8233, %v8228
        %v8414 = vpack.c.b16 %v8234, %v8229
        %v8415 = vpack.c.b16 %v8235, %v8230
        %v8416 = vpack.c.b16 %v8236, %v8231
        %v8417 = vpack.c.b16 %v8237, %v8232
        %v8418 = vpack.c.b16 %v8243, %v8238
        %v8419 = vpack.c.b16 %v8244, %v8239
        %v8420 = vpack.c.b16 %v8245, %v8240
        %v8421 = vpack.c.b16 %v8246, %v8241
        %v8422 = vpack.c.b16 %v8247, %v8242
        %v8423 = vpack.c.b16 %v8253, %v8248
        %v8424 = vpack.c.b16 %v8254, %v8249
        %v8425 = vpack.c.b16 %v8255, %v8250
        %v8426 = vpack.c.b16 %v8256, %v8251
        %v8427 = vpack.c.b16 %v8257, %v8252
        %v8428 = vpack.c.b16 %v8263, %v8258
        %v8429 = vpack.c.b16 %v8264, %v8259
        %v8430 = vpack.c.b16 %v8265, %v8260
        %v8431 = vpack.c.b16 %v8266, %v8261
        %v8432 = vpack.c.b16 %v8267, %v8262
        %v8433 = vpack.c.b16 %v8273, %v8268
        %v8434 = vpack.c.b16 %v8274, %v8269
        %v8435 = vpack.c.b16 %v8275, %v8270
        %v8436 = vpack.c.b16 %v8276, %v8271
        %v8437 = vpack.c.b16 %v8277, %v8272
        %v8438 = vpack.c.b16 %v8283, %v8278
        %v8439 = vpack.c.b16 %v8284, %v8279
        %v8440 = vpack.c.b16 %v8285, %v8280
        %v8441 = vpack.c.b16 %v8286, %v8281
        %v8442 = vpack.c.b16 %v8287, %v8282
        %v8443 = vpack.c.b16 %v8293, %v8288
        %v8444 = vpack.c.b16 %v8294, %v8289
        %v8445 = vpack.c.b16 %v8295, %v8290
        %v8446 = vpack.c.b16 %v8296, %v8291
        %v8447 = vpack.c.b16 %v8297, %v8292
        %v8448 = vpack.c.b16 %v8303, %v8298
        %v8449 = vpack.c.b16 %v8304, %v8299
        %v8450 = vpack.c.b16 %v8305, %v8300
        %v8451 = vpack.c.b16 %v8306, %v8301
        %v8452 = vpack.c.b16 %v8307, %v8302
        %v8453 = vpack.c.b16 %v8313, %v8308
        %v8454 = vpack.c.b16 %v8314, %v8309
        %v8455 = vpack.c.b16 %v8315, %v8310
        %v8456 = vpack.c.b16 %v8316, %v8311
        %v8457 = vpack.c.b16 %v8317, %v8312
        %v8458 = vpack.c.b16 %v8323, %v8318
        %v8459 = vpack.c.b16 %v8324, %v8319
        %v8460 = vpack.c.b16 %v8325, %v8320
        %v8461 = vpack.c.b16 %v8326, %v8321
        %v8462 = vpack.c.b16 %v8327, %v8322
        %v8463 = vpack.c.b16 %v8333, %v8328
        %v8464 = vpack.c.b16 %v8334, %v8329
        %v8465 = vpack.c.b16 %v8335, %v8330
        %v8466 = vpack.c.b16 %v8336, %v8331
        %v8467 = vpack.c.b16 %v8337, %v8332
        %v8468 = vpack.c.b16 %v8343, %v8338
        %v8469 = vpack.c.b16 %v8344, %v8339
        %v8470 = vpack.c.b16 %v8345, %v8340
        %v8471 = vpack.c.b16 %v8346, %v8341
        %v8472 = vpack.c.b16 %v8347, %v8342
        %v8473 = vpack.c.b16 %v8353, %v8348
        %v8474 = vpack.c.b16 %v8354, %v8349
        %v8475 = vpack.c.b16 %v8355, %v8350
        %v8476 = vpack.c.b16 %v8356, %v8351
        %v8477 = vpack.c.b16 %v8357, %v8352
        %v8478 = vpack.c.b16 %v8363, %v8358
        %v8479 = vpack.c.b16 %v8364, %v8359
        %v8480 = vpack.c.b16 %v8365, %v8360
        %v8481 = vpack.c.b16 %v8366, %v8361
        %v8482 = vpack.c.b16 %v8367, %v8362
        %v8483 = vpack.c.b16 %v8373, %v8368
        %v8484 = vpack.c.b16 %v8374, %v8369
        %v8485 = vpack.c.b16 %v8375, %v8370
        %v8486 = vpack.c.b16 %v8376, %v8371
        %v8487 = vpack.c.b16 %v8377, %v8372
        %v8488 = vpack.c.b16 %v8383, %v8378
        %v8489 = vpack.c.b16 %v8384, %v8379
        %v8490 = vpack.c.b16 %v8385, %v8380
        %v8491 = vpack.c.b16 %v8386, %v8381
        %v8492 = vpack.c.b16 %v8387, %v8382
        %v8493 = vpack.c.b16 %v8393, %v8388
        %v8494 = vpack.c.b16 %v8394, %v8389
        %v8495 = vpack.c.b16 %v8395, %v8390
        %v8496 = vpack.c.b16 %v8396, %v8391
        %v8497 = vpack.c.b16 %v8397, %v8392
        %v8498 = vpack.c.b16 %v8403, %v8398
        %v8499 = vpack.c.b16 %v8404, %v8399
        %v8500 = vpack.c.b16 %v8405, %v8400
        %v8501 = vpack.c.b16 %v8406, %v8401
        %v8502 = vpack.c.b16 %v8407, %v8402
        %v8594 = vsel %vm4872, %v8099, 0
        %v8597 = vsel %vm4872, %v8098, 0
        %v8600 = vsel %vm2517, %v8498, 0
        %v8603 = vsel %vm2517, %v8499, 0
        %v8606 = vsel %vm2517, %v8500, 0
        %v8609 = vsel %vm2517, %v8501, 0
        %v8612 = vsel %vm2517, %v8502, 0
        %8614 = vmatprep.subr.bf16.mxu0 %v8444
        %8615 = vmatpush1.bf16.msra.mxu0 %v8443
        %8616 = vmatprep.subr.bf16.mxu0 %v8439
        %8617 = vmatpush1.bf16.msra.mxu0 %v8438
        %8618 = vmatprep.subr.bf16.mxu0 %v8434
        %8619 = vmatpush1.bf16.msra.mxu0 %v8433
        %8620 = vmatprep.subr.bf16.mxu0 %v8429
        %8621 = vmatpush1.bf16.msra.mxu0 %v8428
        %8622 = vmatprep.subr.bf16.mxu0 %v8424
        %8623 = vmatpush1.bf16.msra.mxu0 %v8423
        %8624 = vmatprep.subr.bf16.mxu0 %v8419
        %8625 = vmatpush1.bf16.msra.mxu0 %v8418
        %8626 = vmatprep.subr.bf16.mxu0 %v8414
        %8627 = vmatpush1.bf16.msra.mxu0 %v8413
        %8628 = vmatprep.subr.bf16.mxu0 %v8409
        %8629 = vmatpush1.bf16.msra.mxu0 %v8408
        %8630 = vmatprep.subr.bf16.mxu0 %v8484
        %8631 = vmatpush2.bf16.msra.mxu0 %v8483
        %8632 = vmatprep.subr.bf16.mxu0 %v8479
        %8633 = vmatpush2.bf16.msra.mxu0 %v8478
        %8634 = vmatprep.subr.bf16.mxu0 %v8474
        %8635 = vmatpush2.bf16.msra.mxu0 %v8473
        %8636 = vmatprep.subr.bf16.mxu0 %v8469
        %8637 = vmatpush2.bf16.msra.mxu0 %v8468
        %8638 = vmatprep.subr.bf16.mxu0 %v8464
        %8639 = vmatpush2.bf16.msra.mxu0 %v8463
        %8640 = vmatprep.subr.bf16.mxu0 %v8459
        %8641 = vmatpush2.bf16.msra.mxu0 %v8458
        %8642 = vmatprep.subr.bf16.mxu0 %v8454
        %8643 = vmatpush2.bf16.msra.mxu0 %v8453
        %8644 = vmatprep.subr.bf16.mxu0 %v8449
        %8645 = vmatpush2.bf16.msra.mxu0 %v8448
        %8646 = vmatprep.mubr.bf16.mxu0 %v8096
        %8647 = vmatmul.mubr.bf16.gmra.mxu0 %v8093
        %v8648 = vpop.f32.mrf.mxu0
        %v8649 = vadd.f32 0.0, %v8648
        %v8650 = vpop.f32.mrf.mxu0
        %v8651 = vadd.f32 0.0, %v8650
        %v8652 = vpop.f32.mrf.mxu0
        %v8653 = vadd.f32 0.0, %v8652
        %v8654 = vpop.f32.mrf.mxu0
        %v8655 = vadd.f32 0.0, %v8654
        %8656 = vmatprep.mubr.bf16.mxu0 %v8095
        %8657 = vmatmul.mubr.bf16.gmra.mxu0 %v8092
        %v8658 = vpop.f32.mrf.mxu0
        %v8659 = vadd.f32 0.0, %v8658
        %v8660 = vpop.f32.mrf.mxu0
        %v8661 = vadd.f32 0.0, %v8660
        %v8662 = vpop.f32.mrf.mxu0
        %v8663 = vadd.f32 0.0, %v8662
        %v8664 = vpop.f32.mrf.mxu0
        %v8665 = vadd.f32 0.0, %v8664
        %8666 = vdwg.mxu0
        %8667 = vmatprep.subr.bf16.mxu0 0
        %8668 = vmatpush1.bf16.msra.mxu0 0
        %8669 = vmatprep.subr.bf16.mxu0 0
        %8670 = vmatpush1.bf16.msra.mxu0 0
        %8671 = vmatprep.subr.bf16.mxu0 0
        %8672 = vmatpush1.bf16.msra.mxu0 0
        %8673 = vmatprep.subr.bf16.mxu0 0
        %8674 = vmatpush1.bf16.msra.mxu0 0
        %8675 = vmatprep.subr.bf16.mxu0 0
        %8676 = vmatpush1.bf16.msra.mxu0 0
        %8677 = vmatprep.subr.bf16.mxu0 %v8603
        %8678 = vmatpush1.bf16.msra.mxu0 %v8600
        %8679 = vmatprep.subr.bf16.mxu0 %v8494
        %8680 = vmatpush1.bf16.msra.mxu0 %v8493
        %8681 = vmatprep.subr.bf16.mxu0 %v8489
        %8682 = vmatpush1.bf16.msra.mxu0 %v8488
        %8683 = vmatprep.subr.bf16.mxu0 0
        %8684 = vmatpush2.bf16.msra.mxu0 0
        %8685 = vmatprep.subr.bf16.mxu0 0
        %8686 = vmatpush2.bf16.msra.mxu0 0
        %8687 = vmatprep.subr.bf16.mxu0 0
        %8688 = vmatpush2.bf16.msra.mxu0 0
        %8689 = vmatprep.subr.bf16.mxu0 0
        %8690 = vmatpush2.bf16.msra.mxu0 0
        %8691 = vmatprep.subr.bf16.mxu0 0
        %8692 = vmatpush2.bf16.msra.mxu0 0
        %8693 = vmatprep.subr.bf16.mxu0 0
        %8694 = vmatpush2.bf16.msra.mxu0 0
        %8695 = vmatprep.subr.bf16.mxu0 0
        %8696 = vmatpush2.bf16.msra.mxu0 0
        %8697 = vmatprep.subr.bf16.mxu0 0
        %8698 = vmatpush2.bf16.msra.mxu0 0
        %8699 = vmatprep.mubr.bf16.mxu0 0
        %8700 = vmatmul.mubr.bf16.gmra.mxu0 %v8594
        %v8701 = vpop.f32.mrf.mxu0
        %v8702 = vadd.f32 %v8649, %v8701
        %v8703 = vpop.f32.mrf.mxu0
        %v8704 = vadd.f32 %v8651, %v8703
        %v8705 = vpop.f32.mrf.mxu0
        %v8706 = vadd.f32 %v8653, %v8705
        %v8707 = vpop.f32.mrf.mxu0
        %v8708 = vadd.f32 %v8655, %v8707
        %8709 = vmatprep.mubr.bf16.mxu0 0
        %8710 = vmatmul.mubr.bf16.gmra.mxu0 %v8597
        %v8711 = vpop.f32.mrf.mxu0
        %v8712 = vadd.f32 %v8659, %v8711
        %v8713 = vpop.f32.mrf.mxu0
        %v8714 = vadd.f32 %v8661, %v8713
        %v8715 = vpop.f32.mrf.mxu0
        %v8716 = vadd.f32 %v8663, %v8715
        %v8717 = vpop.f32.mrf.mxu0
        %v8718 = vadd.f32 %v8665, %v8717
        %8719 = vdwg.mxu0
        %8720 = vmatprep.subr.bf16.mxu0 %v8446
        %8721 = vmatpush1.bf16.msra.mxu0 %v8445
        %8722 = vmatprep.subr.bf16.mxu0 %v8441
        %8723 = vmatpush1.bf16.msra.mxu0 %v8440
        %8724 = vmatprep.subr.bf16.mxu0 %v8436
        %8725 = vmatpush1.bf16.msra.mxu0 %v8435
        %8726 = vmatprep.subr.bf16.mxu0 %v8431
        %8727 = vmatpush1.bf16.msra.mxu0 %v8430
        %8728 = vmatprep.subr.bf16.mxu0 %v8426
        %8729 = vmatpush1.bf16.msra.mxu0 %v8425
        %8730 = vmatprep.subr.bf16.mxu0 %v8421
        %8731 = vmatpush1.bf16.msra.mxu0 %v8420
        %8732 = vmatprep.subr.bf16.mxu0 %v8416
        %8733 = vmatpush1.bf16.msra.mxu0 %v8415
        %8734 = vmatprep.subr.bf16.mxu0 %v8411
        %8735 = vmatpush1.bf16.msra.mxu0 %v8410
        %8736 = vmatprep.subr.bf16.mxu0 %v8486
        %8737 = vmatpush2.bf16.msra.mxu0 %v8485
        %8738 = vmatprep.subr.bf16.mxu0 %v8481
        %8739 = vmatpush2.bf16.msra.mxu0 %v8480
        %8740 = vmatprep.subr.bf16.mxu0 %v8476
        %8741 = vmatpush2.bf16.msra.mxu0 %v8475
        %8742 = vmatprep.subr.bf16.mxu0 %v8471
        %8743 = vmatpush2.bf16.msra.mxu0 %v8470
        %8744 = vmatprep.subr.bf16.mxu0 %v8466
        %8745 = vmatpush2.bf16.msra.mxu0 %v8465
        %8746 = vmatprep.subr.bf16.mxu0 %v8461
        %8747 = vmatpush2.bf16.msra.mxu0 %v8460
        %8748 = vmatprep.subr.bf16.mxu0 %v8456
        %8749 = vmatpush2.bf16.msra.mxu0 %v8455
        %8750 = vmatprep.subr.bf16.mxu0 %v8451
        %8751 = vmatpush2.bf16.msra.mxu0 %v8450
        %8752 = vmatprep.mubr.bf16.mxu0 %v8096
        %8753 = vmatmul.mubr.bf16.gmra.mxu0 %v8093
        %v8754 = vpop.f32.mrf.mxu0
        %v8755 = vadd.f32 0.0, %v8754
        %v8756 = vpop.f32.mrf.mxu0
        %v8757 = vadd.f32 0.0, %v8756
        %v8758 = vpop.f32.mrf.mxu0
        %v8759 = vadd.f32 0.0, %v8758
        %v8760 = vpop.f32.mrf.mxu0
        %v8761 = vadd.f32 0.0, %v8760
        %8762 = vmatprep.mubr.bf16.mxu0 %v8095
        %8763 = vmatmul.mubr.bf16.gmra.mxu0 %v8092
        %v8764 = vpop.f32.mrf.mxu0
        %v8765 = vadd.f32 0.0, %v8764
        %v8766 = vpop.f32.mrf.mxu0
        %v8767 = vadd.f32 0.0, %v8766
        %v8768 = vpop.f32.mrf.mxu0
        %v8769 = vadd.f32 0.0, %v8768
        %v8770 = vpop.f32.mrf.mxu0
        %v8771 = vadd.f32 0.0, %v8770
        %8772 = vdwg.mxu0
        %8773 = vmatprep.subr.bf16.mxu0 0
        %8774 = vmatpush1.bf16.msra.mxu0 0
        %8775 = vmatprep.subr.bf16.mxu0 0
        %8776 = vmatpush1.bf16.msra.mxu0 0
        %8777 = vmatprep.subr.bf16.mxu0 0
        %8778 = vmatpush1.bf16.msra.mxu0 0
        %8779 = vmatprep.subr.bf16.mxu0 0
        %8780 = vmatpush1.bf16.msra.mxu0 0
        %8781 = vmatprep.subr.bf16.mxu0 0
        %8782 = vmatpush1.bf16.msra.mxu0 0
        %8783 = vmatprep.subr.bf16.mxu0 %v8609
        %8784 = vmatpush1.bf16.msra.mxu0 %v8606
        %8785 = vmatprep.subr.bf16.mxu0 %v8496
        %8786 = vmatpush1.bf16.msra.mxu0 %v8495
        %8787 = vmatprep.subr.bf16.mxu0 %v8491
        %8788 = vmatpush1.bf16.msra.mxu0 %v8490
        %8789 = vmatprep.subr.bf16.mxu0 0
        %8790 = vmatpush2.bf16.msra.mxu0 0
        %8791 = vmatprep.subr.bf16.mxu0 0
        %8792 = vmatpush2.bf16.msra.mxu0 0
        %8793 = vmatprep.subr.bf16.mxu0 0
        %8794 = vmatpush2.bf16.msra.mxu0 0
        %8795 = vmatprep.subr.bf16.mxu0 0
        %8796 = vmatpush2.bf16.msra.mxu0 0
        %8797 = vmatprep.subr.bf16.mxu0 0
        %8798 = vmatpush2.bf16.msra.mxu0 0
        %8799 = vmatprep.subr.bf16.mxu0 0
        %8800 = vmatpush2.bf16.msra.mxu0 0
        %8801 = vmatprep.subr.bf16.mxu0 0
        %8802 = vmatpush2.bf16.msra.mxu0 0
        %8803 = vmatprep.subr.bf16.mxu0 0
        %8804 = vmatpush2.bf16.msra.mxu0 0
        %8805 = vmatprep.mubr.bf16.mxu0 0
        %8806 = vmatmul.mubr.bf16.gmra.mxu0 %v8594
        %v8807 = vpop.f32.mrf.mxu0
        %v8808 = vadd.f32 %v8755, %v8807
        %v8809 = vpop.f32.mrf.mxu0
        %v8810 = vadd.f32 %v8757, %v8809
        %v8811 = vpop.f32.mrf.mxu0
        %v8812 = vadd.f32 %v8759, %v8811
        %v8813 = vpop.f32.mrf.mxu0
        %v8814 = vadd.f32 %v8761, %v8813
        %8815 = vmatprep.mubr.bf16.mxu0 0
        %8816 = vmatmul.mubr.bf16.gmra.mxu0 %v8597
        %v8817 = vpop.f32.mrf.mxu0
        %v8818 = vadd.f32 %v8765, %v8817
        %v8819 = vpop.f32.mrf.mxu0
        %v8820 = vadd.f32 %v8767, %v8819
        %v8821 = vpop.f32.mrf.mxu0
        %v8822 = vadd.f32 %v8769, %v8821
        %v8823 = vpop.f32.mrf.mxu0
        %v8824 = vadd.f32 %v8771, %v8823
        %8825 = vdwg.mxu0
        %8826 = vmatprep.subr.bf16.mxu0 0
        %8827 = vmatpush1.bf16.msra.mxu0 %v8447
        %8828 = vmatprep.subr.bf16.mxu0 0
        %8829 = vmatpush1.bf16.msra.mxu0 %v8442
        %8830 = vmatprep.subr.bf16.mxu0 0
        %8831 = vmatpush1.bf16.msra.mxu0 %v8437
        %8832 = vmatprep.subr.bf16.mxu0 0
        %8833 = vmatpush1.bf16.msra.mxu0 %v8432
        %8834 = vmatprep.subr.bf16.mxu0 0
        %8835 = vmatpush1.bf16.msra.mxu0 %v8427
        %8836 = vmatprep.subr.bf16.mxu0 0
        %8837 = vmatpush1.bf16.msra.mxu0 %v8422
        %8838 = vmatprep.subr.bf16.mxu0 0
        %8839 = vmatpush1.bf16.msra.mxu0 %v8417
        %8840 = vmatprep.subr.bf16.mxu0 0
        %8841 = vmatpush1.bf16.msra.mxu0 %v8412
        %8842 = vmatprep.subr.bf16.mxu0 0
        %8843 = vmatpush2.bf16.msra.mxu0 %v8487
        %8844 = vmatprep.subr.bf16.mxu0 0
        %8845 = vmatpush2.bf16.msra.mxu0 %v8482
        %8846 = vmatprep.subr.bf16.mxu0 0
        %8847 = vmatpush2.bf16.msra.mxu0 %v8477
        %8848 = vmatprep.subr.bf16.mxu0 0
        %8849 = vmatpush2.bf16.msra.mxu0 %v8472
        %8850 = vmatprep.subr.bf16.mxu0 0
        %8851 = vmatpush2.bf16.msra.mxu0 %v8467
        %8852 = vmatprep.subr.bf16.mxu0 0
        %8853 = vmatpush2.bf16.msra.mxu0 %v8462
        %8854 = vmatprep.subr.bf16.mxu0 0
        %8855 = vmatpush2.bf16.msra.mxu0 %v8457
        %8856 = vmatprep.subr.bf16.mxu0 0
        %8857 = vmatpush2.bf16.msra.mxu0 %v8452
        %8858 = vmatprep.mubr.bf16.mxu0 %v8096
        %8859 = vmatmul.mubr.bf16.gmra.mxu0 %v8093
        %v8860 = vpop.f32.mrf.mxu0
        %v8861 = vadd.f32 0.0, %v8860
        %v8862 = vpop.f32.mrf.mxu0
        %v8863 = vpop.f32.mrf.mxu0
        %v8864 = vadd.f32 0.0, %v8863
        %v8865 = vpop.f32.mrf.mxu0
        %8866 = vmatprep.mubr.bf16.mxu0 %v8095
        %8867 = vmatmul.mubr.bf16.gmra.mxu0 %v8092
        %v8868 = vpop.f32.mrf.mxu0
        %v8869 = vadd.f32 0.0, %v8868
        %v8870 = vpop.f32.mrf.mxu0
        %v8871 = vpop.f32.mrf.mxu0
        %v8872 = vadd.f32 0.0, %v8871
        %v8873 = vpop.f32.mrf.mxu0
        %8874 = vdwg.mxu0
        %8875 = vmatprep.subr.bf16.mxu0 0
        %8876 = vmatpush1.bf16.msra.mxu0 0
        %8877 = vmatprep.subr.bf16.mxu0 0
        %8878 = vmatpush1.bf16.msra.mxu0 0
        %8879 = vmatprep.subr.bf16.mxu0 0
        %8880 = vmatpush1.bf16.msra.mxu0 0
        %8881 = vmatprep.subr.bf16.mxu0 0
        %8882 = vmatpush1.bf16.msra.mxu0 0
        %8883 = vmatprep.subr.bf16.mxu0 0
        %8884 = vmatpush1.bf16.msra.mxu0 0
        %8885 = vmatprep.subr.bf16.mxu0 0
        %8886 = vmatpush1.bf16.msra.mxu0 %v8612
        %8887 = vmatprep.subr.bf16.mxu0 0
        %8888 = vmatpush1.bf16.msra.mxu0 %v8497
        %8889 = vmatprep.subr.bf16.mxu0 0
        %8890 = vmatpush1.bf16.msra.mxu0 %v8492
        %8891 = vmatprep.subr.bf16.mxu0 0
        %8892 = vmatpush2.bf16.msra.mxu0 0
        %8893 = vmatprep.subr.bf16.mxu0 0
        %8894 = vmatpush2.bf16.msra.mxu0 0
        %8895 = vmatprep.subr.bf16.mxu0 0
        %8896 = vmatpush2.bf16.msra.mxu0 0
        %8897 = vmatprep.subr.bf16.mxu0 0
        %8898 = vmatpush2.bf16.msra.mxu0 0
        %8899 = vmatprep.subr.bf16.mxu0 0
        %8900 = vmatpush2.bf16.msra.mxu0 0
        %8901 = vmatprep.subr.bf16.mxu0 0
        %8902 = vmatpush2.bf16.msra.mxu0 0
        %8903 = vmatprep.subr.bf16.mxu0 0
        %8904 = vmatpush2.bf16.msra.mxu0 0
        %8905 = vmatprep.subr.bf16.mxu0 0
        %8906 = vmatpush2.bf16.msra.mxu0 0
        %8907 = vmatprep.mubr.bf16.mxu0 0
        %8908 = vmatmul.mubr.bf16.gmra.mxu0 %v8594
        %v8909 = vpop.f32.mrf.mxu0
        %v8910 = vadd.f32 %v8861, %v8909
        %v8911 = vpop.f32.mrf.mxu0
        %v8912 = vpop.f32.mrf.mxu0
        %v8913 = vadd.f32 %v8864, %v8912
        %v8914 = vpop.f32.mrf.mxu0
        %8915 = vmatprep.mubr.bf16.mxu0 0
        %8916 = vmatmul.mubr.bf16.gmra.mxu0 %v8597
        %v8917 = vpop.f32.mrf.mxu0
        %v8918 = vadd.f32 %v8869, %v8917
        %v8919 = vpop.f32.mrf.mxu0
        %v8920 = vpop.f32.mrf.mxu0
        %v8921 = vadd.f32 %v8872, %v8920
        %v8922 = vpop.f32.mrf.mxu0
        %8923 = vdwg.mxu0
        %v8924 = vadd.f32 %v7956, %v8702
        %v8925 = vadd.f32 %v7957, %v8704
        %v8926 = vadd.f32 %v7958, %v8808
        %v8927 = vadd.f32 %v7959, %v8810
        %v8928 = vadd.f32 %v7960, %v8910
        %v8929 = vadd.f32 %v7961, %v8706
        %v8930 = vadd.f32 %v7962, %v8708
        %v8931 = vadd.f32 %v7963, %v8812
        %v8932 = vadd.f32 %v7964, %v8814
        %v8933 = vadd.f32 %v7965, %v8913
        %v8934 = vadd.f32 %v7966, %v8712
        %v8935 = vadd.f32 %v7967, %v8714
        %v8936 = vadd.f32 %v7968, %v8818
        %v8937 = vadd.f32 %v7969, %v8820
        %v8938 = vadd.f32 %v7970, %v8918
        %v8939 = vadd.f32 %v7971, %v8716
        %v8940 = vadd.f32 %v7972, %v8718
        %v8941 = vadd.f32 %v7973, %v8822
        %v8942 = vadd.f32 %v7974, %v8824
        %v8943 = vadd.f32 %v7975, %v8921
        %v8944 = vpack.c.bf16 %v8929, %v8924
        %v8945 = vpack.c.bf16 %v8930, %v8925
        %v8946 = vpack.c.bf16 %v8931, %v8926
        %v8947 = vpack.c.bf16 %v8932, %v8927
        %v8948 = vpack.c.bf16 %v8933, %v8928
        %v8949 = vpack.c.bf16 %v8939, %v8934
        %v8950 = vpack.c.bf16 %v8940, %v8935
        %v8951 = vpack.c.bf16 %v8941, %v8936
        %v8952 = vpack.c.bf16 %v8942, %v8937
        %v8953 = vpack.c.bf16 %v8943, %v8938
        %v8954 = vld [vmem:[#allocation12] sm:$0xf]
        %v8955 = vld [vmem:[#allocation12 + $0x4] sm:$0x7]
        %v8958 = vunpack.c.l.b16 %v8954
        %v8959 = vunpack.c.l.b16 %v8955
        %v8960 = vpack.c.b16 %v8959, %v8958
        %vm8961 = vcmask 211968
        %v8963 = vsel %vm8961, %v8960, 0
        %vm8965 = vcmask 1044480
        %v8967 = vsel %vm8965, %v8949, 0
        %v8970 = vsel %vm8965, %v8950, 0
        %v8973 = vsel %vm8965, %v8951, 0
        %v8976 = vsel %vm8965, %v8952, 0
        %v8979 = vsel %vm8965, %v8953, 0
        %8981 = vmatprep.subr.bf16.mxu0 0
        %8982 = vmatpush1.bf16.msra.mxu0 0
        %8983 = vmatprep.subr.bf16.mxu0 0
        %8984 = vmatpush1.bf16.msra.mxu0 0
        %8985 = vmatprep.subr.bf16.mxu0 0
        %8986 = vmatpush1.bf16.msra.mxu0 0
        %8987 = vmatprep.subr.bf16.mxu0 0
        %8988 = vmatpush1.bf16.msra.mxu0 0
        %8989 = vmatprep.subr.bf16.mxu0 0
        %8990 = vmatpush1.bf16.msra.mxu0 0
        %8991 = vmatprep.subr.bf16.mxu0 0
        %8992 = vmatpush1.bf16.msra.mxu0 0
        %8993 = vmatprep.subr.bf16.mxu0 %v8970
        %8994 = vmatpush1.bf16.msra.mxu0 %v8967
        %8995 = vmatprep.subr.bf16.mxu0 %v8945
        %8996 = vmatpush1.bf16.msra.mxu0 %v8944
        %8997 = vmatprep.subr.bf16.mxu0 0
        %8998 = vmatpush2.bf16.msra.mxu0 0
        %8999 = vmatprep.subr.bf16.mxu0 0
        %9000 = vmatpush2.bf16.msra.mxu0 0
        %9001 = vmatprep.subr.bf16.mxu0 0
        %9002 = vmatpush2.bf16.msra.mxu0 0
        %9003 = vmatprep.subr.bf16.mxu0 0
        %9004 = vmatpush2.bf16.msra.mxu0 0
        %9005 = vmatprep.subr.bf16.mxu0 0
        %9006 = vmatpush2.bf16.msra.mxu0 0
        %9007 = vmatprep.subr.bf16.mxu0 0
        %9008 = vmatpush2.bf16.msra.mxu0 0
        %9009 = vmatprep.subr.bf16.mxu0 0
        %9010 = vmatpush2.bf16.msra.mxu0 0
        %9011 = vmatprep.subr.bf16.mxu0 0
        %9012 = vmatpush2.bf16.msra.mxu0 0
        %9013 = vmatprep.mubr.bf16.mxu0 0
        %9014 = vmatmul.mubr.bf16.gmra.mxu0 %v8963
        %v9015 = vpop.f32.mrf.mxu0
        %v9016 = vadd.f32 0.0, %v9015
        %v9017 = vpop.f32.mrf.mxu0
        %v9018 = vadd.f32 0.0, %v9017
        %v9019 = vpop.f32.mrf.mxu0
        %v9020 = vadd.f32 0.0, %v9019
        %v9021 = vpop.f32.mrf.mxu0
        %v9022 = vadd.f32 0.0, %v9021
        %9023 = vdwg.mxu0
        %9024 = vmatprep.subr.bf16.mxu0 0
        %9025 = vmatpush1.bf16.msra.mxu0 0
        %9026 = vmatprep.subr.bf16.mxu0 0
        %9027 = vmatpush1.bf16.msra.mxu0 0
        %9028 = vmatprep.subr.bf16.mxu0 0
        %9029 = vmatpush1.bf16.msra.mxu0 0
        %9030 = vmatprep.subr.bf16.mxu0 0
        %9031 = vmatpush1.bf16.msra.mxu0 0
        %9032 = vmatprep.subr.bf16.mxu0 0
        %9033 = vmatpush1.bf16.msra.mxu0 0
        %9034 = vmatprep.subr.bf16.mxu0 0
        %9035 = vmatpush1.bf16.msra.mxu0 0
        %9036 = vmatprep.subr.bf16.mxu0 %v8976
        %9037 = vmatpush1.bf16.msra.mxu0 %v8973
        %9038 = vmatprep.subr.bf16.mxu0 %v8947
        %9039 = vmatpush1.bf16.msra.mxu0 %v8946
        %9040 = vmatprep.subr.bf16.mxu0 0
        %9041 = vmatpush2.bf16.msra.mxu0 0
        %9042 = vmatprep.subr.bf16.mxu0 0
        %9043 = vmatpush2.bf16.msra.mxu0 0
        %9044 = vmatprep.subr.bf16.mxu0 0
        %9045 = vmatpush2.bf16.msra.mxu0 0
        %9046 = vmatprep.subr.bf16.mxu0 0
        %9047 = vmatpush2.bf16.msra.mxu0 0
        %9048 = vmatprep.subr.bf16.mxu0 0
        %9049 = vmatpush2.bf16.msra.mxu0 0
        %9050 = vmatprep.subr.bf16.mxu0 0
        %9051 = vmatpush2.bf16.msra.mxu0 0
        %9052 = vmatprep.subr.bf16.mxu0 0
        %9053 = vmatpush2.bf16.msra.mxu0 0
        %9054 = vmatprep.subr.bf16.mxu0 0
        %9055 = vmatpush2.bf16.msra.mxu0 0
        %9056 = vmatprep.mubr.bf16.mxu0 0
        %9057 = vmatmul.mubr.bf16.gmra.mxu0 %v8963
        %v9058 = vpop.f32.mrf.mxu0
        %v9059 = vadd.f32 0.0, %v9058
        %v9060 = vpop.f32.mrf.mxu0
        %v9061 = vadd.f32 0.0, %v9060
        %v9062 = vpop.f32.mrf.mxu0
        %v9063 = vadd.f32 0.0, %v9062
        %v9064 = vpop.f32.mrf.mxu0
        %v9065 = vadd.f32 0.0, %v9064
        %9066 = vdwg.mxu0
        %9067 = vmatprep.subr.bf16.mxu0 0
        %9068 = vmatpush1.bf16.msra.mxu0 0
        %9069 = vmatprep.subr.bf16.mxu0 0
        %9070 = vmatpush1.bf16.msra.mxu0 0
        %9071 = vmatprep.subr.bf16.mxu0 0
        %9072 = vmatpush1.bf16.msra.mxu0 0
        %9073 = vmatprep.subr.bf16.mxu0 0
        %9074 = vmatpush1.bf16.msra.mxu0 0
        %9075 = vmatprep.subr.bf16.mxu0 0
        %9076 = vmatpush1.bf16.msra.mxu0 0
        %9077 = vmatprep.subr.bf16.mxu0 0
        %9078 = vmatpush1.bf16.msra.mxu0 0
        %9079 = vmatprep.subr.bf16.mxu0 0
        %9080 = vmatpush1.bf16.msra.mxu0 %v8979
        %9081 = vmatprep.subr.bf16.mxu0 0
        %9082 = vmatpush1.bf16.msra.mxu0 %v8948
        %9083 = vmatprep.subr.bf16.mxu0 0
        %9084 = vmatpush2.bf16.msra.mxu0 0
        %9085 = vmatprep.subr.bf16.mxu0 0
        %9086 = vmatpush2.bf16.msra.mxu0 0
        %9087 = vmatprep.subr.bf16.mxu0 0
        %9088 = vmatpush2.bf16.msra.mxu0 0
        %9089 = vmatprep.subr.bf16.mxu0 0
        %9090 = vmatpush2.bf16.msra.mxu0 0
        %9091 = vmatprep.subr.bf16.mxu0 0
        %9092 = vmatpush2.bf16.msra.mxu0 0
        %9093 = vmatprep.subr.bf16.mxu0 0
        %9094 = vmatpush2.bf16.msra.mxu0 0
        %9095 = vmatprep.subr.bf16.mxu0 0
        %9096 = vmatpush2.bf16.msra.mxu0 0
        %9097 = vmatprep.subr.bf16.mxu0 0
        %9098 = vmatpush2.bf16.msra.mxu0 0
        %9099 = vmatprep.mubr.bf16.mxu0 0
        %9100 = vmatmul.mubr.bf16.gmra.mxu0 %v8963
        %v9101 = vpop.f32.mrf.mxu0
        %v9102 = vadd.f32 0.0, %v9101
        %v9103 = vpop.f32.mrf.mxu0
        %v9104 = vpop.f32.mrf.mxu0
        %v9105 = vadd.f32 0.0, %v9104
        %v9106 = vpop.f32.mrf.mxu0
        %9107 = vdwg.mxu0
        %v9108 = vld [vmem:[#allocation13] sm:$0xf]
        %v9109 = vld [vmem:[#allocation13 + $0x4] sm:$0x7]
        %v9112 = vunpack.c.l.b16 %v9108
        %v9113 = vunpack.c.l.b16 %v9109
        %v9114 = vpack.c.b16 %v9113, %v9112
        %v9116 = vsel %vm8961, %v9114, 0
        %9118 = vmatprep.subr.bf16.mxu0 0
        %9119 = vmatpush1.bf16.msra.mxu0 0
        %9120 = vmatprep.subr.bf16.mxu0 0
        %9121 = vmatpush1.bf16.msra.mxu0 0
        %9122 = vmatprep.subr.bf16.mxu0 0
        %9123 = vmatpush1.bf16.msra.mxu0 0
        %9124 = vmatprep.subr.bf16.mxu0 0
        %9125 = vmatpush1.bf16.msra.mxu0 0
        %9126 = vmatprep.subr.bf16.mxu0 0
        %9127 = vmatpush1.bf16.msra.mxu0 0
        %9128 = vmatprep.subr.bf16.mxu0 0
        %9129 = vmatpush1.bf16.msra.mxu0 0
        %9130 = vmatprep.subr.bf16.mxu0 %v8970
        %9131 = vmatpush1.bf16.msra.mxu0 %v8967
        %9132 = vmatprep.subr.bf16.mxu0 %v8945
        %9133 = vmatpush1.bf16.msra.mxu0 %v8944
        %9134 = vmatprep.subr.bf16.mxu0 0
        %9135 = vmatpush2.bf16.msra.mxu0 0
        %9136 = vmatprep.subr.bf16.mxu0 0
        %9137 = vmatpush2.bf16.msra.mxu0 0
        %9138 = vmatprep.subr.bf16.mxu0 0
        %9139 = vmatpush2.bf16.msra.mxu0 0
        %9140 = vmatprep.subr.bf16.mxu0 0
        %9141 = vmatpush2.bf16.msra.mxu0 0
        %9142 = vmatprep.subr.bf16.mxu0 0
        %9143 = vmatpush2.bf16.msra.mxu0 0
        %9144 = vmatprep.subr.bf16.mxu0 0
        %9145 = vmatpush2.bf16.msra.mxu0 0
        %9146 = vmatprep.subr.bf16.mxu0 0
        %9147 = vmatpush2.bf16.msra.mxu0 0
        %9148 = vmatprep.subr.bf16.mxu0 0
        %9149 = vmatpush2.bf16.msra.mxu0 0
        %9150 = vmatprep.mubr.bf16.mxu0 0
        %9151 = vmatmul.mubr.bf16.gmra.mxu0 %v9116
        %v9152 = vpop.f32.mrf.mxu0
        %v9153 = vadd.f32 0.0, %v9152
        %v9154 = vpop.f32.mrf.mxu0
        %v9155 = vadd.f32 0.0, %v9154
        %v9156 = vpop.f32.mrf.mxu0
        %v9157 = vadd.f32 0.0, %v9156
        %v9158 = vpop.f32.mrf.mxu0
        %v9159 = vadd.f32 0.0, %v9158
        %9160 = vdwg.mxu0
        %9161 = vmatprep.subr.bf16.mxu0 0
        %9162 = vmatpush1.bf16.msra.mxu0 0
        %9163 = vmatprep.subr.bf16.mxu0 0
        %9164 = vmatpush1.bf16.msra.mxu0 0
        %9165 = vmatprep.subr.bf16.mxu0 0
        %9166 = vmatpush1.bf16.msra.mxu0 0
        %9167 = vmatprep.subr.bf16.mxu0 0
        %9168 = vmatpush1.bf16.msra.mxu0 0
        %9169 = vmatprep.subr.bf16.mxu0 0
        %9170 = vmatpush1.bf16.msra.mxu0 0
        %9171 = vmatprep.subr.bf16.mxu0 0
        %9172 = vmatpush1.bf16.msra.mxu0 0
        %9173 = vmatprep.subr.bf16.mxu0 %v8976
        %9174 = vmatpush1.bf16.msra.mxu0 %v8973
        %9175 = vmatprep.subr.bf16.mxu0 %v8947
        %9176 = vmatpush1.bf16.msra.mxu0 %v8946
        %9177 = vmatprep.subr.bf16.mxu0 0
        %9178 = vmatpush2.bf16.msra.mxu0 0
        %9179 = vmatprep.subr.bf16.mxu0 0
        %9180 = vmatpush2.bf16.msra.mxu0 0
        %9181 = vmatprep.subr.bf16.mxu0 0
        %9182 = vmatpush2.bf16.msra.mxu0 0
        %9183 = vmatprep.subr.bf16.mxu0 0
        %9184 = vmatpush2.bf16.msra.mxu0 0
        %9185 = vmatprep.subr.bf16.mxu0 0
        %9186 = vmatpush2.bf16.msra.mxu0 0
        %9187 = vmatprep.subr.bf16.mxu0 0
        %9188 = vmatpush2.bf16.msra.mxu0 0
        %9189 = vmatprep.subr.bf16.mxu0 0
        %9190 = vmatpush2.bf16.msra.mxu0 0
        %9191 = vmatprep.subr.bf16.mxu0 0
        %9192 = vmatpush2.bf16.msra.mxu0 0
        %9193 = vmatprep.mubr.bf16.mxu0 0
        %9194 = vmatmul.mubr.bf16.gmra.mxu0 %v9116
        %v9195 = vpop.f32.mrf.mxu0
        %v9196 = vadd.f32 0.0, %v9195
        %v9197 = vpop.f32.mrf.mxu0
        %v9198 = vadd.f32 0.0, %v9197
        %v9199 = vpop.f32.mrf.mxu0
        %v9200 = vadd.f32 0.0, %v9199
        %v9201 = vpop.f32.mrf.mxu0
        %v9202 = vadd.f32 0.0, %v9201
        %9203 = vdwg.mxu0
        %9204 = vmatprep.subr.bf16.mxu0 0
        %9205 = vmatpush1.bf16.msra.mxu0 0
        %9206 = vmatprep.subr.bf16.mxu0 0
        %9207 = vmatpush1.bf16.msra.mxu0 0
        %9208 = vmatprep.subr.bf16.mxu0 0
        %9209 = vmatpush1.bf16.msra.mxu0 0
        %9210 = vmatprep.subr.bf16.mxu0 0
        %9211 = vmatpush1.bf16.msra.mxu0 0
        %9212 = vmatprep.subr.bf16.mxu0 0
        %9213 = vmatpush1.bf16.msra.mxu0 0
        %9214 = vmatprep.subr.bf16.mxu0 0
        %9215 = vmatpush1.bf16.msra.mxu0 0
        %9216 = vmatprep.subr.bf16.mxu0 0
        %9217 = vmatpush1.bf16.msra.mxu0 %v8979
        %9218 = vmatprep.subr.bf16.mxu0 0
        %9219 = vmatpush1.bf16.msra.mxu0 %v8948
        %9220 = vmatprep.subr.bf16.mxu0 0
        %9221 = vmatpush2.bf16.msra.mxu0 0
        %9222 = vmatprep.subr.bf16.mxu0 0
        %9223 = vmatpush2.bf16.msra.mxu0 0
        %9224 = vmatprep.subr.bf16.mxu0 0
        %9225 = vmatpush2.bf16.msra.mxu0 0
        %9226 = vmatprep.subr.bf16.mxu0 0
        %9227 = vmatpush2.bf16.msra.mxu0 0
        %9228 = vmatprep.subr.bf16.mxu0 0
        %9229 = vmatpush2.bf16.msra.mxu0 0
        %9230 = vmatprep.subr.bf16.mxu0 0
        %9231 = vmatpush2.bf16.msra.mxu0 0
        %9232 = vmatprep.subr.bf16.mxu0 0
        %9233 = vmatpush2.bf16.msra.mxu0 0
        %9234 = vmatprep.subr.bf16.mxu0 0
        %9235 = vmatpush2.bf16.msra.mxu0 0
        %9236 = vmatprep.mubr.bf16.mxu0 0
        %9237 = vmatmul.mubr.bf16.gmra.mxu0 %v9116
        %v9238 = vpop.f32.mrf.mxu0
        %v9239 = vadd.f32 0.0, %v9238
        %v9240 = vpop.f32.mrf.mxu0
        %v9241 = vpop.f32.mrf.mxu0
        %v9242 = vadd.f32 0.0, %v9241
        %v9243 = vpop.f32.mrf.mxu0
        %9244 = vdwg.mxu0
        %v9245 = vmax.f32 %v9016, %v9153
        %v9246 = vmax.f32 %v9018, %v9155
        %v9247 = vmax.f32 %v9059, %v9196
        %v9248 = vmax.f32 %v9061, %v9198
        %v9249 = vmax.f32 %v9102, %v9239
        %v9250 = vmax.f32 %v9020, %v9157
        %v9251 = vmax.f32 %v9022, %v9159
        %v9252 = vmax.f32 %v9063, %v9200
        %v9253 = vmax.f32 %v9065, %v9202
        %v9254 = vmax.f32 %v9105, %v9242
        %9265 = vrot.lane.b32.xlu0 %v9245, 108
        %v9266 = vpop.permute.xlu0 %9265
        %9267 = vrot.lane.b32.xlu0 %v9246, 108
        %v9268 = vpop.permute.xlu0 %9267
        %9269 = vrot.lane.b32.xlu0 %v9247, 108
        %v9270 = vpop.permute.xlu0 %9269
        %9271 = vrot.lane.b32.xlu0 %v9248, 108
        %v9272 = vpop.permute.xlu0 %9271
        %9273 = vrot.lane.b32.xlu0 %v9249, 108
        %v9274 = vpop.permute.xlu0 %9273
        %9275 = vrot.lane.b32.xlu0 %v9250, 108
        %v9276 = vpop.permute.xlu0 %9275
        %9277 = vrot.lane.b32.xlu0 %v9251, 108
        %v9278 = vpop.permute.xlu0 %9277
        %9279 = vrot.lane.b32.xlu0 %v9252, 108
        %v9280 = vpop.permute.xlu0 %9279
        %9281 = vrot.lane.b32.xlu0 %v9253, 108
        %v9282 = vpop.permute.xlu0 %9281
        %9283 = vrot.lane.b32.xlu0 %v9254, 108
        %v9284 = vpop.permute.xlu0 %9283
        %vm9285 = vcmask 883712
        %v9286 = vsel %vm9285, %v9266, %v9268
        %v9287 = vsel %vm9285, %v9268, %v9270
        %v9288 = vsel %vm9285, %v9270, %v9272
        %v9289 = vsel %vm9285, %v9272, %v9274
        %v9290 = vsel %vm9285, %v9276, %v9278
        %v9291 = vsel %vm9285, %v9278, %v9280
        %v9292 = vsel %vm9285, %v9280, %v9282
        %v9293 = vsel %vm9285, %v9282, %v9284
        %v9302 = vmax.f32 %v9245, %v9286
        %v9303 = vmax.f32 %v9246, %v9287
        %v9304 = vmax.f32 %v9247, %v9288
        %v9305 = vmax.f32 %v9248, %v9289
        %v9306 = vmax.f32 %v9250, %v9290
        %v9307 = vmax.f32 %v9251, %v9291
        %v9308 = vmax.f32 %v9252, %v9292
        %v9309 = vmax.f32 %v9253, %v9293
        %v9310 = vpack.c.bf16 %v9306, %v9302
        %v9311 = vpack.c.bf16 %v9307, %v9303
        %v9312 = vpack.c.bf16 %v9308, %v9304
        %v9313 = vpack.c.bf16 %v9309, %v9305
        %v9314 = vld [vmem:[%s9] sm:$0xff]
        %v9315 = vld [vmem:[%s9 + $0x8] sm:$0xf]
        %v9316 = vld [vmem:[%s9 + $0xc] sm:$0xff]
        %v9317 = vld [vmem:[%s9 + $0x14] sm:$0xf]
        %v9318 = vld [vmem:[%s9 + $0x18] sm:$0xff]
        %v9319 = vld [vmem:[%s9 + $0x20] sm:$0xf]
        %v9320 = vld [vmem:[%s9 + $0x24] sm:$0xff]
        %v9321 = vld [vmem:[%s9 + $0x2c] sm:$0xf]
        %v9322 = vld [vmem:[%s9 + $0x30] sm:$0xff]
        %v9323 = vld [vmem:[%s9 + $0x38] sm:$0xf]
        %v9324 = vld [vmem:[%s9 + $0x3c] sm:$0xff]
        %v9325 = vld [vmem:[%s9 + $0x44] sm:$0xf]
        %v9326 = vld [vmem:[%s9 + $0x48] sm:$0xff]
        %v9327 = vld [vmem:[%s9 + $0x50] sm:$0xf]
        %v9328 = vld [vmem:[%s9 + $0x54] sm:$0xff]
        %v9329 = vld [vmem:[%s9 + $0x5c] sm:$0xf]
        %v9330 = vld [vmem:[%s9 + $0x60] sm:$0xff]
        %v9331 = vld [vmem:[%s9 + $0x68] sm:$0xf]
        %v9332 = vld [vmem:[%s9 + $0x6c] sm:$0xff]
        %v9333 = vld [vmem:[%s9 + $0x74] sm:$0xf]
        %v9334 = vld [vmem:[%s9 + $0x78] sm:$0xff]
        %v9335 = vld [vmem:[%s9 + $0x80] sm:$0xf]
        %v9336 = vld [vmem:[%s9 + $0x84] sm:$0xff]
        %v9337 = vld [vmem:[%s9 + $0x8c] sm:$0xf]
        %v9338 = vld [vmem:[%s9 + $0x90] sm:$0xff]
        %v9339 = vld [vmem:[%s9 + $0x98] sm:$0xf]
        %v9340 = vld [vmem:[%s9 + $0x9c] sm:$0xff]
        %v9341 = vld [vmem:[%s9 + $0xa4] sm:$0xf]
        %v9342 = vld [vmem:[%s9 + $0xa8] sm:$0xff]
        %v9343 = vld [vmem:[%s9 + $0xb0] sm:$0xf]
        %v9344 = vld [vmem:[%s9 + $0xb4] sm:$0xff]
        %v9345 = vld [vmem:[%s9 + $0xbc] sm:$0xf]
        %v9346 = vld [vmem:[%s9 + $0xc0] sm:$0xff]
        %v9347 = vld [vmem:[%s9 + $0xc8] sm:$0xf]
        %v9348 = vld [vmem:[%s9 + $0xcc] sm:$0xff]
        %v9349 = vld [vmem:[%s9 + $0xd4] sm:$0xf]
        %v9350 = vld [vmem:[%s9 + $0xd8] sm:$0xff]
        %v9351 = vld [vmem:[%s9 + $0xe0] sm:$0xf]
        %v9352 = vld [vmem:[%s9 + $0xe4] sm:$0xff]
        %v9353 = vld [vmem:[%s9 + $0xec] sm:$0xf]
        %v9354 = vld [vmem:[%s9 + $0xf0] sm:$0xff]
        %v9355 = vld [vmem:[%s9 + $0xf8] sm:$0xf]
        %v9356 = vld [vmem:[%s9 + $0xfc] sm:$0xff]
        %v9357 = vld [vmem:[%s9 + $0x104] sm:$0xf]
        %v9358 = vld [vmem:[%s9 + $0x108] sm:$0xff]
        %v9359 = vld [vmem:[%s9 + $0x110] sm:$0xf]
        %v9360 = vld [vmem:[%s9 + $0x114] sm:$0xff]
        %v9361 = vld [vmem:[%s9 + $0x11c] sm:$0xf]
        %v9362 = vld [vmem:[%s9 + $0x120] sm:$0xff]
        %v9363 = vld [vmem:[%s9 + $0x128] sm:$0xf]
        %v9364 = vld [vmem:[%s9 + $0x12c] sm:$0xff]
        %v9365 = vld [vmem:[%s9 + $0x134] sm:$0xf]
        %v9366 = vld [vmem:[%s9 + $0x138] sm:$0xff]
        %v9367 = vld [vmem:[%s9 + $0x140] sm:$0xf]
        %v9368 = vld [vmem:[%s9 + $0x144] sm:$0xff]
        %v9369 = vld [vmem:[%s9 + $0x14c] sm:$0xf]
        %v9370 = vld [vmem:[%s9 + $0x150] sm:$0xff]
        %v9371 = vld [vmem:[%s9 + $0x158] sm:$0xf]
        %v9372 = vld [vmem:[%s9 + $0x15c] sm:$0xff]
        %v9373 = vld [vmem:[%s9 + $0x164] sm:$0xf]
        %v9374 = vld [vmem:[%s9 + $0x168] sm:$0xff]
        %v9375 = vld [vmem:[%s9 + $0x170] sm:$0xf]
        %v9376 = vld [vmem:[%s9 + $0x174] sm:$0xff]
        %v9377 = vld [vmem:[%s9 + $0x17c] sm:$0xf]
        %v9378 = vld [vmem:[%s9 + $0x180] sm:$0xff]
        %v9379 = vld [vmem:[%s9 + $0x188] sm:$0xf]
        %v9380 = vld [vmem:[%s9 + $0x18c] sm:$0xff]
        %v9381 = vld [vmem:[%s9 + $0x194] sm:$0xf]
        %v9382 = vld [vmem:[%s9 + $0x198] sm:$0xff]
        %v9383 = vld [vmem:[%s9 + $0x1a0] sm:$0xf]
        %v9384 = vld [vmem:[%s9 + $0x1a4] sm:$0xff]
        %v9385 = vld [vmem:[%s9 + $0x1ac] sm:$0xf]
        %v9386 = vld [vmem:[%s9 + $0x1b0] sm:$0xff]
        %v9387 = vld [vmem:[%s9 + $0x1b8] sm:$0xf]
        %v9388 = vld [vmem:[%s9 + $0x1bc] sm:$0xff]
        %v9389 = vld [vmem:[%s9 + $0x1c4] sm:$0xf]
        %v9390 = vld [vmem:[%s9 + $0x1c8] sm:$0xff]
        %v9391 = vld [vmem:[%s9 + $0x1d0] sm:$0xf]
        %v9392 = vld [vmem:[%s9 + $0x1d4] sm:$0xff]
        %v9393 = vld [vmem:[%s9 + $0x1dc] sm:$0xf]
        %v9394 = vld [vmem:[%s9 + $0x1e0] sm:$0xff]
        %v9395 = vld [vmem:[%s9 + $0x1e8] sm:$0xf]
        %v9396 = vld [vmem:[%s9 + $0x1ec] sm:$0xff]
        %v9397 = vld [vmem:[%s9 + $0x1f4] sm:$0xf]
        %v9398 = vld [vmem:[%s9 + $0x1f8] sm:$0xff]
        %v9399 = vld [vmem:[%s9 + $0x200] sm:$0xf]
        %v9400 = vld [vmem:[%s9 + $0x204] sm:$0xff]
        %v9401 = vld [vmem:[%s9 + $0x20c] sm:$0xf]
        %v9402 = vld [vmem:[%s9 + $0x210] sm:$0xff]
        %v9403 = vld [vmem:[%s9 + $0x218] sm:$0xf]
        %v9404 = vld [vmem:[%s9 + $0x21c] sm:$0xff]
        %v9405 = vld [vmem:[%s9 + $0x224] sm:$0xf]
        %v9406 = vld [vmem:[%s9 + $0x228] sm:$0xff]
        %v9407 = vld [vmem:[%s9 + $0x230] sm:$0xf]
        %v9408 = vld [vmem:[%s9 + $0x234] sm:$0xff]
        %v9409 = vld [vmem:[%s9 + $0x23c] sm:$0xf]
        %v9410 = vld [vmem:[%s9 + $0x240] sm:$0xff]
        %v9411 = vld [vmem:[%s9 + $0x248] sm:$0xf]
        %v9412 = vld [vmem:[%s9 + $0x24c] sm:$0xff]
        %v9413 = vld [vmem:[%s9 + $0x254] sm:$0xf]
        %v9414 = vld [vmem:[%s9 + $0x258] sm:$0xff]
        %v9415 = vld [vmem:[%s9 + $0x260] sm:$0xf]
        %v9416 = vld [vmem:[%s9 + $0x264] sm:$0xff]
        %v9417 = vld [vmem:[%s9 + $0x26c] sm:$0xf]
        %v9418 = vld [vmem:[%s9 + $0x270] sm:$0xff]
        %v9419 = vld [vmem:[%s9 + $0x278] sm:$0xf]
        %v9420 = vld [vmem:[%s9 + $0x27c] sm:$0xff]
        %v9421 = vld [vmem:[%s9 + $0x284] sm:$0xf]
        %v9422 = vld [vmem:[%s9 + $0x288] sm:$0xff]
        %v9423 = vld [vmem:[%s9 + $0x290] sm:$0xf]
        %v9424 = vld [vmem:[%s9 + $0x294] sm:$0xff]
        %v9425 = vld [vmem:[%s9 + $0x29c] sm:$0xf]
        %v9426 = vld [vmem:[%s9 + $0x2a0] sm:$0xff]
        %v9427 = vld [vmem:[%s9 + $0x2a8] sm:$0xf]
        %v9428 = vld [vmem:[%s9 + $0x2ac] sm:$0xff]
        %v9429 = vld [vmem:[%s9 + $0x2b4] sm:$0xf]
        %v9430 = vld [vmem:[%s9 + $0x2b8] sm:$0xff]
        %v9431 = vld [vmem:[%s9 + $0x2c0] sm:$0xf]
        %v9432 = vld [vmem:[%s9 + $0x2c4] sm:$0xff]
        %v9433 = vld [vmem:[%s9 + $0x2cc] sm:$0xf]
        %v9434 = vld [vmem:[%s9 + $0x2d0] sm:$0xff]
        %v9435 = vld [vmem:[%s9 + $0x2d8] sm:$0xf]
        %v9436 = vld [vmem:[%s9 + $0x2dc] sm:$0xff]
        %v9437 = vld [vmem:[%s9 + $0x2e4] sm:$0xf]
        %v9438 = vld [vmem:[%s9 + $0x2e8] sm:$0x33]
        %v9439 = vld [vmem:[%s9 + $0x2f0] sm:$0x3]
        %v9440 = vld [vmem:[#allocation15] sm:$0x7]
        %v9442 = vlaneseq
        %v9443 = vshrl.u32 %v9442, 7
        %v9444 = vsub.s32 0, %v9443
        %v9445 = vrot.slane %v9440, %v9444
        %v9446 = vlaneseq
        %v9447 = vshrl.u32 %v9446, 7
        %v9448 = vsub.s32 1, %v9447
        %v9449 = vrot.slane %v9440, %v9448
        %v9450 = vlaneseq
        %v9451 = vshrl.u32 %v9450, 7
        %v9452 = vsub.s32 2, %v9451
        %v9453 = vrot.slane %v9440, %v9452
        %v9583 = vunpack.c.l.b16 %v9314
        %v9584 = vunpack.c.h.b16 %v9314
        %v9585 = vunpack.c.l.b16 %v9315
        %v9586 = vunpack.c.l.b16 %v9316
        %v9587 = vunpack.c.h.b16 %v9316
        %v9588 = vunpack.c.l.b16 %v9317
        %v9589 = vunpack.c.l.b16 %v9318
        %v9590 = vunpack.c.h.b16 %v9318
        %v9591 = vunpack.c.l.b16 %v9319
        %v9592 = vunpack.c.l.b16 %v9320
        %v9593 = vunpack.c.h.b16 %v9320
        %v9594 = vunpack.c.l.b16 %v9321
        %v9595 = vunpack.c.l.b16 %v9322
        %v9596 = vunpack.c.h.b16 %v9322
        %v9597 = vunpack.c.l.b16 %v9323
        %v9598 = vunpack.c.l.b16 %v9324
        %v9599 = vunpack.c.h.b16 %v9324
        %v9600 = vunpack.c.l.b16 %v9325
        %v9601 = vunpack.c.l.b16 %v9326
        %v9602 = vunpack.c.h.b16 %v9326
        %v9603 = vunpack.c.l.b16 %v9327
        %v9604 = vunpack.c.l.b16 %v9328
        %v9605 = vunpack.c.h.b16 %v9328
        %v9606 = vunpack.c.l.b16 %v9329
        %v9607 = vunpack.c.l.b16 %v9330
        %v9608 = vunpack.c.h.b16 %v9330
        %v9609 = vunpack.c.l.b16 %v9331
        %v9610 = vunpack.c.l.b16 %v9332
        %v9611 = vunpack.c.h.b16 %v9332
        %v9612 = vunpack.c.l.b16 %v9333
        %v9613 = vunpack.c.l.b16 %v9334
        %v9614 = vunpack.c.h.b16 %v9334
        %v9615 = vunpack.c.l.b16 %v9335
        %v9616 = vunpack.c.l.b16 %v9336
        %v9617 = vunpack.c.h.b16 %v9336
        %v9618 = vunpack.c.l.b16 %v9337
        %v9619 = vunpack.c.l.b16 %v9338
        %v9620 = vunpack.c.h.b16 %v9338
        %v9621 = vunpack.c.l.b16 %v9339
        %v9622 = vunpack.c.l.b16 %v9340
        %v9623 = vunpack.c.h.b16 %v9340
        %v9624 = vunpack.c.l.b16 %v9341
        %v9625 = vunpack.c.l.b16 %v9342
        %v9626 = vunpack.c.h.b16 %v9342
        %v9627 = vunpack.c.l.b16 %v9343
        %v9628 = vunpack.c.l.b16 %v9344
        %v9629 = vunpack.c.h.b16 %v9344
        %v9630 = vunpack.c.l.b16 %v9345
        %v9631 = vunpack.c.l.b16 %v9346
        %v9632 = vunpack.c.h.b16 %v9346
        %v9633 = vunpack.c.l.b16 %v9347
        %v9634 = vunpack.c.l.b16 %v9348
        %v9635 = vunpack.c.h.b16 %v9348
        %v9636 = vunpack.c.l.b16 %v9349
        %v9637 = vunpack.c.l.b16 %v9350
        %v9638 = vunpack.c.h.b16 %v9350
        %v9639 = vunpack.c.l.b16 %v9351
        %v9640 = vunpack.c.l.b16 %v9352
        %v9641 = vunpack.c.h.b16 %v9352
        %v9642 = vunpack.c.l.b16 %v9353
        %v9643 = vunpack.c.l.b16 %v9354
        %v9644 = vunpack.c.h.b16 %v9354
        %v9645 = vunpack.c.l.b16 %v9355
        %v9646 = vunpack.c.l.b16 %v9356
        %v9647 = vunpack.c.h.b16 %v9356
        %v9648 = vunpack.c.l.b16 %v9357
        %v9649 = vunpack.c.l.b16 %v9358
        %v9650 = vunpack.c.h.b16 %v9358
        %v9651 = vunpack.c.l.b16 %v9359
        %v9652 = vunpack.c.l.b16 %v9360
        %v9653 = vunpack.c.h.b16 %v9360
        %v9654 = vunpack.c.l.b16 %v9361
        %v9655 = vunpack.c.l.b16 %v9362
        %v9656 = vunpack.c.h.b16 %v9362
        %v9657 = vunpack.c.l.b16 %v9363
        %v9658 = vunpack.c.l.b16 %v9364
        %v9659 = vunpack.c.h.b16 %v9364
        %v9660 = vunpack.c.l.b16 %v9365
        %v9661 = vunpack.c.l.b16 %v9366
        %v9662 = vunpack.c.h.b16 %v9366
        %v9663 = vunpack.c.l.b16 %v9367
        %v9664 = vunpack.c.l.b16 %v9368
        %v9665 = vunpack.c.h.b16 %v9368
        %v9666 = vunpack.c.l.b16 %v9369
        %v9667 = vunpack.c.l.b16 %v9370
        %v9668 = vunpack.c.h.b16 %v9370
        %v9669 = vunpack.c.l.b16 %v9371
        %v9670 = vunpack.c.l.b16 %v9372
        %v9671 = vunpack.c.h.b16 %v9372
        %v9672 = vunpack.c.l.b16 %v9373
        %v9673 = vunpack.c.l.b16 %v9374
        %v9674 = vunpack.c.h.b16 %v9374
        %v9675 = vunpack.c.l.b16 %v9375
        %v9676 = vunpack.c.l.b16 %v9376
        %v9677 = vunpack.c.h.b16 %v9376
        %v9678 = vunpack.c.l.b16 %v9377
        %v9679 = vunpack.c.l.b16 %v9378
        %v9680 = vunpack.c.h.b16 %v9378
        %v9681 = vunpack.c.l.b16 %v9379
        %v9682 = vunpack.c.l.b16 %v9380
        %v9683 = vunpack.c.h.b16 %v9380
        %v9684 = vunpack.c.l.b16 %v9381
        %v9685 = vunpack.c.l.b16 %v9382
        %v9686 = vunpack.c.h.b16 %v9382
        %v9687 = vunpack.c.l.b16 %v9383
        %v9688 = vunpack.c.l.b16 %v9384
        %v9689 = vunpack.c.h.b16 %v9384
        %v9690 = vunpack.c.l.b16 %v9385
        %v9691 = vunpack.c.l.b16 %v9386
        %v9692 = vunpack.c.h.b16 %v9386
        %v9693 = vunpack.c.l.b16 %v9387
        %v9694 = vunpack.c.l.b16 %v9388
        %v9695 = vunpack.c.h.b16 %v9388
        %v9696 = vunpack.c.l.b16 %v9389
        %v9697 = vunpack.c.l.b16 %v9390
        %v9698 = vunpack.c.h.b16 %v9390
        %v9699 = vunpack.c.l.b16 %v9391
        %v9700 = vunpack.c.l.b16 %v9392
        %v9701 = vunpack.c.h.b16 %v9392
        %v9702 = vunpack.c.l.b16 %v9393
        %v9703 = vunpack.c.l.b16 %v9394
        %v9704 = vunpack.c.h.b16 %v9394
        %v9705 = vunpack.c.l.b16 %v9395
        %v9706 = vunpack.c.l.b16 %v9396
        %v9707 = vunpack.c.h.b16 %v9396
        %v9708 = vunpack.c.l.b16 %v9397
        %v9709 = vunpack.c.l.b16 %v9398
        %v9710 = vunpack.c.h.b16 %v9398
        %v9711 = vunpack.c.l.b16 %v9399
        %v9712 = vunpack.c.l.b16 %v9400
        %v9713 = vunpack.c.h.b16 %v9400
        %v9714 = vunpack.c.l.b16 %v9401
        %v9715 = vunpack.c.l.b16 %v9402
        %v9716 = vunpack.c.h.b16 %v9402
        %v9717 = vunpack.c.l.b16 %v9403
        %v9718 = vunpack.c.l.b16 %v9404
        %v9719 = vunpack.c.h.b16 %v9404
        %v9720 = vunpack.c.l.b16 %v9405
        %v9721 = vunpack.c.l.b16 %v9406
        %v9722 = vunpack.c.h.b16 %v9406
        %v9723 = vunpack.c.l.b16 %v9407
        %v9724 = vunpack.c.l.b16 %v9408
        %v9725 = vunpack.c.h.b16 %v9408
        %v9726 = vunpack.c.l.b16 %v9409
        %v9727 = vunpack.c.l.b16 %v9410
        %v9728 = vunpack.c.h.b16 %v9410
        %v9729 = vunpack.c.l.b16 %v9411
        %v9730 = vunpack.c.l.b16 %v9412
        %v9731 = vunpack.c.h.b16 %v9412
        %v9732 = vunpack.c.l.b16 %v9413
        %v9733 = vunpack.c.l.b16 %v9414
        %v9734 = vunpack.c.h.b16 %v9414
        %v9735 = vunpack.c.l.b16 %v9415
        %v9736 = vunpack.c.l.b16 %v9416
        %v9737 = vunpack.c.h.b16 %v9416
        %v9738 = vunpack.c.l.b16 %v9417
        %v9739 = vunpack.c.l.b16 %v9418
        %v9740 = vunpack.c.h.b16 %v9418
        %v9741 = vunpack.c.l.b16 %v9419
        %v9742 = vunpack.c.l.b16 %v9420
        %v9743 = vunpack.c.h.b16 %v9420
        %v9744 = vunpack.c.l.b16 %v9421
        %v9745 = vunpack.c.l.b16 %v9422
        %v9746 = vunpack.c.h.b16 %v9422
        %v9747 = vunpack.c.l.b16 %v9423
        %v9748 = vunpack.c.l.b16 %v9424
        %v9749 = vunpack.c.h.b16 %v9424
        %v9750 = vunpack.c.l.b16 %v9425
        %v9751 = vunpack.c.l.b16 %v9426
        %v9752 = vunpack.c.h.b16 %v9426
        %v9753 = vunpack.c.l.b16 %v9427
        %v9754 = vunpack.c.l.b16 %v9428
        %v9755 = vunpack.c.h.b16 %v9428
        %v9756 = vunpack.c.l.b16 %v9429
        %v9757 = vunpack.c.l.b16 %v9430
        %v9758 = vunpack.c.h.b16 %v9430
        %v9759 = vunpack.c.l.b16 %v9431
        %v9760 = vunpack.c.l.b16 %v9432
        %v9761 = vunpack.c.h.b16 %v9432
        %v9762 = vunpack.c.l.b16 %v9433
        %v9763 = vunpack.c.l.b16 %v9434
        %v9764 = vunpack.c.h.b16 %v9434
        %v9765 = vunpack.c.l.b16 %v9435
        %v9766 = vunpack.c.l.b16 %v9436
        %v9767 = vunpack.c.h.b16 %v9436
        %v9768 = vunpack.c.l.b16 %v9437
        %v9769 = vunpack.c.l.b16 %v9438
        %v9770 = vunpack.c.h.b16 %v9438
        %v9771 = vunpack.c.l.b16 %v9439
        %v9772 = vpack.c.b16 %v9586, %v9583
        %v9773 = vpack.c.b16 %v9587, %v9584
        %v9774 = vpack.c.b16 %v9588, %v9585
        %v9775 = vpack.c.b16 %v9592, %v9589
        %v9776 = vpack.c.b16 %v9593, %v9590
        %v9777 = vpack.c.b16 %v9594, %v9591
        %v9778 = vpack.c.b16 %v9598, %v9595
        %v9779 = vpack.c.b16 %v9599, %v9596
        %v9780 = vpack.c.b16 %v9600, %v9597
        %v9781 = vpack.c.b16 %v9604, %v9601
        %v9782 = vpack.c.b16 %v9605, %v9602
        %v9783 = vpack.c.b16 %v9606, %v9603
        %v9784 = vpack.c.b16 %v9610, %v9607
        %v9785 = vpack.c.b16 %v9611, %v9608
        %v9786 = vpack.c.b16 %v9612, %v9609
        %v9787 = vpack.c.b16 %v9616, %v9613
        %v9788 = vpack.c.b16 %v9617, %v9614
        %v9789 = vpack.c.b16 %v9618, %v9615
        %v9790 = vpack.c.b16 %v9622, %v9619
        %v9791 = vpack.c.b16 %v9623, %v9620
        %v9792 = vpack.c.b16 %v9624, %v9621
        %v9793 = vpack.c.b16 %v9628, %v9625
        %v9794 = vpack.c.b16 %v9629, %v9626
        %v9795 = vpack.c.b16 %v9630, %v9627
        %v9796 = vpack.c.b16 %v9634, %v9631
        %v9797 = vpack.c.b16 %v9635, %v9632
        %v9798 = vpack.c.b16 %v9636, %v9633
        %v9799 = vpack.c.b16 %v9640, %v9637
        %v9800 = vpack.c.b16 %v9641, %v9638
        %v9801 = vpack.c.b16 %v9642, %v9639
        %v9802 = vpack.c.b16 %v9646, %v9643
        %v9803 = vpack.c.b16 %v9647, %v9644
        %v9804 = vpack.c.b16 %v9648, %v9645
        %v9805 = vpack.c.b16 %v9652, %v9649
        %v9806 = vpack.c.b16 %v9653, %v9650
        %v9807 = vpack.c.b16 %v9654, %v9651
        %v9808 = vpack.c.b16 %v9658, %v9655
        %v9809 = vpack.c.b16 %v9659, %v9656
        %v9810 = vpack.c.b16 %v9660, %v9657
        %v9811 = vpack.c.b16 %v9664, %v9661
        %v9812 = vpack.c.b16 %v9665, %v9662
        %v9813 = vpack.c.b16 %v9666, %v9663
        %v9814 = vpack.c.b16 %v9670, %v9667
        %v9815 = vpack.c.b16 %v9671, %v9668
        %v9816 = vpack.c.b16 %v9672, %v9669
        %v9817 = vpack.c.b16 %v9676, %v9673
        %v9818 = vpack.c.b16 %v9677, %v9674
        %v9819 = vpack.c.b16 %v9678, %v9675
        %v9820 = vpack.c.b16 %v9682, %v9679
        %v9821 = vpack.c.b16 %v9683, %v9680
        %v9822 = vpack.c.b16 %v9684, %v9681
        %v9823 = vpack.c.b16 %v9688, %v9685
        %v9824 = vpack.c.b16 %v9689, %v9686
        %v9825 = vpack.c.b16 %v9690, %v9687
        %v9826 = vpack.c.b16 %v9694, %v9691
        %v9827 = vpack.c.b16 %v9695, %v9692
        %v9828 = vpack.c.b16 %v9696, %v9693
        %v9829 = vpack.c.b16 %v9700, %v9697
        %v9830 = vpack.c.b16 %v9701, %v9698
        %v9831 = vpack.c.b16 %v9702, %v9699
        %v9832 = vpack.c.b16 %v9706, %v9703
        %v9833 = vpack.c.b16 %v9707, %v9704
        %v9834 = vpack.c.b16 %v9708, %v9705
        %v9835 = vpack.c.b16 %v9712, %v9709
        %v9836 = vpack.c.b16 %v9713, %v9710
        %v9837 = vpack.c.b16 %v9714, %v9711
        %v9838 = vpack.c.b16 %v9718, %v9715
        %v9839 = vpack.c.b16 %v9719, %v9716
        %v9840 = vpack.c.b16 %v9720, %v9717
        %v9841 = vpack.c.b16 %v9724, %v9721
        %v9842 = vpack.c.b16 %v9725, %v9722
        %v9843 = vpack.c.b16 %v9726, %v9723
        %v9844 = vpack.c.b16 %v9730, %v9727
        %v9845 = vpack.c.b16 %v9731, %v9728
        %v9846 = vpack.c.b16 %v9732, %v9729
        %v9847 = vpack.c.b16 %v9736, %v9733
        %v9848 = vpack.c.b16 %v9737, %v9734
        %v9849 = vpack.c.b16 %v9738, %v9735
        %v9850 = vpack.c.b16 %v9742, %v9739
        %v9851 = vpack.c.b16 %v9743, %v9740
        %v9852 = vpack.c.b16 %v9744, %v9741
        %v9853 = vpack.c.b16 %v9748, %v9745
        %v9854 = vpack.c.b16 %v9749, %v9746
        %v9855 = vpack.c.b16 %v9750, %v9747
        %v9856 = vpack.c.b16 %v9754, %v9751
        %v9857 = vpack.c.b16 %v9755, %v9752
        %v9858 = vpack.c.b16 %v9756, %v9753
        %v9859 = vpack.c.b16 %v9760, %v9757
        %v9860 = vpack.c.b16 %v9761, %v9758
        %v9861 = vpack.c.b16 %v9762, %v9759
        %v9862 = vpack.c.b16 %v9766, %v9763
        %v9863 = vpack.c.b16 %v9767, %v9764
        %v9864 = vpack.c.b16 %v9768, %v9765
        %v9865 = vpack.c.b16 %v9769, %v9769
        %v9866 = vpack.c.b16 %v9770, %v9770
        %v9867 = vpack.c.b16 %v9771, %v9771
        %vm9961 = vcmask 949248
        %v9963 = vsel %vm9961, %v9313, 0
        %vm9965 = vcmask 1041408
        %v9967 = vsel %vm9965, %v9865, 0
        %v9970 = vsel %vm9965, %v9866, 0
        %v9973 = vsel %vm9965, %v9867, 0
        %9975 = vmatprep.subr.bf16.mxu0 %v9794
        %9976 = vmatpush1.bf16.msra.mxu0 %v9793
        %9977 = vmatprep.subr.bf16.mxu0 %v9791
        %9978 = vmatpush1.bf16.msra.mxu0 %v9790
        %9979 = vmatprep.subr.bf16.mxu0 %v9788
        %9980 = vmatpush1.bf16.msra.mxu0 %v9787
        %9981 = vmatprep.subr.bf16.mxu0 %v9785
        %9982 = vmatpush1.bf16.msra.mxu0 %v9784
        %9983 = vmatprep.subr.bf16.mxu0 %v9782
        %9984 = vmatpush1.bf16.msra.mxu0 %v9781
        %9985 = vmatprep.subr.bf16.mxu0 %v9779
        %9986 = vmatpush1.bf16.msra.mxu0 %v9778
        %9987 = vmatprep.subr.bf16.mxu0 %v9776
        %9988 = vmatpush1.bf16.msra.mxu0 %v9775
        %9989 = vmatprep.subr.bf16.mxu0 %v9773
        %9990 = vmatpush1.bf16.msra.mxu0 %v9772
        %9991 = vmatprep.subr.bf16.mxu0 %v9818
        %9992 = vmatpush2.bf16.msra.mxu0 %v9817
        %9993 = vmatprep.subr.bf16.mxu0 %v9815
        %9994 = vmatpush2.bf16.msra.mxu0 %v9814
        %9995 = vmatprep.subr.bf16.mxu0 %v9812
        %9996 = vmatpush2.bf16.msra.mxu0 %v9811
        %9997 = vmatprep.subr.bf16.mxu0 %v9809
        %9998 = vmatpush2.bf16.msra.mxu0 %v9808
        %9999 = vmatprep.subr.bf16.mxu0 %v9806
        %10000 = vmatpush2.bf16.msra.mxu0 %v9805
        %10001 = vmatprep.subr.bf16.mxu0 %v9803
        %10002 = vmatpush2.bf16.msra.mxu0 %v9802
        %10003 = vmatprep.subr.bf16.mxu0 %v9800
        %10004 = vmatpush2.bf16.msra.mxu0 %v9799
        %10005 = vmatprep.subr.bf16.mxu0 %v9797
        %10006 = vmatpush2.bf16.msra.mxu0 %v9796
        %10007 = vmatprep.mubr.bf16.mxu0 %v9311
        %10008 = vmatmul.mubr.bf16.gmra.mxu0 %v9310
        %v10009 = vpop.f32.mrf.mxu0
        %v10010 = vadd.f32 %v9445, %v10009
        %v10011 = vpop.f32.mrf.mxu0
        %v10012 = vadd.f32 %v9449, %v10011
        %v10013 = vpop.f32.mrf.mxu0
        %v10014 = vadd.f32 %v9445, %v10013
        %v10015 = vpop.f32.mrf.mxu0
        %v10016 = vadd.f32 %v9449, %v10015
        %10017 = vdwg.mxu0
        %10018 = vmatprep.subr.bf16.mxu0 %v9842
        %10019 = vmatpush1.bf16.msra.mxu0 %v9841
        %10020 = vmatprep.subr.bf16.mxu0 %v9839
        %10021 = vmatpush1.bf16.msra.mxu0 %v9838
        %10022 = vmatprep.subr.bf16.mxu0 %v9836
        %10023 = vmatpush1.bf16.msra.mxu0 %v9835
        %10024 = vmatprep.subr.bf16.mxu0 %v9833
        %10025 = vmatpush1.bf16.msra.mxu0 %v9832
        %10026 = vmatprep.subr.bf16.mxu0 %v9830
        %10027 = vmatpush1.bf16.msra.mxu0 %v9829
        %10028 = vmatprep.subr.bf16.mxu0 %v9827
        %10029 = vmatpush1.bf16.msra.mxu0 %v9826
        %10030 = vmatprep.subr.bf16.mxu0 %v9824
        %10031 = vmatpush1.bf16.msra.mxu0 %v9823
        %10032 = vmatprep.subr.bf16.mxu0 %v9821
        %10033 = vmatpush1.bf16.msra.mxu0 %v9820
        %10034 = vmatprep.subr.bf16.mxu0 %v9970
        %10035 = vmatpush2.bf16.msra.mxu0 %v9967
        %10036 = vmatprep.subr.bf16.mxu0 %v9863
        %10037 = vmatpush2.bf16.msra.mxu0 %v9862
        %10038 = vmatprep.subr.bf16.mxu0 %v9860
        %10039 = vmatpush2.bf16.msra.mxu0 %v9859
        %10040 = vmatprep.subr.bf16.mxu0 %v9857
        %10041 = vmatpush2.bf16.msra.mxu0 %v9856
        %10042 = vmatprep.subr.bf16.mxu0 %v9854
        %10043 = vmatpush2.bf16.msra.mxu0 %v9853
        %10044 = vmatprep.subr.bf16.mxu0 %v9851
        %10045 = vmatpush2.bf16.msra.mxu0 %v9850
        %10046 = vmatprep.subr.bf16.mxu0 %v9848
        %10047 = vmatpush2.bf16.msra.mxu0 %v9847
        %10048 = vmatprep.subr.bf16.mxu0 %v9845
        %10049 = vmatpush2.bf16.msra.mxu0 %v9844
        %10050 = vmatprep.mubr.bf16.mxu0 %v9963
        %10051 = vmatmul.mubr.bf16.gmra.mxu0 %v9312
        %v10052 = vpop.f32.mrf.mxu0
        %v10053 = vadd.f32 %v10010, %v10052
        %v10054 = vpop.f32.mrf.mxu0
        %v10055 = vadd.f32 %v10012, %v10054
        %v10056 = vpop.f32.mrf.mxu0
        %v10057 = vadd.f32 %v10014, %v10056
        %v10058 = vpop.f32.mrf.mxu0
        %v10059 = vadd.f32 %v10016, %v10058
        %10060 = vdwg.mxu0
        %10061 = vmatprep.subr.bf16.mxu0 0
        %10062 = vmatpush1.bf16.msra.mxu0 %v9795
        %10063 = vmatprep.subr.bf16.mxu0 0
        %10064 = vmatpush1.bf16.msra.mxu0 %v9792
        %10065 = vmatprep.subr.bf16.mxu0 0
        %10066 = vmatpush1.bf16.msra.mxu0 %v9789
        %10067 = vmatprep.subr.bf16.mxu0 0
        %10068 = vmatpush1.bf16.msra.mxu0 %v9786
        %10069 = vmatprep.subr.bf16.mxu0 0
        %10070 = vmatpush1.bf16.msra.mxu0 %v9783
        %10071 = vmatprep.subr.bf16.mxu0 0
        %10072 = vmatpush1.bf16.msra.mxu0 %v9780
        %10073 = vmatprep.subr.bf16.mxu0 0
        %10074 = vmatpush1.bf16.msra.mxu0 %v9777
        %10075 = vmatprep.subr.bf16.mxu0 0
        %10076 = vmatpush1.bf16.msra.mxu0 %v9774
        %10077 = vmatprep.subr.bf16.mxu0 0
        %10078 = vmatpush2.bf16.msra.mxu0 %v9819
        %10079 = vmatprep.subr.bf16.mxu0 0
        %10080 = vmatpush2.bf16.msra.mxu0 %v9816
        %10081 = vmatprep.subr.bf16.mxu0 0
        %10082 = vmatpush2.bf16.msra.mxu0 %v9813
        %10083 = vmatprep.subr.bf16.mxu0 0
        %10084 = vmatpush2.bf16.msra.mxu0 %v9810
        %10085 = vmatprep.subr.bf16.mxu0 0
        %10086 = vmatpush2.bf16.msra.mxu0 %v9807
        %10087 = vmatprep.subr.bf16.mxu0 0
        %10088 = vmatpush2.bf16.msra.mxu0 %v9804
        %10089 = vmatprep.subr.bf16.mxu0 0
        %10090 = vmatpush2.bf16.msra.mxu0 %v9801
        %10091 = vmatprep.subr.bf16.mxu0 0
        %10092 = vmatpush2.bf16.msra.mxu0 %v9798
        %10093 = vmatprep.mubr.bf16.mxu0 %v9311
        %10094 = vmatmul.mubr.bf16.gmra.mxu0 %v9310
        %v10095 = vpop.f32.mrf.mxu0
        %v10096 = vadd.f32 %v9453, %v10095
        %v10097 = vpop.f32.mrf.mxu0
        %v10098 = vpop.f32.mrf.mxu0
        %v10099 = vadd.f32 %v9453, %v10098
        %v10100 = vpop.f32.mrf.mxu0
        %10101 = vdwg.mxu0
        %10102 = vmatprep.subr.bf16.mxu0 0
        %10103 = vmatpush1.bf16.msra.mxu0 %v9843
        %10104 = vmatprep.subr.bf16.mxu0 0
        %10105 = vmatpush1.bf16.msra.mxu0 %v9840
        %10106 = vmatprep.subr.bf16.mxu0 0
        %10107 = vmatpush1.bf16.msra.mxu0 %v9837
        %10108 = vmatprep.subr.bf16.mxu0 0
        %10109 = vmatpush1.bf16.msra.mxu0 %v9834
        %10110 = vmatprep.subr.bf16.mxu0 0
        %10111 = vmatpush1.bf16.msra.mxu0 %v9831
        %10112 = vmatprep.subr.bf16.mxu0 0
        %10113 = vmatpush1.bf16.msra.mxu0 %v9828
        %10114 = vmatprep.subr.bf16.mxu0 0
        %10115 = vmatpush1.bf16.msra.mxu0 %v9825
        %10116 = vmatprep.subr.bf16.mxu0 0
        %10117 = vmatpush1.bf16.msra.mxu0 %v9822
        %10118 = vmatprep.subr.bf16.mxu0 0
        %10119 = vmatpush2.bf16.msra.mxu0 %v9973
        %10120 = vmatprep.subr.bf16.mxu0 0
        %10121 = vmatpush2.bf16.msra.mxu0 %v9864
        %10122 = vmatprep.subr.bf16.mxu0 0
        %10123 = vmatpush2.bf16.msra.mxu0 %v9861
        %10124 = vmatprep.subr.bf16.mxu0 0
        %10125 = vmatpush2.bf16.msra.mxu0 %v9858
        %10126 = vmatprep.subr.bf16.mxu0 0
        %10127 = vmatpush2.bf16.msra.mxu0 %v9855
        %10128 = vmatprep.subr.bf16.mxu0 0
        %10129 = vmatpush2.bf16.msra.mxu0 %v9852
        %10130 = vmatprep.subr.bf16.mxu0 0
        %10131 = vmatpush2.bf16.msra.mxu0 %v9849
        %10132 = vmatprep.subr.bf16.mxu0 0
        %10133 = vmatpush2.bf16.msra.mxu0 %v9846
        %10134 = vmatprep.mubr.bf16.mxu0 %v9963
        %10135 = vmatmul.mubr.bf16.gmra.mxu0 %v9312
        %v10136 = vpop.f32.mrf.mxu0
        %v10137 = vadd.f32 %v10096, %v10136
        %v10138 = vpop.f32.mrf.mxu0
        %v10139 = vpop.f32.mrf.mxu0
        %v10140 = vadd.f32 %v10099, %v10139
        %v10141 = vpop.f32.mrf.mxu0
        %10142 = vdwg.mxu0
        %v10143 = vmax.f32 %v10053, 0.0
        %v10144 = vmax.f32 %v10055, 0.0
        %v10145 = vmax.f32 %v10137, 0.0
        %v10146 = vmax.f32 %v10057, 0.0
        %v10147 = vmax.f32 %v10059, 0.0
        %v10148 = vmax.f32 %v10140, 0.0
        %v10149 = vpack.c.bf16 %v10146, %v10143
        %v10150 = vpack.c.bf16 %v10147, %v10144
        %v10151 = vpack.c.bf16 %v10148, %v10145
        %v10155 = vunpack.c.l.b16 %v10149
        %v10156 = vunpack.c.l.b16 %v10150
        %v10157 = vunpack.c.l.b16 %v10151
        %v10158 = vunpack.c.h.b16 %v10149
        %v10159 = vunpack.c.h.b16 %v10150
        %v10160 = vunpack.c.h.b16 %v10151
        %v10161 = vpack.c.b16 %v10156, %v10155
        %v10162 = vpack.c.b16 %v10157, %v10157
        %v10163 = vpack.c.b16 %v10159, %v10158
        %v10164 = vpack.c.b16 %v10160, %v10160
        %10169 = vst [vmem:[%s518] sm:$0xff] %v10161
        %vm10170 = vcmask 27648
        %10171 = vst.msk [vmem:[%s518 + $0x8] sm:$0xf] %vm10170, %v10162
        %vm10172 = vcmask 1042432
        %vm10173 = vsmask.f32 2304
        %vm10174 = vmand %vm10172, %vm10173
        %vm10175 = vcmask 1046532
        %vm10176 = vmand %vm10175, %vm1693
        %vm10177 = vmor %vm10176, %vm10174
        %v10178 = vld [vmem:[%s518 + $0xc] sm:$0x77]
        %v10179 = vsel %vm10177, %v10163, %v10178
        %10180 = vst [vmem:[%s518 + $0xc] sm:$0x77] %v10179
        %vm10181 = vcmask 26624
        %vm10182 = vmand %vm10181, %vm10173
        %v10183 = vld [vmem:[%s518 + $0x14] sm:$0x7]
        %v10184 = vsel %vm10182, %v10164, %v10183
        %10185 = vst [vmem:[%s518 + $0x14] sm:$0x7] %v10184
        %p10186 = scmp.lt.s32.totalorder %s29, 1
        %s10187 = scalar_select %p10186, %s29, 1
        %s10188 = smul.addr %s10187, 6
        %s10189 = smul.addr %s10188, 4
        %s10190 = scalar_lea.vmem %s11, %s10189
        // Predicated region
        $region101: #{cnn_mnist_forward.2} parent=63 // pred_check
          %p10191 = pneg %p283
        $region102: #{cnn_mnist_forward.2} parent=63 // pred_check_branch
          %10193 = sbr.rel (%p10191) target = $region104
        $region103: #{cnn_mnist_forward.2} parent=63 // pred_region
          _
        $region104: #{cnn_mnist_forward.2} parent=63 // pred_fallthru
          _
      $region64: #{cnn_mnist_forward.2} parent=5 // pred_fallthru
        _
      %p10194 = scmp.le.s32.totalorder 2, %s24
      // Predicated region
      $region105: #{cnn_mnist_forward.2} parent=5 // pred_check
        %p10195 = pneg %p10194
      $region106: #{cnn_mnist_forward.2} parent=5 // pred_check_branch
        %10197 = sbr.rel (%p10195) target = $region108
      $region107: #{cnn_mnist_forward.2} parent=5 // pred_region
        %s10198 = ssub.s32 %s24, 2
        // Predicated region
        $region109: #{cnn_mnist_forward.2} parent=107 // pred_check
          %p10199 = pneg %p289
        $region110: #{cnn_mnist_forward.2} parent=107 // pred_check_branch
          %10201 = sbr.rel (%p10199) target = $region112
        $region111: #{cnn_mnist_forward.2} parent=107 // pred_region
          %p10202 = scmp.lt.s32.totalorder %s30, 1
          %s10203 = scalar_select %p10202, %s30, 1
          %s10204 = smul.addr %s10203, 6
          %s10205 = smul.addr %s10204, 4
          %s10206 = scalar_lea.vmem %s11, %s10205
        $region112: #{cnn_mnist_forward.2} parent=107 // pred_fallthru
          _
      $region108: #{cnn_mnist_forward.2} parent=5 // pred_fallthru
        _
    $region6: #{cnn_mnist_forward.2} parent=1 // loop_footer
      %s28 = sadd.s32 1, %s24
    $region7: #{cnn_mnist_forward.2} parent=1 // loop_footer_branch
      %23 = sbr.rel target = $region3
    $region8: #{cnn_mnist_forward.2} parent=1 // loop_exit
      _
    %10207 = vsyncpa [#allocation3], 1
    %s10208 = scalar_lea.sflag [#allocation3], 1
    %10209 = vsyncpa %s10208, 1
    %10210 = vsyncpa [#allocation5], 1
    %10211 = vsyncpa [#allocation8], 1
    %10212 = vsyncpa [#allocation11], 1
    %10213 = vsyncpa [#allocation14], 1

</llo_original>
